<compile_context>
chip_gen: v7x
topology: tpu7x:2x2x1
jax: 0.10.0
libtpu: 0.0.40
codegen_flags: <defaults>
</compile_context>

<pallas_src>
import functools
import math

import jax
import jax.numpy as jnp
from jax import lax
from jax.experimental import pallas as pl
from jax.experimental.pallas import tpu as pltpu


# ----------------------------- in-kernel helpers -----------------------------

def _layer_norm(x, gamma, beta, eps=1e-5):
    # PyTorch nn.LayerNorm: biased variance, eps inside rsqrt.
    mean = jnp.mean(x, axis=-1, keepdims=True)
    var = jnp.mean(jnp.square(x - mean), axis=-1, keepdims=True)
    return (x - mean) * lax.rsqrt(var + eps) * gamma + beta


def _gelu_tanh(x):
    # tanh-form GELU (EUP); |diff| vs exact erf GELU < ~1e-3.
    c = 0.7978845608028654  # sqrt(2/pi)
    return 0.5 * x * (1.0 + jnp.tanh(c * (x + 0.044715 * x * x * x)))


def _softmax_last(x):
    x = x - jnp.max(x, axis=-1, keepdims=True)
    e = jnp.exp(x)
    return e / jnp.sum(e, axis=-1, keepdims=True)


# --------------------------------- kernel ------------------------------------

def transformer_kernel(x_ref,
                       wq_ref, wk_ref, wv_ref, wo_ref, bo_ref,
                       ln1_g_ref, ln1_b_ref,
                       wf1_ref, bf1_ref, wf2_ref, bf2_ref,
                       ln2_g_ref, ln2_b_ref,
                       out_ref, *, depth, heads):
    x = x_ref[0]                           # (N, D) float32 residual stream
    n, d = x.shape

    # depth is a small compile-time constant -> static Python unroll, static ref indices.
    for l in range(depth):
        # ---- Residual(PreNorm(Attention)) ----
        xn = _layer_norm(x, ln1_g_ref[l], ln1_b_ref[l])                        # (N, D) f32
        xnb = jnp.broadcast_to(xn.astype(jnp.bfloat16)[None], (heads, n, d))   # (H, N, D) bf16

        # Head-major weight stacks: wq/wk/wv are (H, D, dh); scale pre-folded into wq.
        q = jnp.einsum('hnd,hdf->hnf', xnb, wq_ref[l],
                       preferred_element_type=jnp.float32).astype(jnp.bfloat16)  # (H, N, dh)
        k = jnp.einsum('hnd,hdf->hnf', xnb, wk_ref[l],
                       preferred_element_type=jnp.float32).astype(jnp.bfloat16)
        v = jnp.einsum('hnd,hdf->hnf', xnb, wv_ref[l],
                       preferred_element_type=jnp.float32).astype(jnp.bfloat16)

        dots = jnp.einsum('hqf,hkf->hqk', q, k,
                          preferred_element_type=jnp.float32)                   # (H, N, N) f32
        attn = _softmax_last(dots).astype(jnp.bfloat16)

        ctx = jnp.einsum('hqk,hkf->hqf', attn, v,
                         preferred_element_type=jnp.float32).astype(jnp.bfloat16)  # (H, N, dh)

        # Per-head output projection summed over heads == concat(heads) @ W_out.
        proj = jnp.einsum('hqf,hfd->hqd', ctx, wo_ref[l],
                          preferred_element_type=jnp.float32)                   # (H, N, D) f32
        x = x + jnp.sum(proj, axis=0) + bo_ref[l]

        # ---- Residual(PreNorm(FeedForward)) ----
        xn2 = _layer_norm(x, ln2_g_ref[l], ln2_b_ref[l])
        h1 = jnp.dot(xn2.astype(jnp.bfloat16), wf1_ref[l],
                     preferred_element_type=jnp.float32) + bf1_ref[l]
        h1 = _gelu_tanh(h1)
        h2 = jnp.dot(h1.astype(jnp.bfloat16), wf2_ref[l],
                     preferred_element_type=jnp.float32) + bf2_ref[l]
        x = x + h2

    out_ref[0] = x.astype(out_ref.dtype)


# -------------------------------- wrapper -------------------------------------

def pack_params(params, heads):
    """Stack per-layer PyTorch-style params into head-major, depth-stacked weights (bf16)."""
    D = params[0]["w_qkv"].shape[0]
    dh = D // heads
    scale = float(D) ** (-0.5)      # PyTorch module uses dim**-0.5 (not head_dim**-0.5)

    def per_head(w2d):              # (D, D) with columns ordered (h, d) -> (heads, D, dh)
        return w2d.reshape(D, heads, dh).transpose(1, 0, 2)

    wq, wk, wv, wo = [], [], [], []
    bo, ln1g, ln1b, ln2g, ln2b = [], [], [], [], []
    wf1, bf1, wf2, bf2 = [], [], [], []
    for p in params:
        wq.append(per_head(p["w_qkv"][:, :D] * scale))       # scale folded into Q
        wk.append(per_head(p["w_qkv"][:, D:2 * D]))
        wv.append(per_head(p["w_qkv"][:, 2 * D:3 * D]))
        wo.append(p["w_out"].reshape(heads, dh, D))           # rows ordered (h, d)
        bo.append(p["b_out"])
        ln1g.append(p["ln1_g"]); ln1b.append(p["ln1_b"])
        ln2g.append(p["ln2_g"]); ln2b.append(p["ln2_b"])
        wf1.append(p["w_f1"]); bf1.append(p["b_f1"])
        wf2.append(p["w_f2"]); bf2.append(p["b_f2"])

    bf16 = lambda xs: jnp.stack(xs).astype(jnp.bfloat16)
    f32 = lambda xs: jnp.stack(xs).astype(jnp.float32)
    return {
        "wq": bf16(wq), "wk": bf16(wk), "wv": bf16(wv), "wo": bf16(wo),
        "bo": f32(bo),
        "ln1_g": f32(ln1g), "ln1_b": f32(ln1b),
        "wf1": bf16(wf1), "bf1": f32(bf1),
        "wf2": bf16(wf2), "bf2": f32(bf2),
        "ln2_g": f32(ln2g), "ln2_b": f32(ln2b),
    }


def transformer_forward(x, packed, heads):
    B, N, D = x.shape
    depth = packed["wq"].shape[0]
    kernel = functools.partial(transformer_kernel, depth=depth, heads=heads)

    operands = (packed["wq"], packed["wk"], packed["wv"], packed["wo"], packed["bo"],
                packed["ln1_g"], packed["ln1_b"],
                packed["wf1"], packed["bf1"], packed["wf2"], packed["bf2"],
                packed["ln2_g"], packed["ln2_b"])

    def full_spec(a):
        nd = a.ndim
        # Constant block index -> DMA'd once, resident in VMEM across all grid steps.
        return pl.BlockSpec(a.shape, lambda b, nd=nd: (0,) * nd)

    in_specs = [pl.BlockSpec((1, N, D), lambda b: (b, 0, 0))] + [full_spec(a) for a in operands]

    return pl.pallas_call(
        kernel,
        out_shape=jax.ShapeDtypeStruct((B, N, D), x.dtype),
        grid=(B,),
        in_specs=in_specs,
        out_specs=pl.BlockSpec((1, N, D), lambda b: (b, 0, 0)),
        # Batch axis is independent -> "parallel" (megacore on v7x); layer loop is sequential
        # inside the kernel because of the residual dependency.
        compiler_params=pltpu.CompilerParams(dimension_semantics=("parallel",)),
    )(x, *operands)


# ------------------------- deterministic param init ---------------------------

def init_params(key, dim, depth, mlp_dim):
    params = []
    for _ in range(depth):
        key, *ks = jax.random.split(key, 7)
        p = {
            # Linear weights stored as (in, out); biases / LN params as (1, out).
            "w_qkv": 0.05 * jax.random.normal(ks[0], (dim, 3 * dim), jnp.float32),
            "w_out": 0.05 * jax.random.normal(ks[1], (dim, dim), jnp.float32),
            "b_out": 0.05 * jax.random.normal(ks[2], (1, dim), jnp.float32),
            "ln1_g": jnp.ones((1, dim), jnp.float32),
            "ln1_b": jnp.zeros((1, dim), jnp.float32),
            "w_f1": 0.05 * jax.random.normal(ks[3], (dim, mlp_dim), jnp.float32),
            "b_f1": 0.05 * jax.random.normal(ks[4], (1, mlp_dim), jnp.float32),
            "w_f2": 0.05 * jax.random.normal(ks[5], (mlp_dim, dim), jnp.float32),
            "b_f2": jnp.zeros((1, dim), jnp.float32),
            "ln2_g": jnp.ones((1, dim), jnp.float32),
            "ln2_b": jnp.zeros((1, dim), jnp.float32),
        }
        params.append(p)
    return params


# ------------------------------ pure-JAX reference ----------------------------

def transformer_ref(x, params, heads):
    for p in params:
        B, N, D = x.shape
        dh = D // heads
        scale = float(D) ** (-0.5)

        def ln(t, g, b):
            m = jnp.mean(t, axis=-1, keepdims=True)
            v = jnp.mean(jnp.square(t - m), axis=-1, keepdims=True)
            return (t - m) / jnp.sqrt(v + 1e-5) * g + b

        xn = ln(x, p["ln1_g"][0], p["ln1_b"][0])
        qkv = xn @ p["w_qkv"]
        q, k, v = (qkv[..., i * D:(i + 1) * D] for i in range(3))
        sh = lambda t: t.reshape(B, N, heads, dh).transpose(0, 2, 1, 3)
        q, k, v = sh(q), sh(k), sh(v)
        dots = jnp.einsum('bhid,bhjd->bhij', q, k) * scale
        attn = jax.nn.softmax(dots, axis=-1)
        out = jnp.einsum('bhij,bhjd->bhid', attn, v)
        out = out.transpose(0, 2, 1, 3).reshape(B, N, D)
        x = x + (out @ p["w_out"] + p["b_out"][0])

        xn2 = ln(x, p["ln2_g"][0], p["ln2_b"][0])
        h1 = jax.nn.gelu(xn2 @ p["w_f1"] + p["b_f1"][0], approximate=False)
        x = x + (h1 @ p["w_f2"] + p["b_f2"][0])
    return x


# ---------------------------------- main ---------------------------------------

if __name__ == "__main__":
    B, N = 2, 16          # batch, sequence length
    DIM, DEPTH, HEADS, MLP_DIM = 64, 2, 8, 128

    key = jax.random.PRNGKey(0)
    kx, kp = jax.random.split(key)
    x = jax.random.normal(kx, (B, N, DIM), jnp.float32)
    params = init_params(kp, DIM, DEPTH, MLP_DIM)
    packed = pack_params(params, HEADS)

    y = transformer_forward(x, packed, HEADS)
    y = jax.block_until_ready(y)

    y_ref = jax.block_until_ready(transformer_ref(x, params, HEADS))
    assert y.shape == (B, N, DIM)
    # bf16 MXU inputs (f32 accumulation) + tanh-GELU vs exact-f32 reference: ~1e-3 level diffs.
    assert jnp.allclose(y, y_ref, rtol=2e-2, atol=2e-2), "mismatch vs reference"

    print("KERNEL_OK")
</pallas_src>

<mosaic_0001>
module attributes {stable_mosaic.version = 11 : i64} {
  func.func @transformer_kernel(%arg0: i32, %arg1: memref<1x16x64xf32, #tpu.memory_space<vmem>>, %arg2: memref<2x8x64x8xbf16, #tpu.memory_space<vmem>>, %arg3: memref<2x8x64x8xbf16, #tpu.memory_space<vmem>>, %arg4: memref<2x8x64x8xbf16, #tpu.memory_space<vmem>>, %arg5: memref<2x8x8x64xbf16, #tpu.memory_space<vmem>>, %arg6: memref<2x1x64xf32, #tpu.memory_space<vmem>>, %arg7: memref<2x1x64xf32, #tpu.memory_space<vmem>>, %arg8: memref<2x1x64xf32, #tpu.memory_space<vmem>>, %arg9: memref<2x64x128xbf16, #tpu.memory_space<vmem>>, %arg10: memref<2x1x128xf32, #tpu.memory_space<vmem>>, %arg11: memref<2x128x64xbf16, #tpu.memory_space<vmem>>, %arg12: memref<2x1x64xf32, #tpu.memory_space<vmem>>, %arg13: memref<2x1x64xf32, #tpu.memory_space<vmem>>, %arg14: memref<2x1x64xf32, #tpu.memory_space<vmem>>, %arg15: memref<1x16x64xf32, #tpu.memory_space<vmem>>) attributes {dimension_semantics = [#tpu.dimension_semantics<parallel>], iteration_bounds = array<i64: 2>, scalar_prefetch = 0 : i64, scratch_operands = 0 : i64, tpu.core_type = #tpu.core_type<tc>, window_params = [{transform_indices = @transform_0, window_bounds = array<i64: 1, 16, 64>}, {pipeline_mode = #tpu.pipeline_mode<synchronous>, transform_indices = @transform_1, window_bounds = array<i64: 2, 8, 64, 8>}, {pipeline_mode = #tpu.pipeline_mode<synchronous>, transform_indices = @transform_2, window_bounds = array<i64: 2, 8, 64, 8>}, {pipeline_mode = #tpu.pipeline_mode<synchronous>, transform_indices = @transform_3, window_bounds = array<i64: 2, 8, 64, 8>}, {pipeline_mode = #tpu.pipeline_mode<synchronous>, transform_indices = @transform_4, window_bounds = array<i64: 2, 8, 8, 64>}, {pipeline_mode = #tpu.pipeline_mode<synchronous>, transform_indices = @transform_5, window_bounds = array<i64: 2, 1, 64>}, {pipeline_mode = #tpu.pipeline_mode<synchronous>, transform_indices = @transform_6, window_bounds = array<i64: 2, 1, 64>}, {pipeline_mode = #tpu.pipeline_mode<synchronous>, transform_indices = @transform_7, window_bounds = array<i64: 2, 1, 64>}, {pipeline_mode = #tpu.pipeline_mode<synchronous>, transform_indices = @transform_8, window_bounds = array<i64: 2, 64, 128>}, {pipeline_mode = #tpu.pipeline_mode<synchronous>, transform_indices = @transform_9, window_bounds = array<i64: 2, 1, 128>}, {pipeline_mode = #tpu.pipeline_mode<synchronous>, transform_indices = @transform_10, window_bounds = array<i64: 2, 128, 64>}, {pipeline_mode = #tpu.pipeline_mode<synchronous>, transform_indices = @transform_11, window_bounds = array<i64: 2, 1, 64>}, {pipeline_mode = #tpu.pipeline_mode<synchronous>, transform_indices = @transform_12, window_bounds = array<i64: 2, 1, 64>}, {pipeline_mode = #tpu.pipeline_mode<synchronous>, transform_indices = @transform_13, window_bounds = array<i64: 2, 1, 64>}, {transform_indices = @transform_14, window_bounds = array<i64: 1, 16, 64>}]} {
    %c0 = arith.constant 0 : index
    %c0_0 = arith.constant 0 : index
    %c0_1 = arith.constant 0 : index
    %0 = vector.load %arg1[%c0, %c0_0, %c0_1] : memref<1x16x64xf32, #tpu.memory_space<vmem>>, vector<1x16x64xf32>
    %1 = vector.shape_cast %0 : vector<1x16x64xf32> to vector<16x64xf32>
    %c0_2 = arith.constant 0 : index
    %c0_3 = arith.constant 0 : index
    %c0_4 = arith.constant 0 : index
    %2 = vector.load %arg7[%c0_2, %c0_3, %c0_4] : memref<2x1x64xf32, #tpu.memory_space<vmem>>, vector<1x1x64xf32>
    %3 = vector.shape_cast %2 : vector<1x1x64xf32> to vector<1x64xf32>
    %c0_5 = arith.constant 0 : index
    %c0_6 = arith.constant 0 : index
    %c0_7 = arith.constant 0 : index
    %4 = vector.load %arg8[%c0_5, %c0_6, %c0_7] : memref<2x1x64xf32, #tpu.memory_space<vmem>>, vector<1x1x64xf32>
    %5 = vector.shape_cast %4 : vector<1x1x64xf32> to vector<1x64xf32>
    %cst = arith.constant dense<0.000000e+00> : vector<16xf32>
    %6 = vector.multi_reduction <add>, %1, %cst [1] : vector<16x64xf32> to vector<16xf32>
    %7 = vector.shape_cast %6 : vector<16xf32> to vector<16x1xf32>
    %cst_8 = arith.constant 6.400000e+01 : f32
    %8 = vector.broadcast %cst_8 : f32 to vector<16x1xf32>
    %9 = arith.divf %7, %8 : vector<16x1xf32>
    %10 = vector.broadcast %9 : vector<16x1xf32> to vector<16x64xf32>
    %11 = arith.subf %1, %10 : vector<16x64xf32>
    %12 = arith.mulf %11, %11 : vector<16x64xf32>
    %cst_9 = arith.constant dense<0.000000e+00> : vector<16xf32>
    %13 = vector.multi_reduction <add>, %12, %cst_9 [1] : vector<16x64xf32> to vector<16xf32>
    %14 = vector.shape_cast %13 : vector<16xf32> to vector<16x1xf32>
    %cst_10 = arith.constant 6.400000e+01 : f32
    %15 = vector.broadcast %cst_10 : f32 to vector<16x1xf32>
    %16 = arith.divf %14, %15 : vector<16x1xf32>
    %17 = vector.broadcast %9 : vector<16x1xf32> to vector<16x64xf32>
    %18 = arith.subf %1, %17 : vector<16x64xf32>
    %cst_11 = arith.constant 9.99999974E-6 : f32
    %19 = vector.broadcast %cst_11 : f32 to vector<16x1xf32>
    %20 = arith.addf %16, %19 : vector<16x1xf32>
    %21 = math.rsqrt %20 : vector<16x1xf32>
    %22 = vector.broadcast %21 : vector<16x1xf32> to vector<16x64xf32>
    %23 = arith.mulf %18, %22 : vector<16x64xf32>
    %24 = vector.broadcast %3 : vector<1x64xf32> to vector<16x64xf32>
    %25 = arith.mulf %23, %24 : vector<16x64xf32>
    %26 = vector.broadcast %5 : vector<1x64xf32> to vector<16x64xf32>
    %27 = arith.addf %25, %26 : vector<16x64xf32>
    %28 = arith.truncf %27 : vector<16x64xf32> to vector<16x64xbf16>
    %29 = vector.shape_cast %28 : vector<16x64xbf16> to vector<1x16x64xbf16>
    %30 = vector.shape_cast %29 : vector<1x16x64xbf16> to vector<1x16x64xbf16>
    %31 = vector.broadcast %30 : vector<1x16x64xbf16> to vector<8x16x64xbf16>
    %c0_12 = arith.constant 0 : index
    %c0_13 = arith.constant 0 : index
    %c0_14 = arith.constant 0 : index
    %c0_15 = arith.constant 0 : index
    %32 = vector.load %arg2[%c0_12, %c0_13, %c0_14, %c0_15] : memref<2x8x64x8xbf16, #tpu.memory_space<vmem>>, vector<1x8x64x8xbf16>
    %33 = vector.shape_cast %32 : vector<1x8x64x8xbf16> to vector<8x64x8xbf16>
    "tpu.trace_start"() <{level = 10 : i32, message = "hnd,hdf->hnf"}> : () -> ()
    %cst_16 = arith.constant dense<0.000000e+00> : vector<8x16x8xf32>
    %34 = tpu.matmul %31, %33, %cst_16 {dimension_numbers = #tpu.dot_dimension_numbers<[2], [1], [1], [2], [0, 0, 0, 1, 1, 2], [0], [0]>} : vector<8x16x64xbf16>, vector<8x64x8xbf16>, vector<8x16x8xf32> -> vector<8x16x8xf32>
    "tpu.trace_stop"() : () -> ()
    %35 = arith.truncf %34 : vector<8x16x8xf32> to vector<8x16x8xbf16>
    %c0_17 = arith.constant 0 : index
    %c0_18 = arith.constant 0 : index
    %c0_19 = arith.constant 0 : index
    %c0_20 = arith.constant 0 : index
    %36 = vector.load %arg3[%c0_17, %c0_18, %c0_19, %c0_20] : memref<2x8x64x8xbf16, #tpu.memory_space<vmem>>, vector<1x8x64x8xbf16>
    %37 = vector.shape_cast %36 : vector<1x8x64x8xbf16> to vector<8x64x8xbf16>
    "tpu.trace_start"() <{level = 10 : i32, message = "hnd,hdf->hnf"}> : () -> ()
    %cst_21 = arith.constant dense<0.000000e+00> : vector<8x16x8xf32>
    %38 = tpu.matmul %31, %37, %cst_21 {dimension_numbers = #tpu.dot_dimension_numbers<[2], [1], [1], [2], [0, 0, 0, 1, 1, 2], [0], [0]>} : vector<8x16x64xbf16>, vector<8x64x8xbf16>, vector<8x16x8xf32> -> vector<8x16x8xf32>
    "tpu.trace_stop"() : () -> ()
    %39 = arith.truncf %38 : vector<8x16x8xf32> to vector<8x16x8xbf16>
    %c0_22 = arith.constant 0 : index
    %c0_23 = arith.constant 0 : index
    %c0_24 = arith.constant 0 : index
    %c0_25 = arith.constant 0 : index
    %40 = vector.load %arg4[%c0_22, %c0_23, %c0_24, %c0_25] : memref<2x8x64x8xbf16, #tpu.memory_space<vmem>>, vector<1x8x64x8xbf16>
    %41 = vector.shape_cast %40 : vector<1x8x64x8xbf16> to vector<8x64x8xbf16>
    "tpu.trace_start"() <{level = 10 : i32, message = "hnd,hdf->hnf"}> : () -> ()
    %cst_26 = arith.constant dense<0.000000e+00> : vector<8x16x8xf32>
    %42 = tpu.matmul %31, %41, %cst_26 {dimension_numbers = #tpu.dot_dimension_numbers<[2], [1], [1], [2], [0, 0, 0, 1, 1, 2], [0], [0]>} : vector<8x16x64xbf16>, vector<8x64x8xbf16>, vector<8x16x8xf32> -> vector<8x16x8xf32>
    "tpu.trace_stop"() : () -> ()
    %43 = arith.truncf %42 : vector<8x16x8xf32> to vector<8x16x8xbf16>
    "tpu.trace_start"() <{level = 10 : i32, message = "hqf,hkf->hqk"}> : () -> ()
    %cst_27 = arith.constant dense<0.000000e+00> : vector<8x16x16xf32>
    %44 = tpu.matmul %35, %39, %cst_27 {dimension_numbers = #tpu.dot_dimension_numbers<[2], [2], [1], [1], [0, 0, 0, 1, 1, 1], [0], [0]>} : vector<8x16x8xbf16>, vector<8x16x8xbf16>, vector<8x16x16xf32> -> vector<8x16x16xf32>
    "tpu.trace_stop"() : () -> ()
    %cst_28 = arith.constant dense<0xFF800000> : vector<8x16xf32>
    %45 = vector.multi_reduction <maximumf>, %44, %cst_28 [2] : vector<8x16x16xf32> to vector<8x16xf32>
    %46 = vector.shape_cast %45 : vector<8x16xf32> to vector<8x16x1xf32>
    %47 = vector.broadcast %46 : vector<8x16x1xf32> to vector<8x16x16xf32>
    %48 = arith.subf %44, %47 : vector<8x16x16xf32>
    %49 = math.exp %48 : vector<8x16x16xf32>
    %cst_29 = arith.constant dense<0.000000e+00> : vector<8x16xf32>
    %50 = vector.multi_reduction <add>, %49, %cst_29 [2] : vector<8x16x16xf32> to vector<8x16xf32>
    %51 = vector.shape_cast %50 : vector<8x16xf32> to vector<8x16x1xf32>
    %52 = vector.broadcast %51 : vector<8x16x1xf32> to vector<8x16x16xf32>
    %53 = arith.divf %49, %52 : vector<8x16x16xf32>
    %54 = arith.truncf %53 : vector<8x16x16xf32> to vector<8x16x16xbf16>
    "tpu.trace_start"() <{level = 10 : i32, message = "hqk,hkf->hqf"}> : () -> ()
    %cst_30 = arith.constant dense<0.000000e+00> : vector<8x16x8xf32>
    %55 = tpu.matmul %54, %43, %cst_30 {dimension_numbers = #tpu.dot_dimension_numbers<[2], [1], [1], [2], [0, 0, 0, 1, 1, 2], [0], [0]>} : vector<8x16x16xbf16>, vector<8x16x8xbf16>, vector<8x16x8xf32> -> vector<8x16x8xf32>
    "tpu.trace_stop"() : () -> ()
    %56 = arith.truncf %55 : vector<8x16x8xf32> to vector<8x16x8xbf16>
    %c0_31 = arith.constant 0 : index
    %c0_32 = arith.constant 0 : index
    %c0_33 = arith.constant 0 : index
    %c0_34 = arith.constant 0 : index
    %57 = vector.load %arg5[%c0_31, %c0_32, %c0_33, %c0_34] : memref<2x8x8x64xbf16, #tpu.memory_space<vmem>>, vector<1x8x8x64xbf16>
    %58 = vector.shape_cast %57 : vector<1x8x8x64xbf16> to vector<8x8x64xbf16>
    "tpu.trace_start"() <{level = 10 : i32, message = "hqf,hfd->hqd"}> : () -> ()
    %cst_35 = arith.constant dense<0.000000e+00> : vector<8x16x64xf32>
    %59 = tpu.matmul %56, %58, %cst_35 {dimension_numbers = #tpu.dot_dimension_numbers<[2], [1], [1], [2], [0, 0, 0, 1, 1, 2], [0], [0]>} : vector<8x16x8xbf16>, vector<8x8x64xbf16>, vector<8x16x64xf32> -> vector<8x16x64xf32>
    "tpu.trace_stop"() : () -> ()
    %cst_36 = arith.constant dense<0.000000e+00> : vector<16x64xf32>
    %60 = vector.multi_reduction <add>, %59, %cst_36 [0] : vector<8x16x64xf32> to vector<16x64xf32>
    %61 = arith.addf %1, %60 : vector<16x64xf32>
    %c0_37 = arith.constant 0 : index
    %c0_38 = arith.constant 0 : index
    %c0_39 = arith.constant 0 : index
    %62 = vector.load %arg6[%c0_37, %c0_38, %c0_39] : memref<2x1x64xf32, #tpu.memory_space<vmem>>, vector<1x1x64xf32>
    %63 = vector.shape_cast %62 : vector<1x1x64xf32> to vector<1x64xf32>
    %64 = vector.broadcast %63 : vector<1x64xf32> to vector<16x64xf32>
    %65 = arith.addf %61, %64 : vector<16x64xf32>
    %c0_40 = arith.constant 0 : index
    %c0_41 = arith.constant 0 : index
    %c0_42 = arith.constant 0 : index
    %66 = vector.load %arg13[%c0_40, %c0_41, %c0_42] : memref<2x1x64xf32, #tpu.memory_space<vmem>>, vector<1x1x64xf32>
    %67 = vector.shape_cast %66 : vector<1x1x64xf32> to vector<1x64xf32>
    %c0_43 = arith.constant 0 : index
    %c0_44 = arith.constant 0 : index
    %c0_45 = arith.constant 0 : index
    %68 = vector.load %arg14[%c0_43, %c0_44, %c0_45] : memref<2x1x64xf32, #tpu.memory_space<vmem>>, vector<1x1x64xf32>
    %69 = vector.shape_cast %68 : vector<1x1x64xf32> to vector<1x64xf32>
    %cst_46 = arith.constant dense<0.000000e+00> : vector<16xf32>
    %70 = vector.multi_reduction <add>, %65, %cst_46 [1] : vector<16x64xf32> to vector<16xf32>
    %71 = vector.shape_cast %70 : vector<16xf32> to vector<16x1xf32>
    %cst_47 = arith.constant 6.400000e+01 : f32
    %72 = vector.broadcast %cst_47 : f32 to vector<16x1xf32>
    %73 = arith.divf %71, %72 : vector<16x1xf32>
    %74 = vector.broadcast %73 : vector<16x1xf32> to vector<16x64xf32>
    %75 = arith.subf %65, %74 : vector<16x64xf32>
    %76 = arith.mulf %75, %75 : vector<16x64xf32>
    %cst_48 = arith.constant dense<0.000000e+00> : vector<16xf32>
    %77 = vector.multi_reduction <add>, %76, %cst_48 [1] : vector<16x64xf32> to vector<16xf32>
    %78 = vector.shape_cast %77 : vector<16xf32> to vector<16x1xf32>
    %cst_49 = arith.constant 6.400000e+01 : f32
    %79 = vector.broadcast %cst_49 : f32 to vector<16x1xf32>
    %80 = arith.divf %78, %79 : vector<16x1xf32>
    %81 = vector.broadcast %73 : vector<16x1xf32> to vector<16x64xf32>
    %82 = arith.subf %65, %81 : vector<16x64xf32>
    %cst_50 = arith.constant 9.99999974E-6 : f32
    %83 = vector.broadcast %cst_50 : f32 to vector<16x1xf32>
    %84 = arith.addf %80, %83 : vector<16x1xf32>
    %85 = math.rsqrt %84 : vector<16x1xf32>
    %86 = vector.broadcast %85 : vector<16x1xf32> to vector<16x64xf32>
    %87 = arith.mulf %82, %86 : vector<16x64xf32>
    %88 = vector.broadcast %67 : vector<1x64xf32> to vector<16x64xf32>
    %89 = arith.mulf %87, %88 : vector<16x64xf32>
    %90 = vector.broadcast %69 : vector<1x64xf32> to vector<16x64xf32>
    %91 = arith.addf %89, %90 : vector<16x64xf32>
    %92 = arith.truncf %91 : vector<16x64xf32> to vector<16x64xbf16>
    %c0_51 = arith.constant 0 : index
    %c0_52 = arith.constant 0 : index
    %c0_53 = arith.constant 0 : index
    %93 = vector.load %arg9[%c0_51, %c0_52, %c0_53] : memref<2x64x128xbf16, #tpu.memory_space<vmem>>, vector<1x64x128xbf16>
    %94 = vector.shape_cast %93 : vector<1x64x128xbf16> to vector<64x128xbf16>
    %cst_54 = arith.constant dense<0.000000e+00> : vector<16x128xf32>
    %95 = tpu.matmul %92, %94, %cst_54 {dimension_numbers = #tpu.dot_dimension_numbers<[1], [0], [0], [1], [0, 0, 1, 1], [], []>} : vector<16x64xbf16>, vector<64x128xbf16>, vector<16x128xf32> -> vector<16x128xf32>
    %c0_55 = arith.constant 0 : index
    %c0_56 = arith.constant 0 : index
    %c0_57 = arith.constant 0 : index
    %96 = vector.load %arg10[%c0_55, %c0_56, %c0_57] : memref<2x1x128xf32, #tpu.memory_space<vmem>>, vector<1x1x128xf32>
    %97 = vector.shape_cast %96 : vector<1x1x128xf32> to vector<1x128xf32>
    %98 = vector.broadcast %97 : vector<1x128xf32> to vector<16x128xf32>
    %99 = arith.addf %95, %98 : vector<16x128xf32>
    %cst_58 = arith.constant 5.000000e-01 : f32
    %100 = vector.broadcast %cst_58 : f32 to vector<16x128xf32>
    %101 = arith.mulf %100, %99 : vector<16x128xf32>
    %cst_59 = arith.constant 4.471500e-02 : f32
    %102 = vector.broadcast %cst_59 : f32 to vector<16x128xf32>
    %103 = arith.mulf %102, %99 : vector<16x128xf32>
    %104 = arith.mulf %103, %99 : vector<16x128xf32>
    %105 = arith.mulf %104, %99 : vector<16x128xf32>
    %106 = arith.addf %99, %105 : vector<16x128xf32>
    %cst_60 = arith.constant 0.797884583 : f32
    %107 = vector.broadcast %cst_60 : f32 to vector<16x128xf32>
    %108 = arith.mulf %107, %106 : vector<16x128xf32>
    %109 = math.tanh %108 : vector<16x128xf32>
    %cst_61 = arith.constant 1.000000e+00 : f32
    %110 = vector.broadcast %cst_61 : f32 to vector<16x128xf32>
    %111 = arith.addf %110, %109 : vector<16x128xf32>
    %112 = arith.mulf %101, %111 : vector<16x128xf32>
    %113 = arith.truncf %112 : vector<16x128xf32> to vector<16x128xbf16>
    %c0_62 = arith.constant 0 : index
    %c0_63 = arith.constant 0 : index
    %c0_64 = arith.constant 0 : index
    %114 = vector.load %arg11[%c0_62, %c0_63, %c0_64] : memref<2x128x64xbf16, #tpu.memory_space<vmem>>, vector<1x128x64xbf16>
    %115 = vector.shape_cast %114 : vector<1x128x64xbf16> to vector<128x64xbf16>
    %cst_65 = arith.constant dense<0.000000e+00> : vector<16x64xf32>
    %116 = tpu.matmul %113, %115, %cst_65 {dimension_numbers = #tpu.dot_dimension_numbers<[1], [0], [0], [1], [0, 0, 1, 1], [], []>} : vector<16x128xbf16>, vector<128x64xbf16>, vector<16x64xf32> -> vector<16x64xf32>
    %c0_66 = arith.constant 0 : index
    %c0_67 = arith.constant 0 : index
    %c0_68 = arith.constant 0 : index
    %117 = vector.load %arg12[%c0_66, %c0_67, %c0_68] : memref<2x1x64xf32, #tpu.memory_space<vmem>>, vector<1x1x64xf32>
    %118 = vector.shape_cast %117 : vector<1x1x64xf32> to vector<1x64xf32>
    %119 = vector.broadcast %118 : vector<1x64xf32> to vector<16x64xf32>
    %120 = arith.addf %116, %119 : vector<16x64xf32>
    %121 = arith.addf %65, %120 : vector<16x64xf32>
    %c1 = arith.constant 1 : index
    %c0_69 = arith.constant 0 : index
    %c0_70 = arith.constant 0 : index
    %122 = vector.load %arg7[%c1, %c0_69, %c0_70] : memref<2x1x64xf32, #tpu.memory_space<vmem>>, vector<1x1x64xf32>
    %123 = vector.shape_cast %122 : vector<1x1x64xf32> to vector<1x64xf32>
    %c1_71 = arith.constant 1 : index
    %c0_72 = arith.constant 0 : index
    %c0_73 = arith.constant 0 : index
    %124 = vector.load %arg8[%c1_71, %c0_72, %c0_73] : memref<2x1x64xf32, #tpu.memory_space<vmem>>, vector<1x1x64xf32>
    %125 = vector.shape_cast %124 : vector<1x1x64xf32> to vector<1x64xf32>
    %cst_74 = arith.constant dense<0.000000e+00> : vector<16xf32>
    %126 = vector.multi_reduction <add>, %121, %cst_74 [1] : vector<16x64xf32> to vector<16xf32>
    %127 = vector.shape_cast %126 : vector<16xf32> to vector<16x1xf32>
    %cst_75 = arith.constant 6.400000e+01 : f32
    %128 = vector.broadcast %cst_75 : f32 to vector<16x1xf32>
    %129 = arith.divf %127, %128 : vector<16x1xf32>
    %130 = vector.broadcast %129 : vector<16x1xf32> to vector<16x64xf32>
    %131 = arith.subf %121, %130 : vector<16x64xf32>
    %132 = arith.mulf %131, %131 : vector<16x64xf32>
    %cst_76 = arith.constant dense<0.000000e+00> : vector<16xf32>
    %133 = vector.multi_reduction <add>, %132, %cst_76 [1] : vector<16x64xf32> to vector<16xf32>
    %134 = vector.shape_cast %133 : vector<16xf32> to vector<16x1xf32>
    %cst_77 = arith.constant 6.400000e+01 : f32
    %135 = vector.broadcast %cst_77 : f32 to vector<16x1xf32>
    %136 = arith.divf %134, %135 : vector<16x1xf32>
    %137 = vector.broadcast %129 : vector<16x1xf32> to vector<16x64xf32>
    %138 = arith.subf %121, %137 : vector<16x64xf32>
    %cst_78 = arith.constant 9.99999974E-6 : f32
    %139 = vector.broadcast %cst_78 : f32 to vector<16x1xf32>
    %140 = arith.addf %136, %139 : vector<16x1xf32>
    %141 = math.rsqrt %140 : vector<16x1xf32>
    %142 = vector.broadcast %141 : vector<16x1xf32> to vector<16x64xf32>
    %143 = arith.mulf %138, %142 : vector<16x64xf32>
    %144 = vector.broadcast %123 : vector<1x64xf32> to vector<16x64xf32>
    %145 = arith.mulf %143, %144 : vector<16x64xf32>
    %146 = vector.broadcast %125 : vector<1x64xf32> to vector<16x64xf32>
    %147 = arith.addf %145, %146 : vector<16x64xf32>
    %148 = arith.truncf %147 : vector<16x64xf32> to vector<16x64xbf16>
    %149 = vector.shape_cast %148 : vector<16x64xbf16> to vector<1x16x64xbf16>
    %150 = vector.shape_cast %149 : vector<1x16x64xbf16> to vector<1x16x64xbf16>
    %151 = vector.broadcast %150 : vector<1x16x64xbf16> to vector<8x16x64xbf16>
    %c1_79 = arith.constant 1 : index
    %c0_80 = arith.constant 0 : index
    %c0_81 = arith.constant 0 : index
    %c0_82 = arith.constant 0 : index
    %152 = vector.load %arg2[%c1_79, %c0_80, %c0_81, %c0_82] : memref<2x8x64x8xbf16, #tpu.memory_space<vmem>>, vector<1x8x64x8xbf16>
    %153 = vector.shape_cast %152 : vector<1x8x64x8xbf16> to vector<8x64x8xbf16>
    "tpu.trace_start"() <{level = 10 : i32, message = "hnd,hdf->hnf"}> : () -> ()
    %cst_83 = arith.constant dense<0.000000e+00> : vector<8x16x8xf32>
    %154 = tpu.matmul %151, %153, %cst_83 {dimension_numbers = #tpu.dot_dimension_numbers<[2], [1], [1], [2], [0, 0, 0, 1, 1, 2], [0], [0]>} : vector<8x16x64xbf16>, vector<8x64x8xbf16>, vector<8x16x8xf32> -> vector<8x16x8xf32>
    "tpu.trace_stop"() : () -> ()
    %155 = arith.truncf %154 : vector<8x16x8xf32> to vector<8x16x8xbf16>
    %c1_84 = arith.constant 1 : index
    %c0_85 = arith.constant 0 : index
    %c0_86 = arith.constant 0 : index
    %c0_87 = arith.constant 0 : index
    %156 = vector.load %arg3[%c1_84, %c0_85, %c0_86, %c0_87] : memref<2x8x64x8xbf16, #tpu.memory_space<vmem>>, vector<1x8x64x8xbf16>
    %157 = vector.shape_cast %156 : vector<1x8x64x8xbf16> to vector<8x64x8xbf16>
    "tpu.trace_start"() <{level = 10 : i32, message = "hnd,hdf->hnf"}> : () -> ()
    %cst_88 = arith.constant dense<0.000000e+00> : vector<8x16x8xf32>
    %158 = tpu.matmul %151, %157, %cst_88 {dimension_numbers = #tpu.dot_dimension_numbers<[2], [1], [1], [2], [0, 0, 0, 1, 1, 2], [0], [0]>} : vector<8x16x64xbf16>, vector<8x64x8xbf16>, vector<8x16x8xf32> -> vector<8x16x8xf32>
    "tpu.trace_stop"() : () -> ()
    %159 = arith.truncf %158 : vector<8x16x8xf32> to vector<8x16x8xbf16>
    %c1_89 = arith.constant 1 : index
    %c0_90 = arith.constant 0 : index
    %c0_91 = arith.constant 0 : index
    %c0_92 = arith.constant 0 : index
    %160 = vector.load %arg4[%c1_89, %c0_90, %c0_91, %c0_92] : memref<2x8x64x8xbf16, #tpu.memory_space<vmem>>, vector<1x8x64x8xbf16>
    %161 = vector.shape_cast %160 : vector<1x8x64x8xbf16> to vector<8x64x8xbf16>
    "tpu.trace_start"() <{level = 10 : i32, message = "hnd,hdf->hnf"}> : () -> ()
    %cst_93 = arith.constant dense<0.000000e+00> : vector<8x16x8xf32>
    %162 = tpu.matmul %151, %161, %cst_93 {dimension_numbers = #tpu.dot_dimension_numbers<[2], [1], [1], [2], [0, 0, 0, 1, 1, 2], [0], [0]>} : vector<8x16x64xbf16>, vector<8x64x8xbf16>, vector<8x16x8xf32> -> vector<8x16x8xf32>
    "tpu.trace_stop"() : () -> ()
    %163 = arith.truncf %162 : vector<8x16x8xf32> to vector<8x16x8xbf16>
    "tpu.trace_start"() <{level = 10 : i32, message = "hqf,hkf->hqk"}> : () -> ()
    %cst_94 = arith.constant dense<0.000000e+00> : vector<8x16x16xf32>
    %164 = tpu.matmul %155, %159, %cst_94 {dimension_numbers = #tpu.dot_dimension_numbers<[2], [2], [1], [1], [0, 0, 0, 1, 1, 1], [0], [0]>} : vector<8x16x8xbf16>, vector<8x16x8xbf16>, vector<8x16x16xf32> -> vector<8x16x16xf32>
    "tpu.trace_stop"() : () -> ()
    %cst_95 = arith.constant dense<0xFF800000> : vector<8x16xf32>
    %165 = vector.multi_reduction <maximumf>, %164, %cst_95 [2] : vector<8x16x16xf32> to vector<8x16xf32>
    %166 = vector.shape_cast %165 : vector<8x16xf32> to vector<8x16x1xf32>
    %167 = vector.broadcast %166 : vector<8x16x1xf32> to vector<8x16x16xf32>
    %168 = arith.subf %164, %167 : vector<8x16x16xf32>
    %169 = math.exp %168 : vector<8x16x16xf32>
    %cst_96 = arith.constant dense<0.000000e+00> : vector<8x16xf32>
    %170 = vector.multi_reduction <add>, %169, %cst_96 [2] : vector<8x16x16xf32> to vector<8x16xf32>
    %171 = vector.shape_cast %170 : vector<8x16xf32> to vector<8x16x1xf32>
    %172 = vector.broadcast %171 : vector<8x16x1xf32> to vector<8x16x16xf32>
    %173 = arith.divf %169, %172 : vector<8x16x16xf32>
    %174 = arith.truncf %173 : vector<8x16x16xf32> to vector<8x16x16xbf16>
    "tpu.trace_start"() <{level = 10 : i32, message = "hqk,hkf->hqf"}> : () -> ()
    %cst_97 = arith.constant dense<0.000000e+00> : vector<8x16x8xf32>
    %175 = tpu.matmul %174, %163, %cst_97 {dimension_numbers = #tpu.dot_dimension_numbers<[2], [1], [1], [2], [0, 0, 0, 1, 1, 2], [0], [0]>} : vector<8x16x16xbf16>, vector<8x16x8xbf16>, vector<8x16x8xf32> -> vector<8x16x8xf32>
    "tpu.trace_stop"() : () -> ()
    %176 = arith.truncf %175 : vector<8x16x8xf32> to vector<8x16x8xbf16>
    %c1_98 = arith.constant 1 : index
    %c0_99 = arith.constant 0 : index
    %c0_100 = arith.constant 0 : index
    %c0_101 = arith.constant 0 : index
    %177 = vector.load %arg5[%c1_98, %c0_99, %c0_100, %c0_101] : memref<2x8x8x64xbf16, #tpu.memory_space<vmem>>, vector<1x8x8x64xbf16>
    %178 = vector.shape_cast %177 : vector<1x8x8x64xbf16> to vector<8x8x64xbf16>
    "tpu.trace_start"() <{level = 10 : i32, message = "hqf,hfd->hqd"}> : () -> ()
    %cst_102 = arith.constant dense<0.000000e+00> : vector<8x16x64xf32>
    %179 = tpu.matmul %176, %178, %cst_102 {dimension_numbers = #tpu.dot_dimension_numbers<[2], [1], [1], [2], [0, 0, 0, 1, 1, 2], [0], [0]>} : vector<8x16x8xbf16>, vector<8x8x64xbf16>, vector<8x16x64xf32> -> vector<8x16x64xf32>
    "tpu.trace_stop"() : () -> ()
    %cst_103 = arith.constant dense<0.000000e+00> : vector<16x64xf32>
    %180 = vector.multi_reduction <add>, %179, %cst_103 [0] : vector<8x16x64xf32> to vector<16x64xf32>
    %181 = arith.addf %121, %180 : vector<16x64xf32>
    %c1_104 = arith.constant 1 : index
    %c0_105 = arith.constant 0 : index
    %c0_106 = arith.constant 0 : index
    %182 = vector.load %arg6[%c1_104, %c0_105, %c0_106] : memref<2x1x64xf32, #tpu.memory_space<vmem>>, vector<1x1x64xf32>
    %183 = vector.shape_cast %182 : vector<1x1x64xf32> to vector<1x64xf32>
    %184 = vector.broadcast %183 : vector<1x64xf32> to vector<16x64xf32>
    %185 = arith.addf %181, %184 : vector<16x64xf32>
    %c1_107 = arith.constant 1 : index
    %c0_108 = arith.constant 0 : index
    %c0_109 = arith.constant 0 : index
    %186 = vector.load %arg13[%c1_107, %c0_108, %c0_109] : memref<2x1x64xf32, #tpu.memory_space<vmem>>, vector<1x1x64xf32>
    %187 = vector.shape_cast %186 : vector<1x1x64xf32> to vector<1x64xf32>
    %c1_110 = arith.constant 1 : index
    %c0_111 = arith.constant 0 : index
    %c0_112 = arith.constant 0 : index
    %188 = vector.load %arg14[%c1_110, %c0_111, %c0_112] : memref<2x1x64xf32, #tpu.memory_space<vmem>>, vector<1x1x64xf32>
    %189 = vector.shape_cast %188 : vector<1x1x64xf32> to vector<1x64xf32>
    %cst_113 = arith.constant dense<0.000000e+00> : vector<16xf32>
    %190 = vector.multi_reduction <add>, %185, %cst_113 [1] : vector<16x64xf32> to vector<16xf32>
    %191 = vector.shape_cast %190 : vector<16xf32> to vector<16x1xf32>
    %cst_114 = arith.constant 6.400000e+01 : f32
    %192 = vector.broadcast %cst_114 : f32 to vector<16x1xf32>
    %193 = arith.divf %191, %192 : vector<16x1xf32>
    %194 = vector.broadcast %193 : vector<16x1xf32> to vector<16x64xf32>
    %195 = arith.subf %185, %194 : vector<16x64xf32>
    %196 = arith.mulf %195, %195 : vector<16x64xf32>
    %cst_115 = arith.constant dense<0.000000e+00> : vector<16xf32>
    %197 = vector.multi_reduction <add>, %196, %cst_115 [1] : vector<16x64xf32> to vector<16xf32>
    %198 = vector.shape_cast %197 : vector<16xf32> to vector<16x1xf32>
    %cst_116 = arith.constant 6.400000e+01 : f32
    %199 = vector.broadcast %cst_116 : f32 to vector<16x1xf32>
    %200 = arith.divf %198, %199 : vector<16x1xf32>
    %201 = vector.broadcast %193 : vector<16x1xf32> to vector<16x64xf32>
    %202 = arith.subf %185, %201 : vector<16x64xf32>
    %cst_117 = arith.constant 9.99999974E-6 : f32
    %203 = vector.broadcast %cst_117 : f32 to vector<16x1xf32>
    %204 = arith.addf %200, %203 : vector<16x1xf32>
    %205 = math.rsqrt %204 : vector<16x1xf32>
    %206 = vector.broadcast %205 : vector<16x1xf32> to vector<16x64xf32>
    %207 = arith.mulf %202, %206 : vector<16x64xf32>
    %208 = vector.broadcast %187 : vector<1x64xf32> to vector<16x64xf32>
    %209 = arith.mulf %207, %208 : vector<16x64xf32>
    %210 = vector.broadcast %189 : vector<1x64xf32> to vector<16x64xf32>
    %211 = arith.addf %209, %210 : vector<16x64xf32>
    %212 = arith.truncf %211 : vector<16x64xf32> to vector<16x64xbf16>
    %c1_118 = arith.constant 1 : index
    %c0_119 = arith.constant 0 : index
    %c0_120 = arith.constant 0 : index
    %213 = vector.load %arg9[%c1_118, %c0_119, %c0_120] : memref<2x64x128xbf16, #tpu.memory_space<vmem>>, vector<1x64x128xbf16>
    %214 = vector.shape_cast %213 : vector<1x64x128xbf16> to vector<64x128xbf16>
    %cst_121 = arith.constant dense<0.000000e+00> : vector<16x128xf32>
    %215 = tpu.matmul %212, %214, %cst_121 {dimension_numbers = #tpu.dot_dimension_numbers<[1], [0], [0], [1], [0, 0, 1, 1], [], []>} : vector<16x64xbf16>, vector<64x128xbf16>, vector<16x128xf32> -> vector<16x128xf32>
    %c1_122 = arith.constant 1 : index
    %c0_123 = arith.constant 0 : index
    %c0_124 = arith.constant 0 : index
    %216 = vector.load %arg10[%c1_122, %c0_123, %c0_124] : memref<2x1x128xf32, #tpu.memory_space<vmem>>, vector<1x1x128xf32>
    %217 = vector.shape_cast %216 : vector<1x1x128xf32> to vector<1x128xf32>
    %218 = vector.broadcast %217 : vector<1x128xf32> to vector<16x128xf32>
    %219 = arith.addf %215, %218 : vector<16x128xf32>
    %cst_125 = arith.constant 5.000000e-01 : f32
    %220 = vector.broadcast %cst_125 : f32 to vector<16x128xf32>
    %221 = arith.mulf %220, %219 : vector<16x128xf32>
    %cst_126 = arith.constant 4.471500e-02 : f32
    %222 = vector.broadcast %cst_126 : f32 to vector<16x128xf32>
    %223 = arith.mulf %222, %219 : vector<16x128xf32>
    %224 = arith.mulf %223, %219 : vector<16x128xf32>
    %225 = arith.mulf %224, %219 : vector<16x128xf32>
    %226 = arith.addf %219, %225 : vector<16x128xf32>
    %cst_127 = arith.constant 0.797884583 : f32
    %227 = vector.broadcast %cst_127 : f32 to vector<16x128xf32>
    %228 = arith.mulf %227, %226 : vector<16x128xf32>
    %229 = math.tanh %228 : vector<16x128xf32>
    %cst_128 = arith.constant 1.000000e+00 : f32
    %230 = vector.broadcast %cst_128 : f32 to vector<16x128xf32>
    %231 = arith.addf %230, %229 : vector<16x128xf32>
    %232 = arith.mulf %221, %231 : vector<16x128xf32>
    %233 = arith.truncf %232 : vector<16x128xf32> to vector<16x128xbf16>
    %c1_129 = arith.constant 1 : index
    %c0_130 = arith.constant 0 : index
    %c0_131 = arith.constant 0 : index
    %234 = vector.load %arg11[%c1_129, %c0_130, %c0_131] : memref<2x128x64xbf16, #tpu.memory_space<vmem>>, vector<1x128x64xbf16>
    %235 = vector.shape_cast %234 : vector<1x128x64xbf16> to vector<128x64xbf16>
    %cst_132 = arith.constant dense<0.000000e+00> : vector<16x64xf32>
    %236 = tpu.matmul %233, %235, %cst_132 {dimension_numbers = #tpu.dot_dimension_numbers<[1], [0], [0], [1], [0, 0, 1, 1], [], []>} : vector<16x128xbf16>, vector<128x64xbf16>, vector<16x64xf32> -> vector<16x64xf32>
    %c1_133 = arith.constant 1 : index
    %c0_134 = arith.constant 0 : index
    %c0_135 = arith.constant 0 : index
    %237 = vector.load %arg12[%c1_133, %c0_134, %c0_135] : memref<2x1x64xf32, #tpu.memory_space<vmem>>, vector<1x1x64xf32>
    %238 = vector.shape_cast %237 : vector<1x1x64xf32> to vector<1x64xf32>
    %239 = vector.broadcast %238 : vector<1x64xf32> to vector<16x64xf32>
    %240 = arith.addf %236, %239 : vector<16x64xf32>
    %241 = arith.addf %185, %240 : vector<16x64xf32>
    %c0_136 = arith.constant 0 : index
    %c0_137 = arith.constant 0 : index
    %c0_138 = arith.constant 0 : index
    %242 = vector.load %arg15[%c0_136, %c0_137, %c0_138] : memref<1x16x64xf32, #tpu.memory_space<vmem>>, vector<1x16x64xf32>
    %243 = vector.shape_cast %242 : vector<1x16x64xf32> to vector<16x64xf32>
    %244 = vector.shape_cast %241 : vector<16x64xf32> to vector<1x16x64xf32>
    tpu.vector_store %arg15[%c0_136, %c0_137, %c0_138], %244 {strides = array<i32>} : memref<1x16x64xf32, #tpu.memory_space<vmem>>, vector<1x16x64xf32>,
    return
  }
  func.func @transform_0(%arg0: i32) -> (i32, i32, i32) {
    %c0_i32 = arith.constant 0 : i32
    %c0_i32_0 = arith.constant 0 : i32
    %c0_i32_1 = arith.constant 0 : i32
    return %arg0, %c0_i32, %c0_i32_0 : i32, i32, i32
  }
  func.func @transform_1(%arg0: i32) -> (i32, i32, i32, i32) {
    %c0_i32 = arith.constant 0 : i32
    %c0_i32_0 = arith.constant 0 : i32
    %c0_i32_1 = arith.constant 0 : i32
    %c0_i32_2 = arith.constant 0 : i32
    %c0_i32_3 = arith.constant 0 : i32
    return %c0_i32, %c0_i32_0, %c0_i32_1, %c0_i32_2 : i32, i32, i32, i32
  }
  func.func @transform_2(%arg0: i32) -> (i32, i32, i32, i32) {
    %c0_i32 = arith.constant 0 : i32
    %c0_i32_0 = arith.constant 0 : i32
    %c0_i32_1 = arith.constant 0 : i32
    %c0_i32_2 = arith.constant 0 : i32
    %c0_i32_3 = arith.constant 0 : i32
    return %c0_i32, %c0_i32_0, %c0_i32_1, %c0_i32_2 : i32, i32, i32, i32
  }
  func.func @transform_3(%arg0: i32) -> (i32, i32, i32, i32) {
    %c0_i32 = arith.constant 0 : i32
    %c0_i32_0 = arith.constant 0 : i32
    %c0_i32_1 = arith.constant 0 : i32
    %c0_i32_2 = arith.constant 0 : i32
    %c0_i32_3 = arith.constant 0 : i32
    return %c0_i32, %c0_i32_0, %c0_i32_1, %c0_i32_2 : i32, i32, i32, i32
  }
  func.func @transform_4(%arg0: i32) -> (i32, i32, i32, i32) {
    %c0_i32 = arith.constant 0 : i32
    %c0_i32_0 = arith.constant 0 : i32
    %c0_i32_1 = arith.constant 0 : i32
    %c0_i32_2 = arith.constant 0 : i32
    %c0_i32_3 = arith.constant 0 : i32
    return %c0_i32, %c0_i32_0, %c0_i32_1, %c0_i32_2 : i32, i32, i32, i32
  }
  func.func @transform_5(%arg0: i32) -> (i32, i32, i32) {
    %c0_i32 = arith.constant 0 : i32
    %c0_i32_0 = arith.constant 0 : i32
    %c0_i32_1 = arith.constant 0 : i32
    %c0_i32_2 = arith.constant 0 : i32
    return %c0_i32, %c0_i32_0, %c0_i32_1 : i32, i32, i32
  }
  func.func @transform_6(%arg0: i32) -> (i32, i32, i32) {
    %c0_i32 = arith.constant 0 : i32
    %c0_i32_0 = arith.constant 0 : i32
    %c0_i32_1 = arith.constant 0 : i32
    %c0_i32_2 = arith.constant 0 : i32
    return %c0_i32, %c0_i32_0, %c0_i32_1 : i32, i32, i32
  }
  func.func @transform_7(%arg0: i32) -> (i32, i32, i32) {
    %c0_i32 = arith.constant 0 : i32
    %c0_i32_0 = arith.constant 0 : i32
    %c0_i32_1 = arith.constant 0 : i32
    %c0_i32_2 = arith.constant 0 : i32
    return %c0_i32, %c0_i32_0, %c0_i32_1 : i32, i32, i32
  }
  func.func @transform_8(%arg0: i32) -> (i32, i32, i32) {
    %c0_i32 = arith.constant 0 : i32
    %c0_i32_0 = arith.constant 0 : i32
    %c0_i32_1 = arith.constant 0 : i32
    %c0_i32_2 = arith.constant 0 : i32
    return %c0_i32, %c0_i32_0, %c0_i32_1 : i32, i32, i32
  }
  func.func @transform_9(%arg0: i32) -> (i32, i32, i32) {
    %c0_i32 = arith.constant 0 : i32
    %c0_i32_0 = arith.constant 0 : i32
    %c0_i32_1 = arith.constant 0 : i32
    %c0_i32_2 = arith.constant 0 : i32
    return %c0_i32, %c0_i32_0, %c0_i32_1 : i32, i32, i32
  }
  func.func @transform_10(%arg0: i32) -> (i32, i32, i32) {
    %c0_i32 = arith.constant 0 : i32
    %c0_i32_0 = arith.constant 0 : i32
    %c0_i32_1 = arith.constant 0 : i32
    %c0_i32_2 = arith.constant 0 : i32
    return %c0_i32, %c0_i32_0, %c0_i32_1 : i32, i32, i32
  }
  func.func @transform_11(%arg0: i32) -> (i32, i32, i32) {
    %c0_i32 = arith.constant 0 : i32
    %c0_i32_0 = arith.constant 0 : i32
    %c0_i32_1 = arith.constant 0 : i32
    %c0_i32_2 = arith.constant 0 : i32
    return %c0_i32, %c0_i32_0, %c0_i32_1 : i32, i32, i32
  }
  func.func @transform_12(%arg0: i32) -> (i32, i32, i32) {
    %c0_i32 = arith.constant 0 : i32
    %c0_i32_0 = arith.constant 0 : i32
    %c0_i32_1 = arith.constant 0 : i32
    %c0_i32_2 = arith.constant 0 : i32
    return %c0_i32, %c0_i32_0, %c0_i32_1 : i32, i32, i32
  }
  func.func @transform_13(%arg0: i32) -> (i32, i32, i32) {
    %c0_i32 = arith.constant 0 : i32
    %c0_i32_0 = arith.constant 0 : i32
    %c0_i32_1 = arith.constant 0 : i32
    %c0_i32_2 = arith.constant 0 : i32
    return %c0_i32, %c0_i32_0, %c0_i32_1 : i32, i32, i32
  }
  func.func @transform_14(%arg0: i32) -> (i32, i32, i32) {
    %c0_i32 = arith.constant 0 : i32
    %c0_i32_0 = arith.constant 0 : i32
    %c0_i32_1 = arith.constant 0 : i32
    return %arg0, %c0_i32, %c0_i32_0 : i32, i32, i32
  }
}

</mosaic_0001>

<llo_original>
// kernel: tpu_custom_call.1
$region0: #{tpu_custom_call.1}
  #allocation0 [shape = 'u32[]', space=smem, size = 0x4, offset = 0x4, fixed_abs, tag = 'smem constant byte address 0x4 - core index']
  #allocation1 [shape = 'u32[144,128]{1,0:T(1,128)}', space=vmem, size = 0x12000, scoped, tag = 'internal scratch']
  %s0 = inlined_call_operand.vmem [shape: f32[2,16,64], index: 0, kind: input, shape index: {}]
  %s1 = inlined_call_operand.vmem [shape: bf16[2,8,64,8], index: 1, kind: input, shape index: {}]
  %s2 = inlined_call_operand.vmem [shape: bf16[2,8,64,8], index: 2, kind: input, shape index: {}]
  %s3 = inlined_call_operand.vmem [shape: bf16[2,8,64,8], index: 3, kind: input, shape index: {}]
  %s4 = inlined_call_operand.vmem [shape: bf16[2,8,8,64], index: 4, kind: input, shape index: {}]
  %s5 = inlined_call_operand.vmem [shape: f32[2,1,64], index: 5, kind: input, shape index: {}]
  %s6 = inlined_call_operand.vmem [shape: f32[2,1,64], index: 6, kind: input, shape index: {}]
  %s7 = inlined_call_operand.vmem [shape: f32[2,1,64], index: 7, kind: input, shape index: {}]
  %s8 = inlined_call_operand.vmem [shape: bf16[2,64,128], index: 8, kind: input, shape index: {}]
  %s9 = inlined_call_operand.vmem [shape: f32[2,1,128], index: 9, kind: input, shape index: {}]
  %s10 = inlined_call_operand.vmem [shape: bf16[2,128,64], index: 10, kind: input, shape index: {}]
  %s11 = inlined_call_operand.vmem [shape: f32[2,1,64], index: 11, kind: input, shape index: {}]
  %s12 = inlined_call_operand.vmem [shape: f32[2,1,64], index: 12, kind: input, shape index: {}]
  %s13 = inlined_call_operand.vmem [shape: f32[2,1,64], index: 13, kind: input, shape index: {}]
  %s14 = inlined_call_operand.hbm [shape: f32[2,16,64], index: 14, kind: output, shape index: {}]
  %s15 = sld [smem:[#allocation0]]
  $region89: #{tpu_custom_call.1} parent=0
    _
  %s17 = ssub.s32 1, %s15
  %s18 = scalar_select 0, %s17, %s15
  $region1: #{tpu_custom_call.1} parent=0
    #allocation2 [shape = 'u8[16384]{0}', space=vmem, size = 0x4000, scoped, tag = 'output window, operand 0']
    #allocation3 [shape = 's32[2]{0}', space=sflag, size = 0x8, scoped, tag = 'scoped memory for tpu_custom_call.1']
    %19 = vsyncpa [#allocation3], 0
    %s20 = scalar_lea.sflag [#allocation3], 1
    %21 = vsyncpa %s20, 0
    loop: start=0, step=1, limit=4
    $region2: #{tpu_custom_call.1} parent=1 // loop_pre_header
      _
    $region3: #{tpu_custom_call.1} parent=1 // loop_header
      %s23 = sphi 0, %s27
      %p24 = scmp.ge.s32.totalorder %s23, 4
      %s33 = sphi 0, %s35
      %s36 = sphi 0, %s33
      %s37 = sphi 0, %s36
      %s53 = sphi 0, %s37
      %s57 = sphi 0, %s57
      %s59 = sphi 0, %s57
      %s60 = sphi 0, %s59
      %s74 = sphi 0, %s60
      %s78 = sphi 0, %s78
      %s80 = sphi 0, %s78
      %s81 = sphi 0, %s80
      %s95 = sphi 0, %s81
      %s99 = sphi 0, %s99
      %s101 = sphi 0, %s99
      %s102 = sphi 0, %s101
      %s116 = sphi 0, %s102
      %s120 = sphi 0, %s120
      %s122 = sphi 0, %s120
      %s123 = sphi 0, %s122
      %s137 = sphi 0, %s123
      %s141 = sphi 0, %s141
      %s143 = sphi 0, %s141
      %s144 = sphi 0, %s143
      %s158 = sphi 0, %s144
      %s162 = sphi 0, %s162
      %s164 = sphi 0, %s162
      %s165 = sphi 0, %s164
      %s179 = sphi 0, %s165
      %s183 = sphi 0, %s183
      %s185 = sphi 0, %s183
      %s186 = sphi 0, %s185
      %s200 = sphi 0, %s186
      %s204 = sphi 0, %s204
      %s206 = sphi 0, %s204
      %s207 = sphi 0, %s206
      %s221 = sphi 0, %s207
      %s225 = sphi 0, %s225
      %s227 = sphi 0, %s225
      %s228 = sphi 0, %s227
      %s242 = sphi 0, %s228
      %s246 = sphi 0, %s246
      %s248 = sphi 0, %s246
      %s249 = sphi 0, %s248
      %s263 = sphi 0, %s249
      %s267 = sphi 0, %s267
      %s269 = sphi 0, %s267
      %s270 = sphi 0, %s269
      %s284 = sphi 0, %s270
      %s288 = sphi 0, %s288
      %s290 = sphi 0, %s288
      %s291 = sphi 0, %s290
      %s305 = sphi 0, %s291
      %s309 = sphi 0, %s309
      %s311 = sphi 0, %s309
      %s312 = sphi 0, %s311
      %s326 = sphi 0, %s312
      %s332 = sphi 0, %s334
      %s335 = sphi 0, %s332
      %s336 = sphi 0, %s335
      %s352 = sphi 0, %s336
    $region4: #{tpu_custom_call.1} parent=1 // loop_header_branch
      %26 = sbr.rel (%p24) target = $region8
    $region5: #{tpu_custom_call.1} parent=1 // loop_body
      %s28 = ssub.s32 %s23, 1
      %s29 = ssub.s32 %s23, 2
      %s30 = sadd.s32 %s23, 1
      %s31 = ssub.s32 %s23, %s30
      %p32 = scmp.eq.s32.totalorder %s31, 0
      %s34 = sadd.s32 %s33, 1
      %s35 = scalar_select %p32, %s33, %s34
      %p38 = pneg %p32
      %p39 = scmp.eq.s32.totalorder %s23, 1
      %p40 = por %p38, %p39
      %p41 = scmp.ne.s32.totalorder %s33, %s36
      %p42 = scmp.eq.s32.totalorder %s23, 0
      %p43 = por %p41, %p42
      %p44 = scmp.ne.s32.totalorder %s33, %s36
      %p45 = scmp.eq.s32.totalorder %s28, 1
      %p46 = por %p44, %p45
      %p47 = scmp.ne.s32.totalorder %s36, %s37
      %p48 = scmp.eq.s32.totalorder %s28, 0
      %p49 = por %p47, %p48
      %p50 = scmp.ne.s32.totalorder %s36, %s37
      %p51 = scmp.eq.s32.totalorder %s29, 1
      %p52 = por %p50, %p51
      %p54 = scmp.ne.s32.totalorder %s37, %s53
      %p55 = scmp.eq.s32.totalorder %s29, 0
      %p56 = por %p54, %p55
      %s58 = sadd.s32 %s57, 1
      %p61 = scmp.eq.s32.totalorder %s23, 1
      %p62 = scmp.ne.s32.totalorder %s57, %s59
      %p63 = scmp.eq.s32.totalorder %s23, 0
      %p64 = por %p62, %p63
      %p65 = scmp.ne.s32.totalorder %s57, %s59
      %p66 = scmp.eq.s32.totalorder %s28, 1
      %p67 = por %p65, %p66
      %p68 = scmp.ne.s32.totalorder %s59, %s60
      %p69 = scmp.eq.s32.totalorder %s28, 0
      %p70 = por %p68, %p69
      %p71 = scmp.ne.s32.totalorder %s59, %s60
      %p72 = scmp.eq.s32.totalorder %s29, 1
      %p73 = por %p71, %p72
      %p75 = scmp.ne.s32.totalorder %s60, %s74
      %p76 = scmp.eq.s32.totalorder %s29, 0
      %p77 = por %p75, %p76
      %s79 = sadd.s32 %s78, 1
      %p82 = scmp.eq.s32.totalorder %s23, 1
      %p83 = scmp.ne.s32.totalorder %s78, %s80
      %p84 = scmp.eq.s32.totalorder %s23, 0
      %p85 = por %p83, %p84
      %p86 = scmp.ne.s32.totalorder %s78, %s80
      %p87 = scmp.eq.s32.totalorder %s28, 1
      %p88 = por %p86, %p87
      %p89 = scmp.ne.s32.totalorder %s80, %s81
      %p90 = scmp.eq.s32.totalorder %s28, 0
      %p91 = por %p89, %p90
      %p92 = scmp.ne.s32.totalorder %s80, %s81
      %p93 = scmp.eq.s32.totalorder %s29, 1
      %p94 = por %p92, %p93
      %p96 = scmp.ne.s32.totalorder %s81, %s95
      %p97 = scmp.eq.s32.totalorder %s29, 0
      %p98 = por %p96, %p97
      %s100 = sadd.s32 %s99, 1
      %p103 = scmp.eq.s32.totalorder %s23, 1
      %p104 = scmp.ne.s32.totalorder %s99, %s101
      %p105 = scmp.eq.s32.totalorder %s23, 0
      %p106 = por %p104, %p105
      %p107 = scmp.ne.s32.totalorder %s99, %s101
      %p108 = scmp.eq.s32.totalorder %s28, 1
      %p109 = por %p107, %p108
      %p110 = scmp.ne.s32.totalorder %s101, %s102
      %p111 = scmp.eq.s32.totalorder %s28, 0
      %p112 = por %p110, %p111
      %p113 = scmp.ne.s32.totalorder %s101, %s102
      %p114 = scmp.eq.s32.totalorder %s29, 1
      %p115 = por %p113, %p114
      %p117 = scmp.ne.s32.totalorder %s102, %s116
      %p118 = scmp.eq.s32.totalorder %s29, 0
      %p119 = por %p117, %p118
      %s121 = sadd.s32 %s120, 1
      %p124 = scmp.eq.s32.totalorder %s23, 1
      %p125 = scmp.ne.s32.totalorder %s120, %s122
      %p126 = scmp.eq.s32.totalorder %s23, 0
      %p127 = por %p125, %p126
      %p128 = scmp.ne.s32.totalorder %s120, %s122
      %p129 = scmp.eq.s32.totalorder %s28, 1
      %p130 = por %p128, %p129
      %p131 = scmp.ne.s32.totalorder %s122, %s123
      %p132 = scmp.eq.s32.totalorder %s28, 0
      %p133 = por %p131, %p132
      %p134 = scmp.ne.s32.totalorder %s122, %s123
      %p135 = scmp.eq.s32.totalorder %s29, 1
      %p136 = por %p134, %p135
      %p138 = scmp.ne.s32.totalorder %s123, %s137
      %p139 = scmp.eq.s32.totalorder %s29, 0
      %p140 = por %p138, %p139
      %s142 = sadd.s32 %s141, 1
      %p145 = scmp.eq.s32.totalorder %s23, 1
      %p146 = scmp.ne.s32.totalorder %s141, %s143
      %p147 = scmp.eq.s32.totalorder %s23, 0
      %p148 = por %p146, %p147
      %p149 = scmp.ne.s32.totalorder %s141, %s143
      %p150 = scmp.eq.s32.totalorder %s28, 1
      %p151 = por %p149, %p150
      %p152 = scmp.ne.s32.totalorder %s143, %s144
      %p153 = scmp.eq.s32.totalorder %s28, 0
      %p154 = por %p152, %p153
      %p155 = scmp.ne.s32.totalorder %s143, %s144
      %p156 = scmp.eq.s32.totalorder %s29, 1
      %p157 = por %p155, %p156
      %p159 = scmp.ne.s32.totalorder %s144, %s158
      %p160 = scmp.eq.s32.totalorder %s29, 0
      %p161 = por %p159, %p160
      %s163 = sadd.s32 %s162, 1
      %p166 = scmp.eq.s32.totalorder %s23, 1
      %p167 = scmp.ne.s32.totalorder %s162, %s164
      %p168 = scmp.eq.s32.totalorder %s23, 0
      %p169 = por %p167, %p168
      %p170 = scmp.ne.s32.totalorder %s162, %s164
      %p171 = scmp.eq.s32.totalorder %s28, 1
      %p172 = por %p170, %p171
      %p173 = scmp.ne.s32.totalorder %s164, %s165
      %p174 = scmp.eq.s32.totalorder %s28, 0
      %p175 = por %p173, %p174
      %p176 = scmp.ne.s32.totalorder %s164, %s165
      %p177 = scmp.eq.s32.totalorder %s29, 1
      %p178 = por %p176, %p177
      %p180 = scmp.ne.s32.totalorder %s165, %s179
      %p181 = scmp.eq.s32.totalorder %s29, 0
      %p182 = por %p180, %p181
      %s184 = sadd.s32 %s183, 1
      %p187 = scmp.eq.s32.totalorder %s23, 1
      %p188 = scmp.ne.s32.totalorder %s183, %s185
      %p189 = scmp.eq.s32.totalorder %s23, 0
      %p190 = por %p188, %p189
      %p191 = scmp.ne.s32.totalorder %s183, %s185
      %p192 = scmp.eq.s32.totalorder %s28, 1
      %p193 = por %p191, %p192
      %p194 = scmp.ne.s32.totalorder %s185, %s186
      %p195 = scmp.eq.s32.totalorder %s28, 0
      %p196 = por %p194, %p195
      %p197 = scmp.ne.s32.totalorder %s185, %s186
      %p198 = scmp.eq.s32.totalorder %s29, 1
      %p199 = por %p197, %p198
      %p201 = scmp.ne.s32.totalorder %s186, %s200
      %p202 = scmp.eq.s32.totalorder %s29, 0
      %p203 = por %p201, %p202
      %s205 = sadd.s32 %s204, 1
      %p208 = scmp.eq.s32.totalorder %s23, 1
      %p209 = scmp.ne.s32.totalorder %s204, %s206
      %p210 = scmp.eq.s32.totalorder %s23, 0
      %p211 = por %p209, %p210
      %p212 = scmp.ne.s32.totalorder %s204, %s206
      %p213 = scmp.eq.s32.totalorder %s28, 1
      %p214 = por %p212, %p213
      %p215 = scmp.ne.s32.totalorder %s206, %s207
      %p216 = scmp.eq.s32.totalorder %s28, 0
      %p217 = por %p215, %p216
      %p218 = scmp.ne.s32.totalorder %s206, %s207
      %p219 = scmp.eq.s32.totalorder %s29, 1
      %p220 = por %p218, %p219
      %p222 = scmp.ne.s32.totalorder %s207, %s221
      %p223 = scmp.eq.s32.totalorder %s29, 0
      %p224 = por %p222, %p223
      %s226 = sadd.s32 %s225, 1
      %p229 = scmp.eq.s32.totalorder %s23, 1
      %p230 = scmp.ne.s32.totalorder %s225, %s227
      %p231 = scmp.eq.s32.totalorder %s23, 0
      %p232 = por %p230, %p231
      %p233 = scmp.ne.s32.totalorder %s225, %s227
      %p234 = scmp.eq.s32.totalorder %s28, 1
      %p235 = por %p233, %p234
      %p236 = scmp.ne.s32.totalorder %s227, %s228
      %p237 = scmp.eq.s32.totalorder %s28, 0
      %p238 = por %p236, %p237
      %p239 = scmp.ne.s32.totalorder %s227, %s228
      %p240 = scmp.eq.s32.totalorder %s29, 1
      %p241 = por %p239, %p240
      %p243 = scmp.ne.s32.totalorder %s228, %s242
      %p244 = scmp.eq.s32.totalorder %s29, 0
      %p245 = por %p243, %p244
      %s247 = sadd.s32 %s246, 1
      %p250 = scmp.eq.s32.totalorder %s23, 1
      %p251 = scmp.ne.s32.totalorder %s246, %s248
      %p252 = scmp.eq.s32.totalorder %s23, 0
      %p253 = por %p251, %p252
      %p254 = scmp.ne.s32.totalorder %s246, %s248
      %p255 = scmp.eq.s32.totalorder %s28, 1
      %p256 = por %p254, %p255
      %p257 = scmp.ne.s32.totalorder %s248, %s249
      %p258 = scmp.eq.s32.totalorder %s28, 0
      %p259 = por %p257, %p258
      %p260 = scmp.ne.s32.totalorder %s248, %s249
      %p261 = scmp.eq.s32.totalorder %s29, 1
      %p262 = por %p260, %p261
      %p264 = scmp.ne.s32.totalorder %s249, %s263
      %p265 = scmp.eq.s32.totalorder %s29, 0
      %p266 = por %p264, %p265
      %s268 = sadd.s32 %s267, 1
      %p271 = scmp.eq.s32.totalorder %s23, 1
      %p272 = scmp.ne.s32.totalorder %s267, %s269
      %p273 = scmp.eq.s32.totalorder %s23, 0
      %p274 = por %p272, %p273
      %p275 = scmp.ne.s32.totalorder %s267, %s269
      %p276 = scmp.eq.s32.totalorder %s28, 1
      %p277 = por %p275, %p276
      %p278 = scmp.ne.s32.totalorder %s269, %s270
      %p279 = scmp.eq.s32.totalorder %s28, 0
      %p280 = por %p278, %p279
      %p281 = scmp.ne.s32.totalorder %s269, %s270
      %p282 = scmp.eq.s32.totalorder %s29, 1
      %p283 = por %p281, %p282
      %p285 = scmp.ne.s32.totalorder %s270, %s284
      %p286 = scmp.eq.s32.totalorder %s29, 0
      %p287 = por %p285, %p286
      %s289 = sadd.s32 %s288, 1
      %p292 = scmp.eq.s32.totalorder %s23, 1
      %p293 = scmp.ne.s32.totalorder %s288, %s290
      %p294 = scmp.eq.s32.totalorder %s23, 0
      %p295 = por %p293, %p294
      %p296 = scmp.ne.s32.totalorder %s288, %s290
      %p297 = scmp.eq.s32.totalorder %s28, 1
      %p298 = por %p296, %p297
      %p299 = scmp.ne.s32.totalorder %s290, %s291
      %p300 = scmp.eq.s32.totalorder %s28, 0
      %p301 = por %p299, %p300
      %p302 = scmp.ne.s32.totalorder %s290, %s291
      %p303 = scmp.eq.s32.totalorder %s29, 1
      %p304 = por %p302, %p303
      %p306 = scmp.ne.s32.totalorder %s291, %s305
      %p307 = scmp.eq.s32.totalorder %s29, 0
      %p308 = por %p306, %p307
      %s310 = sadd.s32 %s309, 1
      %p313 = scmp.eq.s32.totalorder %s23, 1
      %p314 = scmp.ne.s32.totalorder %s309, %s311
      %p315 = scmp.eq.s32.totalorder %s23, 0
      %p316 = por %p314, %p315
      %p317 = scmp.ne.s32.totalorder %s309, %s311
      %p318 = scmp.eq.s32.totalorder %s28, 1
      %p319 = por %p317, %p318
      %p320 = scmp.ne.s32.totalorder %s311, %s312
      %p321 = scmp.eq.s32.totalorder %s28, 0
      %p322 = por %p320, %p321
      %p323 = scmp.ne.s32.totalorder %s311, %s312
      %p324 = scmp.eq.s32.totalorder %s29, 1
      %p325 = por %p323, %p324
      %p327 = scmp.ne.s32.totalorder %s312, %s326
      %p328 = scmp.eq.s32.totalorder %s29, 0
      %p329 = por %p327, %p328
      %s330 = ssub.s32 %s23, %s30
      %p331 = scmp.eq.s32.totalorder %s330, 0
      %s333 = sadd.s32 %s332, 1
      %s334 = scalar_select %p331, %s332, %s333
      %p337 = pneg %p331
      %p338 = scmp.eq.s32.totalorder %s23, 1
      %p339 = por %p337, %p338
      %p340 = scmp.ne.s32.totalorder %s332, %s335
      %p341 = scmp.eq.s32.totalorder %s23, 0
      %p342 = por %p340, %p341
      %p343 = scmp.ne.s32.totalorder %s332, %s335
      %p344 = scmp.eq.s32.totalorder %s28, 1
      %p345 = por %p343, %p344
      %p346 = scmp.ne.s32.totalorder %s335, %s336
      %p347 = scmp.eq.s32.totalorder %s28, 0
      %p348 = por %p346, %p347
      %p349 = scmp.ne.s32.totalorder %s335, %s336
      %p350 = scmp.eq.s32.totalorder %s29, 1
      %p351 = por %p349, %p350
      %p353 = scmp.ne.s32.totalorder %s336, %s352
      %p354 = scmp.eq.s32.totalorder %s29, 0
      %p355 = por %p353, %p354
      %p356 = scmp.le.s32.totalorder 1, %s23
      %p357 = scmp.lt.s32.totalorder %s23, 3
      %p358 = pnand %p356, %p357
      %p359 = pneg %p358
      // Predicated region
      $region9: #{tpu_custom_call.1} parent=5 // pred_check
        _
      $region10: #{tpu_custom_call.1} parent=5 // pred_check_branch
        %361 = sbr.rel (%p358) target = $region12
      $region11: #{tpu_custom_call.1} parent=5 // pred_region
        %s362 = ssub.s32 %s23, 1
        // Predicated region
        $region13: #{tpu_custom_call.1} parent=11 // pred_check
          %p363 = pneg %p70
        $region14: #{tpu_custom_call.1} parent=11 // pred_check_branch
          %365 = sbr.rel (%p363) target = $region16
        $region15: #{tpu_custom_call.1} parent=11 // pred_region
          _
        $region16: #{tpu_custom_call.1} parent=11 // pred_fallthru
          _
        // Predicated region
        $region17: #{tpu_custom_call.1} parent=11 // pred_check
          %p366 = pneg %p91
        $region18: #{tpu_custom_call.1} parent=11 // pred_check_branch
          %368 = sbr.rel (%p366) target = $region20
        $region19: #{tpu_custom_call.1} parent=11 // pred_region
          _
        $region20: #{tpu_custom_call.1} parent=11 // pred_fallthru
          _
        // Predicated region
        $region21: #{tpu_custom_call.1} parent=11 // pred_check
          %p369 = pneg %p112
        $region22: #{tpu_custom_call.1} parent=11 // pred_check_branch
          %371 = sbr.rel (%p369) target = $region24
        $region23: #{tpu_custom_call.1} parent=11 // pred_region
          _
        $region24: #{tpu_custom_call.1} parent=11 // pred_fallthru
          _
        // Predicated region
        $region25: #{tpu_custom_call.1} parent=11 // pred_check
          %p372 = pneg %p133
        $region26: #{tpu_custom_call.1} parent=11 // pred_check_branch
          %374 = sbr.rel (%p372) target = $region28
        $region27: #{tpu_custom_call.1} parent=11 // pred_region
          _
        $region28: #{tpu_custom_call.1} parent=11 // pred_fallthru
          _
        // Predicated region
        $region29: #{tpu_custom_call.1} parent=11 // pred_check
          %p375 = pneg %p154
        $region30: #{tpu_custom_call.1} parent=11 // pred_check_branch
          %377 = sbr.rel (%p375) target = $region32
        $region31: #{tpu_custom_call.1} parent=11 // pred_region
          _
        $region32: #{tpu_custom_call.1} parent=11 // pred_fallthru
          _
        // Predicated region
        $region33: #{tpu_custom_call.1} parent=11 // pred_check
          %p378 = pneg %p175
        $region34: #{tpu_custom_call.1} parent=11 // pred_check_branch
          %380 = sbr.rel (%p378) target = $region36
        $region35: #{tpu_custom_call.1} parent=11 // pred_region
          _
        $region36: #{tpu_custom_call.1} parent=11 // pred_fallthru
          _
        // Predicated region
        $region37: #{tpu_custom_call.1} parent=11 // pred_check
          %p381 = pneg %p196
        $region38: #{tpu_custom_call.1} parent=11 // pred_check_branch
          %383 = sbr.rel (%p381) target = $region40
        $region39: #{tpu_custom_call.1} parent=11 // pred_region
          _
        $region40: #{tpu_custom_call.1} parent=11 // pred_fallthru
          _
        // Predicated region
        $region41: #{tpu_custom_call.1} parent=11 // pred_check
          %p384 = pneg %p217
        $region42: #{tpu_custom_call.1} parent=11 // pred_check_branch
          %386 = sbr.rel (%p384) target = $region44
        $region43: #{tpu_custom_call.1} parent=11 // pred_region
          _
        $region44: #{tpu_custom_call.1} parent=11 // pred_fallthru
          _
        // Predicated region
        $region45: #{tpu_custom_call.1} parent=11 // pred_check
          %p387 = pneg %p238
        $region46: #{tpu_custom_call.1} parent=11 // pred_check_branch
          %389 = sbr.rel (%p387) target = $region48
        $region47: #{tpu_custom_call.1} parent=11 // pred_region
          _
        $region48: #{tpu_custom_call.1} parent=11 // pred_fallthru
          _
        // Predicated region
        $region49: #{tpu_custom_call.1} parent=11 // pred_check
          %p390 = pneg %p259
        $region50: #{tpu_custom_call.1} parent=11 // pred_check_branch
          %392 = sbr.rel (%p390) target = $region52
        $region51: #{tpu_custom_call.1} parent=11 // pred_region
          _
        $region52: #{tpu_custom_call.1} parent=11 // pred_fallthru
          _
        // Predicated region
        $region53: #{tpu_custom_call.1} parent=11 // pred_check
          %p393 = pneg %p280
        $region54: #{tpu_custom_call.1} parent=11 // pred_check_branch
          %395 = sbr.rel (%p393) target = $region56
        $region55: #{tpu_custom_call.1} parent=11 // pred_region
          _
        $region56: #{tpu_custom_call.1} parent=11 // pred_fallthru
          _
        // Predicated region
        $region57: #{tpu_custom_call.1} parent=11 // pred_check
          %p396 = pneg %p301
        $region58: #{tpu_custom_call.1} parent=11 // pred_check_branch
          %398 = sbr.rel (%p396) target = $region60
        $region59: #{tpu_custom_call.1} parent=11 // pred_region
          _
        $region60: #{tpu_custom_call.1} parent=11 // pred_fallthru
          _
        // Predicated region
        $region61: #{tpu_custom_call.1} parent=11 // pred_check
          %p399 = pneg %p322
        $region62: #{tpu_custom_call.1} parent=11 // pred_check_branch
          %401 = sbr.rel (%p399) target = $region64
        $region63: #{tpu_custom_call.1} parent=11 // pred_region
          _
        $region64: #{tpu_custom_call.1} parent=11 // pred_fallthru
          _
      $region12: #{tpu_custom_call.1} parent=5 // pred_fallthru
        _
      %p402 = scmp.lt.s32.totalorder %s23, 2
      // Predicated region
      $region65: #{tpu_custom_call.1} parent=5 // pred_check
        %p403 = pneg %p402
      $region66: #{tpu_custom_call.1} parent=5 // pred_check_branch
        %405 = sbr.rel (%p403) target = $region68
      $region67: #{tpu_custom_call.1} parent=5 // pred_region
        // Predicated region
        $region69: #{tpu_custom_call.1} parent=67 // pred_check
          %p406 = pneg %p43
        $region70: #{tpu_custom_call.1} parent=67 // pred_check_branch
          %408 = sbr.rel (%p406) target = $region72
        $region71: #{tpu_custom_call.1} parent=67 // pred_region
          %p409 = scmp.lt.s32.totalorder %s23, 1
          %s410 = scalar_select %p409, %s23, 1
          %s411 = smul.addr %s410, 2
          %s412 = smul.addr %s411, 8
          %s413 = scalar_lea.vmem %s0, %s412
        $region72: #{tpu_custom_call.1} parent=67 // pred_fallthru
          _
      $region68: #{tpu_custom_call.1} parent=5 // pred_fallthru
        _
      %p414 = scmp.le.s32.totalorder 1, %s23
      %p415 = scmp.lt.s32.totalorder %s23, 3
      %p416 = pnand %p414, %p415
      %p417 = pneg %p416
      // Predicated region
      $region73: #{tpu_custom_call.1} parent=5 // pred_check
        _
      $region74: #{tpu_custom_call.1} parent=5 // pred_check_branch
        %419 = sbr.rel (%p416) target = $region76
      $region75: #{tpu_custom_call.1} parent=5 // pred_region
        %s420 = ssub.s32 %s23, 1
        %p421 = scmp.lt.s32.totalorder %s28, 1
        %s422 = scalar_select %p421, %s28, 1
        %s423 = smul.addr %s422, 2
        %s424 = smul.addr %s423, 8
        %s425 = scalar_lea.vmem %s0, %s424
        %p426 = pneg %p49
        %p427 = pneg %p46
        %p428 = pneg %p70
        %p429 = pneg %p67
        %p430 = pneg %p91
        %p431 = pneg %p88
        %p432 = pneg %p112
        %p433 = pneg %p109
        %p434 = pneg %p133
        %p435 = pneg %p130
        %p436 = pneg %p154
        %p437 = pneg %p151
        %p438 = pneg %p175
        %p439 = pneg %p172
        %p440 = pneg %p196
        %p441 = pneg %p193
        %p442 = pneg %p217
        %p443 = pneg %p214
        %p444 = pneg %p238
        %p445 = pneg %p235
        %p446 = pneg %p259
        %p447 = pneg %p256
        %p448 = pneg %p280
        %p449 = pneg %p277
        %p450 = pneg %p301
        %p451 = pneg %p298
        %p452 = pneg %p322
        %p453 = pneg %p319
        %p454 = pneg %p348
        %p455 = pneg %p345
        %s456 = sand.u32 %s335, 1
        %s457 = scalar_lea.sflag [#allocation3], %s456
        %s458 = sand.u32 %s335, 1
        %s459 = smul.addr %s458, 16
        %s460 = scalar_lea.vmem [#allocation2], %s459
        %p461 = scmp.lt.s32.totalorder %s28, 1
        %s462 = scalar_select %p461, %s28, 1
        %s463 = smul.addr %s462, 2
        %s464 = smul.addr %s463, 8
        %s465 = scalar_lea.vmem %s0, %s464
        %v467 = vld [vmem:[%s465] sm:$0xff]
        %v468 = vld [vmem:[%s465 + $0x8] sm:$0xff]
        %v469 = vld [vmem:[%s6] sm:$0x1]
        %v470 = vld [vmem:[%s7] sm:$0x1]
        %vm471 = vcmask 523264
        %v472 = vsel %vm471, %v467, 0.0
        %473 = vadd.xlane.f32.xlu0 %v472
        %v474 = vpop.xlane.xlu0 %473
        %v475 = vsel %vm471, %v468, 0.0
        %476 = vadd.xlane.f32.xlu0 %v475
        %v477 = vpop.xlane.xlu0 %476
        %v478 = vrcp.pop 64.0
        %v479 = vmul.f32 %v474, %v478
        %v480 = vmul.f32 %v477, %v478
        %v481 = vsub.f32 %v467, %v479
        %v482 = vsub.f32 %v468, %v480
        %v483 = vmul.f32 %v481, %v481
        %v484 = vmul.f32 %v482, %v482
        %v485 = vsel %vm471, %v483, 0.0
        %486 = vadd.xlane.f32.xlu0 %v485
        %v487 = vpop.xlane.xlu0 %486
        %v488 = vsel %vm471, %v484, 0.0
        %489 = vadd.xlane.f32.xlu0 %v488
        %v490 = vpop.xlane.xlu0 %489
        %v491 = vmul.f32 %v487, %v478
        %v492 = vmul.f32 %v490, %v478
        %v493 = vadd.f32 %v491, 1e-05
        %v494 = vadd.f32 %v492, 1e-05
        %v495 = vrsqrt.pop %v493
        %v496 = vrsqrt.pop %v494
        %v497 = vmul.f32 %v481, %v495
        %v498 = vmul.f32 %v482, %v496
        %v500 = vlaneseq
        %v501 = vshrl.u32 %v500, 7
        %v502 = vsub.s32 0, %v501
        %v503 = vrot.slane %v469, %v502
        %v505 = vmul.f32 %v497, %v503
        %v506 = vmul.f32 %v498, %v503
        %v508 = vlaneseq
        %v509 = vshrl.u32 %v508, 7
        %v510 = vsub.s32 0, %v509
        %v511 = vrot.slane %v470, %v510
        %v513 = vadd.f32 %v505, %v511
        %v514 = vadd.f32 %v506, %v511
        %v515 = vpack.c.bf16 %v514, %v513
        %v516 = vld [vmem:[%s1] sm:$0xf]
        %v517 = vld [vmem:[%s1 + $0x4] sm:$0xf]
        %v518 = vld [vmem:[%s1 + $0x8] sm:$0xf]
        %v519 = vld [vmem:[%s1 + $0xc] sm:$0xf]
        %v520 = vld [vmem:[%s1 + $0x10] sm:$0xf]
        %v521 = vld [vmem:[%s1 + $0x14] sm:$0xf]
        %v522 = vld [vmem:[%s1 + $0x18] sm:$0xf]
        %v523 = vld [vmem:[%s1 + $0x1c] sm:$0xf]
        %v524 = vld [vmem:[%s1 + $0x20] sm:$0xf]
        %v525 = vld [vmem:[%s1 + $0x24] sm:$0xf]
        %v526 = vld [vmem:[%s1 + $0x28] sm:$0xf]
        %v527 = vld [vmem:[%s1 + $0x2c] sm:$0xf]
        %v528 = vld [vmem:[%s1 + $0x30] sm:$0xf]
        %v529 = vld [vmem:[%s1 + $0x34] sm:$0xf]
        %v530 = vld [vmem:[%s1 + $0x38] sm:$0xf]
        %v531 = vld [vmem:[%s1 + $0x3c] sm:$0xf]
        %v532 = vld [vmem:[%s1 + $0x40] sm:$0xf]
        %v533 = vld [vmem:[%s1 + $0x44] sm:$0xf]
        %v534 = vld [vmem:[%s1 + $0x48] sm:$0xf]
        %v535 = vld [vmem:[%s1 + $0x4c] sm:$0xf]
        %v536 = vld [vmem:[%s1 + $0x50] sm:$0xf]
        %v537 = vld [vmem:[%s1 + $0x54] sm:$0xf]
        %v538 = vld [vmem:[%s1 + $0x58] sm:$0xf]
        %v539 = vld [vmem:[%s1 + $0x5c] sm:$0xf]
        %v540 = vld [vmem:[%s1 + $0x60] sm:$0xf]
        %v541 = vld [vmem:[%s1 + $0x64] sm:$0xf]
        %v542 = vld [vmem:[%s1 + $0x68] sm:$0xf]
        %v543 = vld [vmem:[%s1 + $0x6c] sm:$0xf]
        %v544 = vld [vmem:[%s1 + $0x70] sm:$0xf]
        %v545 = vld [vmem:[%s1 + $0x74] sm:$0xf]
        %v546 = vld [vmem:[%s1 + $0x78] sm:$0xf]
        %v547 = vld [vmem:[%s1 + $0x7c] sm:$0xf]
        %v548 = vld [vmem:[%s1 + $0x80] sm:$0xf]
        %v549 = vld [vmem:[%s1 + $0x84] sm:$0xf]
        %v550 = vld [vmem:[%s1 + $0x88] sm:$0xf]
        %v551 = vld [vmem:[%s1 + $0x8c] sm:$0xf]
        %v552 = vld [vmem:[%s1 + $0x90] sm:$0xf]
        %v553 = vld [vmem:[%s1 + $0x94] sm:$0xf]
        %v554 = vld [vmem:[%s1 + $0x98] sm:$0xf]
        %v555 = vld [vmem:[%s1 + $0x9c] sm:$0xf]
        %v556 = vld [vmem:[%s1 + $0xa0] sm:$0xf]
        %v557 = vld [vmem:[%s1 + $0xa4] sm:$0xf]
        %v558 = vld [vmem:[%s1 + $0xa8] sm:$0xf]
        %v559 = vld [vmem:[%s1 + $0xac] sm:$0xf]
        %v560 = vld [vmem:[%s1 + $0xb0] sm:$0xf]
        %v561 = vld [vmem:[%s1 + $0xb4] sm:$0xf]
        %v562 = vld [vmem:[%s1 + $0xb8] sm:$0xf]
        %v563 = vld [vmem:[%s1 + $0xbc] sm:$0xf]
        %v564 = vld [vmem:[%s1 + $0xc0] sm:$0xf]
        %v565 = vld [vmem:[%s1 + $0xc4] sm:$0xf]
        %v566 = vld [vmem:[%s1 + $0xc8] sm:$0xf]
        %v567 = vld [vmem:[%s1 + $0xcc] sm:$0xf]
        %v568 = vld [vmem:[%s1 + $0xd0] sm:$0xf]
        %v569 = vld [vmem:[%s1 + $0xd4] sm:$0xf]
        %v570 = vld [vmem:[%s1 + $0xd8] sm:$0xf]
        %v571 = vld [vmem:[%s1 + $0xdc] sm:$0xf]
        %v572 = vld [vmem:[%s1 + $0xe0] sm:$0xf]
        %v573 = vld [vmem:[%s1 + $0xe4] sm:$0xf]
        %v574 = vld [vmem:[%s1 + $0xe8] sm:$0xf]
        %v575 = vld [vmem:[%s1 + $0xec] sm:$0xf]
        %v576 = vld [vmem:[%s1 + $0xf0] sm:$0xf]
        %v577 = vld [vmem:[%s1 + $0xf4] sm:$0xf]
        %v578 = vld [vmem:[%s1 + $0xf8] sm:$0xf]
        %v579 = vld [vmem:[%s1 + $0xfc] sm:$0xf]
        %v588 = vunpack.c.l.b16 %v516
        %v589 = vunpack.c.l.b16 %v517
        %v590 = vunpack.c.l.b16 %v518
        %v591 = vunpack.c.l.b16 %v519
        %v592 = vunpack.c.l.b16 %v520
        %v593 = vunpack.c.l.b16 %v521
        %v594 = vunpack.c.l.b16 %v522
        %v595 = vunpack.c.l.b16 %v523
        %v596 = vpack.c.b16 %v589, %v588
        %v597 = vpack.c.b16 %v591, %v590
        %v598 = vpack.c.b16 %v593, %v592
        %v599 = vpack.c.b16 %v595, %v594
        %v605 = vsel %vm471, %v515, 0
        %607 = vmatprep.subr.bf16.mxu0 0
        %608 = vmatpush1.bf16.msra.mxu0 %v596
        %609 = vmatprep.subr.bf16.mxu0 0
        %610 = vmatpush1.bf16.msra.mxu0 %v597
        %611 = vmatprep.subr.bf16.mxu0 0
        %612 = vmatpush1.bf16.msra.mxu0 %v598
        %613 = vmatprep.subr.bf16.mxu0 0
        %614 = vmatpush1.bf16.msra.mxu0 %v599
        %615 = vmatprep.subr.bf16.mxu0 0
        %616 = vmatpush1.bf16.msra.mxu0 0
        %617 = vmatprep.subr.bf16.mxu0 0
        %618 = vmatpush1.bf16.msra.mxu0 0
        %619 = vmatprep.subr.bf16.mxu0 0
        %620 = vmatpush1.bf16.msra.mxu0 0
        %621 = vmatprep.subr.bf16.mxu0 0
        %622 = vmatpush1.bf16.msra.mxu0 0
        %623 = vmatprep.subr.bf16.mxu0 0
        %624 = vmatpush1.bf16.msra.mxu0 0
        %625 = vmatprep.subr.bf16.mxu0 0
        %626 = vmatpush1.bf16.msra.mxu0 0
        %627 = vmatprep.subr.bf16.mxu0 0
        %628 = vmatpush1.bf16.msra.mxu0 0
        %629 = vmatprep.subr.bf16.mxu0 0
        %630 = vmatpush1.bf16.msra.mxu0 0
        %631 = vmatprep.subr.bf16.mxu0 0
        %632 = vmatpush1.bf16.msra.mxu0 0
        %633 = vmatprep.subr.bf16.mxu0 0
        %634 = vmatpush1.bf16.msra.mxu0 0
        %635 = vmatprep.subr.bf16.mxu0 0
        %636 = vmatpush1.bf16.msra.mxu0 0
        %637 = vmatprep.subr.bf16.mxu0 0
        %638 = vmatpush1.bf16.msra.mxu0 0
        %639 = vmatprep.mubr.bf16.mxu0 0
        %640 = vmatmul.mubr.bf16.gmra.mrb[0].mxu0 %v605
        %v641 = vpop.f32.mrb[0].mxu0
        %v642 = vadd.f32 0.0, %v641
        %v643 = vpop.f32.mrb[0].mxu0
        %v644 = vpop.f32.mrb[0].mxu0
        %v645 = vadd.f32 0.0, %v644
        %v646 = vpop.f32.mrb[0].mxu0
        %647 = vdwg.mxu0
        %v656 = vunpack.c.l.b16 %v524
        %v657 = vunpack.c.l.b16 %v525
        %v658 = vunpack.c.l.b16 %v526
        %v659 = vunpack.c.l.b16 %v527
        %v660 = vunpack.c.l.b16 %v528
        %v661 = vunpack.c.l.b16 %v529
        %v662 = vunpack.c.l.b16 %v530
        %v663 = vunpack.c.l.b16 %v531
        %v664 = vpack.c.b16 %v657, %v656
        %v665 = vpack.c.b16 %v659, %v658
        %v666 = vpack.c.b16 %v661, %v660
        %v667 = vpack.c.b16 %v663, %v662
        %672 = vmatprep.subr.bf16.mxu0 0
        %673 = vmatpush1.bf16.msra.mxu0 %v664
        %674 = vmatprep.subr.bf16.mxu0 0
        %675 = vmatpush1.bf16.msra.mxu0 %v665
        %676 = vmatprep.subr.bf16.mxu0 0
        %677 = vmatpush1.bf16.msra.mxu0 %v666
        %678 = vmatprep.subr.bf16.mxu0 0
        %679 = vmatpush1.bf16.msra.mxu0 %v667
        %680 = vmatprep.subr.bf16.mxu0 0
        %681 = vmatpush1.bf16.msra.mxu0 0
        %682 = vmatprep.subr.bf16.mxu0 0
        %683 = vmatpush1.bf16.msra.mxu0 0
        %684 = vmatprep.subr.bf16.mxu0 0
        %685 = vmatpush1.bf16.msra.mxu0 0
        %686 = vmatprep.subr.bf16.mxu0 0
        %687 = vmatpush1.bf16.msra.mxu0 0
        %688 = vmatprep.subr.bf16.mxu0 0
        %689 = vmatpush1.bf16.msra.mxu0 0
        %690 = vmatprep.subr.bf16.mxu0 0
        %691 = vmatpush1.bf16.msra.mxu0 0
        %692 = vmatprep.subr.bf16.mxu0 0
        %693 = vmatpush1.bf16.msra.mxu0 0
        %694 = vmatprep.subr.bf16.mxu0 0
        %695 = vmatpush1.bf16.msra.mxu0 0
        %696 = vmatprep.subr.bf16.mxu0 0
        %697 = vmatpush1.bf16.msra.mxu0 0
        %698 = vmatprep.subr.bf16.mxu0 0
        %699 = vmatpush1.bf16.msra.mxu0 0
        %700 = vmatprep.subr.bf16.mxu0 0
        %701 = vmatpush1.bf16.msra.mxu0 0
        %702 = vmatprep.subr.bf16.mxu0 0
        %703 = vmatpush1.bf16.msra.mxu0 0
        %704 = vmatprep.mubr.bf16.mxu0 0
        %705 = vmatmul.mubr.bf16.gmra.mrb[0].mxu0 %v605
        %v706 = vpop.f32.mrb[0].mxu0
        %v707 = vadd.f32 0.0, %v706
        %v708 = vpop.f32.mrb[0].mxu0
        %v709 = vpop.f32.mrb[0].mxu0
        %v710 = vadd.f32 0.0, %v709
        %v711 = vpop.f32.mrb[0].mxu0
        %712 = vdwg.mxu0
        %v721 = vunpack.c.l.b16 %v532
        %v722 = vunpack.c.l.b16 %v533
        %v723 = vunpack.c.l.b16 %v534
        %v724 = vunpack.c.l.b16 %v535
        %v725 = vunpack.c.l.b16 %v536
        %v726 = vunpack.c.l.b16 %v537
        %v727 = vunpack.c.l.b16 %v538
        %v728 = vunpack.c.l.b16 %v539
        %v729 = vpack.c.b16 %v722, %v721
        %v730 = vpack.c.b16 %v724, %v723
        %v731 = vpack.c.b16 %v726, %v725
        %v732 = vpack.c.b16 %v728, %v727
        %737 = vmatprep.subr.bf16.mxu0 0
        %738 = vmatpush1.bf16.msra.mxu0 %v729
        %739 = vmatprep.subr.bf16.mxu0 0
        %740 = vmatpush1.bf16.msra.mxu0 %v730
        %741 = vmatprep.subr.bf16.mxu0 0
        %742 = vmatpush1.bf16.msra.mxu0 %v731
        %743 = vmatprep.subr.bf16.mxu0 0
        %744 = vmatpush1.bf16.msra.mxu0 %v732
        %745 = vmatprep.subr.bf16.mxu0 0
        %746 = vmatpush1.bf16.msra.mxu0 0
        %747 = vmatprep.subr.bf16.mxu0 0
        %748 = vmatpush1.bf16.msra.mxu0 0
        %749 = vmatprep.subr.bf16.mxu0 0
        %750 = vmatpush1.bf16.msra.mxu0 0
        %751 = vmatprep.subr.bf16.mxu0 0
        %752 = vmatpush1.bf16.msra.mxu0 0
        %753 = vmatprep.subr.bf16.mxu0 0
        %754 = vmatpush1.bf16.msra.mxu0 0
        %755 = vmatprep.subr.bf16.mxu0 0
        %756 = vmatpush1.bf16.msra.mxu0 0
        %757 = vmatprep.subr.bf16.mxu0 0
        %758 = vmatpush1.bf16.msra.mxu0 0
        %759 = vmatprep.subr.bf16.mxu0 0
        %760 = vmatpush1.bf16.msra.mxu0 0
        %761 = vmatprep.subr.bf16.mxu0 0
        %762 = vmatpush1.bf16.msra.mxu0 0
        %763 = vmatprep.subr.bf16.mxu0 0
        %764 = vmatpush1.bf16.msra.mxu0 0
        %765 = vmatprep.subr.bf16.mxu0 0
        %766 = vmatpush1.bf16.msra.mxu0 0
        %767 = vmatprep.subr.bf16.mxu0 0
        %768 = vmatpush1.bf16.msra.mxu0 0
        %769 = vmatprep.mubr.bf16.mxu0 0
        %770 = vmatmul.mubr.bf16.gmra.mrb[0].mxu0 %v605
        %v771 = vpop.f32.mrb[0].mxu0
        %v772 = vadd.f32 0.0, %v771
        %v773 = vpop.f32.mrb[0].mxu0
        %v774 = vpop.f32.mrb[0].mxu0
        %v775 = vadd.f32 0.0, %v774
        %v776 = vpop.f32.mrb[0].mxu0
        %777 = vdwg.mxu0
        %v786 = vunpack.c.l.b16 %v540
        %v787 = vunpack.c.l.b16 %v541
        %v788 = vunpack.c.l.b16 %v542
        %v789 = vunpack.c.l.b16 %v543
        %v790 = vunpack.c.l.b16 %v544
        %v791 = vunpack.c.l.b16 %v545
        %v792 = vunpack.c.l.b16 %v546
        %v793 = vunpack.c.l.b16 %v547
        %v794 = vpack.c.b16 %v787, %v786
        %v795 = vpack.c.b16 %v789, %v788
        %v796 = vpack.c.b16 %v791, %v790
        %v797 = vpack.c.b16 %v793, %v792
        %802 = vmatprep.subr.bf16.mxu0 0
        %803 = vmatpush1.bf16.msra.mxu0 %v794
        %804 = vmatprep.subr.bf16.mxu0 0
        %805 = vmatpush1.bf16.msra.mxu0 %v795
        %806 = vmatprep.subr.bf16.mxu0 0
        %807 = vmatpush1.bf16.msra.mxu0 %v796
        %808 = vmatprep.subr.bf16.mxu0 0
        %809 = vmatpush1.bf16.msra.mxu0 %v797
        %810 = vmatprep.subr.bf16.mxu0 0
        %811 = vmatpush1.bf16.msra.mxu0 0
        %812 = vmatprep.subr.bf16.mxu0 0
        %813 = vmatpush1.bf16.msra.mxu0 0
        %814 = vmatprep.subr.bf16.mxu0 0
        %815 = vmatpush1.bf16.msra.mxu0 0
        %816 = vmatprep.subr.bf16.mxu0 0
        %817 = vmatpush1.bf16.msra.mxu0 0
        %818 = vmatprep.subr.bf16.mxu0 0
        %819 = vmatpush1.bf16.msra.mxu0 0
        %820 = vmatprep.subr.bf16.mxu0 0
        %821 = vmatpush1.bf16.msra.mxu0 0
        %822 = vmatprep.subr.bf16.mxu0 0
        %823 = vmatpush1.bf16.msra.mxu0 0
        %824 = vmatprep.subr.bf16.mxu0 0
        %825 = vmatpush1.bf16.msra.mxu0 0
        %826 = vmatprep.subr.bf16.mxu0 0
        %827 = vmatpush1.bf16.msra.mxu0 0
        %828 = vmatprep.subr.bf16.mxu0 0
        %829 = vmatpush1.bf16.msra.mxu0 0
        %830 = vmatprep.subr.bf16.mxu0 0
        %831 = vmatpush1.bf16.msra.mxu0 0
        %832 = vmatprep.subr.bf16.mxu0 0
        %833 = vmatpush1.bf16.msra.mxu0 0
        %834 = vmatprep.mubr.bf16.mxu0 0
        %835 = vmatmul.mubr.bf16.gmra.mrb[0].mxu0 %v605
        %v836 = vpop.f32.mrb[0].mxu0
        %v837 = vadd.f32 0.0, %v836
        %v838 = vpop.f32.mrb[0].mxu0
        %v839 = vpop.f32.mrb[0].mxu0
        %v840 = vadd.f32 0.0, %v839
        %v841 = vpop.f32.mrb[0].mxu0
        %842 = vdwg.mxu0
        %v851 = vunpack.c.l.b16 %v548
        %v852 = vunpack.c.l.b16 %v549
        %v853 = vunpack.c.l.b16 %v550
        %v854 = vunpack.c.l.b16 %v551
        %v855 = vunpack.c.l.b16 %v552
        %v856 = vunpack.c.l.b16 %v553
        %v857 = vunpack.c.l.b16 %v554
        %v858 = vunpack.c.l.b16 %v555
        %v859 = vpack.c.b16 %v852, %v851
        %v860 = vpack.c.b16 %v854, %v853
        %v861 = vpack.c.b16 %v856, %v855
        %v862 = vpack.c.b16 %v858, %v857
        %867 = vmatprep.subr.bf16.mxu0 0
        %868 = vmatpush1.bf16.msra.mxu0 %v859
        %869 = vmatprep.subr.bf16.mxu0 0
        %870 = vmatpush1.bf16.msra.mxu0 %v860
        %871 = vmatprep.subr.bf16.mxu0 0
        %872 = vmatpush1.bf16.msra.mxu0 %v861
        %873 = vmatprep.subr.bf16.mxu0 0
        %874 = vmatpush1.bf16.msra.mxu0 %v862
        %875 = vmatprep.subr.bf16.mxu0 0
        %876 = vmatpush1.bf16.msra.mxu0 0
        %877 = vmatprep.subr.bf16.mxu0 0
        %878 = vmatpush1.bf16.msra.mxu0 0
        %879 = vmatprep.subr.bf16.mxu0 0
        %880 = vmatpush1.bf16.msra.mxu0 0
        %881 = vmatprep.subr.bf16.mxu0 0
        %882 = vmatpush1.bf16.msra.mxu0 0
        %883 = vmatprep.subr.bf16.mxu0 0
        %884 = vmatpush1.bf16.msra.mxu0 0
        %885 = vmatprep.subr.bf16.mxu0 0
        %886 = vmatpush1.bf16.msra.mxu0 0
        %887 = vmatprep.subr.bf16.mxu0 0
        %888 = vmatpush1.bf16.msra.mxu0 0
        %889 = vmatprep.subr.bf16.mxu0 0
        %890 = vmatpush1.bf16.msra.mxu0 0
        %891 = vmatprep.subr.bf16.mxu0 0
        %892 = vmatpush1.bf16.msra.mxu0 0
        %893 = vmatprep.subr.bf16.mxu0 0
        %894 = vmatpush1.bf16.msra.mxu0 0
        %895 = vmatprep.subr.bf16.mxu0 0
        %896 = vmatpush1.bf16.msra.mxu0 0
        %897 = vmatprep.subr.bf16.mxu0 0
        %898 = vmatpush1.bf16.msra.mxu0 0
        %899 = vmatprep.mubr.bf16.mxu0 0
        %900 = vmatmul.mubr.bf16.gmra.mrb[0].mxu0 %v605
        %v901 = vpop.f32.mrb[0].mxu0
        %v902 = vadd.f32 0.0, %v901
        %v903 = vpop.f32.mrb[0].mxu0
        %v904 = vpop.f32.mrb[0].mxu0
        %v905 = vadd.f32 0.0, %v904
        %v906 = vpop.f32.mrb[0].mxu0
        %907 = vdwg.mxu0
        %v916 = vunpack.c.l.b16 %v556
        %v917 = vunpack.c.l.b16 %v557
        %v918 = vunpack.c.l.b16 %v558
        %v919 = vunpack.c.l.b16 %v559
        %v920 = vunpack.c.l.b16 %v560
        %v921 = vunpack.c.l.b16 %v561
        %v922 = vunpack.c.l.b16 %v562
        %v923 = vunpack.c.l.b16 %v563
        %v924 = vpack.c.b16 %v917, %v916
        %v925 = vpack.c.b16 %v919, %v918
        %v926 = vpack.c.b16 %v921, %v920
        %v927 = vpack.c.b16 %v923, %v922
        %932 = vmatprep.subr.bf16.mxu0 0
        %933 = vmatpush1.bf16.msra.mxu0 %v924
        %934 = vmatprep.subr.bf16.mxu0 0
        %935 = vmatpush1.bf16.msra.mxu0 %v925
        %936 = vmatprep.subr.bf16.mxu0 0
        %937 = vmatpush1.bf16.msra.mxu0 %v926
        %938 = vmatprep.subr.bf16.mxu0 0
        %939 = vmatpush1.bf16.msra.mxu0 %v927
        %940 = vmatprep.subr.bf16.mxu0 0
        %941 = vmatpush1.bf16.msra.mxu0 0
        %942 = vmatprep.subr.bf16.mxu0 0
        %943 = vmatpush1.bf16.msra.mxu0 0
        %944 = vmatprep.subr.bf16.mxu0 0
        %945 = vmatpush1.bf16.msra.mxu0 0
        %946 = vmatprep.subr.bf16.mxu0 0
        %947 = vmatpush1.bf16.msra.mxu0 0
        %948 = vmatprep.subr.bf16.mxu0 0
        %949 = vmatpush1.bf16.msra.mxu0 0
        %950 = vmatprep.subr.bf16.mxu0 0
        %951 = vmatpush1.bf16.msra.mxu0 0
        %952 = vmatprep.subr.bf16.mxu0 0
        %953 = vmatpush1.bf16.msra.mxu0 0
        %954 = vmatprep.subr.bf16.mxu0 0
        %955 = vmatpush1.bf16.msra.mxu0 0
        %956 = vmatprep.subr.bf16.mxu0 0
        %957 = vmatpush1.bf16.msra.mxu0 0
        %958 = vmatprep.subr.bf16.mxu0 0
        %959 = vmatpush1.bf16.msra.mxu0 0
        %960 = vmatprep.subr.bf16.mxu0 0
        %961 = vmatpush1.bf16.msra.mxu0 0
        %962 = vmatprep.subr.bf16.mxu0 0
        %963 = vmatpush1.bf16.msra.mxu0 0
        %964 = vmatprep.mubr.bf16.mxu0 0
        %965 = vmatmul.mubr.bf16.gmra.mrb[0].mxu0 %v605
        %v966 = vpop.f32.mrb[0].mxu0
        %v967 = vadd.f32 0.0, %v966
        %v968 = vpop.f32.mrb[0].mxu0
        %v969 = vpop.f32.mrb[0].mxu0
        %v970 = vadd.f32 0.0, %v969
        %v971 = vpop.f32.mrb[0].mxu0
        %972 = vdwg.mxu0
        %v981 = vunpack.c.l.b16 %v564
        %v982 = vunpack.c.l.b16 %v565
        %v983 = vunpack.c.l.b16 %v566
        %v984 = vunpack.c.l.b16 %v567
        %v985 = vunpack.c.l.b16 %v568
        %v986 = vunpack.c.l.b16 %v569
        %v987 = vunpack.c.l.b16 %v570
        %v988 = vunpack.c.l.b16 %v571
        %v989 = vpack.c.b16 %v982, %v981
        %v990 = vpack.c.b16 %v984, %v983
        %v991 = vpack.c.b16 %v986, %v985
        %v992 = vpack.c.b16 %v988, %v987
        %997 = vmatprep.subr.bf16.mxu0 0
        %998 = vmatpush1.bf16.msra.mxu0 %v989
        %999 = vmatprep.subr.bf16.mxu0 0
        %1000 = vmatpush1.bf16.msra.mxu0 %v990
        %1001 = vmatprep.subr.bf16.mxu0 0
        %1002 = vmatpush1.bf16.msra.mxu0 %v991
        %1003 = vmatprep.subr.bf16.mxu0 0
        %1004 = vmatpush1.bf16.msra.mxu0 %v992
        %1005 = vmatprep.subr.bf16.mxu0 0
        %1006 = vmatpush1.bf16.msra.mxu0 0
        %1007 = vmatprep.subr.bf16.mxu0 0
        %1008 = vmatpush1.bf16.msra.mxu0 0
        %1009 = vmatprep.subr.bf16.mxu0 0
        %1010 = vmatpush1.bf16.msra.mxu0 0
        %1011 = vmatprep.subr.bf16.mxu0 0
        %1012 = vmatpush1.bf16.msra.mxu0 0
        %1013 = vmatprep.subr.bf16.mxu0 0
        %1014 = vmatpush1.bf16.msra.mxu0 0
        %1015 = vmatprep.subr.bf16.mxu0 0
        %1016 = vmatpush1.bf16.msra.mxu0 0
        %1017 = vmatprep.subr.bf16.mxu0 0
        %1018 = vmatpush1.bf16.msra.mxu0 0
        %1019 = vmatprep.subr.bf16.mxu0 0
        %1020 = vmatpush1.bf16.msra.mxu0 0
        %1021 = vmatprep.subr.bf16.mxu0 0
        %1022 = vmatpush1.bf16.msra.mxu0 0
        %1023 = vmatprep.subr.bf16.mxu0 0
        %1024 = vmatpush1.bf16.msra.mxu0 0
        %1025 = vmatprep.subr.bf16.mxu0 0
        %1026 = vmatpush1.bf16.msra.mxu0 0
        %1027 = vmatprep.subr.bf16.mxu0 0
        %1028 = vmatpush1.bf16.msra.mxu0 0
        %1029 = vmatprep.mubr.bf16.mxu0 0
        %1030 = vmatmul.mubr.bf16.gmra.mrb[0].mxu0 %v605
        %v1031 = vpop.f32.mrb[0].mxu0
        %v1032 = vadd.f32 0.0, %v1031
        %v1033 = vpop.f32.mrb[0].mxu0
        %v1034 = vpop.f32.mrb[0].mxu0
        %v1035 = vadd.f32 0.0, %v1034
        %v1036 = vpop.f32.mrb[0].mxu0
        %1037 = vdwg.mxu0
        %v1046 = vunpack.c.l.b16 %v572
        %v1047 = vunpack.c.l.b16 %v573
        %v1048 = vunpack.c.l.b16 %v574
        %v1049 = vunpack.c.l.b16 %v575
        %v1050 = vunpack.c.l.b16 %v576
        %v1051 = vunpack.c.l.b16 %v577
        %v1052 = vunpack.c.l.b16 %v578
        %v1053 = vunpack.c.l.b16 %v579
        %v1054 = vpack.c.b16 %v1047, %v1046
        %v1055 = vpack.c.b16 %v1049, %v1048
        %v1056 = vpack.c.b16 %v1051, %v1050
        %v1057 = vpack.c.b16 %v1053, %v1052
        %1062 = vmatprep.subr.bf16.mxu0 0
        %1063 = vmatpush1.bf16.msra.mxu0 %v1054
        %1064 = vmatprep.subr.bf16.mxu0 0
        %1065 = vmatpush1.bf16.msra.mxu0 %v1055
        %1066 = vmatprep.subr.bf16.mxu0 0
        %1067 = vmatpush1.bf16.msra.mxu0 %v1056
        %1068 = vmatprep.subr.bf16.mxu0 0
        %1069 = vmatpush1.bf16.msra.mxu0 %v1057
        %1070 = vmatprep.subr.bf16.mxu0 0
        %1071 = vmatpush1.bf16.msra.mxu0 0
        %1072 = vmatprep.subr.bf16.mxu0 0
        %1073 = vmatpush1.bf16.msra.mxu0 0
        %1074 = vmatprep.subr.bf16.mxu0 0
        %1075 = vmatpush1.bf16.msra.mxu0 0
        %1076 = vmatprep.subr.bf16.mxu0 0
        %1077 = vmatpush1.bf16.msra.mxu0 0
        %1078 = vmatprep.subr.bf16.mxu0 0
        %1079 = vmatpush1.bf16.msra.mxu0 0
        %1080 = vmatprep.subr.bf16.mxu0 0
        %1081 = vmatpush1.bf16.msra.mxu0 0
        %1082 = vmatprep.subr.bf16.mxu0 0
        %1083 = vmatpush1.bf16.msra.mxu0 0
        %1084 = vmatprep.subr.bf16.mxu0 0
        %1085 = vmatpush1.bf16.msra.mxu0 0
        %1086 = vmatprep.subr.bf16.mxu0 0
        %1087 = vmatpush1.bf16.msra.mxu0 0
        %1088 = vmatprep.subr.bf16.mxu0 0
        %1089 = vmatpush1.bf16.msra.mxu0 0
        %1090 = vmatprep.subr.bf16.mxu0 0
        %1091 = vmatpush1.bf16.msra.mxu0 0
        %1092 = vmatprep.subr.bf16.mxu0 0
        %1093 = vmatpush1.bf16.msra.mxu0 0
        %1094 = vmatprep.mubr.bf16.mxu0 0
        %1095 = vmatmul.mubr.bf16.gmra.mrb[0].mxu0 %v605
        %v1096 = vpop.f32.mrb[0].mxu0
        %v1097 = vadd.f32 0.0, %v1096
        %v1098 = vpop.f32.mrb[0].mxu0
        %v1099 = vpop.f32.mrb[0].mxu0
        %v1100 = vadd.f32 0.0, %v1099
        %v1101 = vpop.f32.mrb[0].mxu0
        %1102 = vdwg.mxu0
        %v1103 = vpack.c.bf16 %v645, %v642
        %v1104 = vpack.c.bf16 %v710, %v707
        %v1105 = vpack.c.bf16 %v775, %v772
        %v1106 = vpack.c.bf16 %v840, %v837
        %v1107 = vpack.c.bf16 %v905, %v902
        %v1108 = vpack.c.bf16 %v970, %v967
        %v1109 = vpack.c.bf16 %v1035, %v1032
        %v1110 = vpack.c.bf16 %v1100, %v1097
        %v1111 = vld [vmem:[%s2] sm:$0xf]
        %v1112 = vld [vmem:[%s2 + $0x4] sm:$0xf]
        %v1113 = vld [vmem:[%s2 + $0x8] sm:$0xf]
        %v1114 = vld [vmem:[%s2 + $0xc] sm:$0xf]
        %v1115 = vld [vmem:[%s2 + $0x10] sm:$0xf]
        %v1116 = vld [vmem:[%s2 + $0x14] sm:$0xf]
        %v1117 = vld [vmem:[%s2 + $0x18] sm:$0xf]
        %v1118 = vld [vmem:[%s2 + $0x1c] sm:$0xf]
        %v1119 = vld [vmem:[%s2 + $0x20] sm:$0xf]
        %v1120 = vld [vmem:[%s2 + $0x24] sm:$0xf]
        %v1121 = vld [vmem:[%s2 + $0x28] sm:$0xf]
        %v1122 = vld [vmem:[%s2 + $0x2c] sm:$0xf]
        %v1123 = vld [vmem:[%s2 + $0x30] sm:$0xf]
        %v1124 = vld [vmem:[%s2 + $0x34] sm:$0xf]
        %v1125 = vld [vmem:[%s2 + $0x38] sm:$0xf]
        %v1126 = vld [vmem:[%s2 + $0x3c] sm:$0xf]
        %v1127 = vld [vmem:[%s2 + $0x40] sm:$0xf]
        %v1128 = vld [vmem:[%s2 + $0x44] sm:$0xf]
        %v1129 = vld [vmem:[%s2 + $0x48] sm:$0xf]
        %v1130 = vld [vmem:[%s2 + $0x4c] sm:$0xf]
        %v1131 = vld [vmem:[%s2 + $0x50] sm:$0xf]
        %v1132 = vld [vmem:[%s2 + $0x54] sm:$0xf]
        %v1133 = vld [vmem:[%s2 + $0x58] sm:$0xf]
        %v1134 = vld [vmem:[%s2 + $0x5c] sm:$0xf]
        %v1135 = vld [vmem:[%s2 + $0x60] sm:$0xf]
        %v1136 = vld [vmem:[%s2 + $0x64] sm:$0xf]
        %v1137 = vld [vmem:[%s2 + $0x68] sm:$0xf]
        %v1138 = vld [vmem:[%s2 + $0x6c] sm:$0xf]
        %v1139 = vld [vmem:[%s2 + $0x70] sm:$0xf]
        %v1140 = vld [vmem:[%s2 + $0x74] sm:$0xf]
        %v1141 = vld [vmem:[%s2 + $0x78] sm:$0xf]
        %v1142 = vld [vmem:[%s2 + $0x7c] sm:$0xf]
        %v1143 = vld [vmem:[%s2 + $0x80] sm:$0xf]
        %v1144 = vld [vmem:[%s2 + $0x84] sm:$0xf]
        %v1145 = vld [vmem:[%s2 + $0x88] sm:$0xf]
        %v1146 = vld [vmem:[%s2 + $0x8c] sm:$0xf]
        %v1147 = vld [vmem:[%s2 + $0x90] sm:$0xf]
        %v1148 = vld [vmem:[%s2 + $0x94] sm:$0xf]
        %v1149 = vld [vmem:[%s2 + $0x98] sm:$0xf]
        %v1150 = vld [vmem:[%s2 + $0x9c] sm:$0xf]
        %v1151 = vld [vmem:[%s2 + $0xa0] sm:$0xf]
        %v1152 = vld [vmem:[%s2 + $0xa4] sm:$0xf]
        %v1153 = vld [vmem:[%s2 + $0xa8] sm:$0xf]
        %v1154 = vld [vmem:[%s2 + $0xac] sm:$0xf]
        %v1155 = vld [vmem:[%s2 + $0xb0] sm:$0xf]
        %v1156 = vld [vmem:[%s2 + $0xb4] sm:$0xf]
        %v1157 = vld [vmem:[%s2 + $0xb8] sm:$0xf]
        %v1158 = vld [vmem:[%s2 + $0xbc] sm:$0xf]
        %v1159 = vld [vmem:[%s2 + $0xc0] sm:$0xf]
        %v1160 = vld [vmem:[%s2 + $0xc4] sm:$0xf]
        %v1161 = vld [vmem:[%s2 + $0xc8] sm:$0xf]
        %v1162 = vld [vmem:[%s2 + $0xcc] sm:$0xf]
        %v1163 = vld [vmem:[%s2 + $0xd0] sm:$0xf]
        %v1164 = vld [vmem:[%s2 + $0xd4] sm:$0xf]
        %v1165 = vld [vmem:[%s2 + $0xd8] sm:$0xf]
        %v1166 = vld [vmem:[%s2 + $0xdc] sm:$0xf]
        %v1167 = vld [vmem:[%s2 + $0xe0] sm:$0xf]
        %v1168 = vld [vmem:[%s2 + $0xe4] sm:$0xf]
        %v1169 = vld [vmem:[%s2 + $0xe8] sm:$0xf]
        %v1170 = vld [vmem:[%s2 + $0xec] sm:$0xf]
        %v1171 = vld [vmem:[%s2 + $0xf0] sm:$0xf]
        %v1172 = vld [vmem:[%s2 + $0xf4] sm:$0xf]
        %v1173 = vld [vmem:[%s2 + $0xf8] sm:$0xf]
        %v1174 = vld [vmem:[%s2 + $0xfc] sm:$0xf]
        %v1183 = vunpack.c.l.b16 %v1111
        %v1184 = vunpack.c.l.b16 %v1112
        %v1185 = vunpack.c.l.b16 %v1113
        %v1186 = vunpack.c.l.b16 %v1114
        %v1187 = vunpack.c.l.b16 %v1115
        %v1188 = vunpack.c.l.b16 %v1116
        %v1189 = vunpack.c.l.b16 %v1117
        %v1190 = vunpack.c.l.b16 %v1118
        %v1191 = vpack.c.b16 %v1184, %v1183
        %v1192 = vpack.c.b16 %v1186, %v1185
        %v1193 = vpack.c.b16 %v1188, %v1187
        %v1194 = vpack.c.b16 %v1190, %v1189
        %1199 = vmatprep.subr.bf16.mxu0 0
        %1200 = vmatpush1.bf16.msra.mxu0 %v1191
        %1201 = vmatprep.subr.bf16.mxu0 0
        %1202 = vmatpush1.bf16.msra.mxu0 %v1192
        %1203 = vmatprep.subr.bf16.mxu0 0
        %1204 = vmatpush1.bf16.msra.mxu0 %v1193
        %1205 = vmatprep.subr.bf16.mxu0 0
        %1206 = vmatpush1.bf16.msra.mxu0 %v1194
        %1207 = vmatprep.subr.bf16.mxu0 0
        %1208 = vmatpush1.bf16.msra.mxu0 0
        %1209 = vmatprep.subr.bf16.mxu0 0
        %1210 = vmatpush1.bf16.msra.mxu0 0
        %1211 = vmatprep.subr.bf16.mxu0 0
        %1212 = vmatpush1.bf16.msra.mxu0 0
        %1213 = vmatprep.subr.bf16.mxu0 0
        %1214 = vmatpush1.bf16.msra.mxu0 0
        %1215 = vmatprep.subr.bf16.mxu0 0
        %1216 = vmatpush1.bf16.msra.mxu0 0
        %1217 = vmatprep.subr.bf16.mxu0 0
        %1218 = vmatpush1.bf16.msra.mxu0 0
        %1219 = vmatprep.subr.bf16.mxu0 0
        %1220 = vmatpush1.bf16.msra.mxu0 0
        %1221 = vmatprep.subr.bf16.mxu0 0
        %1222 = vmatpush1.bf16.msra.mxu0 0
        %1223 = vmatprep.subr.bf16.mxu0 0
        %1224 = vmatpush1.bf16.msra.mxu0 0
        %1225 = vmatprep.subr.bf16.mxu0 0
        %1226 = vmatpush1.bf16.msra.mxu0 0
        %1227 = vmatprep.subr.bf16.mxu0 0
        %1228 = vmatpush1.bf16.msra.mxu0 0
        %1229 = vmatprep.subr.bf16.mxu0 0
        %1230 = vmatpush1.bf16.msra.mxu0 0
        %1231 = vmatprep.mubr.bf16.mxu0 0
        %1232 = vmatmul.mubr.bf16.gmra.mrb[0].mxu0 %v605
        %v1233 = vpop.f32.mrb[0].mxu0
        %v1234 = vadd.f32 0.0, %v1233
        %v1235 = vpop.f32.mrb[0].mxu0
        %v1236 = vpop.f32.mrb[0].mxu0
        %v1237 = vadd.f32 0.0, %v1236
        %v1238 = vpop.f32.mrb[0].mxu0
        %1239 = vdwg.mxu0
        %v1248 = vunpack.c.l.b16 %v1119
        %v1249 = vunpack.c.l.b16 %v1120
        %v1250 = vunpack.c.l.b16 %v1121
        %v1251 = vunpack.c.l.b16 %v1122
        %v1252 = vunpack.c.l.b16 %v1123
        %v1253 = vunpack.c.l.b16 %v1124
        %v1254 = vunpack.c.l.b16 %v1125
        %v1255 = vunpack.c.l.b16 %v1126
        %v1256 = vpack.c.b16 %v1249, %v1248
        %v1257 = vpack.c.b16 %v1251, %v1250
        %v1258 = vpack.c.b16 %v1253, %v1252
        %v1259 = vpack.c.b16 %v1255, %v1254
        %1264 = vmatprep.subr.bf16.mxu0 0
        %1265 = vmatpush1.bf16.msra.mxu0 %v1256
        %1266 = vmatprep.subr.bf16.mxu0 0
        %1267 = vmatpush1.bf16.msra.mxu0 %v1257
        %1268 = vmatprep.subr.bf16.mxu0 0
        %1269 = vmatpush1.bf16.msra.mxu0 %v1258
        %1270 = vmatprep.subr.bf16.mxu0 0
        %1271 = vmatpush1.bf16.msra.mxu0 %v1259
        %1272 = vmatprep.subr.bf16.mxu0 0
        %1273 = vmatpush1.bf16.msra.mxu0 0
        %1274 = vmatprep.subr.bf16.mxu0 0
        %1275 = vmatpush1.bf16.msra.mxu0 0
        %1276 = vmatprep.subr.bf16.mxu0 0
        %1277 = vmatpush1.bf16.msra.mxu0 0
        %1278 = vmatprep.subr.bf16.mxu0 0
        %1279 = vmatpush1.bf16.msra.mxu0 0
        %1280 = vmatprep.subr.bf16.mxu0 0
        %1281 = vmatpush1.bf16.msra.mxu0 0
        %1282 = vmatprep.subr.bf16.mxu0 0
        %1283 = vmatpush1.bf16.msra.mxu0 0
        %1284 = vmatprep.subr.bf16.mxu0 0
        %1285 = vmatpush1.bf16.msra.mxu0 0
        %1286 = vmatprep.subr.bf16.mxu0 0
        %1287 = vmatpush1.bf16.msra.mxu0 0
        %1288 = vmatprep.subr.bf16.mxu0 0
        %1289 = vmatpush1.bf16.msra.mxu0 0
        %1290 = vmatprep.subr.bf16.mxu0 0
        %1291 = vmatpush1.bf16.msra.mxu0 0
        %1292 = vmatprep.subr.bf16.mxu0 0
        %1293 = vmatpush1.bf16.msra.mxu0 0
        %1294 = vmatprep.subr.bf16.mxu0 0
        %1295 = vmatpush1.bf16.msra.mxu0 0
        %1296 = vmatprep.mubr.bf16.mxu0 0
        %1297 = vmatmul.mubr.bf16.gmra.mrb[0].mxu0 %v605
        %v1298 = vpop.f32.mrb[0].mxu0
        %v1299 = vadd.f32 0.0, %v1298
        %v1300 = vpop.f32.mrb[0].mxu0
        %v1301 = vpop.f32.mrb[0].mxu0
        %v1302 = vadd.f32 0.0, %v1301
        %v1303 = vpop.f32.mrb[0].mxu0
        %1304 = vdwg.mxu0
        %v1313 = vunpack.c.l.b16 %v1127
        %v1314 = vunpack.c.l.b16 %v1128
        %v1315 = vunpack.c.l.b16 %v1129
        %v1316 = vunpack.c.l.b16 %v1130
        %v1317 = vunpack.c.l.b16 %v1131
        %v1318 = vunpack.c.l.b16 %v1132
        %v1319 = vunpack.c.l.b16 %v1133
        %v1320 = vunpack.c.l.b16 %v1134
        %v1321 = vpack.c.b16 %v1314, %v1313
        %v1322 = vpack.c.b16 %v1316, %v1315
        %v1323 = vpack.c.b16 %v1318, %v1317
        %v1324 = vpack.c.b16 %v1320, %v1319
        %1329 = vmatprep.subr.bf16.mxu0 0
        %1330 = vmatpush1.bf16.msra.mxu0 %v1321
        %1331 = vmatprep.subr.bf16.mxu0 0
        %1332 = vmatpush1.bf16.msra.mxu0 %v1322
        %1333 = vmatprep.subr.bf16.mxu0 0
        %1334 = vmatpush1.bf16.msra.mxu0 %v1323
        %1335 = vmatprep.subr.bf16.mxu0 0
        %1336 = vmatpush1.bf16.msra.mxu0 %v1324
        %1337 = vmatprep.subr.bf16.mxu0 0
        %1338 = vmatpush1.bf16.msra.mxu0 0
        %1339 = vmatprep.subr.bf16.mxu0 0
        %1340 = vmatpush1.bf16.msra.mxu0 0
        %1341 = vmatprep.subr.bf16.mxu0 0
        %1342 = vmatpush1.bf16.msra.mxu0 0
        %1343 = vmatprep.subr.bf16.mxu0 0
        %1344 = vmatpush1.bf16.msra.mxu0 0
        %1345 = vmatprep.subr.bf16.mxu0 0
        %1346 = vmatpush1.bf16.msra.mxu0 0
        %1347 = vmatprep.subr.bf16.mxu0 0
        %1348 = vmatpush1.bf16.msra.mxu0 0
        %1349 = vmatprep.subr.bf16.mxu0 0
        %1350 = vmatpush1.bf16.msra.mxu0 0
        %1351 = vmatprep.subr.bf16.mxu0 0
        %1352 = vmatpush1.bf16.msra.mxu0 0
        %1353 = vmatprep.subr.bf16.mxu0 0
        %1354 = vmatpush1.bf16.msra.mxu0 0
        %1355 = vmatprep.subr.bf16.mxu0 0
        %1356 = vmatpush1.bf16.msra.mxu0 0
        %1357 = vmatprep.subr.bf16.mxu0 0
        %1358 = vmatpush1.bf16.msra.mxu0 0
        %1359 = vmatprep.subr.bf16.mxu0 0
        %1360 = vmatpush1.bf16.msra.mxu0 0
        %1361 = vmatprep.mubr.bf16.mxu0 0
        %1362 = vmatmul.mubr.bf16.gmra.mrb[0].mxu0 %v605
        %v1363 = vpop.f32.mrb[0].mxu0
        %v1364 = vadd.f32 0.0, %v1363
        %v1365 = vpop.f32.mrb[0].mxu0
        %v1366 = vpop.f32.mrb[0].mxu0
        %v1367 = vadd.f32 0.0, %v1366
        %v1368 = vpop.f32.mrb[0].mxu0
        %1369 = vdwg.mxu0
        %v1378 = vunpack.c.l.b16 %v1135
        %v1379 = vunpack.c.l.b16 %v1136
        %v1380 = vunpack.c.l.b16 %v1137
        %v1381 = vunpack.c.l.b16 %v1138
        %v1382 = vunpack.c.l.b16 %v1139
        %v1383 = vunpack.c.l.b16 %v1140
        %v1384 = vunpack.c.l.b16 %v1141
        %v1385 = vunpack.c.l.b16 %v1142
        %v1386 = vpack.c.b16 %v1379, %v1378
        %v1387 = vpack.c.b16 %v1381, %v1380
        %v1388 = vpack.c.b16 %v1383, %v1382
        %v1389 = vpack.c.b16 %v1385, %v1384
        %1394 = vmatprep.subr.bf16.mxu0 0
        %1395 = vmatpush1.bf16.msra.mxu0 %v1386
        %1396 = vmatprep.subr.bf16.mxu0 0
        %1397 = vmatpush1.bf16.msra.mxu0 %v1387
        %1398 = vmatprep.subr.bf16.mxu0 0
        %1399 = vmatpush1.bf16.msra.mxu0 %v1388
        %1400 = vmatprep.subr.bf16.mxu0 0
        %1401 = vmatpush1.bf16.msra.mxu0 %v1389
        %1402 = vmatprep.subr.bf16.mxu0 0
        %1403 = vmatpush1.bf16.msra.mxu0 0
        %1404 = vmatprep.subr.bf16.mxu0 0
        %1405 = vmatpush1.bf16.msra.mxu0 0
        %1406 = vmatprep.subr.bf16.mxu0 0
        %1407 = vmatpush1.bf16.msra.mxu0 0
        %1408 = vmatprep.subr.bf16.mxu0 0
        %1409 = vmatpush1.bf16.msra.mxu0 0
        %1410 = vmatprep.subr.bf16.mxu0 0
        %1411 = vmatpush1.bf16.msra.mxu0 0
        %1412 = vmatprep.subr.bf16.mxu0 0
        %1413 = vmatpush1.bf16.msra.mxu0 0
        %1414 = vmatprep.subr.bf16.mxu0 0
        %1415 = vmatpush1.bf16.msra.mxu0 0
        %1416 = vmatprep.subr.bf16.mxu0 0
        %1417 = vmatpush1.bf16.msra.mxu0 0
        %1418 = vmatprep.subr.bf16.mxu0 0
        %1419 = vmatpush1.bf16.msra.mxu0 0
        %1420 = vmatprep.subr.bf16.mxu0 0
        %1421 = vmatpush1.bf16.msra.mxu0 0
        %1422 = vmatprep.subr.bf16.mxu0 0
        %1423 = vmatpush1.bf16.msra.mxu0 0
        %1424 = vmatprep.subr.bf16.mxu0 0
        %1425 = vmatpush1.bf16.msra.mxu0 0
        %1426 = vmatprep.mubr.bf16.mxu0 0
        %1427 = vmatmul.mubr.bf16.gmra.mrb[0].mxu0 %v605
        %v1428 = vpop.f32.mrb[0].mxu0
        %v1429 = vadd.f32 0.0, %v1428
        %v1430 = vpop.f32.mrb[0].mxu0
        %v1431 = vpop.f32.mrb[0].mxu0
        %v1432 = vadd.f32 0.0, %v1431
        %v1433 = vpop.f32.mrb[0].mxu0
        %1434 = vdwg.mxu0
        %v1443 = vunpack.c.l.b16 %v1143
        %v1444 = vunpack.c.l.b16 %v1144
        %v1445 = vunpack.c.l.b16 %v1145
        %v1446 = vunpack.c.l.b16 %v1146
        %v1447 = vunpack.c.l.b16 %v1147
        %v1448 = vunpack.c.l.b16 %v1148
        %v1449 = vunpack.c.l.b16 %v1149
        %v1450 = vunpack.c.l.b16 %v1150
        %v1451 = vpack.c.b16 %v1444, %v1443
        %v1452 = vpack.c.b16 %v1446, %v1445
        %v1453 = vpack.c.b16 %v1448, %v1447
        %v1454 = vpack.c.b16 %v1450, %v1449
        %1459 = vmatprep.subr.bf16.mxu0 0
        %1460 = vmatpush1.bf16.msra.mxu0 %v1451
        %1461 = vmatprep.subr.bf16.mxu0 0
        %1462 = vmatpush1.bf16.msra.mxu0 %v1452
        %1463 = vmatprep.subr.bf16.mxu0 0
        %1464 = vmatpush1.bf16.msra.mxu0 %v1453
        %1465 = vmatprep.subr.bf16.mxu0 0
        %1466 = vmatpush1.bf16.msra.mxu0 %v1454
        %1467 = vmatprep.subr.bf16.mxu0 0
        %1468 = vmatpush1.bf16.msra.mxu0 0
        %1469 = vmatprep.subr.bf16.mxu0 0
        %1470 = vmatpush1.bf16.msra.mxu0 0
        %1471 = vmatprep.subr.bf16.mxu0 0
        %1472 = vmatpush1.bf16.msra.mxu0 0
        %1473 = vmatprep.subr.bf16.mxu0 0
        %1474 = vmatpush1.bf16.msra.mxu0 0
        %1475 = vmatprep.subr.bf16.mxu0 0
        %1476 = vmatpush1.bf16.msra.mxu0 0
        %1477 = vmatprep.subr.bf16.mxu0 0
        %1478 = vmatpush1.bf16.msra.mxu0 0
        %1479 = vmatprep.subr.bf16.mxu0 0
        %1480 = vmatpush1.bf16.msra.mxu0 0
        %1481 = vmatprep.subr.bf16.mxu0 0
        %1482 = vmatpush1.bf16.msra.mxu0 0
        %1483 = vmatprep.subr.bf16.mxu0 0
        %1484 = vmatpush1.bf16.msra.mxu0 0
        %1485 = vmatprep.subr.bf16.mxu0 0
        %1486 = vmatpush1.bf16.msra.mxu0 0
        %1487 = vmatprep.subr.bf16.mxu0 0
        %1488 = vmatpush1.bf16.msra.mxu0 0
        %1489 = vmatprep.subr.bf16.mxu0 0
        %1490 = vmatpush1.bf16.msra.mxu0 0
        %1491 = vmatprep.mubr.bf16.mxu0 0
        %1492 = vmatmul.mubr.bf16.gmra.mrb[0].mxu0 %v605
        %v1493 = vpop.f32.mrb[0].mxu0
        %v1494 = vadd.f32 0.0, %v1493
        %v1495 = vpop.f32.mrb[0].mxu0
        %v1496 = vpop.f32.mrb[0].mxu0
        %v1497 = vadd.f32 0.0, %v1496
        %v1498 = vpop.f32.mrb[0].mxu0
        %1499 = vdwg.mxu0
        %v1508 = vunpack.c.l.b16 %v1151
        %v1509 = vunpack.c.l.b16 %v1152
        %v1510 = vunpack.c.l.b16 %v1153
        %v1511 = vunpack.c.l.b16 %v1154
        %v1512 = vunpack.c.l.b16 %v1155
        %v1513 = vunpack.c.l.b16 %v1156
        %v1514 = vunpack.c.l.b16 %v1157
        %v1515 = vunpack.c.l.b16 %v1158
        %v1516 = vpack.c.b16 %v1509, %v1508
        %v1517 = vpack.c.b16 %v1511, %v1510
        %v1518 = vpack.c.b16 %v1513, %v1512
        %v1519 = vpack.c.b16 %v1515, %v1514
        %1524 = vmatprep.subr.bf16.mxu0 0
        %1525 = vmatpush1.bf16.msra.mxu0 %v1516
        %1526 = vmatprep.subr.bf16.mxu0 0
        %1527 = vmatpush1.bf16.msra.mxu0 %v1517
        %1528 = vmatprep.subr.bf16.mxu0 0
        %1529 = vmatpush1.bf16.msra.mxu0 %v1518
        %1530 = vmatprep.subr.bf16.mxu0 0
        %1531 = vmatpush1.bf16.msra.mxu0 %v1519
        %1532 = vmatprep.subr.bf16.mxu0 0
        %1533 = vmatpush1.bf16.msra.mxu0 0
        %1534 = vmatprep.subr.bf16.mxu0 0
        %1535 = vmatpush1.bf16.msra.mxu0 0
        %1536 = vmatprep.subr.bf16.mxu0 0
        %1537 = vmatpush1.bf16.msra.mxu0 0
        %1538 = vmatprep.subr.bf16.mxu0 0
        %1539 = vmatpush1.bf16.msra.mxu0 0
        %1540 = vmatprep.subr.bf16.mxu0 0
        %1541 = vmatpush1.bf16.msra.mxu0 0
        %1542 = vmatprep.subr.bf16.mxu0 0
        %1543 = vmatpush1.bf16.msra.mxu0 0
        %1544 = vmatprep.subr.bf16.mxu0 0
        %1545 = vmatpush1.bf16.msra.mxu0 0
        %1546 = vmatprep.subr.bf16.mxu0 0
        %1547 = vmatpush1.bf16.msra.mxu0 0
        %1548 = vmatprep.subr.bf16.mxu0 0
        %1549 = vmatpush1.bf16.msra.mxu0 0
        %1550 = vmatprep.subr.bf16.mxu0 0
        %1551 = vmatpush1.bf16.msra.mxu0 0
        %1552 = vmatprep.subr.bf16.mxu0 0
        %1553 = vmatpush1.bf16.msra.mxu0 0
        %1554 = vmatprep.subr.bf16.mxu0 0
        %1555 = vmatpush1.bf16.msra.mxu0 0
        %1556 = vmatprep.mubr.bf16.mxu0 0
        %1557 = vmatmul.mubr.bf16.gmra.mrb[0].mxu0 %v605
        %v1558 = vpop.f32.mrb[0].mxu0
        %v1559 = vadd.f32 0.0, %v1558
        %v1560 = vpop.f32.mrb[0].mxu0
        %v1561 = vpop.f32.mrb[0].mxu0
        %v1562 = vadd.f32 0.0, %v1561
        %v1563 = vpop.f32.mrb[0].mxu0
        %1564 = vdwg.mxu0
        %v1573 = vunpack.c.l.b16 %v1159
        %v1574 = vunpack.c.l.b16 %v1160
        %v1575 = vunpack.c.l.b16 %v1161
        %v1576 = vunpack.c.l.b16 %v1162
        %v1577 = vunpack.c.l.b16 %v1163
        %v1578 = vunpack.c.l.b16 %v1164
        %v1579 = vunpack.c.l.b16 %v1165
        %v1580 = vunpack.c.l.b16 %v1166
        %v1581 = vpack.c.b16 %v1574, %v1573
        %v1582 = vpack.c.b16 %v1576, %v1575
        %v1583 = vpack.c.b16 %v1578, %v1577
        %v1584 = vpack.c.b16 %v1580, %v1579
        %1589 = vmatprep.subr.bf16.mxu0 0
        %1590 = vmatpush1.bf16.msra.mxu0 %v1581
        %1591 = vmatprep.subr.bf16.mxu0 0
        %1592 = vmatpush1.bf16.msra.mxu0 %v1582
        %1593 = vmatprep.subr.bf16.mxu0 0
        %1594 = vmatpush1.bf16.msra.mxu0 %v1583
        %1595 = vmatprep.subr.bf16.mxu0 0
        %1596 = vmatpush1.bf16.msra.mxu0 %v1584
        %1597 = vmatprep.subr.bf16.mxu0 0
        %1598 = vmatpush1.bf16.msra.mxu0 0
        %1599 = vmatprep.subr.bf16.mxu0 0
        %1600 = vmatpush1.bf16.msra.mxu0 0
        %1601 = vmatprep.subr.bf16.mxu0 0
        %1602 = vmatpush1.bf16.msra.mxu0 0
        %1603 = vmatprep.subr.bf16.mxu0 0
        %1604 = vmatpush1.bf16.msra.mxu0 0
        %1605 = vmatprep.subr.bf16.mxu0 0
        %1606 = vmatpush1.bf16.msra.mxu0 0
        %1607 = vmatprep.subr.bf16.mxu0 0
        %1608 = vmatpush1.bf16.msra.mxu0 0
        %1609 = vmatprep.subr.bf16.mxu0 0
        %1610 = vmatpush1.bf16.msra.mxu0 0
        %1611 = vmatprep.subr.bf16.mxu0 0
        %1612 = vmatpush1.bf16.msra.mxu0 0
        %1613 = vmatprep.subr.bf16.mxu0 0
        %1614 = vmatpush1.bf16.msra.mxu0 0
        %1615 = vmatprep.subr.bf16.mxu0 0
        %1616 = vmatpush1.bf16.msra.mxu0 0
        %1617 = vmatprep.subr.bf16.mxu0 0
        %1618 = vmatpush1.bf16.msra.mxu0 0
        %1619 = vmatprep.subr.bf16.mxu0 0
        %1620 = vmatpush1.bf16.msra.mxu0 0
        %1621 = vmatprep.mubr.bf16.mxu0 0
        %1622 = vmatmul.mubr.bf16.gmra.mrb[0].mxu0 %v605
        %v1623 = vpop.f32.mrb[0].mxu0
        %v1624 = vadd.f32 0.0, %v1623
        %v1625 = vpop.f32.mrb[0].mxu0
        %v1626 = vpop.f32.mrb[0].mxu0
        %v1627 = vadd.f32 0.0, %v1626
        %v1628 = vpop.f32.mrb[0].mxu0
        %1629 = vdwg.mxu0
        %v1638 = vunpack.c.l.b16 %v1167
        %v1639 = vunpack.c.l.b16 %v1168
        %v1640 = vunpack.c.l.b16 %v1169
        %v1641 = vunpack.c.l.b16 %v1170
        %v1642 = vunpack.c.l.b16 %v1171
        %v1643 = vunpack.c.l.b16 %v1172
        %v1644 = vunpack.c.l.b16 %v1173
        %v1645 = vunpack.c.l.b16 %v1174
        %v1646 = vpack.c.b16 %v1639, %v1638
        %v1647 = vpack.c.b16 %v1641, %v1640
        %v1648 = vpack.c.b16 %v1643, %v1642
        %v1649 = vpack.c.b16 %v1645, %v1644
        %1654 = vmatprep.subr.bf16.mxu0 0
        %1655 = vmatpush1.bf16.msra.mxu0 %v1646
        %1656 = vmatprep.subr.bf16.mxu0 0
        %1657 = vmatpush1.bf16.msra.mxu0 %v1647
        %1658 = vmatprep.subr.bf16.mxu0 0
        %1659 = vmatpush1.bf16.msra.mxu0 %v1648
        %1660 = vmatprep.subr.bf16.mxu0 0
        %1661 = vmatpush1.bf16.msra.mxu0 %v1649
        %1662 = vmatprep.subr.bf16.mxu0 0
        %1663 = vmatpush1.bf16.msra.mxu0 0
        %1664 = vmatprep.subr.bf16.mxu0 0
        %1665 = vmatpush1.bf16.msra.mxu0 0
        %1666 = vmatprep.subr.bf16.mxu0 0
        %1667 = vmatpush1.bf16.msra.mxu0 0
        %1668 = vmatprep.subr.bf16.mxu0 0
        %1669 = vmatpush1.bf16.msra.mxu0 0
        %1670 = vmatprep.subr.bf16.mxu0 0
        %1671 = vmatpush1.bf16.msra.mxu0 0
        %1672 = vmatprep.subr.bf16.mxu0 0
        %1673 = vmatpush1.bf16.msra.mxu0 0
        %1674 = vmatprep.subr.bf16.mxu0 0
        %1675 = vmatpush1.bf16.msra.mxu0 0
        %1676 = vmatprep.subr.bf16.mxu0 0
        %1677 = vmatpush1.bf16.msra.mxu0 0
        %1678 = vmatprep.subr.bf16.mxu0 0
        %1679 = vmatpush1.bf16.msra.mxu0 0
        %1680 = vmatprep.subr.bf16.mxu0 0
        %1681 = vmatpush1.bf16.msra.mxu0 0
        %1682 = vmatprep.subr.bf16.mxu0 0
        %1683 = vmatpush1.bf16.msra.mxu0 0
        %1684 = vmatprep.subr.bf16.mxu0 0
        %1685 = vmatpush1.bf16.msra.mxu0 0
        %1686 = vmatprep.mubr.bf16.mxu0 0
        %1687 = vmatmul.mubr.bf16.gmra.mrb[0].mxu0 %v605
        %v1688 = vpop.f32.mrb[0].mxu0
        %v1689 = vadd.f32 0.0, %v1688
        %v1690 = vpop.f32.mrb[0].mxu0
        %v1691 = vpop.f32.mrb[0].mxu0
        %v1692 = vadd.f32 0.0, %v1691
        %v1693 = vpop.f32.mrb[0].mxu0
        %1694 = vdwg.mxu0
        %v1695 = vpack.c.bf16 %v1237, %v1234
        %v1696 = vpack.c.bf16 %v1302, %v1299
        %v1697 = vpack.c.bf16 %v1367, %v1364
        %v1698 = vpack.c.bf16 %v1432, %v1429
        %v1699 = vpack.c.bf16 %v1497, %v1494
        %v1700 = vpack.c.bf16 %v1562, %v1559
        %v1701 = vpack.c.bf16 %v1627, %v1624
        %v1702 = vpack.c.bf16 %v1692, %v1689
        %v1703 = vld [vmem:[%s3] sm:$0xf]
        %v1704 = vld [vmem:[%s3 + $0x4] sm:$0xf]
        %v1705 = vld [vmem:[%s3 + $0x8] sm:$0xf]
        %v1706 = vld [vmem:[%s3 + $0xc] sm:$0xf]
        %v1707 = vld [vmem:[%s3 + $0x10] sm:$0xf]
        %v1708 = vld [vmem:[%s3 + $0x14] sm:$0xf]
        %v1709 = vld [vmem:[%s3 + $0x18] sm:$0xf]
        %v1710 = vld [vmem:[%s3 + $0x1c] sm:$0xf]
        %v1711 = vld [vmem:[%s3 + $0x20] sm:$0xf]
        %v1712 = vld [vmem:[%s3 + $0x24] sm:$0xf]
        %v1713 = vld [vmem:[%s3 + $0x28] sm:$0xf]
        %v1714 = vld [vmem:[%s3 + $0x2c] sm:$0xf]
        %v1715 = vld [vmem:[%s3 + $0x30] sm:$0xf]
        %v1716 = vld [vmem:[%s3 + $0x34] sm:$0xf]
        %v1717 = vld [vmem:[%s3 + $0x38] sm:$0xf]
        %v1718 = vld [vmem:[%s3 + $0x3c] sm:$0xf]
        %v1719 = vld [vmem:[%s3 + $0x40] sm:$0xf]
        %v1720 = vld [vmem:[%s3 + $0x44] sm:$0xf]
        %v1721 = vld [vmem:[%s3 + $0x48] sm:$0xf]
        %v1722 = vld [vmem:[%s3 + $0x4c] sm:$0xf]
        %v1723 = vld [vmem:[%s3 + $0x50] sm:$0xf]
        %v1724 = vld [vmem:[%s3 + $0x54] sm:$0xf]
        %v1725 = vld [vmem:[%s3 + $0x58] sm:$0xf]
        %v1726 = vld [vmem:[%s3 + $0x5c] sm:$0xf]
        %v1727 = vld [vmem:[%s3 + $0x60] sm:$0xf]
        %v1728 = vld [vmem:[%s3 + $0x64] sm:$0xf]
        %v1729 = vld [vmem:[%s3 + $0x68] sm:$0xf]
        %v1730 = vld [vmem:[%s3 + $0x6c] sm:$0xf]
        %v1731 = vld [vmem:[%s3 + $0x70] sm:$0xf]
        %v1732 = vld [vmem:[%s3 + $0x74] sm:$0xf]
        %v1733 = vld [vmem:[%s3 + $0x78] sm:$0xf]
        %v1734 = vld [vmem:[%s3 + $0x7c] sm:$0xf]
        %v1735 = vld [vmem:[%s3 + $0x80] sm:$0xf]
        %v1736 = vld [vmem:[%s3 + $0x84] sm:$0xf]
        %v1737 = vld [vmem:[%s3 + $0x88] sm:$0xf]
        %v1738 = vld [vmem:[%s3 + $0x8c] sm:$0xf]
        %v1739 = vld [vmem:[%s3 + $0x90] sm:$0xf]
        %v1740 = vld [vmem:[%s3 + $0x94] sm:$0xf]
        %v1741 = vld [vmem:[%s3 + $0x98] sm:$0xf]
        %v1742 = vld [vmem:[%s3 + $0x9c] sm:$0xf]
        %v1743 = vld [vmem:[%s3 + $0xa0] sm:$0xf]
        %v1744 = vld [vmem:[%s3 + $0xa4] sm:$0xf]
        %v1745 = vld [vmem:[%s3 + $0xa8] sm:$0xf]
        %v1746 = vld [vmem:[%s3 + $0xac] sm:$0xf]
        %v1747 = vld [vmem:[%s3 + $0xb0] sm:$0xf]
        %v1748 = vld [vmem:[%s3 + $0xb4] sm:$0xf]
        %v1749 = vld [vmem:[%s3 + $0xb8] sm:$0xf]
        %v1750 = vld [vmem:[%s3 + $0xbc] sm:$0xf]
        %v1751 = vld [vmem:[%s3 + $0xc0] sm:$0xf]
        %v1752 = vld [vmem:[%s3 + $0xc4] sm:$0xf]
        %v1753 = vld [vmem:[%s3 + $0xc8] sm:$0xf]
        %v1754 = vld [vmem:[%s3 + $0xcc] sm:$0xf]
        %v1755 = vld [vmem:[%s3 + $0xd0] sm:$0xf]
        %v1756 = vld [vmem:[%s3 + $0xd4] sm:$0xf]
        %v1757 = vld [vmem:[%s3 + $0xd8] sm:$0xf]
        %v1758 = vld [vmem:[%s3 + $0xdc] sm:$0xf]
        %v1759 = vld [vmem:[%s3 + $0xe0] sm:$0xf]
        %v1760 = vld [vmem:[%s3 + $0xe4] sm:$0xf]
        %v1761 = vld [vmem:[%s3 + $0xe8] sm:$0xf]
        %v1762 = vld [vmem:[%s3 + $0xec] sm:$0xf]
        %v1763 = vld [vmem:[%s3 + $0xf0] sm:$0xf]
        %v1764 = vld [vmem:[%s3 + $0xf4] sm:$0xf]
        %v1765 = vld [vmem:[%s3 + $0xf8] sm:$0xf]
        %v1766 = vld [vmem:[%s3 + $0xfc] sm:$0xf]
        %v1775 = vunpack.c.l.b16 %v1703
        %v1776 = vunpack.c.l.b16 %v1704
        %v1777 = vunpack.c.l.b16 %v1705
        %v1778 = vunpack.c.l.b16 %v1706
        %v1779 = vunpack.c.l.b16 %v1707
        %v1780 = vunpack.c.l.b16 %v1708
        %v1781 = vunpack.c.l.b16 %v1709
        %v1782 = vunpack.c.l.b16 %v1710
        %v1783 = vpack.c.b16 %v1776, %v1775
        %v1784 = vpack.c.b16 %v1778, %v1777
        %v1785 = vpack.c.b16 %v1780, %v1779
        %v1786 = vpack.c.b16 %v1782, %v1781
        %1791 = vmatprep.subr.bf16.mxu0 0
        %1792 = vmatpush1.bf16.msra.mxu0 %v1783
        %1793 = vmatprep.subr.bf16.mxu0 0
        %1794 = vmatpush1.bf16.msra.mxu0 %v1784
        %1795 = vmatprep.subr.bf16.mxu0 0
        %1796 = vmatpush1.bf16.msra.mxu0 %v1785
        %1797 = vmatprep.subr.bf16.mxu0 0
        %1798 = vmatpush1.bf16.msra.mxu0 %v1786
        %1799 = vmatprep.subr.bf16.mxu0 0
        %1800 = vmatpush1.bf16.msra.mxu0 0
        %1801 = vmatprep.subr.bf16.mxu0 0
        %1802 = vmatpush1.bf16.msra.mxu0 0
        %1803 = vmatprep.subr.bf16.mxu0 0
        %1804 = vmatpush1.bf16.msra.mxu0 0
        %1805 = vmatprep.subr.bf16.mxu0 0
        %1806 = vmatpush1.bf16.msra.mxu0 0
        %1807 = vmatprep.subr.bf16.mxu0 0
        %1808 = vmatpush1.bf16.msra.mxu0 0
        %1809 = vmatprep.subr.bf16.mxu0 0
        %1810 = vmatpush1.bf16.msra.mxu0 0
        %1811 = vmatprep.subr.bf16.mxu0 0
        %1812 = vmatpush1.bf16.msra.mxu0 0
        %1813 = vmatprep.subr.bf16.mxu0 0
        %1814 = vmatpush1.bf16.msra.mxu0 0
        %1815 = vmatprep.subr.bf16.mxu0 0
        %1816 = vmatpush1.bf16.msra.mxu0 0
        %1817 = vmatprep.subr.bf16.mxu0 0
        %1818 = vmatpush1.bf16.msra.mxu0 0
        %1819 = vmatprep.subr.bf16.mxu0 0
        %1820 = vmatpush1.bf16.msra.mxu0 0
        %1821 = vmatprep.subr.bf16.mxu0 0
        %1822 = vmatpush1.bf16.msra.mxu0 0
        %1823 = vmatprep.mubr.bf16.mxu0 0
        %1824 = vmatmul.mubr.bf16.gmra.mrb[0].mxu0 %v605
        %v1825 = vpop.f32.mrb[0].mxu0
        %v1826 = vadd.f32 0.0, %v1825
        %v1827 = vpop.f32.mrb[0].mxu0
        %v1828 = vpop.f32.mrb[0].mxu0
        %v1829 = vadd.f32 0.0, %v1828
        %v1830 = vpop.f32.mrb[0].mxu0
        %1831 = vdwg.mxu0
        %v1840 = vunpack.c.l.b16 %v1711
        %v1841 = vunpack.c.l.b16 %v1712
        %v1842 = vunpack.c.l.b16 %v1713
        %v1843 = vunpack.c.l.b16 %v1714
        %v1844 = vunpack.c.l.b16 %v1715
        %v1845 = vunpack.c.l.b16 %v1716
        %v1846 = vunpack.c.l.b16 %v1717
        %v1847 = vunpack.c.l.b16 %v1718
        %v1848 = vpack.c.b16 %v1841, %v1840
        %v1849 = vpack.c.b16 %v1843, %v1842
        %v1850 = vpack.c.b16 %v1845, %v1844
        %v1851 = vpack.c.b16 %v1847, %v1846
        %1856 = vmatprep.subr.bf16.mxu0 0
        %1857 = vmatpush1.bf16.msra.mxu0 %v1848
        %1858 = vmatprep.subr.bf16.mxu0 0
        %1859 = vmatpush1.bf16.msra.mxu0 %v1849
        %1860 = vmatprep.subr.bf16.mxu0 0
        %1861 = vmatpush1.bf16.msra.mxu0 %v1850
        %1862 = vmatprep.subr.bf16.mxu0 0
        %1863 = vmatpush1.bf16.msra.mxu0 %v1851
        %1864 = vmatprep.subr.bf16.mxu0 0
        %1865 = vmatpush1.bf16.msra.mxu0 0
        %1866 = vmatprep.subr.bf16.mxu0 0
        %1867 = vmatpush1.bf16.msra.mxu0 0
        %1868 = vmatprep.subr.bf16.mxu0 0
        %1869 = vmatpush1.bf16.msra.mxu0 0
        %1870 = vmatprep.subr.bf16.mxu0 0
        %1871 = vmatpush1.bf16.msra.mxu0 0
        %1872 = vmatprep.subr.bf16.mxu0 0
        %1873 = vmatpush1.bf16.msra.mxu0 0
        %1874 = vmatprep.subr.bf16.mxu0 0
        %1875 = vmatpush1.bf16.msra.mxu0 0
        %1876 = vmatprep.subr.bf16.mxu0 0
        %1877 = vmatpush1.bf16.msra.mxu0 0
        %1878 = vmatprep.subr.bf16.mxu0 0
        %1879 = vmatpush1.bf16.msra.mxu0 0
        %1880 = vmatprep.subr.bf16.mxu0 0
        %1881 = vmatpush1.bf16.msra.mxu0 0
        %1882 = vmatprep.subr.bf16.mxu0 0
        %1883 = vmatpush1.bf16.msra.mxu0 0
        %1884 = vmatprep.subr.bf16.mxu0 0
        %1885 = vmatpush1.bf16.msra.mxu0 0
        %1886 = vmatprep.subr.bf16.mxu0 0
        %1887 = vmatpush1.bf16.msra.mxu0 0
        %1888 = vmatprep.mubr.bf16.mxu0 0
        %1889 = vmatmul.mubr.bf16.gmra.mrb[0].mxu0 %v605
        %v1890 = vpop.f32.mrb[0].mxu0
        %v1891 = vadd.f32 0.0, %v1890
        %v1892 = vpop.f32.mrb[0].mxu0
        %v1893 = vpop.f32.mrb[0].mxu0
        %v1894 = vadd.f32 0.0, %v1893
        %v1895 = vpop.f32.mrb[0].mxu0
        %1896 = vdwg.mxu0
        %v1905 = vunpack.c.l.b16 %v1719
        %v1906 = vunpack.c.l.b16 %v1720
        %v1907 = vunpack.c.l.b16 %v1721
        %v1908 = vunpack.c.l.b16 %v1722
        %v1909 = vunpack.c.l.b16 %v1723
        %v1910 = vunpack.c.l.b16 %v1724
        %v1911 = vunpack.c.l.b16 %v1725
        %v1912 = vunpack.c.l.b16 %v1726
        %v1913 = vpack.c.b16 %v1906, %v1905
        %v1914 = vpack.c.b16 %v1908, %v1907
        %v1915 = vpack.c.b16 %v1910, %v1909
        %v1916 = vpack.c.b16 %v1912, %v1911
        %1921 = vmatprep.subr.bf16.mxu0 0
        %1922 = vmatpush1.bf16.msra.mxu0 %v1913
        %1923 = vmatprep.subr.bf16.mxu0 0
        %1924 = vmatpush1.bf16.msra.mxu0 %v1914
        %1925 = vmatprep.subr.bf16.mxu0 0
        %1926 = vmatpush1.bf16.msra.mxu0 %v1915
        %1927 = vmatprep.subr.bf16.mxu0 0
        %1928 = vmatpush1.bf16.msra.mxu0 %v1916
        %1929 = vmatprep.subr.bf16.mxu0 0
        %1930 = vmatpush1.bf16.msra.mxu0 0
        %1931 = vmatprep.subr.bf16.mxu0 0
        %1932 = vmatpush1.bf16.msra.mxu0 0
        %1933 = vmatprep.subr.bf16.mxu0 0
        %1934 = vmatpush1.bf16.msra.mxu0 0
        %1935 = vmatprep.subr.bf16.mxu0 0
        %1936 = vmatpush1.bf16.msra.mxu0 0
        %1937 = vmatprep.subr.bf16.mxu0 0
        %1938 = vmatpush1.bf16.msra.mxu0 0
        %1939 = vmatprep.subr.bf16.mxu0 0
        %1940 = vmatpush1.bf16.msra.mxu0 0
        %1941 = vmatprep.subr.bf16.mxu0 0
        %1942 = vmatpush1.bf16.msra.mxu0 0
        %1943 = vmatprep.subr.bf16.mxu0 0
        %1944 = vmatpush1.bf16.msra.mxu0 0
        %1945 = vmatprep.subr.bf16.mxu0 0
        %1946 = vmatpush1.bf16.msra.mxu0 0
        %1947 = vmatprep.subr.bf16.mxu0 0
        %1948 = vmatpush1.bf16.msra.mxu0 0
        %1949 = vmatprep.subr.bf16.mxu0 0
        %1950 = vmatpush1.bf16.msra.mxu0 0
        %1951 = vmatprep.subr.bf16.mxu0 0
        %1952 = vmatpush1.bf16.msra.mxu0 0
        %1953 = vmatprep.mubr.bf16.mxu0 0
        %1954 = vmatmul.mubr.bf16.gmra.mrb[0].mxu0 %v605
        %v1955 = vpop.f32.mrb[0].mxu0
        %v1956 = vadd.f32 0.0, %v1955
        %v1957 = vpop.f32.mrb[0].mxu0
        %v1958 = vpop.f32.mrb[0].mxu0
        %v1959 = vadd.f32 0.0, %v1958
        %v1960 = vpop.f32.mrb[0].mxu0
        %1961 = vdwg.mxu0
        %v1970 = vunpack.c.l.b16 %v1727
        %v1971 = vunpack.c.l.b16 %v1728
        %v1972 = vunpack.c.l.b16 %v1729
        %v1973 = vunpack.c.l.b16 %v1730
        %v1974 = vunpack.c.l.b16 %v1731
        %v1975 = vunpack.c.l.b16 %v1732
        %v1976 = vunpack.c.l.b16 %v1733
        %v1977 = vunpack.c.l.b16 %v1734
        %v1978 = vpack.c.b16 %v1971, %v1970
        %v1979 = vpack.c.b16 %v1973, %v1972
        %v1980 = vpack.c.b16 %v1975, %v1974
        %v1981 = vpack.c.b16 %v1977, %v1976
        %1986 = vmatprep.subr.bf16.mxu0 0
        %1987 = vmatpush1.bf16.msra.mxu0 %v1978
        %1988 = vmatprep.subr.bf16.mxu0 0
        %1989 = vmatpush1.bf16.msra.mxu0 %v1979
        %1990 = vmatprep.subr.bf16.mxu0 0
        %1991 = vmatpush1.bf16.msra.mxu0 %v1980
        %1992 = vmatprep.subr.bf16.mxu0 0
        %1993 = vmatpush1.bf16.msra.mxu0 %v1981
        %1994 = vmatprep.subr.bf16.mxu0 0
        %1995 = vmatpush1.bf16.msra.mxu0 0
        %1996 = vmatprep.subr.bf16.mxu0 0
        %1997 = vmatpush1.bf16.msra.mxu0 0
        %1998 = vmatprep.subr.bf16.mxu0 0
        %1999 = vmatpush1.bf16.msra.mxu0 0
        %2000 = vmatprep.subr.bf16.mxu0 0
        %2001 = vmatpush1.bf16.msra.mxu0 0
        %2002 = vmatprep.subr.bf16.mxu0 0
        %2003 = vmatpush1.bf16.msra.mxu0 0
        %2004 = vmatprep.subr.bf16.mxu0 0
        %2005 = vmatpush1.bf16.msra.mxu0 0
        %2006 = vmatprep.subr.bf16.mxu0 0
        %2007 = vmatpush1.bf16.msra.mxu0 0
        %2008 = vmatprep.subr.bf16.mxu0 0
        %2009 = vmatpush1.bf16.msra.mxu0 0
        %2010 = vmatprep.subr.bf16.mxu0 0
        %2011 = vmatpush1.bf16.msra.mxu0 0
        %2012 = vmatprep.subr.bf16.mxu0 0
        %2013 = vmatpush1.bf16.msra.mxu0 0
        %2014 = vmatprep.subr.bf16.mxu0 0
        %2015 = vmatpush1.bf16.msra.mxu0 0
        %2016 = vmatprep.subr.bf16.mxu0 0
        %2017 = vmatpush1.bf16.msra.mxu0 0
        %2018 = vmatprep.mubr.bf16.mxu0 0
        %2019 = vmatmul.mubr.bf16.gmra.mrb[0].mxu0 %v605
        %v2020 = vpop.f32.mrb[0].mxu0
        %v2021 = vadd.f32 0.0, %v2020
        %v2022 = vpop.f32.mrb[0].mxu0
        %v2023 = vpop.f32.mrb[0].mxu0
        %v2024 = vadd.f32 0.0, %v2023
        %v2025 = vpop.f32.mrb[0].mxu0
        %2026 = vdwg.mxu0
        %v2035 = vunpack.c.l.b16 %v1735
        %v2036 = vunpack.c.l.b16 %v1736
        %v2037 = vunpack.c.l.b16 %v1737
        %v2038 = vunpack.c.l.b16 %v1738
        %v2039 = vunpack.c.l.b16 %v1739
        %v2040 = vunpack.c.l.b16 %v1740
        %v2041 = vunpack.c.l.b16 %v1741
        %v2042 = vunpack.c.l.b16 %v1742
        %v2043 = vpack.c.b16 %v2036, %v2035
        %v2044 = vpack.c.b16 %v2038, %v2037
        %v2045 = vpack.c.b16 %v2040, %v2039
        %v2046 = vpack.c.b16 %v2042, %v2041
        %2051 = vmatprep.subr.bf16.mxu0 0
        %2052 = vmatpush1.bf16.msra.mxu0 %v2043
        %2053 = vmatprep.subr.bf16.mxu0 0
        %2054 = vmatpush1.bf16.msra.mxu0 %v2044
        %2055 = vmatprep.subr.bf16.mxu0 0
        %2056 = vmatpush1.bf16.msra.mxu0 %v2045
        %2057 = vmatprep.subr.bf16.mxu0 0
        %2058 = vmatpush1.bf16.msra.mxu0 %v2046
        %2059 = vmatprep.subr.bf16.mxu0 0
        %2060 = vmatpush1.bf16.msra.mxu0 0
        %2061 = vmatprep.subr.bf16.mxu0 0
        %2062 = vmatpush1.bf16.msra.mxu0 0
        %2063 = vmatprep.subr.bf16.mxu0 0
        %2064 = vmatpush1.bf16.msra.mxu0 0
        %2065 = vmatprep.subr.bf16.mxu0 0
        %2066 = vmatpush1.bf16.msra.mxu0 0
        %2067 = vmatprep.subr.bf16.mxu0 0
        %2068 = vmatpush1.bf16.msra.mxu0 0
        %2069 = vmatprep.subr.bf16.mxu0 0
        %2070 = vmatpush1.bf16.msra.mxu0 0
        %2071 = vmatprep.subr.bf16.mxu0 0
        %2072 = vmatpush1.bf16.msra.mxu0 0
        %2073 = vmatprep.subr.bf16.mxu0 0
        %2074 = vmatpush1.bf16.msra.mxu0 0
        %2075 = vmatprep.subr.bf16.mxu0 0
        %2076 = vmatpush1.bf16.msra.mxu0 0
        %2077 = vmatprep.subr.bf16.mxu0 0
        %2078 = vmatpush1.bf16.msra.mxu0 0
        %2079 = vmatprep.subr.bf16.mxu0 0
        %2080 = vmatpush1.bf16.msra.mxu0 0
        %2081 = vmatprep.subr.bf16.mxu0 0
        %2082 = vmatpush1.bf16.msra.mxu0 0
        %2083 = vmatprep.mubr.bf16.mxu0 0
        %2084 = vmatmul.mubr.bf16.gmra.mrb[0].mxu0 %v605
        %v2085 = vpop.f32.mrb[0].mxu0
        %v2086 = vadd.f32 0.0, %v2085
        %v2087 = vpop.f32.mrb[0].mxu0
        %v2088 = vpop.f32.mrb[0].mxu0
        %v2089 = vadd.f32 0.0, %v2088
        %v2090 = vpop.f32.mrb[0].mxu0
        %2091 = vdwg.mxu0
        %v2100 = vunpack.c.l.b16 %v1743
        %v2101 = vunpack.c.l.b16 %v1744
        %v2102 = vunpack.c.l.b16 %v1745
        %v2103 = vunpack.c.l.b16 %v1746
        %v2104 = vunpack.c.l.b16 %v1747
        %v2105 = vunpack.c.l.b16 %v1748
        %v2106 = vunpack.c.l.b16 %v1749
        %v2107 = vunpack.c.l.b16 %v1750
        %v2108 = vpack.c.b16 %v2101, %v2100
        %v2109 = vpack.c.b16 %v2103, %v2102
        %v2110 = vpack.c.b16 %v2105, %v2104
        %v2111 = vpack.c.b16 %v2107, %v2106
        %2116 = vmatprep.subr.bf16.mxu0 0
        %2117 = vmatpush1.bf16.msra.mxu0 %v2108
        %2118 = vmatprep.subr.bf16.mxu0 0
        %2119 = vmatpush1.bf16.msra.mxu0 %v2109
        %2120 = vmatprep.subr.bf16.mxu0 0
        %2121 = vmatpush1.bf16.msra.mxu0 %v2110
        %2122 = vmatprep.subr.bf16.mxu0 0
        %2123 = vmatpush1.bf16.msra.mxu0 %v2111
        %2124 = vmatprep.subr.bf16.mxu0 0
        %2125 = vmatpush1.bf16.msra.mxu0 0
        %2126 = vmatprep.subr.bf16.mxu0 0
        %2127 = vmatpush1.bf16.msra.mxu0 0
        %2128 = vmatprep.subr.bf16.mxu0 0
        %2129 = vmatpush1.bf16.msra.mxu0 0
        %2130 = vmatprep.subr.bf16.mxu0 0
        %2131 = vmatpush1.bf16.msra.mxu0 0
        %2132 = vmatprep.subr.bf16.mxu0 0
        %2133 = vmatpush1.bf16.msra.mxu0 0
        %2134 = vmatprep.subr.bf16.mxu0 0
        %2135 = vmatpush1.bf16.msra.mxu0 0
        %2136 = vmatprep.subr.bf16.mxu0 0
        %2137 = vmatpush1.bf16.msra.mxu0 0
        %2138 = vmatprep.subr.bf16.mxu0 0
        %2139 = vmatpush1.bf16.msra.mxu0 0
        %2140 = vmatprep.subr.bf16.mxu0 0
        %2141 = vmatpush1.bf16.msra.mxu0 0
        %2142 = vmatprep.subr.bf16.mxu0 0
        %2143 = vmatpush1.bf16.msra.mxu0 0
        %2144 = vmatprep.subr.bf16.mxu0 0
        %2145 = vmatpush1.bf16.msra.mxu0 0
        %2146 = vmatprep.subr.bf16.mxu0 0
        %2147 = vmatpush1.bf16.msra.mxu0 0
        %2148 = vmatprep.mubr.bf16.mxu0 0
        %2149 = vmatmul.mubr.bf16.gmra.mrb[0].mxu0 %v605
        %v2150 = vpop.f32.mrb[0].mxu0
        %v2151 = vadd.f32 0.0, %v2150
        %v2152 = vpop.f32.mrb[0].mxu0
        %v2153 = vpop.f32.mrb[0].mxu0
        %v2154 = vadd.f32 0.0, %v2153
        %v2155 = vpop.f32.mrb[0].mxu0
        %2156 = vdwg.mxu0
        %v2165 = vunpack.c.l.b16 %v1751
        %v2166 = vunpack.c.l.b16 %v1752
        %v2167 = vunpack.c.l.b16 %v1753
        %v2168 = vunpack.c.l.b16 %v1754
        %v2169 = vunpack.c.l.b16 %v1755
        %v2170 = vunpack.c.l.b16 %v1756
        %v2171 = vunpack.c.l.b16 %v1757
        %v2172 = vunpack.c.l.b16 %v1758
        %v2173 = vpack.c.b16 %v2166, %v2165
        %v2174 = vpack.c.b16 %v2168, %v2167
        %v2175 = vpack.c.b16 %v2170, %v2169
        %v2176 = vpack.c.b16 %v2172, %v2171
        %2181 = vmatprep.subr.bf16.mxu0 0
        %2182 = vmatpush1.bf16.msra.mxu0 %v2173
        %2183 = vmatprep.subr.bf16.mxu0 0
        %2184 = vmatpush1.bf16.msra.mxu0 %v2174
        %2185 = vmatprep.subr.bf16.mxu0 0
        %2186 = vmatpush1.bf16.msra.mxu0 %v2175
        %2187 = vmatprep.subr.bf16.mxu0 0
        %2188 = vmatpush1.bf16.msra.mxu0 %v2176
        %2189 = vmatprep.subr.bf16.mxu0 0
        %2190 = vmatpush1.bf16.msra.mxu0 0
        %2191 = vmatprep.subr.bf16.mxu0 0
        %2192 = vmatpush1.bf16.msra.mxu0 0
        %2193 = vmatprep.subr.bf16.mxu0 0
        %2194 = vmatpush1.bf16.msra.mxu0 0
        %2195 = vmatprep.subr.bf16.mxu0 0
        %2196 = vmatpush1.bf16.msra.mxu0 0
        %2197 = vmatprep.subr.bf16.mxu0 0
        %2198 = vmatpush1.bf16.msra.mxu0 0
        %2199 = vmatprep.subr.bf16.mxu0 0
        %2200 = vmatpush1.bf16.msra.mxu0 0
        %2201 = vmatprep.subr.bf16.mxu0 0
        %2202 = vmatpush1.bf16.msra.mxu0 0
        %2203 = vmatprep.subr.bf16.mxu0 0
        %2204 = vmatpush1.bf16.msra.mxu0 0
        %2205 = vmatprep.subr.bf16.mxu0 0
        %2206 = vmatpush1.bf16.msra.mxu0 0
        %2207 = vmatprep.subr.bf16.mxu0 0
        %2208 = vmatpush1.bf16.msra.mxu0 0
        %2209 = vmatprep.subr.bf16.mxu0 0
        %2210 = vmatpush1.bf16.msra.mxu0 0
        %2211 = vmatprep.subr.bf16.mxu0 0
        %2212 = vmatpush1.bf16.msra.mxu0 0
        %2213 = vmatprep.mubr.bf16.mxu0 0
        %2214 = vmatmul.mubr.bf16.gmra.mrb[0].mxu0 %v605
        %v2215 = vpop.f32.mrb[0].mxu0
        %v2216 = vadd.f32 0.0, %v2215
        %v2217 = vpop.f32.mrb[0].mxu0
        %v2218 = vpop.f32.mrb[0].mxu0
        %v2219 = vadd.f32 0.0, %v2218
        %v2220 = vpop.f32.mrb[0].mxu0
        %2221 = vdwg.mxu0
        %v2230 = vunpack.c.l.b16 %v1759
        %v2231 = vunpack.c.l.b16 %v1760
        %v2232 = vunpack.c.l.b16 %v1761
        %v2233 = vunpack.c.l.b16 %v1762
        %v2234 = vunpack.c.l.b16 %v1763
        %v2235 = vunpack.c.l.b16 %v1764
        %v2236 = vunpack.c.l.b16 %v1765
        %v2237 = vunpack.c.l.b16 %v1766
        %v2238 = vpack.c.b16 %v2231, %v2230
        %v2239 = vpack.c.b16 %v2233, %v2232
        %v2240 = vpack.c.b16 %v2235, %v2234
        %v2241 = vpack.c.b16 %v2237, %v2236
        %2246 = vmatprep.subr.bf16.mxu0 0
        %2247 = vmatpush1.bf16.msra.mxu0 %v2238
        %2248 = vmatprep.subr.bf16.mxu0 0
        %2249 = vmatpush1.bf16.msra.mxu0 %v2239
        %2250 = vmatprep.subr.bf16.mxu0 0
        %2251 = vmatpush1.bf16.msra.mxu0 %v2240
        %2252 = vmatprep.subr.bf16.mxu0 0
        %2253 = vmatpush1.bf16.msra.mxu0 %v2241
        %2254 = vmatprep.subr.bf16.mxu0 0
        %2255 = vmatpush1.bf16.msra.mxu0 0
        %2256 = vmatprep.subr.bf16.mxu0 0
        %2257 = vmatpush1.bf16.msra.mxu0 0
        %2258 = vmatprep.subr.bf16.mxu0 0
        %2259 = vmatpush1.bf16.msra.mxu0 0
        %2260 = vmatprep.subr.bf16.mxu0 0
        %2261 = vmatpush1.bf16.msra.mxu0 0
        %2262 = vmatprep.subr.bf16.mxu0 0
        %2263 = vmatpush1.bf16.msra.mxu0 0
        %2264 = vmatprep.subr.bf16.mxu0 0
        %2265 = vmatpush1.bf16.msra.mxu0 0
        %2266 = vmatprep.subr.bf16.mxu0 0
        %2267 = vmatpush1.bf16.msra.mxu0 0
        %2268 = vmatprep.subr.bf16.mxu0 0
        %2269 = vmatpush1.bf16.msra.mxu0 0
        %2270 = vmatprep.subr.bf16.mxu0 0
        %2271 = vmatpush1.bf16.msra.mxu0 0
        %2272 = vmatprep.subr.bf16.mxu0 0
        %2273 = vmatpush1.bf16.msra.mxu0 0
        %2274 = vmatprep.subr.bf16.mxu0 0
        %2275 = vmatpush1.bf16.msra.mxu0 0
        %2276 = vmatprep.subr.bf16.mxu0 0
        %2277 = vmatpush1.bf16.msra.mxu0 0
        %2278 = vmatprep.mubr.bf16.mxu0 0
        %2279 = vmatmul.mubr.bf16.gmra.mrb[0].mxu0 %v605
        %v2280 = vpop.f32.mrb[0].mxu0
        %v2281 = vadd.f32 0.0, %v2280
        %v2282 = vpop.f32.mrb[0].mxu0
        %v2283 = vpop.f32.mrb[0].mxu0
        %v2284 = vadd.f32 0.0, %v2283
        %v2285 = vpop.f32.mrb[0].mxu0
        %2286 = vdwg.mxu0
        %v2287 = vpack.c.bf16 %v1829, %v1826
        %v2288 = vpack.c.bf16 %v1894, %v1891
        %v2289 = vpack.c.bf16 %v1959, %v1956
        %v2290 = vpack.c.bf16 %v2024, %v2021
        %v2291 = vpack.c.bf16 %v2089, %v2086
        %v2292 = vpack.c.bf16 %v2154, %v2151
        %v2293 = vpack.c.bf16 %v2219, %v2216
        %v2294 = vpack.c.bf16 %v2284, %v2281
        %vm2295 = vcmask 64512
        %v2297 = vsel %vm2295, %v1103, 0
        %v2300 = vsel %vm2295, %v1695, 0
        %2302 = vmatprep.subr.bf16.mxu0 0
        %2303 = vmatpush1.bf16.xpose.msra.mxu0 %v2300
        %2304 = vmatprep.subr.bf16.mxu0 0
        %2305 = vmatpush1.bf16.xpose.msra.mxu0 0
        %2306 = vmatprep.subr.bf16.mxu0 0
        %2307 = vmatpush1.bf16.xpose.msra.mxu0 0
        %2308 = vmatprep.subr.bf16.mxu0 0
        %2309 = vmatpush1.bf16.xpose.msra.mxu0 0
        %2310 = vmatprep.subr.bf16.mxu0 0
        %2311 = vmatpush1.bf16.xpose.msra.mxu0 0
        %2312 = vmatprep.subr.bf16.mxu0 0
        %2313 = vmatpush1.bf16.xpose.msra.mxu0 0
        %2314 = vmatprep.subr.bf16.mxu0 0
        %2315 = vmatpush1.bf16.xpose.msra.mxu0 0
        %2316 = vmatprep.subr.bf16.mxu0 0
        %2317 = vmatpush1.bf16.xpose.msra.mxu0 0
        %2318 = vmatprep.subr.bf16.mxu0 0
        %2319 = vmatpush1.bf16.xpose.msra.mxu0 0
        %2320 = vmatprep.subr.bf16.mxu0 0
        %2321 = vmatpush1.bf16.xpose.msra.mxu0 0
        %2322 = vmatprep.subr.bf16.mxu0 0
        %2323 = vmatpush1.bf16.xpose.msra.mxu0 0
        %2324 = vmatprep.subr.bf16.mxu0 0
        %2325 = vmatpush1.bf16.xpose.msra.mxu0 0
        %2326 = vmatprep.subr.bf16.mxu0 0
        %2327 = vmatpush1.bf16.xpose.msra.mxu0 0
        %2328 = vmatprep.subr.bf16.mxu0 0
        %2329 = vmatpush1.bf16.xpose.msra.mxu0 0
        %2330 = vmatprep.subr.bf16.mxu0 0
        %2331 = vmatpush1.bf16.xpose.msra.mxu0 0
        %2332 = vmatprep.subr.bf16.mxu0 0
        %2333 = vmatpush1.bf16.xpose.msra.mxu0 0
        %2334 = vmatprep.mubr.bf16.mxu0 0
        %2335 = vmatmul.mubr.bf16.gmra.mrb[0].mxu0 %v2297
        %v2336 = vpop.f32.mrb[0].mxu0
        %v2337 = vadd.f32 0.0, %v2336
        %v2338 = vpop.f32.mrb[0].mxu0
        %v2339 = vpop.f32.mrb[0].mxu0
        %v2340 = vadd.f32 0.0, %v2339
        %v2341 = vpop.f32.mrb[0].mxu0
        %2342 = vdwg.mxu0
        %v2344 = vsel %vm2295, %v1104, 0
        %v2347 = vsel %vm2295, %v1696, 0
        %2349 = vmatprep.subr.bf16.mxu0 0
        %2350 = vmatpush1.bf16.xpose.msra.mxu0 %v2347
        %2351 = vmatprep.subr.bf16.mxu0 0
        %2352 = vmatpush1.bf16.xpose.msra.mxu0 0
        %2353 = vmatprep.subr.bf16.mxu0 0
        %2354 = vmatpush1.bf16.xpose.msra.mxu0 0
        %2355 = vmatprep.subr.bf16.mxu0 0
        %2356 = vmatpush1.bf16.xpose.msra.mxu0 0
        %2357 = vmatprep.subr.bf16.mxu0 0
        %2358 = vmatpush1.bf16.xpose.msra.mxu0 0
        %2359 = vmatprep.subr.bf16.mxu0 0
        %2360 = vmatpush1.bf16.xpose.msra.mxu0 0
        %2361 = vmatprep.subr.bf16.mxu0 0
        %2362 = vmatpush1.bf16.xpose.msra.mxu0 0
        %2363 = vmatprep.subr.bf16.mxu0 0
        %2364 = vmatpush1.bf16.xpose.msra.mxu0 0
        %2365 = vmatprep.subr.bf16.mxu0 0
        %2366 = vmatpush1.bf16.xpose.msra.mxu0 0
        %2367 = vmatprep.subr.bf16.mxu0 0
        %2368 = vmatpush1.bf16.xpose.msra.mxu0 0
        %2369 = vmatprep.subr.bf16.mxu0 0
        %2370 = vmatpush1.bf16.xpose.msra.mxu0 0
        %2371 = vmatprep.subr.bf16.mxu0 0
        %2372 = vmatpush1.bf16.xpose.msra.mxu0 0
        %2373 = vmatprep.subr.bf16.mxu0 0
        %2374 = vmatpush1.bf16.xpose.msra.mxu0 0
        %2375 = vmatprep.subr.bf16.mxu0 0
        %2376 = vmatpush1.bf16.xpose.msra.mxu0 0
        %2377 = vmatprep.subr.bf16.mxu0 0
        %2378 = vmatpush1.bf16.xpose.msra.mxu0 0
        %2379 = vmatprep.subr.bf16.mxu0 0
        %2380 = vmatpush1.bf16.xpose.msra.mxu0 0
        %2381 = vmatprep.mubr.bf16.mxu0 0
        %2382 = vmatmul.mubr.bf16.gmra.mrb[0].mxu0 %v2344
        %v2383 = vpop.f32.mrb[0].mxu0
        %v2384 = vadd.f32 0.0, %v2383
        %v2385 = vpop.f32.mrb[0].mxu0
        %v2386 = vpop.f32.mrb[0].mxu0
        %v2387 = vadd.f32 0.0, %v2386
        %v2388 = vpop.f32.mrb[0].mxu0
        %2389 = vdwg.mxu0
        %v2391 = vsel %vm2295, %v1105, 0
        %v2394 = vsel %vm2295, %v1697, 0
        %2396 = vmatprep.subr.bf16.mxu0 0
        %2397 = vmatpush1.bf16.xpose.msra.mxu0 %v2394
        %2398 = vmatprep.subr.bf16.mxu0 0
        %2399 = vmatpush1.bf16.xpose.msra.mxu0 0
        %2400 = vmatprep.subr.bf16.mxu0 0
        %2401 = vmatpush1.bf16.xpose.msra.mxu0 0
        %2402 = vmatprep.subr.bf16.mxu0 0
        %2403 = vmatpush1.bf16.xpose.msra.mxu0 0
        %2404 = vmatprep.subr.bf16.mxu0 0
        %2405 = vmatpush1.bf16.xpose.msra.mxu0 0
        %2406 = vmatprep.subr.bf16.mxu0 0
        %2407 = vmatpush1.bf16.xpose.msra.mxu0 0
        %2408 = vmatprep.subr.bf16.mxu0 0
        %2409 = vmatpush1.bf16.xpose.msra.mxu0 0
        %2410 = vmatprep.subr.bf16.mxu0 0
        %2411 = vmatpush1.bf16.xpose.msra.mxu0 0
        %2412 = vmatprep.subr.bf16.mxu0 0
        %2413 = vmatpush1.bf16.xpose.msra.mxu0 0
        %2414 = vmatprep.subr.bf16.mxu0 0
        %2415 = vmatpush1.bf16.xpose.msra.mxu0 0
        %2416 = vmatprep.subr.bf16.mxu0 0
        %2417 = vmatpush1.bf16.xpose.msra.mxu0 0
        %2418 = vmatprep.subr.bf16.mxu0 0
        %2419 = vmatpush1.bf16.xpose.msra.mxu0 0
        %2420 = vmatprep.subr.bf16.mxu0 0
        %2421 = vmatpush1.bf16.xpose.msra.mxu0 0
        %2422 = vmatprep.subr.bf16.mxu0 0
        %2423 = vmatpush1.bf16.xpose.msra.mxu0 0
        %2424 = vmatprep.subr.bf16.mxu0 0
        %2425 = vmatpush1.bf16.xpose.msra.mxu0 0
        %2426 = vmatprep.subr.bf16.mxu0 0
        %2427 = vmatpush1.bf16.xpose.msra.mxu0 0
        %2428 = vmatprep.mubr.bf16.mxu0 0
        %2429 = vmatmul.mubr.bf16.gmra.mrb[0].mxu0 %v2391
        %v2430 = vpop.f32.mrb[0].mxu0
        %v2431 = vadd.f32 0.0, %v2430
        %v2432 = vpop.f32.mrb[0].mxu0
        %v2433 = vpop.f32.mrb[0].mxu0
        %v2434 = vadd.f32 0.0, %v2433
        %v2435 = vpop.f32.mrb[0].mxu0
        %2436 = vdwg.mxu0
        %v2438 = vsel %vm2295, %v1106, 0
        %v2441 = vsel %vm2295, %v1698, 0
        %2443 = vmatprep.subr.bf16.mxu0 0
        %2444 = vmatpush1.bf16.xpose.msra.mxu0 %v2441
        %2445 = vmatprep.subr.bf16.mxu0 0
        %2446 = vmatpush1.bf16.xpose.msra.mxu0 0
        %2447 = vmatprep.subr.bf16.mxu0 0
        %2448 = vmatpush1.bf16.xpose.msra.mxu0 0
        %2449 = vmatprep.subr.bf16.mxu0 0
        %2450 = vmatpush1.bf16.xpose.msra.mxu0 0
        %2451 = vmatprep.subr.bf16.mxu0 0
        %2452 = vmatpush1.bf16.xpose.msra.mxu0 0
        %2453 = vmatprep.subr.bf16.mxu0 0
        %2454 = vmatpush1.bf16.xpose.msra.mxu0 0
        %2455 = vmatprep.subr.bf16.mxu0 0
        %2456 = vmatpush1.bf16.xpose.msra.mxu0 0
        %2457 = vmatprep.subr.bf16.mxu0 0
        %2458 = vmatpush1.bf16.xpose.msra.mxu0 0
        %2459 = vmatprep.subr.bf16.mxu0 0
        %2460 = vmatpush1.bf16.xpose.msra.mxu0 0
        %2461 = vmatprep.subr.bf16.mxu0 0
        %2462 = vmatpush1.bf16.xpose.msra.mxu0 0
        %2463 = vmatprep.subr.bf16.mxu0 0
        %2464 = vmatpush1.bf16.xpose.msra.mxu0 0
        %2465 = vmatprep.subr.bf16.mxu0 0
        %2466 = vmatpush1.bf16.xpose.msra.mxu0 0
        %2467 = vmatprep.subr.bf16.mxu0 0
        %2468 = vmatpush1.bf16.xpose.msra.mxu0 0
        %2469 = vmatprep.subr.bf16.mxu0 0
        %2470 = vmatpush1.bf16.xpose.msra.mxu0 0
        %2471 = vmatprep.subr.bf16.mxu0 0
        %2472 = vmatpush1.bf16.xpose.msra.mxu0 0
        %2473 = vmatprep.subr.bf16.mxu0 0
        %2474 = vmatpush1.bf16.xpose.msra.mxu0 0
        %2475 = vmatprep.mubr.bf16.mxu0 0
        %2476 = vmatmul.mubr.bf16.gmra.mrb[0].mxu0 %v2438
        %v2477 = vpop.f32.mrb[0].mxu0
        %v2478 = vadd.f32 0.0, %v2477
        %v2479 = vpop.f32.mrb[0].mxu0
        %v2480 = vpop.f32.mrb[0].mxu0
        %v2481 = vadd.f32 0.0, %v2480
        %v2482 = vpop.f32.mrb[0].mxu0
        %2483 = vdwg.mxu0
        %v2485 = vsel %vm2295, %v1107, 0
        %v2488 = vsel %vm2295, %v1699, 0
        %2490 = vmatprep.subr.bf16.mxu0 0
        %2491 = vmatpush1.bf16.xpose.msra.mxu0 %v2488
        %2492 = vmatprep.subr.bf16.mxu0 0
        %2493 = vmatpush1.bf16.xpose.msra.mxu0 0
        %2494 = vmatprep.subr.bf16.mxu0 0
        %2495 = vmatpush1.bf16.xpose.msra.mxu0 0
        %2496 = vmatprep.subr.bf16.mxu0 0
        %2497 = vmatpush1.bf16.xpose.msra.mxu0 0
        %2498 = vmatprep.subr.bf16.mxu0 0
        %2499 = vmatpush1.bf16.xpose.msra.mxu0 0
        %2500 = vmatprep.subr.bf16.mxu0 0
        %2501 = vmatpush1.bf16.xpose.msra.mxu0 0
        %2502 = vmatprep.subr.bf16.mxu0 0
        %2503 = vmatpush1.bf16.xpose.msra.mxu0 0
        %2504 = vmatprep.subr.bf16.mxu0 0
        %2505 = vmatpush1.bf16.xpose.msra.mxu0 0
        %2506 = vmatprep.subr.bf16.mxu0 0
        %2507 = vmatpush1.bf16.xpose.msra.mxu0 0
        %2508 = vmatprep.subr.bf16.mxu0 0
        %2509 = vmatpush1.bf16.xpose.msra.mxu0 0
        %2510 = vmatprep.subr.bf16.mxu0 0
        %2511 = vmatpush1.bf16.xpose.msra.mxu0 0
        %2512 = vmatprep.subr.bf16.mxu0 0
        %2513 = vmatpush1.bf16.xpose.msra.mxu0 0
        %2514 = vmatprep.subr.bf16.mxu0 0
        %2515 = vmatpush1.bf16.xpose.msra.mxu0 0
        %2516 = vmatprep.subr.bf16.mxu0 0
        %2517 = vmatpush1.bf16.xpose.msra.mxu0 0
        %2518 = vmatprep.subr.bf16.mxu0 0
        %2519 = vmatpush1.bf16.xpose.msra.mxu0 0
        %2520 = vmatprep.subr.bf16.mxu0 0
        %2521 = vmatpush1.bf16.xpose.msra.mxu0 0
        %2522 = vmatprep.mubr.bf16.mxu0 0
        %2523 = vmatmul.mubr.bf16.gmra.mrb[0].mxu0 %v2485
        %v2524 = vpop.f32.mrb[0].mxu0
        %v2525 = vadd.f32 0.0, %v2524
        %v2526 = vpop.f32.mrb[0].mxu0
        %v2527 = vpop.f32.mrb[0].mxu0
        %v2528 = vadd.f32 0.0, %v2527
        %v2529 = vpop.f32.mrb[0].mxu0
        %2530 = vdwg.mxu0
        %v2532 = vsel %vm2295, %v1108, 0
        %v2535 = vsel %vm2295, %v1700, 0
        %2537 = vmatprep.subr.bf16.mxu0 0
        %2538 = vmatpush1.bf16.xpose.msra.mxu0 %v2535
        %2539 = vmatprep.subr.bf16.mxu0 0
        %2540 = vmatpush1.bf16.xpose.msra.mxu0 0
        %2541 = vmatprep.subr.bf16.mxu0 0
        %2542 = vmatpush1.bf16.xpose.msra.mxu0 0
        %2543 = vmatprep.subr.bf16.mxu0 0
        %2544 = vmatpush1.bf16.xpose.msra.mxu0 0
        %2545 = vmatprep.subr.bf16.mxu0 0
        %2546 = vmatpush1.bf16.xpose.msra.mxu0 0
        %2547 = vmatprep.subr.bf16.mxu0 0
        %2548 = vmatpush1.bf16.xpose.msra.mxu0 0
        %2549 = vmatprep.subr.bf16.mxu0 0
        %2550 = vmatpush1.bf16.xpose.msra.mxu0 0
        %2551 = vmatprep.subr.bf16.mxu0 0
        %2552 = vmatpush1.bf16.xpose.msra.mxu0 0
        %2553 = vmatprep.subr.bf16.mxu0 0
        %2554 = vmatpush1.bf16.xpose.msra.mxu0 0
        %2555 = vmatprep.subr.bf16.mxu0 0
        %2556 = vmatpush1.bf16.xpose.msra.mxu0 0
        %2557 = vmatprep.subr.bf16.mxu0 0
        %2558 = vmatpush1.bf16.xpose.msra.mxu0 0
        %2559 = vmatprep.subr.bf16.mxu0 0
        %2560 = vmatpush1.bf16.xpose.msra.mxu0 0
        %2561 = vmatprep.subr.bf16.mxu0 0
        %2562 = vmatpush1.bf16.xpose.msra.mxu0 0
        %2563 = vmatprep.subr.bf16.mxu0 0
        %2564 = vmatpush1.bf16.xpose.msra.mxu0 0
        %2565 = vmatprep.subr.bf16.mxu0 0
        %2566 = vmatpush1.bf16.xpose.msra.mxu0 0
        %2567 = vmatprep.subr.bf16.mxu0 0
        %2568 = vmatpush1.bf16.xpose.msra.mxu0 0
        %2569 = vmatprep.mubr.bf16.mxu0 0
        %2570 = vmatmul.mubr.bf16.gmra.mrb[0].mxu0 %v2532
        %v2571 = vpop.f32.mrb[0].mxu0
        %v2572 = vadd.f32 0.0, %v2571
        %v2573 = vpop.f32.mrb[0].mxu0
        %v2574 = vpop.f32.mrb[0].mxu0
        %v2575 = vadd.f32 0.0, %v2574
        %v2576 = vpop.f32.mrb[0].mxu0
        %2577 = vdwg.mxu0
        %v2579 = vsel %vm2295, %v1109, 0
        %v2582 = vsel %vm2295, %v1701, 0
        %2584 = vmatprep.subr.bf16.mxu0 0
        %2585 = vmatpush1.bf16.xpose.msra.mxu0 %v2582
        %2586 = vmatprep.subr.bf16.mxu0 0
        %2587 = vmatpush1.bf16.xpose.msra.mxu0 0
        %2588 = vmatprep.subr.bf16.mxu0 0
        %2589 = vmatpush1.bf16.xpose.msra.mxu0 0
        %2590 = vmatprep.subr.bf16.mxu0 0
        %2591 = vmatpush1.bf16.xpose.msra.mxu0 0
        %2592 = vmatprep.subr.bf16.mxu0 0
        %2593 = vmatpush1.bf16.xpose.msra.mxu0 0
        %2594 = vmatprep.subr.bf16.mxu0 0
        %2595 = vmatpush1.bf16.xpose.msra.mxu0 0
        %2596 = vmatprep.subr.bf16.mxu0 0
        %2597 = vmatpush1.bf16.xpose.msra.mxu0 0
        %2598 = vmatprep.subr.bf16.mxu0 0
        %2599 = vmatpush1.bf16.xpose.msra.mxu0 0
        %2600 = vmatprep.subr.bf16.mxu0 0
        %2601 = vmatpush1.bf16.xpose.msra.mxu0 0
        %2602 = vmatprep.subr.bf16.mxu0 0
        %2603 = vmatpush1.bf16.xpose.msra.mxu0 0
        %2604 = vmatprep.subr.bf16.mxu0 0
        %2605 = vmatpush1.bf16.xpose.msra.mxu0 0
        %2606 = vmatprep.subr.bf16.mxu0 0
        %2607 = vmatpush1.bf16.xpose.msra.mxu0 0
        %2608 = vmatprep.subr.bf16.mxu0 0
        %2609 = vmatpush1.bf16.xpose.msra.mxu0 0
        %2610 = vmatprep.subr.bf16.mxu0 0
        %2611 = vmatpush1.bf16.xpose.msra.mxu0 0
        %2612 = vmatprep.subr.bf16.mxu0 0
        %2613 = vmatpush1.bf16.xpose.msra.mxu0 0
        %2614 = vmatprep.subr.bf16.mxu0 0
        %2615 = vmatpush1.bf16.xpose.msra.mxu0 0
        %2616 = vmatprep.mubr.bf16.mxu0 0
        %2617 = vmatmul.mubr.bf16.gmra.mrb[0].mxu0 %v2579
        %v2618 = vpop.f32.mrb[0].mxu0
        %v2619 = vadd.f32 0.0, %v2618
        %v2620 = vpop.f32.mrb[0].mxu0
        %v2621 = vpop.f32.mrb[0].mxu0
        %v2622 = vadd.f32 0.0, %v2621
        %v2623 = vpop.f32.mrb[0].mxu0
        %2624 = vdwg.mxu0
        %v2626 = vsel %vm2295, %v1110, 0
        %v2629 = vsel %vm2295, %v1702, 0
        %2631 = vmatprep.subr.bf16.mxu0 0
        %2632 = vmatpush1.bf16.xpose.msra.mxu0 %v2629
        %2633 = vmatprep.subr.bf16.mxu0 0
        %2634 = vmatpush1.bf16.xpose.msra.mxu0 0
        %2635 = vmatprep.subr.bf16.mxu0 0
        %2636 = vmatpush1.bf16.xpose.msra.mxu0 0
        %2637 = vmatprep.subr.bf16.mxu0 0
        %2638 = vmatpush1.bf16.xpose.msra.mxu0 0
        %2639 = vmatprep.subr.bf16.mxu0 0
        %2640 = vmatpush1.bf16.xpose.msra.mxu0 0
        %2641 = vmatprep.subr.bf16.mxu0 0
        %2642 = vmatpush1.bf16.xpose.msra.mxu0 0
        %2643 = vmatprep.subr.bf16.mxu0 0
        %2644 = vmatpush1.bf16.xpose.msra.mxu0 0
        %2645 = vmatprep.subr.bf16.mxu0 0
        %2646 = vmatpush1.bf16.xpose.msra.mxu0 0
        %2647 = vmatprep.subr.bf16.mxu0 0
        %2648 = vmatpush1.bf16.xpose.msra.mxu0 0
        %2649 = vmatprep.subr.bf16.mxu0 0
        %2650 = vmatpush1.bf16.xpose.msra.mxu0 0
        %2651 = vmatprep.subr.bf16.mxu0 0
        %2652 = vmatpush1.bf16.xpose.msra.mxu0 0
        %2653 = vmatprep.subr.bf16.mxu0 0
        %2654 = vmatpush1.bf16.xpose.msra.mxu0 0
        %2655 = vmatprep.subr.bf16.mxu0 0
        %2656 = vmatpush1.bf16.xpose.msra.mxu0 0
        %2657 = vmatprep.subr.bf16.mxu0 0
        %2658 = vmatpush1.bf16.xpose.msra.mxu0 0
        %2659 = vmatprep.subr.bf16.mxu0 0
        %2660 = vmatpush1.bf16.xpose.msra.mxu0 0
        %2661 = vmatprep.subr.bf16.mxu0 0
        %2662 = vmatpush1.bf16.xpose.msra.mxu0 0
        %2663 = vmatprep.mubr.bf16.mxu0 0
        %2664 = vmatmul.mubr.bf16.gmra.mrb[0].mxu0 %v2626
        %v2665 = vpop.f32.mrb[0].mxu0
        %v2666 = vadd.f32 0.0, %v2665
        %v2667 = vpop.f32.mrb[0].mxu0
        %v2668 = vpop.f32.mrb[0].mxu0
        %v2669 = vadd.f32 0.0, %v2668
        %v2670 = vpop.f32.mrb[0].mxu0
        %2671 = vdwg.mxu0
        %vm2672 = vcmask 130048
        %v2673 = vsel %vm2672, %v2337, -inf
        %2674 = vmax.xlane.f32.xlu0 %v2673
        %v2675 = vpop.xlane.xlu0 %2674
        %v2676 = vsel %vm2672, %v2340, -inf
        %2677 = vmax.xlane.f32.xlu0 %v2676
        %v2678 = vpop.xlane.xlu0 %2677
        %v2679 = vsel %vm2672, %v2384, -inf
        %2680 = vmax.xlane.f32.xlu0 %v2679
        %v2681 = vpop.xlane.xlu0 %2680
        %v2682 = vsel %vm2672, %v2387, -inf
        %2683 = vmax.xlane.f32.xlu0 %v2682
        %v2684 = vpop.xlane.xlu0 %2683
        %v2685 = vsel %vm2672, %v2431, -inf
        %2686 = vmax.xlane.f32.xlu0 %v2685
        %v2687 = vpop.xlane.xlu0 %2686
        %v2688 = vsel %vm2672, %v2434, -inf
        %2689 = vmax.xlane.f32.xlu0 %v2688
        %v2690 = vpop.xlane.xlu0 %2689
        %v2691 = vsel %vm2672, %v2478, -inf
        %2692 = vmax.xlane.f32.xlu0 %v2691
        %v2693 = vpop.xlane.xlu0 %2692
        %v2694 = vsel %vm2672, %v2481, -inf
        %2695 = vmax.xlane.f32.xlu0 %v2694
        %v2696 = vpop.xlane.xlu0 %2695
        %v2697 = vsel %vm2672, %v2525, -inf
        %2698 = vmax.xlane.f32.xlu0 %v2697
        %v2699 = vpop.xlane.xlu0 %2698
        %v2700 = vsel %vm2672, %v2528, -inf
        %2701 = vmax.xlane.f32.xlu0 %v2700
        %v2702 = vpop.xlane.xlu0 %2701
        %v2703 = vsel %vm2672, %v2572, -inf
        %2704 = vmax.xlane.f32.xlu0 %v2703
        %v2705 = vpop.xlane.xlu0 %2704
        %v2706 = vsel %vm2672, %v2575, -inf
        %2707 = vmax.xlane.f32.xlu0 %v2706
        %v2708 = vpop.xlane.xlu0 %2707
        %v2709 = vsel %vm2672, %v2619, -inf
        %2710 = vmax.xlane.f32.xlu0 %v2709
        %v2711 = vpop.xlane.xlu0 %2710
        %v2712 = vsel %vm2672, %v2622, -inf
        %2713 = vmax.xlane.f32.xlu0 %v2712
        %v2714 = vpop.xlane.xlu0 %2713
        %v2715 = vsel %vm2672, %v2666, -inf
        %2716 = vmax.xlane.f32.xlu0 %v2715
        %v2717 = vpop.xlane.xlu0 %2716
        %v2718 = vsel %vm2672, %v2669, -inf
        %2719 = vmax.xlane.f32.xlu0 %v2718
        %v2720 = vpop.xlane.xlu0 %2719
        %v2721 = vsub.f32 %v2337, %v2675
        %v2722 = vsub.f32 %v2340, %v2678
        %v2723 = vsub.f32 %v2384, %v2681
        %v2724 = vsub.f32 %v2387, %v2684
        %v2725 = vsub.f32 %v2431, %v2687
        %v2726 = vsub.f32 %v2434, %v2690
        %v2727 = vsub.f32 %v2478, %v2693
        %v2728 = vsub.f32 %v2481, %v2696
        %v2729 = vsub.f32 %v2525, %v2699
        %v2730 = vsub.f32 %v2528, %v2702
        %v2731 = vsub.f32 %v2572, %v2705
        %v2732 = vsub.f32 %v2575, %v2708
        %v2733 = vsub.f32 %v2619, %v2711
        %v2734 = vsub.f32 %v2622, %v2714
        %v2735 = vsub.f32 %v2666, %v2717
        %v2736 = vsub.f32 %v2669, %v2720
        %v2737 = vmul.f32 %v2721, 1.442695
        %v2738 = vpow.pop %v2737
        %v2739 = vmul.f32 %v2722, 1.442695
        %v2740 = vpow.pop %v2739
        %v2741 = vmul.f32 %v2723, 1.442695
        %v2742 = vpow.pop %v2741
        %v2743 = vmul.f32 %v2724, 1.442695
        %v2744 = vpow.pop %v2743
        %v2745 = vmul.f32 %v2725, 1.442695
        %v2746 = vpow.pop %v2745
        %v2747 = vmul.f32 %v2726, 1.442695
        %v2748 = vpow.pop %v2747
        %v2749 = vmul.f32 %v2727, 1.442695
        %v2750 = vpow.pop %v2749
        %v2751 = vmul.f32 %v2728, 1.442695
        %v2752 = vpow.pop %v2751
        %v2753 = vmul.f32 %v2729, 1.442695
        %v2754 = vpow.pop %v2753
        %v2755 = vmul.f32 %v2730, 1.442695
        %v2756 = vpow.pop %v2755
        %v2757 = vmul.f32 %v2731, 1.442695
        %v2758 = vpow.pop %v2757
        %v2759 = vmul.f32 %v2732, 1.442695
        %v2760 = vpow.pop %v2759
        %v2761 = vmul.f32 %v2733, 1.442695
        %v2762 = vpow.pop %v2761
        %v2763 = vmul.f32 %v2734, 1.442695
        %v2764 = vpow.pop %v2763
        %v2765 = vmul.f32 %v2735, 1.442695
        %v2766 = vpow.pop %v2765
        %v2767 = vmul.f32 %v2736, 1.442695
        %v2768 = vpow.pop %v2767
        %v2769 = vsel %vm2672, %v2738, 0.0
        %2770 = vadd.xlane.f32.xlu0 %v2769
        %v2771 = vpop.xlane.xlu0 %2770
        %v2772 = vsel %vm2672, %v2740, 0.0
        %2773 = vadd.xlane.f32.xlu0 %v2772
        %v2774 = vpop.xlane.xlu0 %2773
        %v2775 = vsel %vm2672, %v2742, 0.0
        %2776 = vadd.xlane.f32.xlu0 %v2775
        %v2777 = vpop.xlane.xlu0 %2776
        %v2778 = vsel %vm2672, %v2744, 0.0
        %2779 = vadd.xlane.f32.xlu0 %v2778
        %v2780 = vpop.xlane.xlu0 %2779
        %v2781 = vsel %vm2672, %v2746, 0.0
        %2782 = vadd.xlane.f32.xlu0 %v2781
        %v2783 = vpop.xlane.xlu0 %2782
        %v2784 = vsel %vm2672, %v2748, 0.0
        %2785 = vadd.xlane.f32.xlu0 %v2784
        %v2786 = vpop.xlane.xlu0 %2785
        %v2787 = vsel %vm2672, %v2750, 0.0
        %2788 = vadd.xlane.f32.xlu0 %v2787
        %v2789 = vpop.xlane.xlu0 %2788
        %v2790 = vsel %vm2672, %v2752, 0.0
        %2791 = vadd.xlane.f32.xlu0 %v2790
        %v2792 = vpop.xlane.xlu0 %2791
        %v2793 = vsel %vm2672, %v2754, 0.0
        %2794 = vadd.xlane.f32.xlu0 %v2793
        %v2795 = vpop.xlane.xlu0 %2794
        %v2796 = vsel %vm2672, %v2756, 0.0
        %2797 = vadd.xlane.f32.xlu0 %v2796
        %v2798 = vpop.xlane.xlu0 %2797
        %v2799 = vsel %vm2672, %v2758, 0.0
        %2800 = vadd.xlane.f32.xlu0 %v2799
        %v2801 = vpop.xlane.xlu0 %2800
        %v2802 = vsel %vm2672, %v2760, 0.0
        %2803 = vadd.xlane.f32.xlu0 %v2802
        %v2804 = vpop.xlane.xlu0 %2803
        %v2805 = vsel %vm2672, %v2762, 0.0
        %2806 = vadd.xlane.f32.xlu0 %v2805
        %v2807 = vpop.xlane.xlu0 %2806
        %v2808 = vsel %vm2672, %v2764, 0.0
        %2809 = vadd.xlane.f32.xlu0 %v2808
        %v2810 = vpop.xlane.xlu0 %2809
        %v2811 = vsel %vm2672, %v2766, 0.0
        %2812 = vadd.xlane.f32.xlu0 %v2811
        %v2813 = vpop.xlane.xlu0 %2812
        %v2814 = vsel %vm2672, %v2768, 0.0
        %2815 = vadd.xlane.f32.xlu0 %v2814
        %v2816 = vpop.xlane.xlu0 %2815
        %v2817 = vrcp.pop %v2771
        %v2818 = vmul.f32 %v2738, %v2817
        %v2819 = vrcp.pop %v2774
        %v2820 = vmul.f32 %v2740, %v2819
        %v2821 = vrcp.pop %v2777
        %v2822 = vmul.f32 %v2742, %v2821
        %v2823 = vrcp.pop %v2780
        %v2824 = vmul.f32 %v2744, %v2823
        %v2825 = vrcp.pop %v2783
        %v2826 = vmul.f32 %v2746, %v2825
        %v2827 = vrcp.pop %v2786
        %v2828 = vmul.f32 %v2748, %v2827
        %v2829 = vrcp.pop %v2789
        %v2830 = vmul.f32 %v2750, %v2829
        %v2831 = vrcp.pop %v2792
        %v2832 = vmul.f32 %v2752, %v2831
        %v2833 = vrcp.pop %v2795
        %v2834 = vmul.f32 %v2754, %v2833
        %v2835 = vrcp.pop %v2798
        %v2836 = vmul.f32 %v2756, %v2835
        %v2837 = vrcp.pop %v2801
        %v2838 = vmul.f32 %v2758, %v2837
        %v2839 = vrcp.pop %v2804
        %v2840 = vmul.f32 %v2760, %v2839
        %v2841 = vrcp.pop %v2807
        %v2842 = vmul.f32 %v2762, %v2841
        %v2843 = vrcp.pop %v2810
        %v2844 = vmul.f32 %v2764, %v2843
        %v2845 = vrcp.pop %v2813
        %v2846 = vmul.f32 %v2766, %v2845
        %v2847 = vrcp.pop %v2816
        %v2848 = vmul.f32 %v2768, %v2847
        %v2849 = vpack.c.bf16 %v2820, %v2818
        %v2850 = vpack.c.bf16 %v2824, %v2822
        %v2851 = vpack.c.bf16 %v2828, %v2826
        %v2852 = vpack.c.bf16 %v2832, %v2830
        %v2853 = vpack.c.bf16 %v2836, %v2834
        %v2854 = vpack.c.bf16 %v2840, %v2838
        %v2855 = vpack.c.bf16 %v2844, %v2842
        %v2856 = vpack.c.bf16 %v2848, %v2846
        %v2858 = vsel %vm2672, %v2849, 0
        %2860 = vmatprep.subr.bf16.mxu0 0
        %2861 = vmatpush1.bf16.msra.mxu0 %v2287
        %2862 = vmatprep.subr.bf16.mxu0 0
        %2863 = vmatpush1.bf16.msra.mxu0 0
        %2864 = vmatprep.subr.bf16.mxu0 0
        %2865 = vmatpush1.bf16.msra.mxu0 0
        %2866 = vmatprep.subr.bf16.mxu0 0
        %2867 = vmatpush1.bf16.msra.mxu0 0
        %2868 = vmatprep.subr.bf16.mxu0 0
        %2869 = vmatpush1.bf16.msra.mxu0 0
        %2870 = vmatprep.subr.bf16.mxu0 0
        %2871 = vmatpush1.bf16.msra.mxu0 0
        %2872 = vmatprep.subr.bf16.mxu0 0
        %2873 = vmatpush1.bf16.msra.mxu0 0
        %2874 = vmatprep.subr.bf16.mxu0 0
        %2875 = vmatpush1.bf16.msra.mxu0 0
        %2876 = vmatprep.subr.bf16.mxu0 0
        %2877 = vmatpush1.bf16.msra.mxu0 0
        %2878 = vmatprep.subr.bf16.mxu0 0
        %2879 = vmatpush1.bf16.msra.mxu0 0
        %2880 = vmatprep.subr.bf16.mxu0 0
        %2881 = vmatpush1.bf16.msra.mxu0 0
        %2882 = vmatprep.subr.bf16.mxu0 0
        %2883 = vmatpush1.bf16.msra.mxu0 0
        %2884 = vmatprep.subr.bf16.mxu0 0
        %2885 = vmatpush1.bf16.msra.mxu0 0
        %2886 = vmatprep.subr.bf16.mxu0 0
        %2887 = vmatpush1.bf16.msra.mxu0 0
        %2888 = vmatprep.subr.bf16.mxu0 0
        %2889 = vmatpush1.bf16.msra.mxu0 0
        %2890 = vmatprep.subr.bf16.mxu0 0
        %2891 = vmatpush1.bf16.msra.mxu0 0
        %2892 = vmatprep.mubr.bf16.mxu0 0
        %2893 = vmatmul.mubr.bf16.gmra.mrb[0].mxu0 %v2858
        %v2894 = vpop.f32.mrb[0].mxu0
        %v2895 = vadd.f32 0.0, %v2894
        %v2896 = vpop.f32.mrb[0].mxu0
        %v2897 = vpop.f32.mrb[0].mxu0
        %v2898 = vadd.f32 0.0, %v2897
        %v2899 = vpop.f32.mrb[0].mxu0
        %2900 = vdwg.mxu0
        %v2902 = vsel %vm2672, %v2850, 0
        %2904 = vmatprep.subr.bf16.mxu0 0
        %2905 = vmatpush1.bf16.msra.mxu0 %v2288
        %2906 = vmatprep.subr.bf16.mxu0 0
        %2907 = vmatpush1.bf16.msra.mxu0 0
        %2908 = vmatprep.subr.bf16.mxu0 0
        %2909 = vmatpush1.bf16.msra.mxu0 0
        %2910 = vmatprep.subr.bf16.mxu0 0
        %2911 = vmatpush1.bf16.msra.mxu0 0
        %2912 = vmatprep.subr.bf16.mxu0 0
        %2913 = vmatpush1.bf16.msra.mxu0 0
        %2914 = vmatprep.subr.bf16.mxu0 0
        %2915 = vmatpush1.bf16.msra.mxu0 0
        %2916 = vmatprep.subr.bf16.mxu0 0
        %2917 = vmatpush1.bf16.msra.mxu0 0
        %2918 = vmatprep.subr.bf16.mxu0 0
        %2919 = vmatpush1.bf16.msra.mxu0 0
        %2920 = vmatprep.subr.bf16.mxu0 0
        %2921 = vmatpush1.bf16.msra.mxu0 0
        %2922 = vmatprep.subr.bf16.mxu0 0
        %2923 = vmatpush1.bf16.msra.mxu0 0
        %2924 = vmatprep.subr.bf16.mxu0 0
        %2925 = vmatpush1.bf16.msra.mxu0 0
        %2926 = vmatprep.subr.bf16.mxu0 0
        %2927 = vmatpush1.bf16.msra.mxu0 0
        %2928 = vmatprep.subr.bf16.mxu0 0
        %2929 = vmatpush1.bf16.msra.mxu0 0
        %2930 = vmatprep.subr.bf16.mxu0 0
        %2931 = vmatpush1.bf16.msra.mxu0 0
        %2932 = vmatprep.subr.bf16.mxu0 0
        %2933 = vmatpush1.bf16.msra.mxu0 0
        %2934 = vmatprep.subr.bf16.mxu0 0
        %2935 = vmatpush1.bf16.msra.mxu0 0
        %2936 = vmatprep.mubr.bf16.mxu0 0
        %2937 = vmatmul.mubr.bf16.gmra.mrb[0].mxu0 %v2902
        %v2938 = vpop.f32.mrb[0].mxu0
        %v2939 = vadd.f32 0.0, %v2938
        %v2940 = vpop.f32.mrb[0].mxu0
        %v2941 = vpop.f32.mrb[0].mxu0
        %v2942 = vadd.f32 0.0, %v2941
        %v2943 = vpop.f32.mrb[0].mxu0
        %2944 = vdwg.mxu0
        %v2946 = vsel %vm2672, %v2851, 0
        %2948 = vmatprep.subr.bf16.mxu0 0
        %2949 = vmatpush1.bf16.msra.mxu0 %v2289
        %2950 = vmatprep.subr.bf16.mxu0 0
        %2951 = vmatpush1.bf16.msra.mxu0 0
        %2952 = vmatprep.subr.bf16.mxu0 0
        %2953 = vmatpush1.bf16.msra.mxu0 0
        %2954 = vmatprep.subr.bf16.mxu0 0
        %2955 = vmatpush1.bf16.msra.mxu0 0
        %2956 = vmatprep.subr.bf16.mxu0 0
        %2957 = vmatpush1.bf16.msra.mxu0 0
        %2958 = vmatprep.subr.bf16.mxu0 0
        %2959 = vmatpush1.bf16.msra.mxu0 0
        %2960 = vmatprep.subr.bf16.mxu0 0
        %2961 = vmatpush1.bf16.msra.mxu0 0
        %2962 = vmatprep.subr.bf16.mxu0 0
        %2963 = vmatpush1.bf16.msra.mxu0 0
        %2964 = vmatprep.subr.bf16.mxu0 0
        %2965 = vmatpush1.bf16.msra.mxu0 0
        %2966 = vmatprep.subr.bf16.mxu0 0
        %2967 = vmatpush1.bf16.msra.mxu0 0
        %2968 = vmatprep.subr.bf16.mxu0 0
        %2969 = vmatpush1.bf16.msra.mxu0 0
        %2970 = vmatprep.subr.bf16.mxu0 0
        %2971 = vmatpush1.bf16.msra.mxu0 0
        %2972 = vmatprep.subr.bf16.mxu0 0
        %2973 = vmatpush1.bf16.msra.mxu0 0
        %2974 = vmatprep.subr.bf16.mxu0 0
        %2975 = vmatpush1.bf16.msra.mxu0 0
        %2976 = vmatprep.subr.bf16.mxu0 0
        %2977 = vmatpush1.bf16.msra.mxu0 0
        %2978 = vmatprep.subr.bf16.mxu0 0
        %2979 = vmatpush1.bf16.msra.mxu0 0
        %2980 = vmatprep.mubr.bf16.mxu0 0
        %2981 = vmatmul.mubr.bf16.gmra.mrb[0].mxu0 %v2946
        %v2982 = vpop.f32.mrb[0].mxu0
        %v2983 = vadd.f32 0.0, %v2982
        %v2984 = vpop.f32.mrb[0].mxu0
        %v2985 = vpop.f32.mrb[0].mxu0
        %v2986 = vadd.f32 0.0, %v2985
        %v2987 = vpop.f32.mrb[0].mxu0
        %2988 = vdwg.mxu0
        %v2990 = vsel %vm2672, %v2852, 0
        %2992 = vmatprep.subr.bf16.mxu0 0
        %2993 = vmatpush1.bf16.msra.mxu0 %v2290
        %2994 = vmatprep.subr.bf16.mxu0 0
        %2995 = vmatpush1.bf16.msra.mxu0 0
        %2996 = vmatprep.subr.bf16.mxu0 0
        %2997 = vmatpush1.bf16.msra.mxu0 0
        %2998 = vmatprep.subr.bf16.mxu0 0
        %2999 = vmatpush1.bf16.msra.mxu0 0
        %3000 = vmatprep.subr.bf16.mxu0 0
        %3001 = vmatpush1.bf16.msra.mxu0 0
        %3002 = vmatprep.subr.bf16.mxu0 0
        %3003 = vmatpush1.bf16.msra.mxu0 0
        %3004 = vmatprep.subr.bf16.mxu0 0
        %3005 = vmatpush1.bf16.msra.mxu0 0
        %3006 = vmatprep.subr.bf16.mxu0 0
        %3007 = vmatpush1.bf16.msra.mxu0 0
        %3008 = vmatprep.subr.bf16.mxu0 0
        %3009 = vmatpush1.bf16.msra.mxu0 0
        %3010 = vmatprep.subr.bf16.mxu0 0
        %3011 = vmatpush1.bf16.msra.mxu0 0
        %3012 = vmatprep.subr.bf16.mxu0 0
        %3013 = vmatpush1.bf16.msra.mxu0 0
        %3014 = vmatprep.subr.bf16.mxu0 0
        %3015 = vmatpush1.bf16.msra.mxu0 0
        %3016 = vmatprep.subr.bf16.mxu0 0
        %3017 = vmatpush1.bf16.msra.mxu0 0
        %3018 = vmatprep.subr.bf16.mxu0 0
        %3019 = vmatpush1.bf16.msra.mxu0 0
        %3020 = vmatprep.subr.bf16.mxu0 0
        %3021 = vmatpush1.bf16.msra.mxu0 0
        %3022 = vmatprep.subr.bf16.mxu0 0
        %3023 = vmatpush1.bf16.msra.mxu0 0
        %3024 = vmatprep.mubr.bf16.mxu0 0
        %3025 = vmatmul.mubr.bf16.gmra.mrb[0].mxu0 %v2990
        %v3026 = vpop.f32.mrb[0].mxu0
        %v3027 = vadd.f32 0.0, %v3026
        %v3028 = vpop.f32.mrb[0].mxu0
        %v3029 = vpop.f32.mrb[0].mxu0
        %v3030 = vadd.f32 0.0, %v3029
        %v3031 = vpop.f32.mrb[0].mxu0
        %3032 = vdwg.mxu0
        %v3034 = vsel %vm2672, %v2853, 0
        %3036 = vmatprep.subr.bf16.mxu0 0
        %3037 = vmatpush1.bf16.msra.mxu0 %v2291
        %3038 = vmatprep.subr.bf16.mxu0 0
        %3039 = vmatpush1.bf16.msra.mxu0 0
        %3040 = vmatprep.subr.bf16.mxu0 0
        %3041 = vmatpush1.bf16.msra.mxu0 0
        %3042 = vmatprep.subr.bf16.mxu0 0
        %3043 = vmatpush1.bf16.msra.mxu0 0
        %3044 = vmatprep.subr.bf16.mxu0 0
        %3045 = vmatpush1.bf16.msra.mxu0 0
        %3046 = vmatprep.subr.bf16.mxu0 0
        %3047 = vmatpush1.bf16.msra.mxu0 0
        %3048 = vmatprep.subr.bf16.mxu0 0
        %3049 = vmatpush1.bf16.msra.mxu0 0
        %3050 = vmatprep.subr.bf16.mxu0 0
        %3051 = vmatpush1.bf16.msra.mxu0 0
        %3052 = vmatprep.subr.bf16.mxu0 0
        %3053 = vmatpush1.bf16.msra.mxu0 0
        %3054 = vmatprep.subr.bf16.mxu0 0
        %3055 = vmatpush1.bf16.msra.mxu0 0
        %3056 = vmatprep.subr.bf16.mxu0 0
        %3057 = vmatpush1.bf16.msra.mxu0 0
        %3058 = vmatprep.subr.bf16.mxu0 0
        %3059 = vmatpush1.bf16.msra.mxu0 0
        %3060 = vmatprep.subr.bf16.mxu0 0
        %3061 = vmatpush1.bf16.msra.mxu0 0
        %3062 = vmatprep.subr.bf16.mxu0 0
        %3063 = vmatpush1.bf16.msra.mxu0 0
        %3064 = vmatprep.subr.bf16.mxu0 0
        %3065 = vmatpush1.bf16.msra.mxu0 0
        %3066 = vmatprep.subr.bf16.mxu0 0
        %3067 = vmatpush1.bf16.msra.mxu0 0
        %3068 = vmatprep.mubr.bf16.mxu0 0
        %3069 = vmatmul.mubr.bf16.gmra.mrb[0].mxu0 %v3034
        %v3070 = vpop.f32.mrb[0].mxu0
        %v3071 = vadd.f32 0.0, %v3070
        %v3072 = vpop.f32.mrb[0].mxu0
        %v3073 = vpop.f32.mrb[0].mxu0
        %v3074 = vadd.f32 0.0, %v3073
        %v3075 = vpop.f32.mrb[0].mxu0
        %3076 = vdwg.mxu0
        %v3078 = vsel %vm2672, %v2854, 0
        %3080 = vmatprep.subr.bf16.mxu0 0
        %3081 = vmatpush1.bf16.msra.mxu0 %v2292
        %3082 = vmatprep.subr.bf16.mxu0 0
        %3083 = vmatpush1.bf16.msra.mxu0 0
        %3084 = vmatprep.subr.bf16.mxu0 0
        %3085 = vmatpush1.bf16.msra.mxu0 0
        %3086 = vmatprep.subr.bf16.mxu0 0
        %3087 = vmatpush1.bf16.msra.mxu0 0
        %3088 = vmatprep.subr.bf16.mxu0 0
        %3089 = vmatpush1.bf16.msra.mxu0 0
        %3090 = vmatprep.subr.bf16.mxu0 0
        %3091 = vmatpush1.bf16.msra.mxu0 0
        %3092 = vmatprep.subr.bf16.mxu0 0
        %3093 = vmatpush1.bf16.msra.mxu0 0
        %3094 = vmatprep.subr.bf16.mxu0 0
        %3095 = vmatpush1.bf16.msra.mxu0 0
        %3096 = vmatprep.subr.bf16.mxu0 0
        %3097 = vmatpush1.bf16.msra.mxu0 0
        %3098 = vmatprep.subr.bf16.mxu0 0
        %3099 = vmatpush1.bf16.msra.mxu0 0
        %3100 = vmatprep.subr.bf16.mxu0 0
        %3101 = vmatpush1.bf16.msra.mxu0 0
        %3102 = vmatprep.subr.bf16.mxu0 0
        %3103 = vmatpush1.bf16.msra.mxu0 0
        %3104 = vmatprep.subr.bf16.mxu0 0
        %3105 = vmatpush1.bf16.msra.mxu0 0
        %3106 = vmatprep.subr.bf16.mxu0 0
        %3107 = vmatpush1.bf16.msra.mxu0 0
        %3108 = vmatprep.subr.bf16.mxu0 0
        %3109 = vmatpush1.bf16.msra.mxu0 0
        %3110 = vmatprep.subr.bf16.mxu0 0
        %3111 = vmatpush1.bf16.msra.mxu0 0
        %3112 = vmatprep.mubr.bf16.mxu0 0
        %3113 = vmatmul.mubr.bf16.gmra.mrb[0].mxu0 %v3078
        %v3114 = vpop.f32.mrb[0].mxu0
        %v3115 = vadd.f32 0.0, %v3114
        %v3116 = vpop.f32.mrb[0].mxu0
        %v3117 = vpop.f32.mrb[0].mxu0
        %v3118 = vadd.f32 0.0, %v3117
        %v3119 = vpop.f32.mrb[0].mxu0
        %3120 = vdwg.mxu0
        %v3122 = vsel %vm2672, %v2855, 0
        %3124 = vmatprep.subr.bf16.mxu0 0
        %3125 = vmatpush1.bf16.msra.mxu0 %v2293
        %3126 = vmatprep.subr.bf16.mxu0 0
        %3127 = vmatpush1.bf16.msra.mxu0 0
        %3128 = vmatprep.subr.bf16.mxu0 0
        %3129 = vmatpush1.bf16.msra.mxu0 0
        %3130 = vmatprep.subr.bf16.mxu0 0
        %3131 = vmatpush1.bf16.msra.mxu0 0
        %3132 = vmatprep.subr.bf16.mxu0 0
        %3133 = vmatpush1.bf16.msra.mxu0 0
        %3134 = vmatprep.subr.bf16.mxu0 0
        %3135 = vmatpush1.bf16.msra.mxu0 0
        %3136 = vmatprep.subr.bf16.mxu0 0
        %3137 = vmatpush1.bf16.msra.mxu0 0
        %3138 = vmatprep.subr.bf16.mxu0 0
        %3139 = vmatpush1.bf16.msra.mxu0 0
        %3140 = vmatprep.subr.bf16.mxu0 0
        %3141 = vmatpush1.bf16.msra.mxu0 0
        %3142 = vmatprep.subr.bf16.mxu0 0
        %3143 = vmatpush1.bf16.msra.mxu0 0
        %3144 = vmatprep.subr.bf16.mxu0 0
        %3145 = vmatpush1.bf16.msra.mxu0 0
        %3146 = vmatprep.subr.bf16.mxu0 0
        %3147 = vmatpush1.bf16.msra.mxu0 0
        %3148 = vmatprep.subr.bf16.mxu0 0
        %3149 = vmatpush1.bf16.msra.mxu0 0
        %3150 = vmatprep.subr.bf16.mxu0 0
        %3151 = vmatpush1.bf16.msra.mxu0 0
        %3152 = vmatprep.subr.bf16.mxu0 0
        %3153 = vmatpush1.bf16.msra.mxu0 0
        %3154 = vmatprep.subr.bf16.mxu0 0
        %3155 = vmatpush1.bf16.msra.mxu0 0
        %3156 = vmatprep.mubr.bf16.mxu0 0
        %3157 = vmatmul.mubr.bf16.gmra.mrb[0].mxu0 %v3122
        %v3158 = vpop.f32.mrb[0].mxu0
        %v3159 = vadd.f32 0.0, %v3158
        %v3160 = vpop.f32.mrb[0].mxu0
        %v3161 = vpop.f32.mrb[0].mxu0
        %v3162 = vadd.f32 0.0, %v3161
        %v3163 = vpop.f32.mrb[0].mxu0
        %3164 = vdwg.mxu0
        %v3166 = vsel %vm2672, %v2856, 0
        %3168 = vmatprep.subr.bf16.mxu0 0
        %3169 = vmatpush1.bf16.msra.mxu0 %v2294
        %3170 = vmatprep.subr.bf16.mxu0 0
        %3171 = vmatpush1.bf16.msra.mxu0 0
        %3172 = vmatprep.subr.bf16.mxu0 0
        %3173 = vmatpush1.bf16.msra.mxu0 0
        %3174 = vmatprep.subr.bf16.mxu0 0
        %3175 = vmatpush1.bf16.msra.mxu0 0
        %3176 = vmatprep.subr.bf16.mxu0 0
        %3177 = vmatpush1.bf16.msra.mxu0 0
        %3178 = vmatprep.subr.bf16.mxu0 0
        %3179 = vmatpush1.bf16.msra.mxu0 0
        %3180 = vmatprep.subr.bf16.mxu0 0
        %3181 = vmatpush1.bf16.msra.mxu0 0
        %3182 = vmatprep.subr.bf16.mxu0 0
        %3183 = vmatpush1.bf16.msra.mxu0 0
        %3184 = vmatprep.subr.bf16.mxu0 0
        %3185 = vmatpush1.bf16.msra.mxu0 0
        %3186 = vmatprep.subr.bf16.mxu0 0
        %3187 = vmatpush1.bf16.msra.mxu0 0
        %3188 = vmatprep.subr.bf16.mxu0 0
        %3189 = vmatpush1.bf16.msra.mxu0 0
        %3190 = vmatprep.subr.bf16.mxu0 0
        %3191 = vmatpush1.bf16.msra.mxu0 0
        %3192 = vmatprep.subr.bf16.mxu0 0
        %3193 = vmatpush1.bf16.msra.mxu0 0
        %3194 = vmatprep.subr.bf16.mxu0 0
        %3195 = vmatpush1.bf16.msra.mxu0 0
        %3196 = vmatprep.subr.bf16.mxu0 0
        %3197 = vmatpush1.bf16.msra.mxu0 0
        %3198 = vmatprep.subr.bf16.mxu0 0
        %3199 = vmatpush1.bf16.msra.mxu0 0
        %3200 = vmatprep.mubr.bf16.mxu0 0
        %3201 = vmatmul.mubr.bf16.gmra.mrb[0].mxu0 %v3166
        %v3202 = vpop.f32.mrb[0].mxu0
        %v3203 = vadd.f32 0.0, %v3202
        %v3204 = vpop.f32.mrb[0].mxu0
        %v3205 = vpop.f32.mrb[0].mxu0
        %v3206 = vadd.f32 0.0, %v3205
        %v3207 = vpop.f32.mrb[0].mxu0
        %3208 = vdwg.mxu0
        %v3209 = vpack.c.bf16 %v2898, %v2895
        %v3210 = vpack.c.bf16 %v2942, %v2939
        %v3211 = vpack.c.bf16 %v2986, %v2983
        %v3212 = vpack.c.bf16 %v3030, %v3027
        %v3213 = vpack.c.bf16 %v3074, %v3071
        %v3214 = vpack.c.bf16 %v3118, %v3115
        %v3215 = vpack.c.bf16 %v3162, %v3159
        %v3216 = vpack.c.bf16 %v3206, %v3203
        %v3217 = vld [vmem:[%s4] sm:$0xf]
        %v3218 = vld [vmem:[%s4 + $0x4] sm:$0xf]
        %v3219 = vld [vmem:[%s4 + $0x8] sm:$0xf]
        %v3220 = vld [vmem:[%s4 + $0xc] sm:$0xf]
        %v3221 = vld [vmem:[%s4 + $0x10] sm:$0xf]
        %v3222 = vld [vmem:[%s4 + $0x14] sm:$0xf]
        %v3223 = vld [vmem:[%s4 + $0x18] sm:$0xf]
        %v3224 = vld [vmem:[%s4 + $0x1c] sm:$0xf]
        %v3226 = vsel %vm2295, %v3209, 0
        %vm3228 = vcmask 1043456
        %v3230 = vsel %vm3228, %v3217, 0
        %3232 = vmatprep.subr.bf16.mxu0 0
        %3233 = vmatpush1.bf16.msra.mxu0 %v3230
        %3234 = vmatprep.subr.bf16.mxu0 0
        %3235 = vmatpush1.bf16.msra.mxu0 0
        %3236 = vmatprep.subr.bf16.mxu0 0
        %3237 = vmatpush1.bf16.msra.mxu0 0
        %3238 = vmatprep.subr.bf16.mxu0 0
        %3239 = vmatpush1.bf16.msra.mxu0 0
        %3240 = vmatprep.subr.bf16.mxu0 0
        %3241 = vmatpush1.bf16.msra.mxu0 0
        %3242 = vmatprep.subr.bf16.mxu0 0
        %3243 = vmatpush1.bf16.msra.mxu0 0
        %3244 = vmatprep.subr.bf16.mxu0 0
        %3245 = vmatpush1.bf16.msra.mxu0 0
        %3246 = vmatprep.subr.bf16.mxu0 0
        %3247 = vmatpush1.bf16.msra.mxu0 0
        %3248 = vmatprep.subr.bf16.mxu0 0
        %3249 = vmatpush1.bf16.msra.mxu0 0
        %3250 = vmatprep.subr.bf16.mxu0 0
        %3251 = vmatpush1.bf16.msra.mxu0 0
        %3252 = vmatprep.subr.bf16.mxu0 0
        %3253 = vmatpush1.bf16.msra.mxu0 0
        %3254 = vmatprep.subr.bf16.mxu0 0
        %3255 = vmatpush1.bf16.msra.mxu0 0
        %3256 = vmatprep.subr.bf16.mxu0 0
        %3257 = vmatpush1.bf16.msra.mxu0 0
        %3258 = vmatprep.subr.bf16.mxu0 0
        %3259 = vmatpush1.bf16.msra.mxu0 0
        %3260 = vmatprep.subr.bf16.mxu0 0
        %3261 = vmatpush1.bf16.msra.mxu0 0
        %3262 = vmatprep.subr.bf16.mxu0 0
        %3263 = vmatpush1.bf16.msra.mxu0 0
        %3264 = vmatprep.mubr.bf16.mxu0 0
        %3265 = vmatmul.mubr.bf16.gmra.mrb[0].mxu0 %v3226
        %v3266 = vpop.f32.mrb[0].mxu0
        %v3267 = vadd.f32 0.0, %v3266
        %v3268 = vpop.f32.mrb[0].mxu0
        %v3269 = vpop.f32.mrb[0].mxu0
        %v3270 = vadd.f32 0.0, %v3269
        %v3271 = vpop.f32.mrb[0].mxu0
        %3272 = vdwg.mxu0
        %v3274 = vsel %vm2295, %v3210, 0
        %v3277 = vsel %vm3228, %v3218, 0
        %3279 = vmatprep.subr.bf16.mxu0 0
        %3280 = vmatpush1.bf16.msra.mxu0 %v3277
        %3281 = vmatprep.subr.bf16.mxu0 0
        %3282 = vmatpush1.bf16.msra.mxu0 0
        %3283 = vmatprep.subr.bf16.mxu0 0
        %3284 = vmatpush1.bf16.msra.mxu0 0
        %3285 = vmatprep.subr.bf16.mxu0 0
        %3286 = vmatpush1.bf16.msra.mxu0 0
        %3287 = vmatprep.subr.bf16.mxu0 0
        %3288 = vmatpush1.bf16.msra.mxu0 0
        %3289 = vmatprep.subr.bf16.mxu0 0
        %3290 = vmatpush1.bf16.msra.mxu0 0
        %3291 = vmatprep.subr.bf16.mxu0 0
        %3292 = vmatpush1.bf16.msra.mxu0 0
        %3293 = vmatprep.subr.bf16.mxu0 0
        %3294 = vmatpush1.bf16.msra.mxu0 0
        %3295 = vmatprep.subr.bf16.mxu0 0
        %3296 = vmatpush1.bf16.msra.mxu0 0
        %3297 = vmatprep.subr.bf16.mxu0 0
        %3298 = vmatpush1.bf16.msra.mxu0 0
        %3299 = vmatprep.subr.bf16.mxu0 0
        %3300 = vmatpush1.bf16.msra.mxu0 0
        %3301 = vmatprep.subr.bf16.mxu0 0
        %3302 = vmatpush1.bf16.msra.mxu0 0
        %3303 = vmatprep.subr.bf16.mxu0 0
        %3304 = vmatpush1.bf16.msra.mxu0 0
        %3305 = vmatprep.subr.bf16.mxu0 0
        %3306 = vmatpush1.bf16.msra.mxu0 0
        %3307 = vmatprep.subr.bf16.mxu0 0
        %3308 = vmatpush1.bf16.msra.mxu0 0
        %3309 = vmatprep.subr.bf16.mxu0 0
        %3310 = vmatpush1.bf16.msra.mxu0 0
        %3311 = vmatprep.mubr.bf16.mxu0 0
        %3312 = vmatmul.mubr.bf16.gmra.mrb[0].mxu0 %v3274
        %v3313 = vpop.f32.mrb[0].mxu0
        %v3314 = vadd.f32 0.0, %v3313
        %v3315 = vpop.f32.mrb[0].mxu0
        %v3316 = vpop.f32.mrb[0].mxu0
        %v3317 = vadd.f32 0.0, %v3316
        %v3318 = vpop.f32.mrb[0].mxu0
        %3319 = vdwg.mxu0
        %v3321 = vsel %vm2295, %v3211, 0
        %v3324 = vsel %vm3228, %v3219, 0
        %3326 = vmatprep.subr.bf16.mxu0 0
        %3327 = vmatpush1.bf16.msra.mxu0 %v3324
        %3328 = vmatprep.subr.bf16.mxu0 0
        %3329 = vmatpush1.bf16.msra.mxu0 0
        %3330 = vmatprep.subr.bf16.mxu0 0
        %3331 = vmatpush1.bf16.msra.mxu0 0
        %3332 = vmatprep.subr.bf16.mxu0 0
        %3333 = vmatpush1.bf16.msra.mxu0 0
        %3334 = vmatprep.subr.bf16.mxu0 0
        %3335 = vmatpush1.bf16.msra.mxu0 0
        %3336 = vmatprep.subr.bf16.mxu0 0
        %3337 = vmatpush1.bf16.msra.mxu0 0
        %3338 = vmatprep.subr.bf16.mxu0 0
        %3339 = vmatpush1.bf16.msra.mxu0 0
        %3340 = vmatprep.subr.bf16.mxu0 0
        %3341 = vmatpush1.bf16.msra.mxu0 0
        %3342 = vmatprep.subr.bf16.mxu0 0
        %3343 = vmatpush1.bf16.msra.mxu0 0
        %3344 = vmatprep.subr.bf16.mxu0 0
        %3345 = vmatpush1.bf16.msra.mxu0 0
        %3346 = vmatprep.subr.bf16.mxu0 0
        %3347 = vmatpush1.bf16.msra.mxu0 0
        %3348 = vmatprep.subr.bf16.mxu0 0
        %3349 = vmatpush1.bf16.msra.mxu0 0
        %3350 = vmatprep.subr.bf16.mxu0 0
        %3351 = vmatpush1.bf16.msra.mxu0 0
        %3352 = vmatprep.subr.bf16.mxu0 0
        %3353 = vmatpush1.bf16.msra.mxu0 0
        %3354 = vmatprep.subr.bf16.mxu0 0
        %3355 = vmatpush1.bf16.msra.mxu0 0
        %3356 = vmatprep.subr.bf16.mxu0 0
        %3357 = vmatpush1.bf16.msra.mxu0 0
        %3358 = vmatprep.mubr.bf16.mxu0 0
        %3359 = vmatmul.mubr.bf16.gmra.mrb[0].mxu0 %v3321
        %v3360 = vpop.f32.mrb[0].mxu0
        %v3361 = vadd.f32 0.0, %v3360
        %v3362 = vpop.f32.mrb[0].mxu0
        %v3363 = vpop.f32.mrb[0].mxu0
        %v3364 = vadd.f32 0.0, %v3363
        %v3365 = vpop.f32.mrb[0].mxu0
        %3366 = vdwg.mxu0
        %v3368 = vsel %vm2295, %v3212, 0
        %v3371 = vsel %vm3228, %v3220, 0
        %3373 = vmatprep.subr.bf16.mxu0 0
        %3374 = vmatpush1.bf16.msra.mxu0 %v3371
        %3375 = vmatprep.subr.bf16.mxu0 0
        %3376 = vmatpush1.bf16.msra.mxu0 0
        %3377 = vmatprep.subr.bf16.mxu0 0
        %3378 = vmatpush1.bf16.msra.mxu0 0
        %3379 = vmatprep.subr.bf16.mxu0 0
        %3380 = vmatpush1.bf16.msra.mxu0 0
        %3381 = vmatprep.subr.bf16.mxu0 0
        %3382 = vmatpush1.bf16.msra.mxu0 0
        %3383 = vmatprep.subr.bf16.mxu0 0
        %3384 = vmatpush1.bf16.msra.mxu0 0
        %3385 = vmatprep.subr.bf16.mxu0 0
        %3386 = vmatpush1.bf16.msra.mxu0 0
        %3387 = vmatprep.subr.bf16.mxu0 0
        %3388 = vmatpush1.bf16.msra.mxu0 0
        %3389 = vmatprep.subr.bf16.mxu0 0
        %3390 = vmatpush1.bf16.msra.mxu0 0
        %3391 = vmatprep.subr.bf16.mxu0 0
        %3392 = vmatpush1.bf16.msra.mxu0 0
        %3393 = vmatprep.subr.bf16.mxu0 0
        %3394 = vmatpush1.bf16.msra.mxu0 0
        %3395 = vmatprep.subr.bf16.mxu0 0
        %3396 = vmatpush1.bf16.msra.mxu0 0
        %3397 = vmatprep.subr.bf16.mxu0 0
        %3398 = vmatpush1.bf16.msra.mxu0 0
        %3399 = vmatprep.subr.bf16.mxu0 0
        %3400 = vmatpush1.bf16.msra.mxu0 0
        %3401 = vmatprep.subr.bf16.mxu0 0
        %3402 = vmatpush1.bf16.msra.mxu0 0
        %3403 = vmatprep.subr.bf16.mxu0 0
        %3404 = vmatpush1.bf16.msra.mxu0 0
        %3405 = vmatprep.mubr.bf16.mxu0 0
        %3406 = vmatmul.mubr.bf16.gmra.mrb[0].mxu0 %v3368
        %v3407 = vpop.f32.mrb[0].mxu0
        %v3408 = vadd.f32 0.0, %v3407
        %v3409 = vpop.f32.mrb[0].mxu0
        %v3410 = vpop.f32.mrb[0].mxu0
        %v3411 = vadd.f32 0.0, %v3410
        %v3412 = vpop.f32.mrb[0].mxu0
        %3413 = vdwg.mxu0
        %v3415 = vsel %vm2295, %v3213, 0
        %v3418 = vsel %vm3228, %v3221, 0
        %3420 = vmatprep.subr.bf16.mxu0 0
        %3421 = vmatpush1.bf16.msra.mxu0 %v3418
        %3422 = vmatprep.subr.bf16.mxu0 0
        %3423 = vmatpush1.bf16.msra.mxu0 0
        %3424 = vmatprep.subr.bf16.mxu0 0
        %3425 = vmatpush1.bf16.msra.mxu0 0
        %3426 = vmatprep.subr.bf16.mxu0 0
        %3427 = vmatpush1.bf16.msra.mxu0 0
        %3428 = vmatprep.subr.bf16.mxu0 0
        %3429 = vmatpush1.bf16.msra.mxu0 0
        %3430 = vmatprep.subr.bf16.mxu0 0
        %3431 = vmatpush1.bf16.msra.mxu0 0
        %3432 = vmatprep.subr.bf16.mxu0 0
        %3433 = vmatpush1.bf16.msra.mxu0 0
        %3434 = vmatprep.subr.bf16.mxu0 0
        %3435 = vmatpush1.bf16.msra.mxu0 0
        %3436 = vmatprep.subr.bf16.mxu0 0
        %3437 = vmatpush1.bf16.msra.mxu0 0
        %3438 = vmatprep.subr.bf16.mxu0 0
        %3439 = vmatpush1.bf16.msra.mxu0 0
        %3440 = vmatprep.subr.bf16.mxu0 0
        %3441 = vmatpush1.bf16.msra.mxu0 0
        %3442 = vmatprep.subr.bf16.mxu0 0
        %3443 = vmatpush1.bf16.msra.mxu0 0
        %3444 = vmatprep.subr.bf16.mxu0 0
        %3445 = vmatpush1.bf16.msra.mxu0 0
        %3446 = vmatprep.subr.bf16.mxu0 0
        %3447 = vmatpush1.bf16.msra.mxu0 0
        %3448 = vmatprep.subr.bf16.mxu0 0
        %3449 = vmatpush1.bf16.msra.mxu0 0
        %3450 = vmatprep.subr.bf16.mxu0 0
        %3451 = vmatpush1.bf16.msra.mxu0 0
        %3452 = vmatprep.mubr.bf16.mxu0 0
        %3453 = vmatmul.mubr.bf16.gmra.mrb[0].mxu0 %v3415
        %v3454 = vpop.f32.mrb[0].mxu0
        %v3455 = vadd.f32 0.0, %v3454
        %v3456 = vpop.f32.mrb[0].mxu0
        %v3457 = vpop.f32.mrb[0].mxu0
        %v3458 = vadd.f32 0.0, %v3457
        %v3459 = vpop.f32.mrb[0].mxu0
        %3460 = vdwg.mxu0
        %v3462 = vsel %vm2295, %v3214, 0
        %v3465 = vsel %vm3228, %v3222, 0
        %3467 = vmatprep.subr.bf16.mxu0 0
        %3468 = vmatpush1.bf16.msra.mxu0 %v3465
        %3469 = vmatprep.subr.bf16.mxu0 0
        %3470 = vmatpush1.bf16.msra.mxu0 0
        %3471 = vmatprep.subr.bf16.mxu0 0
        %3472 = vmatpush1.bf16.msra.mxu0 0
        %3473 = vmatprep.subr.bf16.mxu0 0
        %3474 = vmatpush1.bf16.msra.mxu0 0
        %3475 = vmatprep.subr.bf16.mxu0 0
        %3476 = vmatpush1.bf16.msra.mxu0 0
        %3477 = vmatprep.subr.bf16.mxu0 0
        %3478 = vmatpush1.bf16.msra.mxu0 0
        %3479 = vmatprep.subr.bf16.mxu0 0
        %3480 = vmatpush1.bf16.msra.mxu0 0
        %3481 = vmatprep.subr.bf16.mxu0 0
        %3482 = vmatpush1.bf16.msra.mxu0 0
        %3483 = vmatprep.subr.bf16.mxu0 0
        %3484 = vmatpush1.bf16.msra.mxu0 0
        %3485 = vmatprep.subr.bf16.mxu0 0
        %3486 = vmatpush1.bf16.msra.mxu0 0
        %3487 = vmatprep.subr.bf16.mxu0 0
        %3488 = vmatpush1.bf16.msra.mxu0 0
        %3489 = vmatprep.subr.bf16.mxu0 0
        %3490 = vmatpush1.bf16.msra.mxu0 0
        %3491 = vmatprep.subr.bf16.mxu0 0
        %3492 = vmatpush1.bf16.msra.mxu0 0
        %3493 = vmatprep.subr.bf16.mxu0 0
        %3494 = vmatpush1.bf16.msra.mxu0 0
        %3495 = vmatprep.subr.bf16.mxu0 0
        %3496 = vmatpush1.bf16.msra.mxu0 0
        %3497 = vmatprep.subr.bf16.mxu0 0
        %3498 = vmatpush1.bf16.msra.mxu0 0
        %3499 = vmatprep.mubr.bf16.mxu0 0
        %3500 = vmatmul.mubr.bf16.gmra.mrb[0].mxu0 %v3462
        %v3501 = vpop.f32.mrb[0].mxu0
        %v3502 = vadd.f32 0.0, %v3501
        %v3503 = vpop.f32.mrb[0].mxu0
        %v3504 = vpop.f32.mrb[0].mxu0
        %v3505 = vadd.f32 0.0, %v3504
        %v3506 = vpop.f32.mrb[0].mxu0
        %3507 = vdwg.mxu0
        %v3509 = vsel %vm2295, %v3215, 0
        %v3512 = vsel %vm3228, %v3223, 0
        %3514 = vmatprep.subr.bf16.mxu0 0
        %3515 = vmatpush1.bf16.msra.mxu0 %v3512
        %3516 = vmatprep.subr.bf16.mxu0 0
        %3517 = vmatpush1.bf16.msra.mxu0 0
        %3518 = vmatprep.subr.bf16.mxu0 0
        %3519 = vmatpush1.bf16.msra.mxu0 0
        %3520 = vmatprep.subr.bf16.mxu0 0
        %3521 = vmatpush1.bf16.msra.mxu0 0
        %3522 = vmatprep.subr.bf16.mxu0 0
        %3523 = vmatpush1.bf16.msra.mxu0 0
        %3524 = vmatprep.subr.bf16.mxu0 0
        %3525 = vmatpush1.bf16.msra.mxu0 0
        %3526 = vmatprep.subr.bf16.mxu0 0
        %3527 = vmatpush1.bf16.msra.mxu0 0
        %3528 = vmatprep.subr.bf16.mxu0 0
        %3529 = vmatpush1.bf16.msra.mxu0 0
        %3530 = vmatprep.subr.bf16.mxu0 0
        %3531 = vmatpush1.bf16.msra.mxu0 0
        %3532 = vmatprep.subr.bf16.mxu0 0
        %3533 = vmatpush1.bf16.msra.mxu0 0
        %3534 = vmatprep.subr.bf16.mxu0 0
        %3535 = vmatpush1.bf16.msra.mxu0 0
        %3536 = vmatprep.subr.bf16.mxu0 0
        %3537 = vmatpush1.bf16.msra.mxu0 0
        %3538 = vmatprep.subr.bf16.mxu0 0
        %3539 = vmatpush1.bf16.msra.mxu0 0
        %3540 = vmatprep.subr.bf16.mxu0 0
        %3541 = vmatpush1.bf16.msra.mxu0 0
        %3542 = vmatprep.subr.bf16.mxu0 0
        %3543 = vmatpush1.bf16.msra.mxu0 0
        %3544 = vmatprep.subr.bf16.mxu0 0
        %3545 = vmatpush1.bf16.msra.mxu0 0
        %3546 = vmatprep.mubr.bf16.mxu0 0
        %3547 = vmatmul.mubr.bf16.gmra.mrb[0].mxu0 %v3509
        %v3548 = vpop.f32.mrb[0].mxu0
        %v3549 = vadd.f32 0.0, %v3548
        %v3550 = vpop.f32.mrb[0].mxu0
        %v3551 = vpop.f32.mrb[0].mxu0
        %v3552 = vadd.f32 0.0, %v3551
        %v3553 = vpop.f32.mrb[0].mxu0
        %3554 = vdwg.mxu0
        %v3556 = vsel %vm2295, %v3216, 0
        %v3559 = vsel %vm3228, %v3224, 0
        %3561 = vmatprep.subr.bf16.mxu0 0
        %3562 = vmatpush1.bf16.msra.mxu0 %v3559
        %3563 = vmatprep.subr.bf16.mxu0 0
        %3564 = vmatpush1.bf16.msra.mxu0 0
        %3565 = vmatprep.subr.bf16.mxu0 0
        %3566 = vmatpush1.bf16.msra.mxu0 0
        %3567 = vmatprep.subr.bf16.mxu0 0
        %3568 = vmatpush1.bf16.msra.mxu0 0
        %3569 = vmatprep.subr.bf16.mxu0 0
        %3570 = vmatpush1.bf16.msra.mxu0 0
        %3571 = vmatprep.subr.bf16.mxu0 0
        %3572 = vmatpush1.bf16.msra.mxu0 0
        %3573 = vmatprep.subr.bf16.mxu0 0
        %3574 = vmatpush1.bf16.msra.mxu0 0
        %3575 = vmatprep.subr.bf16.mxu0 0
        %3576 = vmatpush1.bf16.msra.mxu0 0
        %3577 = vmatprep.subr.bf16.mxu0 0
        %3578 = vmatpush1.bf16.msra.mxu0 0
        %3579 = vmatprep.subr.bf16.mxu0 0
        %3580 = vmatpush1.bf16.msra.mxu0 0
        %3581 = vmatprep.subr.bf16.mxu0 0
        %3582 = vmatpush1.bf16.msra.mxu0 0
        %3583 = vmatprep.subr.bf16.mxu0 0
        %3584 = vmatpush1.bf16.msra.mxu0 0
        %3585 = vmatprep.subr.bf16.mxu0 0
        %3586 = vmatpush1.bf16.msra.mxu0 0
        %3587 = vmatprep.subr.bf16.mxu0 0
        %3588 = vmatpush1.bf16.msra.mxu0 0
        %3589 = vmatprep.subr.bf16.mxu0 0
        %3590 = vmatpush1.bf16.msra.mxu0 0
        %3591 = vmatprep.subr.bf16.mxu0 0
        %3592 = vmatpush1.bf16.msra.mxu0 0
        %3593 = vmatprep.mubr.bf16.mxu0 0
        %3594 = vmatmul.mubr.bf16.gmra.mrb[0].mxu0 %v3556
        %v3595 = vpop.f32.mrb[0].mxu0
        %v3596 = vadd.f32 0.0, %v3595
        %v3597 = vpop.f32.mrb[0].mxu0
        %v3598 = vpop.f32.mrb[0].mxu0
        %v3599 = vadd.f32 0.0, %v3598
        %v3600 = vpop.f32.mrb[0].mxu0
        %3601 = vdwg.mxu0
        %v3602 = vsel %vm471, %v3267, 0.0
        %v3603 = vsel %vm471, %v3314, 0.0
        %v3604 = vadd.f32 %v3602, %v3603
        %v3605 = vsel %vm471, %v3361, 0.0
        %v3606 = vadd.f32 %v3604, %v3605
        %v3607 = vsel %vm471, %v3408, 0.0
        %v3608 = vadd.f32 %v3606, %v3607
        %v3609 = vsel %vm471, %v3455, 0.0
        %v3610 = vadd.f32 %v3608, %v3609
        %v3611 = vsel %vm471, %v3502, 0.0
        %v3612 = vadd.f32 %v3610, %v3611
        %v3613 = vsel %vm471, %v3549, 0.0
        %v3614 = vadd.f32 %v3612, %v3613
        %v3615 = vsel %vm471, %v3596, 0.0
        %v3616 = vadd.f32 %v3614, %v3615
        %v3617 = vsel %vm471, %v3270, 0.0
        %v3618 = vsel %vm471, %v3317, 0.0
        %v3619 = vadd.f32 %v3617, %v3618
        %v3620 = vsel %vm471, %v3364, 0.0
        %v3621 = vadd.f32 %v3619, %v3620
        %v3622 = vsel %vm471, %v3411, 0.0
        %v3623 = vadd.f32 %v3621, %v3622
        %v3624 = vsel %vm471, %v3458, 0.0
        %v3625 = vadd.f32 %v3623, %v3624
        %v3626 = vsel %vm471, %v3505, 0.0
        %v3627 = vadd.f32 %v3625, %v3626
        %v3628 = vsel %vm471, %v3552, 0.0
        %v3629 = vadd.f32 %v3627, %v3628
        %v3630 = vsel %vm471, %v3599, 0.0
        %v3631 = vadd.f32 %v3629, %v3630
        %v3632 = vadd.f32 %v467, %v3616
        %v3633 = vadd.f32 %v468, %v3631
        %v3634 = vld [vmem:[%s5] sm:$0x1]
        %v3636 = vlaneseq
        %v3637 = vshrl.u32 %v3636, 7
        %v3638 = vsub.s32 0, %v3637
        %v3639 = vrot.slane %v3634, %v3638
        %v3641 = vadd.f32 %v3632, %v3639
        %v3642 = vadd.f32 %v3633, %v3639
        %v3643 = vld [vmem:[%s12] sm:$0x1]
        %v3644 = vld [vmem:[%s13] sm:$0x1]
        %v3645 = vsel %vm471, %v3641, 0.0
        %3646 = vadd.xlane.f32.xlu0 %v3645
        %v3647 = vpop.xlane.xlu0 %3646
        %v3648 = vsel %vm471, %v3642, 0.0
        %3649 = vadd.xlane.f32.xlu0 %v3648
        %v3650 = vpop.xlane.xlu0 %3649
        %v3651 = vmul.f32 %v3647, %v478
        %v3652 = vmul.f32 %v3650, %v478
        %v3653 = vsub.f32 %v3641, %v3651
        %v3654 = vsub.f32 %v3642, %v3652
        %v3655 = vmul.f32 %v3653, %v3653
        %v3656 = vmul.f32 %v3654, %v3654
        %v3657 = vsel %vm471, %v3655, 0.0
        %3658 = vadd.xlane.f32.xlu0 %v3657
        %v3659 = vpop.xlane.xlu0 %3658
        %v3660 = vsel %vm471, %v3656, 0.0
        %3661 = vadd.xlane.f32.xlu0 %v3660
        %v3662 = vpop.xlane.xlu0 %3661
        %v3663 = vmul.f32 %v3659, %v478
        %v3664 = vmul.f32 %v3662, %v478
        %v3665 = vadd.f32 %v3663, 1e-05
        %v3666 = vadd.f32 %v3664, 1e-05
        %v3667 = vrsqrt.pop %v3665
        %v3668 = vrsqrt.pop %v3666
        %v3669 = vmul.f32 %v3653, %v3667
        %v3670 = vmul.f32 %v3654, %v3668
        %v3672 = vlaneseq
        %v3673 = vshrl.u32 %v3672, 7
        %v3674 = vsub.s32 0, %v3673
        %v3675 = vrot.slane %v3643, %v3674
        %v3677 = vmul.f32 %v3669, %v3675
        %v3678 = vmul.f32 %v3670, %v3675
        %v3680 = vlaneseq
        %v3681 = vshrl.u32 %v3680, 7
        %v3682 = vsub.s32 0, %v3681
        %v3683 = vrot.slane %v3644, %v3682
        %v3685 = vadd.f32 %v3677, %v3683
        %v3686 = vadd.f32 %v3678, %v3683
        %v3687 = vpack.c.bf16 %v3686, %v3685
        %v3688 = vld [vmem:[%s8] sm:$0xf]
        %v3689 = vld [vmem:[%s8 + $0x4] sm:$0xf]
        %v3690 = vld [vmem:[%s8 + $0x8] sm:$0xf]
        %v3691 = vld [vmem:[%s8 + $0xc] sm:$0xf]
        %v3692 = vld [vmem:[%s8 + $0x10] sm:$0xf]
        %v3693 = vld [vmem:[%s8 + $0x14] sm:$0xf]
        %v3694 = vld [vmem:[%s8 + $0x18] sm:$0xf]
        %v3695 = vld [vmem:[%s8 + $0x1c] sm:$0xf]
        %v3696 = vld [vmem:[%s9] sm:$0x1]
        %v3698 = vlaneseq
        %v3699 = vshrl.u32 %v3698, 7
        %v3700 = vsub.s32 0, %v3699
        %v3701 = vrot.slane %v3696, %v3700
        %v3711 = vunpack.c.l.b16 %v3688
        %v3712 = vunpack.c.l.b16 %v3689
        %v3713 = vunpack.c.l.b16 %v3690
        %v3714 = vunpack.c.l.b16 %v3691
        %v3715 = vunpack.c.l.b16 %v3692
        %v3716 = vunpack.c.l.b16 %v3693
        %v3717 = vunpack.c.l.b16 %v3694
        %v3718 = vunpack.c.l.b16 %v3695
        %v3719 = vpack.c.b16 %v3712, %v3711
        %v3720 = vpack.c.b16 %v3714, %v3713
        %v3721 = vpack.c.b16 %v3716, %v3715
        %v3722 = vpack.c.b16 %v3718, %v3717
        %v3728 = vsel %vm471, %v3687, 0
        %3730 = vmatprep.subr.bf16.mxu0 0
        %3731 = vmatpush1.bf16.msra.mxu0 %v3719
        %3732 = vmatprep.subr.bf16.mxu0 0
        %3733 = vmatpush1.bf16.msra.mxu0 %v3720
        %3734 = vmatprep.subr.bf16.mxu0 0
        %3735 = vmatpush1.bf16.msra.mxu0 %v3721
        %3736 = vmatprep.subr.bf16.mxu0 0
        %3737 = vmatpush1.bf16.msra.mxu0 %v3722
        %3738 = vmatprep.subr.bf16.mxu0 0
        %3739 = vmatpush1.bf16.msra.mxu0 0
        %3740 = vmatprep.subr.bf16.mxu0 0
        %3741 = vmatpush1.bf16.msra.mxu0 0
        %3742 = vmatprep.subr.bf16.mxu0 0
        %3743 = vmatpush1.bf16.msra.mxu0 0
        %3744 = vmatprep.subr.bf16.mxu0 0
        %3745 = vmatpush1.bf16.msra.mxu0 0
        %3746 = vmatprep.subr.bf16.mxu0 0
        %3747 = vmatpush1.bf16.msra.mxu0 0
        %3748 = vmatprep.subr.bf16.mxu0 0
        %3749 = vmatpush1.bf16.msra.mxu0 0
        %3750 = vmatprep.subr.bf16.mxu0 0
        %3751 = vmatpush1.bf16.msra.mxu0 0
        %3752 = vmatprep.subr.bf16.mxu0 0
        %3753 = vmatpush1.bf16.msra.mxu0 0
        %3754 = vmatprep.subr.bf16.mxu0 0
        %3755 = vmatpush1.bf16.msra.mxu0 0
        %3756 = vmatprep.subr.bf16.mxu0 0
        %3757 = vmatpush1.bf16.msra.mxu0 0
        %3758 = vmatprep.subr.bf16.mxu0 0
        %3759 = vmatpush1.bf16.msra.mxu0 0
        %3760 = vmatprep.subr.bf16.mxu0 0
        %3761 = vmatpush1.bf16.msra.mxu0 0
        %3762 = vmatprep.mubr.bf16.mxu0 0
        %3763 = vmatmul.mubr.bf16.gmra.mrb[0].mxu0 %v3728
        %v3764 = vpop.f32.mrb[0].mxu0
        %v3765 = vadd.f32 %v3701, %v3764
        %v3766 = vpop.f32.mrb[0].mxu0
        %v3767 = vpop.f32.mrb[0].mxu0
        %v3768 = vadd.f32 %v3701, %v3767
        %v3769 = vpop.f32.mrb[0].mxu0
        %3770 = vdwg.mxu0
        %v3771 = vmul.f32 %v3765, 0.5
        %v3772 = vmul.f32 %v3768, 0.5
        %v3773 = vmul.f32 %v3765, 0.044715
        %v3774 = vmul.f32 %v3768, 0.044715
        %v3775 = vmul.f32 %v3773, %v3765
        %v3776 = vmul.f32 %v3774, %v3768
        %v3777 = vmul.f32 %v3775, %v3765
        %v3778 = vmul.f32 %v3776, %v3768
        %v3779 = vadd.f32 %v3765, %v3777
        %v3780 = vadd.f32 %v3768, %v3778
        %v3781 = vmul.f32 %v3779, 0.7978846
        %v3782 = vmul.f32 %v3780, 0.7978846
        %v3783 = vtanh.pop %v3781
        %v3784 = vtanh.pop %v3782
        %v3785 = vadd.f32 %v3783, 1.0
        %v3786 = vadd.f32 %v3784, 1.0
        %v3787 = vmul.f32 %v3771, %v3785
        %v3788 = vmul.f32 %v3772, %v3786
        %v3789 = vpack.c.bf16 %v3788, %v3787
        %v3790 = vld [vmem:[%s10] sm:$0xf]
        %v3791 = vld [vmem:[%s10 + $0x4] sm:$0xf]
        %v3792 = vld [vmem:[%s10 + $0x8] sm:$0xf]
        %v3793 = vld [vmem:[%s10 + $0xc] sm:$0xf]
        %v3794 = vld [vmem:[%s10 + $0x10] sm:$0xf]
        %v3795 = vld [vmem:[%s10 + $0x14] sm:$0xf]
        %v3796 = vld [vmem:[%s10 + $0x18] sm:$0xf]
        %v3797 = vld [vmem:[%s10 + $0x1c] sm:$0xf]
        %v3798 = vld [vmem:[%s10 + $0x20] sm:$0xf]
        %v3799 = vld [vmem:[%s10 + $0x24] sm:$0xf]
        %v3800 = vld [vmem:[%s10 + $0x28] sm:$0xf]
        %v3801 = vld [vmem:[%s10 + $0x2c] sm:$0xf]
        %v3802 = vld [vmem:[%s10 + $0x30] sm:$0xf]
        %v3803 = vld [vmem:[%s10 + $0x34] sm:$0xf]
        %v3804 = vld [vmem:[%s10 + $0x38] sm:$0xf]
        %v3805 = vld [vmem:[%s10 + $0x3c] sm:$0xf]
        %v3806 = vld [vmem:[%s11] sm:$0x1]
        %v3808 = vlaneseq
        %v3809 = vshrl.u32 %v3808, 7
        %v3810 = vsub.s32 0, %v3809
        %v3811 = vrot.slane %v3806, %v3810
        %v3829 = vunpack.c.l.b16 %v3790
        %v3830 = vunpack.c.l.b16 %v3791
        %v3831 = vunpack.c.l.b16 %v3792
        %v3832 = vunpack.c.l.b16 %v3793
        %v3833 = vunpack.c.l.b16 %v3794
        %v3834 = vunpack.c.l.b16 %v3795
        %v3835 = vunpack.c.l.b16 %v3796
        %v3836 = vunpack.c.l.b16 %v3797
        %v3837 = vunpack.c.l.b16 %v3798
        %v3838 = vunpack.c.l.b16 %v3799
        %v3839 = vunpack.c.l.b16 %v3800
        %v3840 = vunpack.c.l.b16 %v3801
        %v3841 = vunpack.c.l.b16 %v3802
        %v3842 = vunpack.c.l.b16 %v3803
        %v3843 = vunpack.c.l.b16 %v3804
        %v3844 = vunpack.c.l.b16 %v3805
        %v3845 = vpack.c.b16 %v3830, %v3829
        %v3846 = vpack.c.b16 %v3832, %v3831
        %v3847 = vpack.c.b16 %v3834, %v3833
        %v3848 = vpack.c.b16 %v3836, %v3835
        %v3849 = vpack.c.b16 %v3838, %v3837
        %v3850 = vpack.c.b16 %v3840, %v3839
        %v3851 = vpack.c.b16 %v3842, %v3841
        %v3852 = vpack.c.b16 %v3844, %v3843
        %3861 = vmatprep.subr.bf16.mxu0 0
        %3862 = vmatpush1.bf16.msra.mxu0 %v3845
        %3863 = vmatprep.subr.bf16.mxu0 0
        %3864 = vmatpush1.bf16.msra.mxu0 %v3846
        %3865 = vmatprep.subr.bf16.mxu0 0
        %3866 = vmatpush1.bf16.msra.mxu0 %v3847
        %3867 = vmatprep.subr.bf16.mxu0 0
        %3868 = vmatpush1.bf16.msra.mxu0 %v3848
        %3869 = vmatprep.subr.bf16.mxu0 0
        %3870 = vmatpush1.bf16.msra.mxu0 %v3849
        %3871 = vmatprep.subr.bf16.mxu0 0
        %3872 = vmatpush1.bf16.msra.mxu0 %v3850
        %3873 = vmatprep.subr.bf16.mxu0 0
        %3874 = vmatpush1.bf16.msra.mxu0 %v3851
        %3875 = vmatprep.subr.bf16.mxu0 0
        %3876 = vmatpush1.bf16.msra.mxu0 %v3852
        %3877 = vmatprep.subr.bf16.mxu0 0
        %3878 = vmatpush1.bf16.msra.mxu0 0
        %3879 = vmatprep.subr.bf16.mxu0 0
        %3880 = vmatpush1.bf16.msra.mxu0 0
        %3881 = vmatprep.subr.bf16.mxu0 0
        %3882 = vmatpush1.bf16.msra.mxu0 0
        %3883 = vmatprep.subr.bf16.mxu0 0
        %3884 = vmatpush1.bf16.msra.mxu0 0
        %3885 = vmatprep.subr.bf16.mxu0 0
        %3886 = vmatpush1.bf16.msra.mxu0 0
        %3887 = vmatprep.subr.bf16.mxu0 0
        %3888 = vmatpush1.bf16.msra.mxu0 0
        %3889 = vmatprep.subr.bf16.mxu0 0
        %3890 = vmatpush1.bf16.msra.mxu0 0
        %3891 = vmatprep.subr.bf16.mxu0 0
        %3892 = vmatpush1.bf16.msra.mxu0 0
        %3893 = vmatprep.mubr.bf16.mxu0 0
        %3894 = vmatmul.mubr.bf16.gmra.mrb[0].mxu0 %v3789
        %v3895 = vpop.f32.mrb[0].mxu0
        %v3896 = vadd.f32 %v3811, %v3895
        %v3897 = vpop.f32.mrb[0].mxu0
        %v3898 = vpop.f32.mrb[0].mxu0
        %v3899 = vadd.f32 %v3811, %v3898
        %v3900 = vpop.f32.mrb[0].mxu0
        %3901 = vdwg.mxu0
        %v3902 = vadd.f32 %v3641, %v3896
        %v3903 = vadd.f32 %v3642, %v3899
        %s3904 = scalar_lea.vmem %s6, 1
        %v3905 = vld [vmem:[%s3904] sm:$0x1]
        %s3906 = scalar_lea.vmem %s7, 1
        %v3907 = vld [vmem:[%s3906] sm:$0x1]
        %v3908 = vsel %vm471, %v3902, 0.0
        %3909 = vadd.xlane.f32.xlu0 %v3908
        %v3910 = vpop.xlane.xlu0 %3909
        %v3911 = vsel %vm471, %v3903, 0.0
        %3912 = vadd.xlane.f32.xlu0 %v3911
        %v3913 = vpop.xlane.xlu0 %3912
        %v3914 = vmul.f32 %v3910, %v478
        %v3915 = vmul.f32 %v3913, %v478
        %v3916 = vsub.f32 %v3902, %v3914
        %v3917 = vsub.f32 %v3903, %v3915
        %v3918 = vmul.f32 %v3916, %v3916
        %v3919 = vmul.f32 %v3917, %v3917
        %v3920 = vsel %vm471, %v3918, 0.0
        %3921 = vadd.xlane.f32.xlu0 %v3920
        %v3922 = vpop.xlane.xlu0 %3921
        %v3923 = vsel %vm471, %v3919, 0.0
        %3924 = vadd.xlane.f32.xlu0 %v3923
        %v3925 = vpop.xlane.xlu0 %3924
        %v3926 = vmul.f32 %v3922, %v478
        %v3927 = vmul.f32 %v3925, %v478
        %v3928 = vadd.f32 %v3926, 1e-05
        %v3929 = vadd.f32 %v3927, 1e-05
        %v3930 = vrsqrt.pop %v3928
        %v3931 = vrsqrt.pop %v3929
        %v3932 = vmul.f32 %v3916, %v3930
        %v3933 = vmul.f32 %v3917, %v3931
        %v3935 = vlaneseq
        %v3936 = vshrl.u32 %v3935, 7
        %v3937 = vsub.s32 0, %v3936
        %v3938 = vrot.slane %v3905, %v3937
        %v3940 = vmul.f32 %v3932, %v3938
        %v3941 = vmul.f32 %v3933, %v3938
        %v3943 = vlaneseq
        %v3944 = vshrl.u32 %v3943, 7
        %v3945 = vsub.s32 0, %v3944
        %v3946 = vrot.slane %v3907, %v3945
        %v3948 = vadd.f32 %v3940, %v3946
        %v3949 = vadd.f32 %v3941, %v3946
        %v3950 = vpack.c.bf16 %v3949, %v3948
        %s3951 = scalar_lea.vmem %s1, 256
        %v3952 = vld [vmem:[%s3951] sm:$0xf]
        %v3953 = vld [vmem:[%s3951 + $0x4] sm:$0xf]
        %v3954 = vld [vmem:[%s3951 + $0x8] sm:$0xf]
        %v3955 = vld [vmem:[%s3951 + $0xc] sm:$0xf]
        %v3956 = vld [vmem:[%s3951 + $0x10] sm:$0xf]
        %v3957 = vld [vmem:[%s3951 + $0x14] sm:$0xf]
        %v3958 = vld [vmem:[%s3951 + $0x18] sm:$0xf]
        %v3959 = vld [vmem:[%s3951 + $0x1c] sm:$0xf]
        %v3960 = vld [vmem:[%s3951 + $0x20] sm:$0xf]
        %v3961 = vld [vmem:[%s3951 + $0x24] sm:$0xf]
        %v3962 = vld [vmem:[%s3951 + $0x28] sm:$0xf]
        %v3963 = vld [vmem:[%s3951 + $0x2c] sm:$0xf]
        %v3964 = vld [vmem:[%s3951 + $0x30] sm:$0xf]
        %v3965 = vld [vmem:[%s3951 + $0x34] sm:$0xf]
        %v3966 = vld [vmem:[%s3951 + $0x38] sm:$0xf]
        %v3967 = vld [vmem:[%s3951 + $0x3c] sm:$0xf]
        %v3968 = vld [vmem:[%s3951 + $0x40] sm:$0xf]
        %v3969 = vld [vmem:[%s3951 + $0x44] sm:$0xf]
        %v3970 = vld [vmem:[%s3951 + $0x48] sm:$0xf]
        %v3971 = vld [vmem:[%s3951 + $0x4c] sm:$0xf]
        %v3972 = vld [vmem:[%s3951 + $0x50] sm:$0xf]
        %v3973 = vld [vmem:[%s3951 + $0x54] sm:$0xf]
        %v3974 = vld [vmem:[%s3951 + $0x58] sm:$0xf]
        %v3975 = vld [vmem:[%s3951 + $0x5c] sm:$0xf]
        %v3976 = vld [vmem:[%s3951 + $0x60] sm:$0xf]
        %v3977 = vld [vmem:[%s3951 + $0x64] sm:$0xf]
        %v3978 = vld [vmem:[%s3951 + $0x68] sm:$0xf]
        %v3979 = vld [vmem:[%s3951 + $0x6c] sm:$0xf]
        %v3980 = vld [vmem:[%s3951 + $0x70] sm:$0xf]
        %v3981 = vld [vmem:[%s3951 + $0x74] sm:$0xf]
        %v3982 = vld [vmem:[%s3951 + $0x78] sm:$0xf]
        %v3983 = vld [vmem:[%s3951 + $0x7c] sm:$0xf]
        %v3984 = vld [vmem:[%s3951 + $0x80] sm:$0xf]
        %v3985 = vld [vmem:[%s3951 + $0x84] sm:$0xf]
        %v3986 = vld [vmem:[%s3951 + $0x88] sm:$0xf]
        %v3987 = vld [vmem:[%s3951 + $0x8c] sm:$0xf]
        %v3988 = vld [vmem:[%s3951 + $0x90] sm:$0xf]
        %v3989 = vld [vmem:[%s3951 + $0x94] sm:$0xf]
        %v3990 = vld [vmem:[%s3951 + $0x98] sm:$0xf]
        %v3991 = vld [vmem:[%s3951 + $0x9c] sm:$0xf]
        %v3992 = vld [vmem:[%s3951 + $0xa0] sm:$0xf]
        %v3993 = vld [vmem:[%s3951 + $0xa4] sm:$0xf]
        %v3994 = vld [vmem:[%s3951 + $0xa8] sm:$0xf]
        %v3995 = vld [vmem:[%s3951 + $0xac] sm:$0xf]
        %v3996 = vld [vmem:[%s3951 + $0xb0] sm:$0xf]
        %v3997 = vld [vmem:[%s3951 + $0xb4] sm:$0xf]
        %v3998 = vld [vmem:[%s3951 + $0xb8] sm:$0xf]
        %v3999 = vld [vmem:[%s3951 + $0xbc] sm:$0xf]
        %v4000 = vld [vmem:[%s3951 + $0xc0] sm:$0xf]
        %v4001 = vld [vmem:[%s3951 + $0xc4] sm:$0xf]
        %v4002 = vld [vmem:[%s3951 + $0xc8] sm:$0xf]
        %v4003 = vld [vmem:[%s3951 + $0xcc] sm:$0xf]
        %v4004 = vld [vmem:[%s3951 + $0xd0] sm:$0xf]
        %v4005 = vld [vmem:[%s3951 + $0xd4] sm:$0xf]
        %v4006 = vld [vmem:[%s3951 + $0xd8] sm:$0xf]
        %v4007 = vld [vmem:[%s3951 + $0xdc] sm:$0xf]
        %v4008 = vld [vmem:[%s3951 + $0xe0] sm:$0xf]
        %v4009 = vld [vmem:[%s3951 + $0xe4] sm:$0xf]
        %v4010 = vld [vmem:[%s3951 + $0xe8] sm:$0xf]
        %v4011 = vld [vmem:[%s3951 + $0xec] sm:$0xf]
        %v4012 = vld [vmem:[%s3951 + $0xf0] sm:$0xf]
        %v4013 = vld [vmem:[%s3951 + $0xf4] sm:$0xf]
        %v4014 = vld [vmem:[%s3951 + $0xf8] sm:$0xf]
        %v4015 = vld [vmem:[%s3951 + $0xfc] sm:$0xf]
        %v4024 = vunpack.c.l.b16 %v3952
        %v4025 = vunpack.c.l.b16 %v3953
        %v4026 = vunpack.c.l.b16 %v3954
        %v4027 = vunpack.c.l.b16 %v3955
        %v4028 = vunpack.c.l.b16 %v3956
        %v4029 = vunpack.c.l.b16 %v3957
        %v4030 = vunpack.c.l.b16 %v3958
        %v4031 = vunpack.c.l.b16 %v3959
        %v4032 = vpack.c.b16 %v4025, %v4024
        %v4033 = vpack.c.b16 %v4027, %v4026
        %v4034 = vpack.c.b16 %v4029, %v4028
        %v4035 = vpack.c.b16 %v4031, %v4030
        %v4041 = vsel %vm471, %v3950, 0
        %4043 = vmatprep.subr.bf16.mxu0 0
        %4044 = vmatpush1.bf16.msra.mxu0 %v4032
        %4045 = vmatprep.subr.bf16.mxu0 0
        %4046 = vmatpush1.bf16.msra.mxu0 %v4033
        %4047 = vmatprep.subr.bf16.mxu0 0
        %4048 = vmatpush1.bf16.msra.mxu0 %v4034
        %4049 = vmatprep.subr.bf16.mxu0 0
        %4050 = vmatpush1.bf16.msra.mxu0 %v4035
        %4051 = vmatprep.subr.bf16.mxu0 0
        %4052 = vmatpush1.bf16.msra.mxu0 0
        %4053 = vmatprep.subr.bf16.mxu0 0
        %4054 = vmatpush1.bf16.msra.mxu0 0
        %4055 = vmatprep.subr.bf16.mxu0 0
        %4056 = vmatpush1.bf16.msra.mxu0 0
        %4057 = vmatprep.subr.bf16.mxu0 0
        %4058 = vmatpush1.bf16.msra.mxu0 0
        %4059 = vmatprep.subr.bf16.mxu0 0
        %4060 = vmatpush1.bf16.msra.mxu0 0
        %4061 = vmatprep.subr.bf16.mxu0 0
        %4062 = vmatpush1.bf16.msra.mxu0 0
        %4063 = vmatprep.subr.bf16.mxu0 0
        %4064 = vmatpush1.bf16.msra.mxu0 0
        %4065 = vmatprep.subr.bf16.mxu0 0
        %4066 = vmatpush1.bf16.msra.mxu0 0
        %4067 = vmatprep.subr.bf16.mxu0 0
        %4068 = vmatpush1.bf16.msra.mxu0 0
        %4069 = vmatprep.subr.bf16.mxu0 0
        %4070 = vmatpush1.bf16.msra.mxu0 0
        %4071 = vmatprep.subr.bf16.mxu0 0
        %4072 = vmatpush1.bf16.msra.mxu0 0
        %4073 = vmatprep.subr.bf16.mxu0 0
        %4074 = vmatpush1.bf16.msra.mxu0 0
        %4075 = vmatprep.mubr.bf16.mxu0 0
        %4076 = vmatmul.mubr.bf16.gmra.mrb[0].mxu0 %v4041
        %v4077 = vpop.f32.mrb[0].mxu0
        %v4078 = vadd.f32 0.0, %v4077
        %v4079 = vpop.f32.mrb[0].mxu0
        %v4080 = vpop.f32.mrb[0].mxu0
        %v4081 = vadd.f32 0.0, %v4080
        %v4082 = vpop.f32.mrb[0].mxu0
        %4083 = vdwg.mxu0
        %v4092 = vunpack.c.l.b16 %v3960
        %v4093 = vunpack.c.l.b16 %v3961
        %v4094 = vunpack.c.l.b16 %v3962
        %v4095 = vunpack.c.l.b16 %v3963
        %v4096 = vunpack.c.l.b16 %v3964
        %v4097 = vunpack.c.l.b16 %v3965
        %v4098 = vunpack.c.l.b16 %v3966
        %v4099 = vunpack.c.l.b16 %v3967
        %v4100 = vpack.c.b16 %v4093, %v4092
        %v4101 = vpack.c.b16 %v4095, %v4094
        %v4102 = vpack.c.b16 %v4097, %v4096
        %v4103 = vpack.c.b16 %v4099, %v4098
        %4108 = vmatprep.subr.bf16.mxu0 0
        %4109 = vmatpush1.bf16.msra.mxu0 %v4100
        %4110 = vmatprep.subr.bf16.mxu0 0
        %4111 = vmatpush1.bf16.msra.mxu0 %v4101
        %4112 = vmatprep.subr.bf16.mxu0 0
        %4113 = vmatpush1.bf16.msra.mxu0 %v4102
        %4114 = vmatprep.subr.bf16.mxu0 0
        %4115 = vmatpush1.bf16.msra.mxu0 %v4103
        %4116 = vmatprep.subr.bf16.mxu0 0
        %4117 = vmatpush1.bf16.msra.mxu0 0
        %4118 = vmatprep.subr.bf16.mxu0 0
        %4119 = vmatpush1.bf16.msra.mxu0 0
        %4120 = vmatprep.subr.bf16.mxu0 0
        %4121 = vmatpush1.bf16.msra.mxu0 0
        %4122 = vmatprep.subr.bf16.mxu0 0
        %4123 = vmatpush1.bf16.msra.mxu0 0
        %4124 = vmatprep.subr.bf16.mxu0 0
        %4125 = vmatpush1.bf16.msra.mxu0 0
        %4126 = vmatprep.subr.bf16.mxu0 0
        %4127 = vmatpush1.bf16.msra.mxu0 0
        %4128 = vmatprep.subr.bf16.mxu0 0
        %4129 = vmatpush1.bf16.msra.mxu0 0
        %4130 = vmatprep.subr.bf16.mxu0 0
        %4131 = vmatpush1.bf16.msra.mxu0 0
        %4132 = vmatprep.subr.bf16.mxu0 0
        %4133 = vmatpush1.bf16.msra.mxu0 0
        %4134 = vmatprep.subr.bf16.mxu0 0
        %4135 = vmatpush1.bf16.msra.mxu0 0
        %4136 = vmatprep.subr.bf16.mxu0 0
        %4137 = vmatpush1.bf16.msra.mxu0 0
        %4138 = vmatprep.subr.bf16.mxu0 0
        %4139 = vmatpush1.bf16.msra.mxu0 0
        %4140 = vmatprep.mubr.bf16.mxu0 0
        %4141 = vmatmul.mubr.bf16.gmra.mrb[0].mxu0 %v4041
        %v4142 = vpop.f32.mrb[0].mxu0
        %v4143 = vadd.f32 0.0, %v4142
        %v4144 = vpop.f32.mrb[0].mxu0
        %v4145 = vpop.f32.mrb[0].mxu0
        %v4146 = vadd.f32 0.0, %v4145
        %v4147 = vpop.f32.mrb[0].mxu0
        %4148 = vdwg.mxu0
        %v4157 = vunpack.c.l.b16 %v3968
        %v4158 = vunpack.c.l.b16 %v3969
        %v4159 = vunpack.c.l.b16 %v3970
        %v4160 = vunpack.c.l.b16 %v3971
        %v4161 = vunpack.c.l.b16 %v3972
        %v4162 = vunpack.c.l.b16 %v3973
        %v4163 = vunpack.c.l.b16 %v3974
        %v4164 = vunpack.c.l.b16 %v3975
        %v4165 = vpack.c.b16 %v4158, %v4157
        %v4166 = vpack.c.b16 %v4160, %v4159
        %v4167 = vpack.c.b16 %v4162, %v4161
        %v4168 = vpack.c.b16 %v4164, %v4163
        %4173 = vmatprep.subr.bf16.mxu0 0
        %4174 = vmatpush1.bf16.msra.mxu0 %v4165
        %4175 = vmatprep.subr.bf16.mxu0 0
        %4176 = vmatpush1.bf16.msra.mxu0 %v4166
        %4177 = vmatprep.subr.bf16.mxu0 0
        %4178 = vmatpush1.bf16.msra.mxu0 %v4167
        %4179 = vmatprep.subr.bf16.mxu0 0
        %4180 = vmatpush1.bf16.msra.mxu0 %v4168
        %4181 = vmatprep.subr.bf16.mxu0 0
        %4182 = vmatpush1.bf16.msra.mxu0 0
        %4183 = vmatprep.subr.bf16.mxu0 0
        %4184 = vmatpush1.bf16.msra.mxu0 0
        %4185 = vmatprep.subr.bf16.mxu0 0
        %4186 = vmatpush1.bf16.msra.mxu0 0
        %4187 = vmatprep.subr.bf16.mxu0 0
        %4188 = vmatpush1.bf16.msra.mxu0 0
        %4189 = vmatprep.subr.bf16.mxu0 0
        %4190 = vmatpush1.bf16.msra.mxu0 0
        %4191 = vmatprep.subr.bf16.mxu0 0
        %4192 = vmatpush1.bf16.msra.mxu0 0
        %4193 = vmatprep.subr.bf16.mxu0 0
        %4194 = vmatpush1.bf16.msra.mxu0 0
        %4195 = vmatprep.subr.bf16.mxu0 0
        %4196 = vmatpush1.bf16.msra.mxu0 0
        %4197 = vmatprep.subr.bf16.mxu0 0
        %4198 = vmatpush1.bf16.msra.mxu0 0
        %4199 = vmatprep.subr.bf16.mxu0 0
        %4200 = vmatpush1.bf16.msra.mxu0 0
        %4201 = vmatprep.subr.bf16.mxu0 0
        %4202 = vmatpush1.bf16.msra.mxu0 0
        %4203 = vmatprep.subr.bf16.mxu0 0
        %4204 = vmatpush1.bf16.msra.mxu0 0
        %4205 = vmatprep.mubr.bf16.mxu0 0
        %4206 = vmatmul.mubr.bf16.gmra.mrb[0].mxu0 %v4041
        %v4207 = vpop.f32.mrb[0].mxu0
        %v4208 = vadd.f32 0.0, %v4207
        %v4209 = vpop.f32.mrb[0].mxu0
        %v4210 = vpop.f32.mrb[0].mxu0
        %v4211 = vadd.f32 0.0, %v4210
        %v4212 = vpop.f32.mrb[0].mxu0
        %4213 = vdwg.mxu0
        %v4222 = vunpack.c.l.b16 %v3976
        %v4223 = vunpack.c.l.b16 %v3977
        %v4224 = vunpack.c.l.b16 %v3978
        %v4225 = vunpack.c.l.b16 %v3979
        %v4226 = vunpack.c.l.b16 %v3980
        %v4227 = vunpack.c.l.b16 %v3981
        %v4228 = vunpack.c.l.b16 %v3982
        %v4229 = vunpack.c.l.b16 %v3983
        %v4230 = vpack.c.b16 %v4223, %v4222
        %v4231 = vpack.c.b16 %v4225, %v4224
        %v4232 = vpack.c.b16 %v4227, %v4226
        %v4233 = vpack.c.b16 %v4229, %v4228
        %4238 = vmatprep.subr.bf16.mxu0 0
        %4239 = vmatpush1.bf16.msra.mxu0 %v4230
        %4240 = vmatprep.subr.bf16.mxu0 0
        %4241 = vmatpush1.bf16.msra.mxu0 %v4231
        %4242 = vmatprep.subr.bf16.mxu0 0
        %4243 = vmatpush1.bf16.msra.mxu0 %v4232
        %4244 = vmatprep.subr.bf16.mxu0 0
        %4245 = vmatpush1.bf16.msra.mxu0 %v4233
        %4246 = vmatprep.subr.bf16.mxu0 0
        %4247 = vmatpush1.bf16.msra.mxu0 0
        %4248 = vmatprep.subr.bf16.mxu0 0
        %4249 = vmatpush1.bf16.msra.mxu0 0
        %4250 = vmatprep.subr.bf16.mxu0 0
        %4251 = vmatpush1.bf16.msra.mxu0 0
        %4252 = vmatprep.subr.bf16.mxu0 0
        %4253 = vmatpush1.bf16.msra.mxu0 0
        %4254 = vmatprep.subr.bf16.mxu0 0
        %4255 = vmatpush1.bf16.msra.mxu0 0
        %4256 = vmatprep.subr.bf16.mxu0 0
        %4257 = vmatpush1.bf16.msra.mxu0 0
        %4258 = vmatprep.subr.bf16.mxu0 0
        %4259 = vmatpush1.bf16.msra.mxu0 0
        %4260 = vmatprep.subr.bf16.mxu0 0
        %4261 = vmatpush1.bf16.msra.mxu0 0
        %4262 = vmatprep.subr.bf16.mxu0 0
        %4263 = vmatpush1.bf16.msra.mxu0 0
        %4264 = vmatprep.subr.bf16.mxu0 0
        %4265 = vmatpush1.bf16.msra.mxu0 0
        %4266 = vmatprep.subr.bf16.mxu0 0
        %4267 = vmatpush1.bf16.msra.mxu0 0
        %4268 = vmatprep.subr.bf16.mxu0 0
        %4269 = vmatpush1.bf16.msra.mxu0 0
        %4270 = vmatprep.mubr.bf16.mxu0 0
        %4271 = vmatmul.mubr.bf16.gmra.mrb[0].mxu0 %v4041
        %v4272 = vpop.f32.mrb[0].mxu0
        %v4273 = vadd.f32 0.0, %v4272
        %v4274 = vpop.f32.mrb[0].mxu0
        %v4275 = vpop.f32.mrb[0].mxu0
        %v4276 = vadd.f32 0.0, %v4275
        %v4277 = vpop.f32.mrb[0].mxu0
        %4278 = vdwg.mxu0
        %v4287 = vunpack.c.l.b16 %v3984
        %v4288 = vunpack.c.l.b16 %v3985
        %v4289 = vunpack.c.l.b16 %v3986
        %v4290 = vunpack.c.l.b16 %v3987
        %v4291 = vunpack.c.l.b16 %v3988
        %v4292 = vunpack.c.l.b16 %v3989
        %v4293 = vunpack.c.l.b16 %v3990
        %v4294 = vunpack.c.l.b16 %v3991
        %v4295 = vpack.c.b16 %v4288, %v4287
        %v4296 = vpack.c.b16 %v4290, %v4289
        %v4297 = vpack.c.b16 %v4292, %v4291
        %v4298 = vpack.c.b16 %v4294, %v4293
        %4303 = vmatprep.subr.bf16.mxu0 0
        %4304 = vmatpush1.bf16.msra.mxu0 %v4295
        %4305 = vmatprep.subr.bf16.mxu0 0
        %4306 = vmatpush1.bf16.msra.mxu0 %v4296
        %4307 = vmatprep.subr.bf16.mxu0 0
        %4308 = vmatpush1.bf16.msra.mxu0 %v4297
        %4309 = vmatprep.subr.bf16.mxu0 0
        %4310 = vmatpush1.bf16.msra.mxu0 %v4298
        %4311 = vmatprep.subr.bf16.mxu0 0
        %4312 = vmatpush1.bf16.msra.mxu0 0
        %4313 = vmatprep.subr.bf16.mxu0 0
        %4314 = vmatpush1.bf16.msra.mxu0 0
        %4315 = vmatprep.subr.bf16.mxu0 0
        %4316 = vmatpush1.bf16.msra.mxu0 0
        %4317 = vmatprep.subr.bf16.mxu0 0
        %4318 = vmatpush1.bf16.msra.mxu0 0
        %4319 = vmatprep.subr.bf16.mxu0 0
        %4320 = vmatpush1.bf16.msra.mxu0 0
        %4321 = vmatprep.subr.bf16.mxu0 0
        %4322 = vmatpush1.bf16.msra.mxu0 0
        %4323 = vmatprep.subr.bf16.mxu0 0
        %4324 = vmatpush1.bf16.msra.mxu0 0
        %4325 = vmatprep.subr.bf16.mxu0 0
        %4326 = vmatpush1.bf16.msra.mxu0 0
        %4327 = vmatprep.subr.bf16.mxu0 0
        %4328 = vmatpush1.bf16.msra.mxu0 0
        %4329 = vmatprep.subr.bf16.mxu0 0
        %4330 = vmatpush1.bf16.msra.mxu0 0
        %4331 = vmatprep.subr.bf16.mxu0 0
        %4332 = vmatpush1.bf16.msra.mxu0 0
        %4333 = vmatprep.subr.bf16.mxu0 0
        %4334 = vmatpush1.bf16.msra.mxu0 0
        %4335 = vmatprep.mubr.bf16.mxu0 0
        %4336 = vmatmul.mubr.bf16.gmra.mrb[0].mxu0 %v4041
        %v4337 = vpop.f32.mrb[0].mxu0
        %v4338 = vadd.f32 0.0, %v4337
        %v4339 = vpop.f32.mrb[0].mxu0
        %v4340 = vpop.f32.mrb[0].mxu0
        %v4341 = vadd.f32 0.0, %v4340
        %v4342 = vpop.f32.mrb[0].mxu0
        %4343 = vdwg.mxu0
        %v4352 = vunpack.c.l.b16 %v3992
        %v4353 = vunpack.c.l.b16 %v3993
        %v4354 = vunpack.c.l.b16 %v3994
        %v4355 = vunpack.c.l.b16 %v3995
        %v4356 = vunpack.c.l.b16 %v3996
        %v4357 = vunpack.c.l.b16 %v3997
        %v4358 = vunpack.c.l.b16 %v3998
        %v4359 = vunpack.c.l.b16 %v3999
        %v4360 = vpack.c.b16 %v4353, %v4352
        %v4361 = vpack.c.b16 %v4355, %v4354
        %v4362 = vpack.c.b16 %v4357, %v4356
        %v4363 = vpack.c.b16 %v4359, %v4358
        %4368 = vmatprep.subr.bf16.mxu0 0
        %4369 = vmatpush1.bf16.msra.mxu0 %v4360
        %4370 = vmatprep.subr.bf16.mxu0 0
        %4371 = vmatpush1.bf16.msra.mxu0 %v4361
        %4372 = vmatprep.subr.bf16.mxu0 0
        %4373 = vmatpush1.bf16.msra.mxu0 %v4362
        %4374 = vmatprep.subr.bf16.mxu0 0
        %4375 = vmatpush1.bf16.msra.mxu0 %v4363
        %4376 = vmatprep.subr.bf16.mxu0 0
        %4377 = vmatpush1.bf16.msra.mxu0 0
        %4378 = vmatprep.subr.bf16.mxu0 0
        %4379 = vmatpush1.bf16.msra.mxu0 0
        %4380 = vmatprep.subr.bf16.mxu0 0
        %4381 = vmatpush1.bf16.msra.mxu0 0
        %4382 = vmatprep.subr.bf16.mxu0 0
        %4383 = vmatpush1.bf16.msra.mxu0 0
        %4384 = vmatprep.subr.bf16.mxu0 0
        %4385 = vmatpush1.bf16.msra.mxu0 0
        %4386 = vmatprep.subr.bf16.mxu0 0
        %4387 = vmatpush1.bf16.msra.mxu0 0
        %4388 = vmatprep.subr.bf16.mxu0 0
        %4389 = vmatpush1.bf16.msra.mxu0 0
        %4390 = vmatprep.subr.bf16.mxu0 0
        %4391 = vmatpush1.bf16.msra.mxu0 0
        %4392 = vmatprep.subr.bf16.mxu0 0
        %4393 = vmatpush1.bf16.msra.mxu0 0
        %4394 = vmatprep.subr.bf16.mxu0 0
        %4395 = vmatpush1.bf16.msra.mxu0 0
        %4396 = vmatprep.subr.bf16.mxu0 0
        %4397 = vmatpush1.bf16.msra.mxu0 0
        %4398 = vmatprep.subr.bf16.mxu0 0
        %4399 = vmatpush1.bf16.msra.mxu0 0
        %4400 = vmatprep.mubr.bf16.mxu0 0
        %4401 = vmatmul.mubr.bf16.gmra.mrb[0].mxu0 %v4041
        %v4402 = vpop.f32.mrb[0].mxu0
        %v4403 = vadd.f32 0.0, %v4402
        %v4404 = vpop.f32.mrb[0].mxu0
        %v4405 = vpop.f32.mrb[0].mxu0
        %v4406 = vadd.f32 0.0, %v4405
        %v4407 = vpop.f32.mrb[0].mxu0
        %4408 = vdwg.mxu0
        %v4417 = vunpack.c.l.b16 %v4000
        %v4418 = vunpack.c.l.b16 %v4001
        %v4419 = vunpack.c.l.b16 %v4002
        %v4420 = vunpack.c.l.b16 %v4003
        %v4421 = vunpack.c.l.b16 %v4004
        %v4422 = vunpack.c.l.b16 %v4005
        %v4423 = vunpack.c.l.b16 %v4006
        %v4424 = vunpack.c.l.b16 %v4007
        %v4425 = vpack.c.b16 %v4418, %v4417
        %v4426 = vpack.c.b16 %v4420, %v4419
        %v4427 = vpack.c.b16 %v4422, %v4421
        %v4428 = vpack.c.b16 %v4424, %v4423
        %4433 = vmatprep.subr.bf16.mxu0 0
        %4434 = vmatpush1.bf16.msra.mxu0 %v4425
        %4435 = vmatprep.subr.bf16.mxu0 0
        %4436 = vmatpush1.bf16.msra.mxu0 %v4426
        %4437 = vmatprep.subr.bf16.mxu0 0
        %4438 = vmatpush1.bf16.msra.mxu0 %v4427
        %4439 = vmatprep.subr.bf16.mxu0 0
        %4440 = vmatpush1.bf16.msra.mxu0 %v4428
        %4441 = vmatprep.subr.bf16.mxu0 0
        %4442 = vmatpush1.bf16.msra.mxu0 0
        %4443 = vmatprep.subr.bf16.mxu0 0
        %4444 = vmatpush1.bf16.msra.mxu0 0
        %4445 = vmatprep.subr.bf16.mxu0 0
        %4446 = vmatpush1.bf16.msra.mxu0 0
        %4447 = vmatprep.subr.bf16.mxu0 0
        %4448 = vmatpush1.bf16.msra.mxu0 0
        %4449 = vmatprep.subr.bf16.mxu0 0
        %4450 = vmatpush1.bf16.msra.mxu0 0
        %4451 = vmatprep.subr.bf16.mxu0 0
        %4452 = vmatpush1.bf16.msra.mxu0 0
        %4453 = vmatprep.subr.bf16.mxu0 0
        %4454 = vmatpush1.bf16.msra.mxu0 0
        %4455 = vmatprep.subr.bf16.mxu0 0
        %4456 = vmatpush1.bf16.msra.mxu0 0
        %4457 = vmatprep.subr.bf16.mxu0 0
        %4458 = vmatpush1.bf16.msra.mxu0 0
        %4459 = vmatprep.subr.bf16.mxu0 0
        %4460 = vmatpush1.bf16.msra.mxu0 0
        %4461 = vmatprep.subr.bf16.mxu0 0
        %4462 = vmatpush1.bf16.msra.mxu0 0
        %4463 = vmatprep.subr.bf16.mxu0 0
        %4464 = vmatpush1.bf16.msra.mxu0 0
        %4465 = vmatprep.mubr.bf16.mxu0 0
        %4466 = vmatmul.mubr.bf16.gmra.mrb[0].mxu0 %v4041
        %v4467 = vpop.f32.mrb[0].mxu0
        %v4468 = vadd.f32 0.0, %v4467
        %v4469 = vpop.f32.mrb[0].mxu0
        %v4470 = vpop.f32.mrb[0].mxu0
        %v4471 = vadd.f32 0.0, %v4470
        %v4472 = vpop.f32.mrb[0].mxu0
        %4473 = vdwg.mxu0
        %v4482 = vunpack.c.l.b16 %v4008
        %v4483 = vunpack.c.l.b16 %v4009
        %v4484 = vunpack.c.l.b16 %v4010
        %v4485 = vunpack.c.l.b16 %v4011
        %v4486 = vunpack.c.l.b16 %v4012
        %v4487 = vunpack.c.l.b16 %v4013
        %v4488 = vunpack.c.l.b16 %v4014
        %v4489 = vunpack.c.l.b16 %v4015
        %v4490 = vpack.c.b16 %v4483, %v4482
        %v4491 = vpack.c.b16 %v4485, %v4484
        %v4492 = vpack.c.b16 %v4487, %v4486
        %v4493 = vpack.c.b16 %v4489, %v4488
        %4498 = vmatprep.subr.bf16.mxu0 0
        %4499 = vmatpush1.bf16.msra.mxu0 %v4490
        %4500 = vmatprep.subr.bf16.mxu0 0
        %4501 = vmatpush1.bf16.msra.mxu0 %v4491
        %4502 = vmatprep.subr.bf16.mxu0 0
        %4503 = vmatpush1.bf16.msra.mxu0 %v4492
        %4504 = vmatprep.subr.bf16.mxu0 0
        %4505 = vmatpush1.bf16.msra.mxu0 %v4493
        %4506 = vmatprep.subr.bf16.mxu0 0
        %4507 = vmatpush1.bf16.msra.mxu0 0
        %4508 = vmatprep.subr.bf16.mxu0 0
        %4509 = vmatpush1.bf16.msra.mxu0 0
        %4510 = vmatprep.subr.bf16.mxu0 0
        %4511 = vmatpush1.bf16.msra.mxu0 0
        %4512 = vmatprep.subr.bf16.mxu0 0
        %4513 = vmatpush1.bf16.msra.mxu0 0
        %4514 = vmatprep.subr.bf16.mxu0 0
        %4515 = vmatpush1.bf16.msra.mxu0 0
        %4516 = vmatprep.subr.bf16.mxu0 0
        %4517 = vmatpush1.bf16.msra.mxu0 0
        %4518 = vmatprep.subr.bf16.mxu0 0
        %4519 = vmatpush1.bf16.msra.mxu0 0
        %4520 = vmatprep.subr.bf16.mxu0 0
        %4521 = vmatpush1.bf16.msra.mxu0 0
        %4522 = vmatprep.subr.bf16.mxu0 0
        %4523 = vmatpush1.bf16.msra.mxu0 0
        %4524 = vmatprep.subr.bf16.mxu0 0
        %4525 = vmatpush1.bf16.msra.mxu0 0
        %4526 = vmatprep.subr.bf16.mxu0 0
        %4527 = vmatpush1.bf16.msra.mxu0 0
        %4528 = vmatprep.subr.bf16.mxu0 0
        %4529 = vmatpush1.bf16.msra.mxu0 0
        %4530 = vmatprep.mubr.bf16.mxu0 0
        %4531 = vmatmul.mubr.bf16.gmra.mrb[0].mxu0 %v4041
        %v4532 = vpop.f32.mrb[0].mxu0
        %v4533 = vadd.f32 0.0, %v4532
        %v4534 = vpop.f32.mrb[0].mxu0
        %v4535 = vpop.f32.mrb[0].mxu0
        %v4536 = vadd.f32 0.0, %v4535
        %v4537 = vpop.f32.mrb[0].mxu0
        %4538 = vdwg.mxu0
        %v4539 = vpack.c.bf16 %v4081, %v4078
        %v4540 = vpack.c.bf16 %v4146, %v4143
        %v4541 = vpack.c.bf16 %v4211, %v4208
        %v4542 = vpack.c.bf16 %v4276, %v4273
        %v4543 = vpack.c.bf16 %v4341, %v4338
        %v4544 = vpack.c.bf16 %v4406, %v4403
        %v4545 = vpack.c.bf16 %v4471, %v4468
        %v4546 = vpack.c.bf16 %v4536, %v4533
        %s4547 = scalar_lea.vmem %s2, 256
        %v4548 = vld [vmem:[%s4547] sm:$0xf]
        %v4549 = vld [vmem:[%s4547 + $0x4] sm:$0xf]
        %v4550 = vld [vmem:[%s4547 + $0x8] sm:$0xf]
        %v4551 = vld [vmem:[%s4547 + $0xc] sm:$0xf]
        %v4552 = vld [vmem:[%s4547 + $0x10] sm:$0xf]
        %v4553 = vld [vmem:[%s4547 + $0x14] sm:$0xf]
        %v4554 = vld [vmem:[%s4547 + $0x18] sm:$0xf]
        %v4555 = vld [vmem:[%s4547 + $0x1c] sm:$0xf]
        %v4556 = vld [vmem:[%s4547 + $0x20] sm:$0xf]
        %v4557 = vld [vmem:[%s4547 + $0x24] sm:$0xf]
        %v4558 = vld [vmem:[%s4547 + $0x28] sm:$0xf]
        %v4559 = vld [vmem:[%s4547 + $0x2c] sm:$0xf]
        %v4560 = vld [vmem:[%s4547 + $0x30] sm:$0xf]
        %v4561 = vld [vmem:[%s4547 + $0x34] sm:$0xf]
        %v4562 = vld [vmem:[%s4547 + $0x38] sm:$0xf]
        %v4563 = vld [vmem:[%s4547 + $0x3c] sm:$0xf]
        %v4564 = vld [vmem:[%s4547 + $0x40] sm:$0xf]
        %v4565 = vld [vmem:[%s4547 + $0x44] sm:$0xf]
        %v4566 = vld [vmem:[%s4547 + $0x48] sm:$0xf]
        %v4567 = vld [vmem:[%s4547 + $0x4c] sm:$0xf]
        %v4568 = vld [vmem:[%s4547 + $0x50] sm:$0xf]
        %v4569 = vld [vmem:[%s4547 + $0x54] sm:$0xf]
        %v4570 = vld [vmem:[%s4547 + $0x58] sm:$0xf]
        %v4571 = vld [vmem:[%s4547 + $0x5c] sm:$0xf]
        %v4572 = vld [vmem:[%s4547 + $0x60] sm:$0xf]
        %v4573 = vld [vmem:[%s4547 + $0x64] sm:$0xf]
        %v4574 = vld [vmem:[%s4547 + $0x68] sm:$0xf]
        %v4575 = vld [vmem:[%s4547 + $0x6c] sm:$0xf]
        %v4576 = vld [vmem:[%s4547 + $0x70] sm:$0xf]
        %v4577 = vld [vmem:[%s4547 + $0x74] sm:$0xf]
        %v4578 = vld [vmem:[%s4547 + $0x78] sm:$0xf]
        %v4579 = vld [vmem:[%s4547 + $0x7c] sm:$0xf]
        %v4580 = vld [vmem:[%s4547 + $0x80] sm:$0xf]
        %v4581 = vld [vmem:[%s4547 + $0x84] sm:$0xf]
        %v4582 = vld [vmem:[%s4547 + $0x88] sm:$0xf]
        %v4583 = vld [vmem:[%s4547 + $0x8c] sm:$0xf]
        %v4584 = vld [vmem:[%s4547 + $0x90] sm:$0xf]
        %v4585 = vld [vmem:[%s4547 + $0x94] sm:$0xf]
        %v4586 = vld [vmem:[%s4547 + $0x98] sm:$0xf]
        %v4587 = vld [vmem:[%s4547 + $0x9c] sm:$0xf]
        %v4588 = vld [vmem:[%s4547 + $0xa0] sm:$0xf]
        %v4589 = vld [vmem:[%s4547 + $0xa4] sm:$0xf]
        %v4590 = vld [vmem:[%s4547 + $0xa8] sm:$0xf]
        %v4591 = vld [vmem:[%s4547 + $0xac] sm:$0xf]
        %v4592 = vld [vmem:[%s4547 + $0xb0] sm:$0xf]
        %v4593 = vld [vmem:[%s4547 + $0xb4] sm:$0xf]
        %v4594 = vld [vmem:[%s4547 + $0xb8] sm:$0xf]
        %v4595 = vld [vmem:[%s4547 + $0xbc] sm:$0xf]
        %v4596 = vld [vmem:[%s4547 + $0xc0] sm:$0xf]
        %v4597 = vld [vmem:[%s4547 + $0xc4] sm:$0xf]
        %v4598 = vld [vmem:[%s4547 + $0xc8] sm:$0xf]
        %v4599 = vld [vmem:[%s4547 + $0xcc] sm:$0xf]
        %v4600 = vld [vmem:[%s4547 + $0xd0] sm:$0xf]
        %v4601 = vld [vmem:[%s4547 + $0xd4] sm:$0xf]
        %v4602 = vld [vmem:[%s4547 + $0xd8] sm:$0xf]
        %v4603 = vld [vmem:[%s4547 + $0xdc] sm:$0xf]
        %v4604 = vld [vmem:[%s4547 + $0xe0] sm:$0xf]
        %v4605 = vld [vmem:[%s4547 + $0xe4] sm:$0xf]
        %v4606 = vld [vmem:[%s4547 + $0xe8] sm:$0xf]
        %v4607 = vld [vmem:[%s4547 + $0xec] sm:$0xf]
        %v4608 = vld [vmem:[%s4547 + $0xf0] sm:$0xf]
        %v4609 = vld [vmem:[%s4547 + $0xf4] sm:$0xf]
        %v4610 = vld [vmem:[%s4547 + $0xf8] sm:$0xf]
        %v4611 = vld [vmem:[%s4547 + $0xfc] sm:$0xf]
        %v4620 = vunpack.c.l.b16 %v4548
        %v4621 = vunpack.c.l.b16 %v4549
        %v4622 = vunpack.c.l.b16 %v4550
        %v4623 = vunpack.c.l.b16 %v4551
        %v4624 = vunpack.c.l.b16 %v4552
        %v4625 = vunpack.c.l.b16 %v4553
        %v4626 = vunpack.c.l.b16 %v4554
        %v4627 = vunpack.c.l.b16 %v4555
        %v4628 = vpack.c.b16 %v4621, %v4620
        %v4629 = vpack.c.b16 %v4623, %v4622
        %v4630 = vpack.c.b16 %v4625, %v4624
        %v4631 = vpack.c.b16 %v4627, %v4626
        %4636 = vmatprep.subr.bf16.mxu0 0
        %4637 = vmatpush1.bf16.msra.mxu0 %v4628
        %4638 = vmatprep.subr.bf16.mxu0 0
        %4639 = vmatpush1.bf16.msra.mxu0 %v4629
        %4640 = vmatprep.subr.bf16.mxu0 0
        %4641 = vmatpush1.bf16.msra.mxu0 %v4630
        %4642 = vmatprep.subr.bf16.mxu0 0
        %4643 = vmatpush1.bf16.msra.mxu0 %v4631
        %4644 = vmatprep.subr.bf16.mxu0 0
        %4645 = vmatpush1.bf16.msra.mxu0 0
        %4646 = vmatprep.subr.bf16.mxu0 0
        %4647 = vmatpush1.bf16.msra.mxu0 0
        %4648 = vmatprep.subr.bf16.mxu0 0
        %4649 = vmatpush1.bf16.msra.mxu0 0
        %4650 = vmatprep.subr.bf16.mxu0 0
        %4651 = vmatpush1.bf16.msra.mxu0 0
        %4652 = vmatprep.subr.bf16.mxu0 0
        %4653 = vmatpush1.bf16.msra.mxu0 0
        %4654 = vmatprep.subr.bf16.mxu0 0
        %4655 = vmatpush1.bf16.msra.mxu0 0
        %4656 = vmatprep.subr.bf16.mxu0 0
        %4657 = vmatpush1.bf16.msra.mxu0 0
        %4658 = vmatprep.subr.bf16.mxu0 0
        %4659 = vmatpush1.bf16.msra.mxu0 0
        %4660 = vmatprep.subr.bf16.mxu0 0
        %4661 = vmatpush1.bf16.msra.mxu0 0
        %4662 = vmatprep.subr.bf16.mxu0 0
        %4663 = vmatpush1.bf16.msra.mxu0 0
        %4664 = vmatprep.subr.bf16.mxu0 0
        %4665 = vmatpush1.bf16.msra.mxu0 0
        %4666 = vmatprep.subr.bf16.mxu0 0
        %4667 = vmatpush1.bf16.msra.mxu0 0
        %4668 = vmatprep.mubr.bf16.mxu0 0
        %4669 = vmatmul.mubr.bf16.gmra.mrb[0].mxu0 %v4041
        %v4670 = vpop.f32.mrb[0].mxu0
        %v4671 = vadd.f32 0.0, %v4670
        %v4672 = vpop.f32.mrb[0].mxu0
        %v4673 = vpop.f32.mrb[0].mxu0
        %v4674 = vadd.f32 0.0, %v4673
        %v4675 = vpop.f32.mrb[0].mxu0
        %4676 = vdwg.mxu0
        %v4685 = vunpack.c.l.b16 %v4556
        %v4686 = vunpack.c.l.b16 %v4557
        %v4687 = vunpack.c.l.b16 %v4558
        %v4688 = vunpack.c.l.b16 %v4559
        %v4689 = vunpack.c.l.b16 %v4560
        %v4690 = vunpack.c.l.b16 %v4561
        %v4691 = vunpack.c.l.b16 %v4562
        %v4692 = vunpack.c.l.b16 %v4563
        %v4693 = vpack.c.b16 %v4686, %v4685
        %v4694 = vpack.c.b16 %v4688, %v4687
        %v4695 = vpack.c.b16 %v4690, %v4689
        %v4696 = vpack.c.b16 %v4692, %v4691
        %4701 = vmatprep.subr.bf16.mxu0 0
        %4702 = vmatpush1.bf16.msra.mxu0 %v4693
        %4703 = vmatprep.subr.bf16.mxu0 0
        %4704 = vmatpush1.bf16.msra.mxu0 %v4694
        %4705 = vmatprep.subr.bf16.mxu0 0
        %4706 = vmatpush1.bf16.msra.mxu0 %v4695
        %4707 = vmatprep.subr.bf16.mxu0 0
        %4708 = vmatpush1.bf16.msra.mxu0 %v4696
        %4709 = vmatprep.subr.bf16.mxu0 0
        %4710 = vmatpush1.bf16.msra.mxu0 0
        %4711 = vmatprep.subr.bf16.mxu0 0
        %4712 = vmatpush1.bf16.msra.mxu0 0
        %4713 = vmatprep.subr.bf16.mxu0 0
        %4714 = vmatpush1.bf16.msra.mxu0 0
        %4715 = vmatprep.subr.bf16.mxu0 0
        %4716 = vmatpush1.bf16.msra.mxu0 0
        %4717 = vmatprep.subr.bf16.mxu0 0
        %4718 = vmatpush1.bf16.msra.mxu0 0
        %4719 = vmatprep.subr.bf16.mxu0 0
        %4720 = vmatpush1.bf16.msra.mxu0 0
        %4721 = vmatprep.subr.bf16.mxu0 0
        %4722 = vmatpush1.bf16.msra.mxu0 0
        %4723 = vmatprep.subr.bf16.mxu0 0
        %4724 = vmatpush1.bf16.msra.mxu0 0
        %4725 = vmatprep.subr.bf16.mxu0 0
        %4726 = vmatpush1.bf16.msra.mxu0 0
        %4727 = vmatprep.subr.bf16.mxu0 0
        %4728 = vmatpush1.bf16.msra.mxu0 0
        %4729 = vmatprep.subr.bf16.mxu0 0
        %4730 = vmatpush1.bf16.msra.mxu0 0
        %4731 = vmatprep.subr.bf16.mxu0 0
        %4732 = vmatpush1.bf16.msra.mxu0 0
        %4733 = vmatprep.mubr.bf16.mxu0 0
        %4734 = vmatmul.mubr.bf16.gmra.mrb[0].mxu0 %v4041
        %v4735 = vpop.f32.mrb[0].mxu0
        %v4736 = vadd.f32 0.0, %v4735
        %v4737 = vpop.f32.mrb[0].mxu0
        %v4738 = vpop.f32.mrb[0].mxu0
        %v4739 = vadd.f32 0.0, %v4738
        %v4740 = vpop.f32.mrb[0].mxu0
        %4741 = vdwg.mxu0
        %v4750 = vunpack.c.l.b16 %v4564
        %v4751 = vunpack.c.l.b16 %v4565
        %v4752 = vunpack.c.l.b16 %v4566
        %v4753 = vunpack.c.l.b16 %v4567
        %v4754 = vunpack.c.l.b16 %v4568
        %v4755 = vunpack.c.l.b16 %v4569
        %v4756 = vunpack.c.l.b16 %v4570
        %v4757 = vunpack.c.l.b16 %v4571
        %v4758 = vpack.c.b16 %v4751, %v4750
        %v4759 = vpack.c.b16 %v4753, %v4752
        %v4760 = vpack.c.b16 %v4755, %v4754
        %v4761 = vpack.c.b16 %v4757, %v4756
        %4766 = vmatprep.subr.bf16.mxu0 0
        %4767 = vmatpush1.bf16.msra.mxu0 %v4758
        %4768 = vmatprep.subr.bf16.mxu0 0
        %4769 = vmatpush1.bf16.msra.mxu0 %v4759
        %4770 = vmatprep.subr.bf16.mxu0 0
        %4771 = vmatpush1.bf16.msra.mxu0 %v4760
        %4772 = vmatprep.subr.bf16.mxu0 0
        %4773 = vmatpush1.bf16.msra.mxu0 %v4761
        %4774 = vmatprep.subr.bf16.mxu0 0
        %4775 = vmatpush1.bf16.msra.mxu0 0
        %4776 = vmatprep.subr.bf16.mxu0 0
        %4777 = vmatpush1.bf16.msra.mxu0 0
        %4778 = vmatprep.subr.bf16.mxu0 0
        %4779 = vmatpush1.bf16.msra.mxu0 0
        %4780 = vmatprep.subr.bf16.mxu0 0
        %4781 = vmatpush1.bf16.msra.mxu0 0
        %4782 = vmatprep.subr.bf16.mxu0 0
        %4783 = vmatpush1.bf16.msra.mxu0 0
        %4784 = vmatprep.subr.bf16.mxu0 0
        %4785 = vmatpush1.bf16.msra.mxu0 0
        %4786 = vmatprep.subr.bf16.mxu0 0
        %4787 = vmatpush1.bf16.msra.mxu0 0
        %4788 = vmatprep.subr.bf16.mxu0 0
        %4789 = vmatpush1.bf16.msra.mxu0 0
        %4790 = vmatprep.subr.bf16.mxu0 0
        %4791 = vmatpush1.bf16.msra.mxu0 0
        %4792 = vmatprep.subr.bf16.mxu0 0
        %4793 = vmatpush1.bf16.msra.mxu0 0
        %4794 = vmatprep.subr.bf16.mxu0 0
        %4795 = vmatpush1.bf16.msra.mxu0 0
        %4796 = vmatprep.subr.bf16.mxu0 0
        %4797 = vmatpush1.bf16.msra.mxu0 0
        %4798 = vmatprep.mubr.bf16.mxu0 0
        %4799 = vmatmul.mubr.bf16.gmra.mrb[0].mxu0 %v4041
        %v4800 = vpop.f32.mrb[0].mxu0
        %v4801 = vadd.f32 0.0, %v4800
        %v4802 = vpop.f32.mrb[0].mxu0
        %v4803 = vpop.f32.mrb[0].mxu0
        %v4804 = vadd.f32 0.0, %v4803
        %v4805 = vpop.f32.mrb[0].mxu0
        %4806 = vdwg.mxu0
        %v4815 = vunpack.c.l.b16 %v4572
        %v4816 = vunpack.c.l.b16 %v4573
        %v4817 = vunpack.c.l.b16 %v4574
        %v4818 = vunpack.c.l.b16 %v4575
        %v4819 = vunpack.c.l.b16 %v4576
        %v4820 = vunpack.c.l.b16 %v4577
        %v4821 = vunpack.c.l.b16 %v4578
        %v4822 = vunpack.c.l.b16 %v4579
        %v4823 = vpack.c.b16 %v4816, %v4815
        %v4824 = vpack.c.b16 %v4818, %v4817
        %v4825 = vpack.c.b16 %v4820, %v4819
        %v4826 = vpack.c.b16 %v4822, %v4821
        %4831 = vmatprep.subr.bf16.mxu0 0
        %4832 = vmatpush1.bf16.msra.mxu0 %v4823
        %4833 = vmatprep.subr.bf16.mxu0 0
        %4834 = vmatpush1.bf16.msra.mxu0 %v4824
        %4835 = vmatprep.subr.bf16.mxu0 0
        %4836 = vmatpush1.bf16.msra.mxu0 %v4825
        %4837 = vmatprep.subr.bf16.mxu0 0
        %4838 = vmatpush1.bf16.msra.mxu0 %v4826
        %4839 = vmatprep.subr.bf16.mxu0 0
        %4840 = vmatpush1.bf16.msra.mxu0 0
        %4841 = vmatprep.subr.bf16.mxu0 0
        %4842 = vmatpush1.bf16.msra.mxu0 0
        %4843 = vmatprep.subr.bf16.mxu0 0
        %4844 = vmatpush1.bf16.msra.mxu0 0
        %4845 = vmatprep.subr.bf16.mxu0 0
        %4846 = vmatpush1.bf16.msra.mxu0 0
        %4847 = vmatprep.subr.bf16.mxu0 0
        %4848 = vmatpush1.bf16.msra.mxu0 0
        %4849 = vmatprep.subr.bf16.mxu0 0
        %4850 = vmatpush1.bf16.msra.mxu0 0
        %4851 = vmatprep.subr.bf16.mxu0 0
        %4852 = vmatpush1.bf16.msra.mxu0 0
        %4853 = vmatprep.subr.bf16.mxu0 0
        %4854 = vmatpush1.bf16.msra.mxu0 0
        %4855 = vmatprep.subr.bf16.mxu0 0
        %4856 = vmatpush1.bf16.msra.mxu0 0
        %4857 = vmatprep.subr.bf16.mxu0 0
        %4858 = vmatpush1.bf16.msra.mxu0 0
        %4859 = vmatprep.subr.bf16.mxu0 0
        %4860 = vmatpush1.bf16.msra.mxu0 0
        %4861 = vmatprep.subr.bf16.mxu0 0
        %4862 = vmatpush1.bf16.msra.mxu0 0
        %4863 = vmatprep.mubr.bf16.mxu0 0
        %4864 = vmatmul.mubr.bf16.gmra.mrb[0].mxu0 %v4041
        %v4865 = vpop.f32.mrb[0].mxu0
        %v4866 = vadd.f32 0.0, %v4865
        %v4867 = vpop.f32.mrb[0].mxu0
        %v4868 = vpop.f32.mrb[0].mxu0
        %v4869 = vadd.f32 0.0, %v4868
        %v4870 = vpop.f32.mrb[0].mxu0
        %4871 = vdwg.mxu0
        %v4880 = vunpack.c.l.b16 %v4580
        %v4881 = vunpack.c.l.b16 %v4581
        %v4882 = vunpack.c.l.b16 %v4582
        %v4883 = vunpack.c.l.b16 %v4583
        %v4884 = vunpack.c.l.b16 %v4584
        %v4885 = vunpack.c.l.b16 %v4585
        %v4886 = vunpack.c.l.b16 %v4586
        %v4887 = vunpack.c.l.b16 %v4587
        %v4888 = vpack.c.b16 %v4881, %v4880
        %v4889 = vpack.c.b16 %v4883, %v4882
        %v4890 = vpack.c.b16 %v4885, %v4884
        %v4891 = vpack.c.b16 %v4887, %v4886
        %4896 = vmatprep.subr.bf16.mxu0 0
        %4897 = vmatpush1.bf16.msra.mxu0 %v4888
        %4898 = vmatprep.subr.bf16.mxu0 0
        %4899 = vmatpush1.bf16.msra.mxu0 %v4889
        %4900 = vmatprep.subr.bf16.mxu0 0
        %4901 = vmatpush1.bf16.msra.mxu0 %v4890
        %4902 = vmatprep.subr.bf16.mxu0 0
        %4903 = vmatpush1.bf16.msra.mxu0 %v4891
        %4904 = vmatprep.subr.bf16.mxu0 0
        %4905 = vmatpush1.bf16.msra.mxu0 0
        %4906 = vmatprep.subr.bf16.mxu0 0
        %4907 = vmatpush1.bf16.msra.mxu0 0
        %4908 = vmatprep.subr.bf16.mxu0 0
        %4909 = vmatpush1.bf16.msra.mxu0 0
        %4910 = vmatprep.subr.bf16.mxu0 0
        %4911 = vmatpush1.bf16.msra.mxu0 0
        %4912 = vmatprep.subr.bf16.mxu0 0
        %4913 = vmatpush1.bf16.msra.mxu0 0
        %4914 = vmatprep.subr.bf16.mxu0 0
        %4915 = vmatpush1.bf16.msra.mxu0 0
        %4916 = vmatprep.subr.bf16.mxu0 0
        %4917 = vmatpush1.bf16.msra.mxu0 0
        %4918 = vmatprep.subr.bf16.mxu0 0
        %4919 = vmatpush1.bf16.msra.mxu0 0
        %4920 = vmatprep.subr.bf16.mxu0 0
        %4921 = vmatpush1.bf16.msra.mxu0 0
        %4922 = vmatprep.subr.bf16.mxu0 0
        %4923 = vmatpush1.bf16.msra.mxu0 0
        %4924 = vmatprep.subr.bf16.mxu0 0
        %4925 = vmatpush1.bf16.msra.mxu0 0
        %4926 = vmatprep.subr.bf16.mxu0 0
        %4927 = vmatpush1.bf16.msra.mxu0 0
        %4928 = vmatprep.mubr.bf16.mxu0 0
        %4929 = vmatmul.mubr.bf16.gmra.mrb[0].mxu0 %v4041
        %v4930 = vpop.f32.mrb[0].mxu0
        %v4931 = vadd.f32 0.0, %v4930
        %v4932 = vpop.f32.mrb[0].mxu0
        %v4933 = vpop.f32.mrb[0].mxu0
        %v4934 = vadd.f32 0.0, %v4933
        %v4935 = vpop.f32.mrb[0].mxu0
        %4936 = vdwg.mxu0
        %v4945 = vunpack.c.l.b16 %v4588
        %v4946 = vunpack.c.l.b16 %v4589
        %v4947 = vunpack.c.l.b16 %v4590
        %v4948 = vunpack.c.l.b16 %v4591
        %v4949 = vunpack.c.l.b16 %v4592
        %v4950 = vunpack.c.l.b16 %v4593
        %v4951 = vunpack.c.l.b16 %v4594
        %v4952 = vunpack.c.l.b16 %v4595
        %v4953 = vpack.c.b16 %v4946, %v4945
        %v4954 = vpack.c.b16 %v4948, %v4947
        %v4955 = vpack.c.b16 %v4950, %v4949
        %v4956 = vpack.c.b16 %v4952, %v4951
        %4961 = vmatprep.subr.bf16.mxu0 0
        %4962 = vmatpush1.bf16.msra.mxu0 %v4953
        %4963 = vmatprep.subr.bf16.mxu0 0
        %4964 = vmatpush1.bf16.msra.mxu0 %v4954
        %4965 = vmatprep.subr.bf16.mxu0 0
        %4966 = vmatpush1.bf16.msra.mxu0 %v4955
        %4967 = vmatprep.subr.bf16.mxu0 0
        %4968 = vmatpush1.bf16.msra.mxu0 %v4956
        %4969 = vmatprep.subr.bf16.mxu0 0
        %4970 = vmatpush1.bf16.msra.mxu0 0
        %4971 = vmatprep.subr.bf16.mxu0 0
        %4972 = vmatpush1.bf16.msra.mxu0 0
        %4973 = vmatprep.subr.bf16.mxu0 0
        %4974 = vmatpush1.bf16.msra.mxu0 0
        %4975 = vmatprep.subr.bf16.mxu0 0
        %4976 = vmatpush1.bf16.msra.mxu0 0
        %4977 = vmatprep.subr.bf16.mxu0 0
        %4978 = vmatpush1.bf16.msra.mxu0 0
        %4979 = vmatprep.subr.bf16.mxu0 0
        %4980 = vmatpush1.bf16.msra.mxu0 0
        %4981 = vmatprep.subr.bf16.mxu0 0
        %4982 = vmatpush1.bf16.msra.mxu0 0
        %4983 = vmatprep.subr.bf16.mxu0 0
        %4984 = vmatpush1.bf16.msra.mxu0 0
        %4985 = vmatprep.subr.bf16.mxu0 0
        %4986 = vmatpush1.bf16.msra.mxu0 0
        %4987 = vmatprep.subr.bf16.mxu0 0
        %4988 = vmatpush1.bf16.msra.mxu0 0
        %4989 = vmatprep.subr.bf16.mxu0 0
        %4990 = vmatpush1.bf16.msra.mxu0 0
        %4991 = vmatprep.subr.bf16.mxu0 0
        %4992 = vmatpush1.bf16.msra.mxu0 0
        %4993 = vmatprep.mubr.bf16.mxu0 0
        %4994 = vmatmul.mubr.bf16.gmra.mrb[0].mxu0 %v4041
        %v4995 = vpop.f32.mrb[0].mxu0
        %v4996 = vadd.f32 0.0, %v4995
        %v4997 = vpop.f32.mrb[0].mxu0
        %v4998 = vpop.f32.mrb[0].mxu0
        %v4999 = vadd.f32 0.0, %v4998
        %v5000 = vpop.f32.mrb[0].mxu0
        %5001 = vdwg.mxu0
        %v5010 = vunpack.c.l.b16 %v4596
        %v5011 = vunpack.c.l.b16 %v4597
        %v5012 = vunpack.c.l.b16 %v4598
        %v5013 = vunpack.c.l.b16 %v4599
        %v5014 = vunpack.c.l.b16 %v4600
        %v5015 = vunpack.c.l.b16 %v4601
        %v5016 = vunpack.c.l.b16 %v4602
        %v5017 = vunpack.c.l.b16 %v4603
        %v5018 = vpack.c.b16 %v5011, %v5010
        %v5019 = vpack.c.b16 %v5013, %v5012
        %v5020 = vpack.c.b16 %v5015, %v5014
        %v5021 = vpack.c.b16 %v5017, %v5016
        %5026 = vmatprep.subr.bf16.mxu0 0
        %5027 = vmatpush1.bf16.msra.mxu0 %v5018
        %5028 = vmatprep.subr.bf16.mxu0 0
        %5029 = vmatpush1.bf16.msra.mxu0 %v5019
        %5030 = vmatprep.subr.bf16.mxu0 0
        %5031 = vmatpush1.bf16.msra.mxu0 %v5020
        %5032 = vmatprep.subr.bf16.mxu0 0
        %5033 = vmatpush1.bf16.msra.mxu0 %v5021
        %5034 = vmatprep.subr.bf16.mxu0 0
        %5035 = vmatpush1.bf16.msra.mxu0 0
        %5036 = vmatprep.subr.bf16.mxu0 0
        %5037 = vmatpush1.bf16.msra.mxu0 0
        %5038 = vmatprep.subr.bf16.mxu0 0
        %5039 = vmatpush1.bf16.msra.mxu0 0
        %5040 = vmatprep.subr.bf16.mxu0 0
        %5041 = vmatpush1.bf16.msra.mxu0 0
        %5042 = vmatprep.subr.bf16.mxu0 0
        %5043 = vmatpush1.bf16.msra.mxu0 0
        %5044 = vmatprep.subr.bf16.mxu0 0
        %5045 = vmatpush1.bf16.msra.mxu0 0
        %5046 = vmatprep.subr.bf16.mxu0 0
        %5047 = vmatpush1.bf16.msra.mxu0 0
        %5048 = vmatprep.subr.bf16.mxu0 0
        %5049 = vmatpush1.bf16.msra.mxu0 0
        %5050 = vmatprep.subr.bf16.mxu0 0
        %5051 = vmatpush1.bf16.msra.mxu0 0
        %5052 = vmatprep.subr.bf16.mxu0 0
        %5053 = vmatpush1.bf16.msra.mxu0 0
        %5054 = vmatprep.subr.bf16.mxu0 0
        %5055 = vmatpush1.bf16.msra.mxu0 0
        %5056 = vmatprep.subr.bf16.mxu0 0
        %5057 = vmatpush1.bf16.msra.mxu0 0
        %5058 = vmatprep.mubr.bf16.mxu0 0
        %5059 = vmatmul.mubr.bf16.gmra.mrb[0].mxu0 %v4041
        %v5060 = vpop.f32.mrb[0].mxu0
        %v5061 = vadd.f32 0.0, %v5060
        %v5062 = vpop.f32.mrb[0].mxu0
        %v5063 = vpop.f32.mrb[0].mxu0
        %v5064 = vadd.f32 0.0, %v5063
        %v5065 = vpop.f32.mrb[0].mxu0
        %5066 = vdwg.mxu0
        %v5075 = vunpack.c.l.b16 %v4604
        %v5076 = vunpack.c.l.b16 %v4605
        %v5077 = vunpack.c.l.b16 %v4606
        %v5078 = vunpack.c.l.b16 %v4607
        %v5079 = vunpack.c.l.b16 %v4608
        %v5080 = vunpack.c.l.b16 %v4609
        %v5081 = vunpack.c.l.b16 %v4610
        %v5082 = vunpack.c.l.b16 %v4611
        %v5083 = vpack.c.b16 %v5076, %v5075
        %v5084 = vpack.c.b16 %v5078, %v5077
        %v5085 = vpack.c.b16 %v5080, %v5079
        %v5086 = vpack.c.b16 %v5082, %v5081
        %5091 = vmatprep.subr.bf16.mxu0 0
        %5092 = vmatpush1.bf16.msra.mxu0 %v5083
        %5093 = vmatprep.subr.bf16.mxu0 0
        %5094 = vmatpush1.bf16.msra.mxu0 %v5084
        %5095 = vmatprep.subr.bf16.mxu0 0
        %5096 = vmatpush1.bf16.msra.mxu0 %v5085
        %5097 = vmatprep.subr.bf16.mxu0 0
        %5098 = vmatpush1.bf16.msra.mxu0 %v5086
        %5099 = vmatprep.subr.bf16.mxu0 0
        %5100 = vmatpush1.bf16.msra.mxu0 0
        %5101 = vmatprep.subr.bf16.mxu0 0
        %5102 = vmatpush1.bf16.msra.mxu0 0
        %5103 = vmatprep.subr.bf16.mxu0 0
        %5104 = vmatpush1.bf16.msra.mxu0 0
        %5105 = vmatprep.subr.bf16.mxu0 0
        %5106 = vmatpush1.bf16.msra.mxu0 0
        %5107 = vmatprep.subr.bf16.mxu0 0
        %5108 = vmatpush1.bf16.msra.mxu0 0
        %5109 = vmatprep.subr.bf16.mxu0 0
        %5110 = vmatpush1.bf16.msra.mxu0 0
        %5111 = vmatprep.subr.bf16.mxu0 0
        %5112 = vmatpush1.bf16.msra.mxu0 0
        %5113 = vmatprep.subr.bf16.mxu0 0
        %5114 = vmatpush1.bf16.msra.mxu0 0
        %5115 = vmatprep.subr.bf16.mxu0 0
        %5116 = vmatpush1.bf16.msra.mxu0 0
        %5117 = vmatprep.subr.bf16.mxu0 0
        %5118 = vmatpush1.bf16.msra.mxu0 0
        %5119 = vmatprep.subr.bf16.mxu0 0
        %5120 = vmatpush1.bf16.msra.mxu0 0
        %5121 = vmatprep.subr.bf16.mxu0 0
        %5122 = vmatpush1.bf16.msra.mxu0 0
        %5123 = vmatprep.mubr.bf16.mxu0 0
        %5124 = vmatmul.mubr.bf16.gmra.mrb[0].mxu0 %v4041
        %v5125 = vpop.f32.mrb[0].mxu0
        %v5126 = vadd.f32 0.0, %v5125
        %v5127 = vpop.f32.mrb[0].mxu0
        %v5128 = vpop.f32.mrb[0].mxu0
        %v5129 = vadd.f32 0.0, %v5128
        %v5130 = vpop.f32.mrb[0].mxu0
        %5131 = vdwg.mxu0
        %v5132 = vpack.c.bf16 %v4674, %v4671
        %v5133 = vpack.c.bf16 %v4739, %v4736
        %v5134 = vpack.c.bf16 %v4804, %v4801
        %v5135 = vpack.c.bf16 %v4869, %v4866
        %v5136 = vpack.c.bf16 %v4934, %v4931
        %v5137 = vpack.c.bf16 %v4999, %v4996
        %v5138 = vpack.c.bf16 %v5064, %v5061
        %v5139 = vpack.c.bf16 %v5129, %v5126
        %s5140 = scalar_lea.vmem %s3, 256
        %v5141 = vld [vmem:[%s5140] sm:$0xf]
        %v5142 = vld [vmem:[%s5140 + $0x4] sm:$0xf]
        %v5143 = vld [vmem:[%s5140 + $0x8] sm:$0xf]
        %v5144 = vld [vmem:[%s5140 + $0xc] sm:$0xf]
        %v5145 = vld [vmem:[%s5140 + $0x10] sm:$0xf]
        %v5146 = vld [vmem:[%s5140 + $0x14] sm:$0xf]
        %v5147 = vld [vmem:[%s5140 + $0x18] sm:$0xf]
        %v5148 = vld [vmem:[%s5140 + $0x1c] sm:$0xf]
        %v5149 = vld [vmem:[%s5140 + $0x20] sm:$0xf]
        %v5150 = vld [vmem:[%s5140 + $0x24] sm:$0xf]
        %v5151 = vld [vmem:[%s5140 + $0x28] sm:$0xf]
        %v5152 = vld [vmem:[%s5140 + $0x2c] sm:$0xf]
        %v5153 = vld [vmem:[%s5140 + $0x30] sm:$0xf]
        %v5154 = vld [vmem:[%s5140 + $0x34] sm:$0xf]
        %v5155 = vld [vmem:[%s5140 + $0x38] sm:$0xf]
        %v5156 = vld [vmem:[%s5140 + $0x3c] sm:$0xf]
        %v5157 = vld [vmem:[%s5140 + $0x40] sm:$0xf]
        %v5158 = vld [vmem:[%s5140 + $0x44] sm:$0xf]
        %v5159 = vld [vmem:[%s5140 + $0x48] sm:$0xf]
        %v5160 = vld [vmem:[%s5140 + $0x4c] sm:$0xf]
        %v5161 = vld [vmem:[%s5140 + $0x50] sm:$0xf]
        %v5162 = vld [vmem:[%s5140 + $0x54] sm:$0xf]
        %v5163 = vld [vmem:[%s5140 + $0x58] sm:$0xf]
        %v5164 = vld [vmem:[%s5140 + $0x5c] sm:$0xf]
        %v5165 = vld [vmem:[%s5140 + $0x60] sm:$0xf]
        %v5166 = vld [vmem:[%s5140 + $0x64] sm:$0xf]
        %v5167 = vld [vmem:[%s5140 + $0x68] sm:$0xf]
        %v5168 = vld [vmem:[%s5140 + $0x6c] sm:$0xf]
        %v5169 = vld [vmem:[%s5140 + $0x70] sm:$0xf]
        %v5170 = vld [vmem:[%s5140 + $0x74] sm:$0xf]
        %v5171 = vld [vmem:[%s5140 + $0x78] sm:$0xf]
        %v5172 = vld [vmem:[%s5140 + $0x7c] sm:$0xf]
        %v5173 = vld [vmem:[%s5140 + $0x80] sm:$0xf]
        %v5174 = vld [vmem:[%s5140 + $0x84] sm:$0xf]
        %v5175 = vld [vmem:[%s5140 + $0x88] sm:$0xf]
        %v5176 = vld [vmem:[%s5140 + $0x8c] sm:$0xf]
        %v5177 = vld [vmem:[%s5140 + $0x90] sm:$0xf]
        %v5178 = vld [vmem:[%s5140 + $0x94] sm:$0xf]
        %v5179 = vld [vmem:[%s5140 + $0x98] sm:$0xf]
        %v5180 = vld [vmem:[%s5140 + $0x9c] sm:$0xf]
        %v5181 = vld [vmem:[%s5140 + $0xa0] sm:$0xf]
        %v5182 = vld [vmem:[%s5140 + $0xa4] sm:$0xf]
        %v5183 = vld [vmem:[%s5140 + $0xa8] sm:$0xf]
        %v5184 = vld [vmem:[%s5140 + $0xac] sm:$0xf]
        %v5185 = vld [vmem:[%s5140 + $0xb0] sm:$0xf]
        %v5186 = vld [vmem:[%s5140 + $0xb4] sm:$0xf]
        %v5187 = vld [vmem:[%s5140 + $0xb8] sm:$0xf]
        %v5188 = vld [vmem:[%s5140 + $0xbc] sm:$0xf]
        %v5189 = vld [vmem:[%s5140 + $0xc0] sm:$0xf]
        %v5190 = vld [vmem:[%s5140 + $0xc4] sm:$0xf]
        %v5191 = vld [vmem:[%s5140 + $0xc8] sm:$0xf]
        %v5192 = vld [vmem:[%s5140 + $0xcc] sm:$0xf]
        %v5193 = vld [vmem:[%s5140 + $0xd0] sm:$0xf]
        %v5194 = vld [vmem:[%s5140 + $0xd4] sm:$0xf]
        %v5195 = vld [vmem:[%s5140 + $0xd8] sm:$0xf]
        %v5196 = vld [vmem:[%s5140 + $0xdc] sm:$0xf]
        %v5197 = vld [vmem:[%s5140 + $0xe0] sm:$0xf]
        %v5198 = vld [vmem:[%s5140 + $0xe4] sm:$0xf]
        %v5199 = vld [vmem:[%s5140 + $0xe8] sm:$0xf]
        %v5200 = vld [vmem:[%s5140 + $0xec] sm:$0xf]
        %v5201 = vld [vmem:[%s5140 + $0xf0] sm:$0xf]
        %v5202 = vld [vmem:[%s5140 + $0xf4] sm:$0xf]
        %v5203 = vld [vmem:[%s5140 + $0xf8] sm:$0xf]
        %v5204 = vld [vmem:[%s5140 + $0xfc] sm:$0xf]
        %v5213 = vunpack.c.l.b16 %v5141
        %v5214 = vunpack.c.l.b16 %v5142
        %v5215 = vunpack.c.l.b16 %v5143
        %v5216 = vunpack.c.l.b16 %v5144
        %v5217 = vunpack.c.l.b16 %v5145
        %v5218 = vunpack.c.l.b16 %v5146
        %v5219 = vunpack.c.l.b16 %v5147
        %v5220 = vunpack.c.l.b16 %v5148
        %v5221 = vpack.c.b16 %v5214, %v5213
        %v5222 = vpack.c.b16 %v5216, %v5215
        %v5223 = vpack.c.b16 %v5218, %v5217
        %v5224 = vpack.c.b16 %v5220, %v5219
        %5229 = vmatprep.subr.bf16.mxu0 0
        %5230 = vmatpush1.bf16.msra.mxu0 %v5221
        %5231 = vmatprep.subr.bf16.mxu0 0
        %5232 = vmatpush1.bf16.msra.mxu0 %v5222
        %5233 = vmatprep.subr.bf16.mxu0 0
        %5234 = vmatpush1.bf16.msra.mxu0 %v5223
        %5235 = vmatprep.subr.bf16.mxu0 0
        %5236 = vmatpush1.bf16.msra.mxu0 %v5224
        %5237 = vmatprep.subr.bf16.mxu0 0
        %5238 = vmatpush1.bf16.msra.mxu0 0
        %5239 = vmatprep.subr.bf16.mxu0 0
        %5240 = vmatpush1.bf16.msra.mxu0 0
        %5241 = vmatprep.subr.bf16.mxu0 0
        %5242 = vmatpush1.bf16.msra.mxu0 0
        %5243 = vmatprep.subr.bf16.mxu0 0
        %5244 = vmatpush1.bf16.msra.mxu0 0
        %5245 = vmatprep.subr.bf16.mxu0 0
        %5246 = vmatpush1.bf16.msra.mxu0 0
        %5247 = vmatprep.subr.bf16.mxu0 0
        %5248 = vmatpush1.bf16.msra.mxu0 0
        %5249 = vmatprep.subr.bf16.mxu0 0
        %5250 = vmatpush1.bf16.msra.mxu0 0
        %5251 = vmatprep.subr.bf16.mxu0 0
        %5252 = vmatpush1.bf16.msra.mxu0 0
        %5253 = vmatprep.subr.bf16.mxu0 0
        %5254 = vmatpush1.bf16.msra.mxu0 0
        %5255 = vmatprep.subr.bf16.mxu0 0
        %5256 = vmatpush1.bf16.msra.mxu0 0
        %5257 = vmatprep.subr.bf16.mxu0 0
        %5258 = vmatpush1.bf16.msra.mxu0 0
        %5259 = vmatprep.subr.bf16.mxu0 0
        %5260 = vmatpush1.bf16.msra.mxu0 0
        %5261 = vmatprep.mubr.bf16.mxu0 0
        %5262 = vmatmul.mubr.bf16.gmra.mrb[0].mxu0 %v4041
        %v5263 = vpop.f32.mrb[0].mxu0
        %v5264 = vadd.f32 0.0, %v5263
        %v5265 = vpop.f32.mrb[0].mxu0
        %v5266 = vpop.f32.mrb[0].mxu0
        %v5267 = vadd.f32 0.0, %v5266
        %v5268 = vpop.f32.mrb[0].mxu0
        %5269 = vdwg.mxu0
        %v5278 = vunpack.c.l.b16 %v5149
        %v5279 = vunpack.c.l.b16 %v5150
        %v5280 = vunpack.c.l.b16 %v5151
        %v5281 = vunpack.c.l.b16 %v5152
        %v5282 = vunpack.c.l.b16 %v5153
        %v5283 = vunpack.c.l.b16 %v5154
        %v5284 = vunpack.c.l.b16 %v5155
        %v5285 = vunpack.c.l.b16 %v5156
        %v5286 = vpack.c.b16 %v5279, %v5278
        %v5287 = vpack.c.b16 %v5281, %v5280
        %v5288 = vpack.c.b16 %v5283, %v5282
        %v5289 = vpack.c.b16 %v5285, %v5284
        %5294 = vmatprep.subr.bf16.mxu0 0
        %5295 = vmatpush1.bf16.msra.mxu0 %v5286
        %5296 = vmatprep.subr.bf16.mxu0 0
        %5297 = vmatpush1.bf16.msra.mxu0 %v5287
        %5298 = vmatprep.subr.bf16.mxu0 0
        %5299 = vmatpush1.bf16.msra.mxu0 %v5288
        %5300 = vmatprep.subr.bf16.mxu0 0
        %5301 = vmatpush1.bf16.msra.mxu0 %v5289
        %5302 = vmatprep.subr.bf16.mxu0 0
        %5303 = vmatpush1.bf16.msra.mxu0 0
        %5304 = vmatprep.subr.bf16.mxu0 0
        %5305 = vmatpush1.bf16.msra.mxu0 0
        %5306 = vmatprep.subr.bf16.mxu0 0
        %5307 = vmatpush1.bf16.msra.mxu0 0
        %5308 = vmatprep.subr.bf16.mxu0 0
        %5309 = vmatpush1.bf16.msra.mxu0 0
        %5310 = vmatprep.subr.bf16.mxu0 0
        %5311 = vmatpush1.bf16.msra.mxu0 0
        %5312 = vmatprep.subr.bf16.mxu0 0
        %5313 = vmatpush1.bf16.msra.mxu0 0
        %5314 = vmatprep.subr.bf16.mxu0 0
        %5315 = vmatpush1.bf16.msra.mxu0 0
        %5316 = vmatprep.subr.bf16.mxu0 0
        %5317 = vmatpush1.bf16.msra.mxu0 0
        %5318 = vmatprep.subr.bf16.mxu0 0
        %5319 = vmatpush1.bf16.msra.mxu0 0
        %5320 = vmatprep.subr.bf16.mxu0 0
        %5321 = vmatpush1.bf16.msra.mxu0 0
        %5322 = vmatprep.subr.bf16.mxu0 0
        %5323 = vmatpush1.bf16.msra.mxu0 0
        %5324 = vmatprep.subr.bf16.mxu0 0
        %5325 = vmatpush1.bf16.msra.mxu0 0
        %5326 = vmatprep.mubr.bf16.mxu0 0
        %5327 = vmatmul.mubr.bf16.gmra.mrb[0].mxu0 %v4041
        %v5328 = vpop.f32.mrb[0].mxu0
        %v5329 = vadd.f32 0.0, %v5328
        %v5330 = vpop.f32.mrb[0].mxu0
        %v5331 = vpop.f32.mrb[0].mxu0
        %v5332 = vadd.f32 0.0, %v5331
        %v5333 = vpop.f32.mrb[0].mxu0
        %5334 = vdwg.mxu0
        %v5343 = vunpack.c.l.b16 %v5157
        %v5344 = vunpack.c.l.b16 %v5158
        %v5345 = vunpack.c.l.b16 %v5159
        %v5346 = vunpack.c.l.b16 %v5160
        %v5347 = vunpack.c.l.b16 %v5161
        %v5348 = vunpack.c.l.b16 %v5162
        %v5349 = vunpack.c.l.b16 %v5163
        %v5350 = vunpack.c.l.b16 %v5164
        %v5351 = vpack.c.b16 %v5344, %v5343
        %v5352 = vpack.c.b16 %v5346, %v5345
        %v5353 = vpack.c.b16 %v5348, %v5347
        %v5354 = vpack.c.b16 %v5350, %v5349
        %5359 = vmatprep.subr.bf16.mxu0 0
        %5360 = vmatpush1.bf16.msra.mxu0 %v5351
        %5361 = vmatprep.subr.bf16.mxu0 0
        %5362 = vmatpush1.bf16.msra.mxu0 %v5352
        %5363 = vmatprep.subr.bf16.mxu0 0
        %5364 = vmatpush1.bf16.msra.mxu0 %v5353
        %5365 = vmatprep.subr.bf16.mxu0 0
        %5366 = vmatpush1.bf16.msra.mxu0 %v5354
        %5367 = vmatprep.subr.bf16.mxu0 0
        %5368 = vmatpush1.bf16.msra.mxu0 0
        %5369 = vmatprep.subr.bf16.mxu0 0
        %5370 = vmatpush1.bf16.msra.mxu0 0
        %5371 = vmatprep.subr.bf16.mxu0 0
        %5372 = vmatpush1.bf16.msra.mxu0 0
        %5373 = vmatprep.subr.bf16.mxu0 0
        %5374 = vmatpush1.bf16.msra.mxu0 0
        %5375 = vmatprep.subr.bf16.mxu0 0
        %5376 = vmatpush1.bf16.msra.mxu0 0
        %5377 = vmatprep.subr.bf16.mxu0 0
        %5378 = vmatpush1.bf16.msra.mxu0 0
        %5379 = vmatprep.subr.bf16.mxu0 0
        %5380 = vmatpush1.bf16.msra.mxu0 0
        %5381 = vmatprep.subr.bf16.mxu0 0
        %5382 = vmatpush1.bf16.msra.mxu0 0
        %5383 = vmatprep.subr.bf16.mxu0 0
        %5384 = vmatpush1.bf16.msra.mxu0 0
        %5385 = vmatprep.subr.bf16.mxu0 0
        %5386 = vmatpush1.bf16.msra.mxu0 0
        %5387 = vmatprep.subr.bf16.mxu0 0
        %5388 = vmatpush1.bf16.msra.mxu0 0
        %5389 = vmatprep.subr.bf16.mxu0 0
        %5390 = vmatpush1.bf16.msra.mxu0 0
        %5391 = vmatprep.mubr.bf16.mxu0 0
        %5392 = vmatmul.mubr.bf16.gmra.mrb[0].mxu0 %v4041
        %v5393 = vpop.f32.mrb[0].mxu0
        %v5394 = vadd.f32 0.0, %v5393
        %v5395 = vpop.f32.mrb[0].mxu0
        %v5396 = vpop.f32.mrb[0].mxu0
        %v5397 = vadd.f32 0.0, %v5396
        %v5398 = vpop.f32.mrb[0].mxu0
        %5399 = vdwg.mxu0
        %v5408 = vunpack.c.l.b16 %v5165
        %v5409 = vunpack.c.l.b16 %v5166
        %v5410 = vunpack.c.l.b16 %v5167
        %v5411 = vunpack.c.l.b16 %v5168
        %v5412 = vunpack.c.l.b16 %v5169
        %v5413 = vunpack.c.l.b16 %v5170
        %v5414 = vunpack.c.l.b16 %v5171
        %v5415 = vunpack.c.l.b16 %v5172
        %v5416 = vpack.c.b16 %v5409, %v5408
        %v5417 = vpack.c.b16 %v5411, %v5410
        %v5418 = vpack.c.b16 %v5413, %v5412
        %v5419 = vpack.c.b16 %v5415, %v5414
        %5424 = vmatprep.subr.bf16.mxu0 0
        %5425 = vmatpush1.bf16.msra.mxu0 %v5416
        %5426 = vmatprep.subr.bf16.mxu0 0
        %5427 = vmatpush1.bf16.msra.mxu0 %v5417
        %5428 = vmatprep.subr.bf16.mxu0 0
        %5429 = vmatpush1.bf16.msra.mxu0 %v5418
        %5430 = vmatprep.subr.bf16.mxu0 0
        %5431 = vmatpush1.bf16.msra.mxu0 %v5419
        %5432 = vmatprep.subr.bf16.mxu0 0
        %5433 = vmatpush1.bf16.msra.mxu0 0
        %5434 = vmatprep.subr.bf16.mxu0 0
        %5435 = vmatpush1.bf16.msra.mxu0 0
        %5436 = vmatprep.subr.bf16.mxu0 0
        %5437 = vmatpush1.bf16.msra.mxu0 0
        %5438 = vmatprep.subr.bf16.mxu0 0
        %5439 = vmatpush1.bf16.msra.mxu0 0
        %5440 = vmatprep.subr.bf16.mxu0 0
        %5441 = vmatpush1.bf16.msra.mxu0 0
        %5442 = vmatprep.subr.bf16.mxu0 0
        %5443 = vmatpush1.bf16.msra.mxu0 0
        %5444 = vmatprep.subr.bf16.mxu0 0
        %5445 = vmatpush1.bf16.msra.mxu0 0
        %5446 = vmatprep.subr.bf16.mxu0 0
        %5447 = vmatpush1.bf16.msra.mxu0 0
        %5448 = vmatprep.subr.bf16.mxu0 0
        %5449 = vmatpush1.bf16.msra.mxu0 0
        %5450 = vmatprep.subr.bf16.mxu0 0
        %5451 = vmatpush1.bf16.msra.mxu0 0
        %5452 = vmatprep.subr.bf16.mxu0 0
        %5453 = vmatpush1.bf16.msra.mxu0 0
        %5454 = vmatprep.subr.bf16.mxu0 0
        %5455 = vmatpush1.bf16.msra.mxu0 0
        %5456 = vmatprep.mubr.bf16.mxu0 0
        %5457 = vmatmul.mubr.bf16.gmra.mrb[0].mxu0 %v4041
        %v5458 = vpop.f32.mrb[0].mxu0
        %v5459 = vadd.f32 0.0, %v5458
        %v5460 = vpop.f32.mrb[0].mxu0
        %v5461 = vpop.f32.mrb[0].mxu0
        %v5462 = vadd.f32 0.0, %v5461
        %v5463 = vpop.f32.mrb[0].mxu0
        %5464 = vdwg.mxu0
        %v5473 = vunpack.c.l.b16 %v5173
        %v5474 = vunpack.c.l.b16 %v5174
        %v5475 = vunpack.c.l.b16 %v5175
        %v5476 = vunpack.c.l.b16 %v5176
        %v5477 = vunpack.c.l.b16 %v5177
        %v5478 = vunpack.c.l.b16 %v5178
        %v5479 = vunpack.c.l.b16 %v5179
        %v5480 = vunpack.c.l.b16 %v5180
        %v5481 = vpack.c.b16 %v5474, %v5473
        %v5482 = vpack.c.b16 %v5476, %v5475
        %v5483 = vpack.c.b16 %v5478, %v5477
        %v5484 = vpack.c.b16 %v5480, %v5479
        %5489 = vmatprep.subr.bf16.mxu0 0
        %5490 = vmatpush1.bf16.msra.mxu0 %v5481
        %5491 = vmatprep.subr.bf16.mxu0 0
        %5492 = vmatpush1.bf16.msra.mxu0 %v5482
        %5493 = vmatprep.subr.bf16.mxu0 0
        %5494 = vmatpush1.bf16.msra.mxu0 %v5483
        %5495 = vmatprep.subr.bf16.mxu0 0
        %5496 = vmatpush1.bf16.msra.mxu0 %v5484
        %5497 = vmatprep.subr.bf16.mxu0 0
        %5498 = vmatpush1.bf16.msra.mxu0 0
        %5499 = vmatprep.subr.bf16.mxu0 0
        %5500 = vmatpush1.bf16.msra.mxu0 0
        %5501 = vmatprep.subr.bf16.mxu0 0
        %5502 = vmatpush1.bf16.msra.mxu0 0
        %5503 = vmatprep.subr.bf16.mxu0 0
        %5504 = vmatpush1.bf16.msra.mxu0 0
        %5505 = vmatprep.subr.bf16.mxu0 0
        %5506 = vmatpush1.bf16.msra.mxu0 0
        %5507 = vmatprep.subr.bf16.mxu0 0
        %5508 = vmatpush1.bf16.msra.mxu0 0
        %5509 = vmatprep.subr.bf16.mxu0 0
        %5510 = vmatpush1.bf16.msra.mxu0 0
        %5511 = vmatprep.subr.bf16.mxu0 0
        %5512 = vmatpush1.bf16.msra.mxu0 0
        %5513 = vmatprep.subr.bf16.mxu0 0
        %5514 = vmatpush1.bf16.msra.mxu0 0
        %5515 = vmatprep.subr.bf16.mxu0 0
        %5516 = vmatpush1.bf16.msra.mxu0 0
        %5517 = vmatprep.subr.bf16.mxu0 0
        %5518 = vmatpush1.bf16.msra.mxu0 0
        %5519 = vmatprep.subr.bf16.mxu0 0
        %5520 = vmatpush1.bf16.msra.mxu0 0
        %5521 = vmatprep.mubr.bf16.mxu0 0
        %5522 = vmatmul.mubr.bf16.gmra.mrb[0].mxu0 %v4041
        %v5523 = vpop.f32.mrb[0].mxu0
        %v5524 = vadd.f32 0.0, %v5523
        %v5525 = vpop.f32.mrb[0].mxu0
        %v5526 = vpop.f32.mrb[0].mxu0
        %v5527 = vadd.f32 0.0, %v5526
        %v5528 = vpop.f32.mrb[0].mxu0
        %5529 = vdwg.mxu0
        %v5538 = vunpack.c.l.b16 %v5181
        %v5539 = vunpack.c.l.b16 %v5182
        %v5540 = vunpack.c.l.b16 %v5183
        %v5541 = vunpack.c.l.b16 %v5184
        %v5542 = vunpack.c.l.b16 %v5185
        %v5543 = vunpack.c.l.b16 %v5186
        %v5544 = vunpack.c.l.b16 %v5187
        %v5545 = vunpack.c.l.b16 %v5188
        %v5546 = vpack.c.b16 %v5539, %v5538
        %v5547 = vpack.c.b16 %v5541, %v5540
        %v5548 = vpack.c.b16 %v5543, %v5542
        %v5549 = vpack.c.b16 %v5545, %v5544
        %5554 = vmatprep.subr.bf16.mxu0 0
        %5555 = vmatpush1.bf16.msra.mxu0 %v5546
        %5556 = vmatprep.subr.bf16.mxu0 0
        %5557 = vmatpush1.bf16.msra.mxu0 %v5547
        %5558 = vmatprep.subr.bf16.mxu0 0
        %5559 = vmatpush1.bf16.msra.mxu0 %v5548
        %5560 = vmatprep.subr.bf16.mxu0 0
        %5561 = vmatpush1.bf16.msra.mxu0 %v5549
        %5562 = vmatprep.subr.bf16.mxu0 0
        %5563 = vmatpush1.bf16.msra.mxu0 0
        %5564 = vmatprep.subr.bf16.mxu0 0
        %5565 = vmatpush1.bf16.msra.mxu0 0
        %5566 = vmatprep.subr.bf16.mxu0 0
        %5567 = vmatpush1.bf16.msra.mxu0 0
        %5568 = vmatprep.subr.bf16.mxu0 0
        %5569 = vmatpush1.bf16.msra.mxu0 0
        %5570 = vmatprep.subr.bf16.mxu0 0
        %5571 = vmatpush1.bf16.msra.mxu0 0
        %5572 = vmatprep.subr.bf16.mxu0 0
        %5573 = vmatpush1.bf16.msra.mxu0 0
        %5574 = vmatprep.subr.bf16.mxu0 0
        %5575 = vmatpush1.bf16.msra.mxu0 0
        %5576 = vmatprep.subr.bf16.mxu0 0
        %5577 = vmatpush1.bf16.msra.mxu0 0
        %5578 = vmatprep.subr.bf16.mxu0 0
        %5579 = vmatpush1.bf16.msra.mxu0 0
        %5580 = vmatprep.subr.bf16.mxu0 0
        %5581 = vmatpush1.bf16.msra.mxu0 0
        %5582 = vmatprep.subr.bf16.mxu0 0
        %5583 = vmatpush1.bf16.msra.mxu0 0
        %5584 = vmatprep.subr.bf16.mxu0 0
        %5585 = vmatpush1.bf16.msra.mxu0 0
        %5586 = vmatprep.mubr.bf16.mxu0 0
        %5587 = vmatmul.mubr.bf16.gmra.mrb[0].mxu0 %v4041
        %v5588 = vpop.f32.mrb[0].mxu0
        %v5589 = vadd.f32 0.0, %v5588
        %v5590 = vpop.f32.mrb[0].mxu0
        %v5591 = vpop.f32.mrb[0].mxu0
        %v5592 = vadd.f32 0.0, %v5591
        %v5593 = vpop.f32.mrb[0].mxu0
        %5594 = vdwg.mxu0
        %v5603 = vunpack.c.l.b16 %v5189
        %v5604 = vunpack.c.l.b16 %v5190
        %v5605 = vunpack.c.l.b16 %v5191
        %v5606 = vunpack.c.l.b16 %v5192
        %v5607 = vunpack.c.l.b16 %v5193
        %v5608 = vunpack.c.l.b16 %v5194
        %v5609 = vunpack.c.l.b16 %v5195
        %v5610 = vunpack.c.l.b16 %v5196
        %v5611 = vpack.c.b16 %v5604, %v5603
        %v5612 = vpack.c.b16 %v5606, %v5605
        %v5613 = vpack.c.b16 %v5608, %v5607
        %v5614 = vpack.c.b16 %v5610, %v5609
        %5619 = vmatprep.subr.bf16.mxu0 0
        %5620 = vmatpush1.bf16.msra.mxu0 %v5611
        %5621 = vmatprep.subr.bf16.mxu0 0
        %5622 = vmatpush1.bf16.msra.mxu0 %v5612
        %5623 = vmatprep.subr.bf16.mxu0 0
        %5624 = vmatpush1.bf16.msra.mxu0 %v5613
        %5625 = vmatprep.subr.bf16.mxu0 0
        %5626 = vmatpush1.bf16.msra.mxu0 %v5614
        %5627 = vmatprep.subr.bf16.mxu0 0
        %5628 = vmatpush1.bf16.msra.mxu0 0
        %5629 = vmatprep.subr.bf16.mxu0 0
        %5630 = vmatpush1.bf16.msra.mxu0 0
        %5631 = vmatprep.subr.bf16.mxu0 0
        %5632 = vmatpush1.bf16.msra.mxu0 0
        %5633 = vmatprep.subr.bf16.mxu0 0
        %5634 = vmatpush1.bf16.msra.mxu0 0
        %5635 = vmatprep.subr.bf16.mxu0 0
        %5636 = vmatpush1.bf16.msra.mxu0 0
        %5637 = vmatprep.subr.bf16.mxu0 0
        %5638 = vmatpush1.bf16.msra.mxu0 0
        %5639 = vmatprep.subr.bf16.mxu0 0
        %5640 = vmatpush1.bf16.msra.mxu0 0
        %5641 = vmatprep.subr.bf16.mxu0 0
        %5642 = vmatpush1.bf16.msra.mxu0 0
        %5643 = vmatprep.subr.bf16.mxu0 0
        %5644 = vmatpush1.bf16.msra.mxu0 0
        %5645 = vmatprep.subr.bf16.mxu0 0
        %5646 = vmatpush1.bf16.msra.mxu0 0
        %5647 = vmatprep.subr.bf16.mxu0 0
        %5648 = vmatpush1.bf16.msra.mxu0 0
        %5649 = vmatprep.subr.bf16.mxu0 0
        %5650 = vmatpush1.bf16.msra.mxu0 0
        %5651 = vmatprep.mubr.bf16.mxu0 0
        %5652 = vmatmul.mubr.bf16.gmra.mrb[0].mxu0 %v4041
        %v5653 = vpop.f32.mrb[0].mxu0
        %v5654 = vadd.f32 0.0, %v5653
        %v5655 = vpop.f32.mrb[0].mxu0
        %v5656 = vpop.f32.mrb[0].mxu0
        %v5657 = vadd.f32 0.0, %v5656
        %v5658 = vpop.f32.mrb[0].mxu0
        %5659 = vdwg.mxu0
        %v5668 = vunpack.c.l.b16 %v5197
        %v5669 = vunpack.c.l.b16 %v5198
        %v5670 = vunpack.c.l.b16 %v5199
        %v5671 = vunpack.c.l.b16 %v5200
        %v5672 = vunpack.c.l.b16 %v5201
        %v5673 = vunpack.c.l.b16 %v5202
        %v5674 = vunpack.c.l.b16 %v5203
        %v5675 = vunpack.c.l.b16 %v5204
        %v5676 = vpack.c.b16 %v5669, %v5668
        %v5677 = vpack.c.b16 %v5671, %v5670
        %v5678 = vpack.c.b16 %v5673, %v5672
        %v5679 = vpack.c.b16 %v5675, %v5674
        %5684 = vmatprep.subr.bf16.mxu0 0
        %5685 = vmatpush1.bf16.msra.mxu0 %v5676
        %5686 = vmatprep.subr.bf16.mxu0 0
        %5687 = vmatpush1.bf16.msra.mxu0 %v5677
        %5688 = vmatprep.subr.bf16.mxu0 0
        %5689 = vmatpush1.bf16.msra.mxu0 %v5678
        %5690 = vmatprep.subr.bf16.mxu0 0
        %5691 = vmatpush1.bf16.msra.mxu0 %v5679
        %5692 = vmatprep.subr.bf16.mxu0 0
        %5693 = vmatpush1.bf16.msra.mxu0 0
        %5694 = vmatprep.subr.bf16.mxu0 0
        %5695 = vmatpush1.bf16.msra.mxu0 0
        %5696 = vmatprep.subr.bf16.mxu0 0
        %5697 = vmatpush1.bf16.msra.mxu0 0
        %5698 = vmatprep.subr.bf16.mxu0 0
        %5699 = vmatpush1.bf16.msra.mxu0 0
        %5700 = vmatprep.subr.bf16.mxu0 0
        %5701 = vmatpush1.bf16.msra.mxu0 0
        %5702 = vmatprep.subr.bf16.mxu0 0
        %5703 = vmatpush1.bf16.msra.mxu0 0
        %5704 = vmatprep.subr.bf16.mxu0 0
        %5705 = vmatpush1.bf16.msra.mxu0 0
        %5706 = vmatprep.subr.bf16.mxu0 0
        %5707 = vmatpush1.bf16.msra.mxu0 0
        %5708 = vmatprep.subr.bf16.mxu0 0
        %5709 = vmatpush1.bf16.msra.mxu0 0
        %5710 = vmatprep.subr.bf16.mxu0 0
        %5711 = vmatpush1.bf16.msra.mxu0 0
        %5712 = vmatprep.subr.bf16.mxu0 0
        %5713 = vmatpush1.bf16.msra.mxu0 0
        %5714 = vmatprep.subr.bf16.mxu0 0
        %5715 = vmatpush1.bf16.msra.mxu0 0
        %5716 = vmatprep.mubr.bf16.mxu0 0
        %5717 = vmatmul.mubr.bf16.gmra.mrb[0].mxu0 %v4041
        %v5718 = vpop.f32.mrb[0].mxu0
        %v5719 = vadd.f32 0.0, %v5718
        %v5720 = vpop.f32.mrb[0].mxu0
        %v5721 = vpop.f32.mrb[0].mxu0
        %v5722 = vadd.f32 0.0, %v5721
        %v5723 = vpop.f32.mrb[0].mxu0
        %5724 = vdwg.mxu0
        %v5725 = vpack.c.bf16 %v5267, %v5264
        %v5726 = vpack.c.bf16 %v5332, %v5329
        %v5727 = vpack.c.bf16 %v5397, %v5394
        %v5728 = vpack.c.bf16 %v5462, %v5459
        %v5729 = vpack.c.bf16 %v5527, %v5524
        %v5730 = vpack.c.bf16 %v5592, %v5589
        %v5731 = vpack.c.bf16 %v5657, %v5654
        %v5732 = vpack.c.bf16 %v5722, %v5719
        %v5734 = vsel %vm2295, %v4539, 0
        %v5737 = vsel %vm2295, %v5132, 0
        %5739 = vmatprep.subr.bf16.mxu0 0
        %5740 = vmatpush1.bf16.xpose.msra.mxu0 %v5737
        %5741 = vmatprep.subr.bf16.mxu0 0
        %5742 = vmatpush1.bf16.xpose.msra.mxu0 0
        %5743 = vmatprep.subr.bf16.mxu0 0
        %5744 = vmatpush1.bf16.xpose.msra.mxu0 0
        %5745 = vmatprep.subr.bf16.mxu0 0
        %5746 = vmatpush1.bf16.xpose.msra.mxu0 0
        %5747 = vmatprep.subr.bf16.mxu0 0
        %5748 = vmatpush1.bf16.xpose.msra.mxu0 0
        %5749 = vmatprep.subr.bf16.mxu0 0
        %5750 = vmatpush1.bf16.xpose.msra.mxu0 0
        %5751 = vmatprep.subr.bf16.mxu0 0
        %5752 = vmatpush1.bf16.xpose.msra.mxu0 0
        %5753 = vmatprep.subr.bf16.mxu0 0
        %5754 = vmatpush1.bf16.xpose.msra.mxu0 0
        %5755 = vmatprep.subr.bf16.mxu0 0
        %5756 = vmatpush1.bf16.xpose.msra.mxu0 0
        %5757 = vmatprep.subr.bf16.mxu0 0
        %5758 = vmatpush1.bf16.xpose.msra.mxu0 0
        %5759 = vmatprep.subr.bf16.mxu0 0
        %5760 = vmatpush1.bf16.xpose.msra.mxu0 0
        %5761 = vmatprep.subr.bf16.mxu0 0
        %5762 = vmatpush1.bf16.xpose.msra.mxu0 0
        %5763 = vmatprep.subr.bf16.mxu0 0
        %5764 = vmatpush1.bf16.xpose.msra.mxu0 0
        %5765 = vmatprep.subr.bf16.mxu0 0
        %5766 = vmatpush1.bf16.xpose.msra.mxu0 0
        %5767 = vmatprep.subr.bf16.mxu0 0
        %5768 = vmatpush1.bf16.xpose.msra.mxu0 0
        %5769 = vmatprep.subr.bf16.mxu0 0
        %5770 = vmatpush1.bf16.xpose.msra.mxu0 0
        %5771 = vmatprep.mubr.bf16.mxu0 0
        %5772 = vmatmul.mubr.bf16.gmra.mrb[0].mxu0 %v5734
        %v5773 = vpop.f32.mrb[0].mxu0
        %v5774 = vadd.f32 0.0, %v5773
        %v5775 = vpop.f32.mrb[0].mxu0
        %v5776 = vpop.f32.mrb[0].mxu0
        %v5777 = vadd.f32 0.0, %v5776
        %v5778 = vpop.f32.mrb[0].mxu0
        %5779 = vdwg.mxu0
        %v5781 = vsel %vm2295, %v4540, 0
        %v5784 = vsel %vm2295, %v5133, 0
        %5786 = vmatprep.subr.bf16.mxu0 0
        %5787 = vmatpush1.bf16.xpose.msra.mxu0 %v5784
        %5788 = vmatprep.subr.bf16.mxu0 0
        %5789 = vmatpush1.bf16.xpose.msra.mxu0 0
        %5790 = vmatprep.subr.bf16.mxu0 0
        %5791 = vmatpush1.bf16.xpose.msra.mxu0 0
        %5792 = vmatprep.subr.bf16.mxu0 0
        %5793 = vmatpush1.bf16.xpose.msra.mxu0 0
        %5794 = vmatprep.subr.bf16.mxu0 0
        %5795 = vmatpush1.bf16.xpose.msra.mxu0 0
        %5796 = vmatprep.subr.bf16.mxu0 0
        %5797 = vmatpush1.bf16.xpose.msra.mxu0 0
        %5798 = vmatprep.subr.bf16.mxu0 0
        %5799 = vmatpush1.bf16.xpose.msra.mxu0 0
        %5800 = vmatprep.subr.bf16.mxu0 0
        %5801 = vmatpush1.bf16.xpose.msra.mxu0 0
        %5802 = vmatprep.subr.bf16.mxu0 0
        %5803 = vmatpush1.bf16.xpose.msra.mxu0 0
        %5804 = vmatprep.subr.bf16.mxu0 0
        %5805 = vmatpush1.bf16.xpose.msra.mxu0 0
        %5806 = vmatprep.subr.bf16.mxu0 0
        %5807 = vmatpush1.bf16.xpose.msra.mxu0 0
        %5808 = vmatprep.subr.bf16.mxu0 0
        %5809 = vmatpush1.bf16.xpose.msra.mxu0 0
        %5810 = vmatprep.subr.bf16.mxu0 0
        %5811 = vmatpush1.bf16.xpose.msra.mxu0 0
        %5812 = vmatprep.subr.bf16.mxu0 0
        %5813 = vmatpush1.bf16.xpose.msra.mxu0 0
        %5814 = vmatprep.subr.bf16.mxu0 0
        %5815 = vmatpush1.bf16.xpose.msra.mxu0 0
        %5816 = vmatprep.subr.bf16.mxu0 0
        %5817 = vmatpush1.bf16.xpose.msra.mxu0 0
        %5818 = vmatprep.mubr.bf16.mxu0 0
        %5819 = vmatmul.mubr.bf16.gmra.mrb[0].mxu0 %v5781
        %v5820 = vpop.f32.mrb[0].mxu0
        %v5821 = vadd.f32 0.0, %v5820
        %v5822 = vpop.f32.mrb[0].mxu0
        %v5823 = vpop.f32.mrb[0].mxu0
        %v5824 = vadd.f32 0.0, %v5823
        %v5825 = vpop.f32.mrb[0].mxu0
        %5826 = vdwg.mxu0
        %v5828 = vsel %vm2295, %v4541, 0
        %v5831 = vsel %vm2295, %v5134, 0
        %5833 = vmatprep.subr.bf16.mxu0 0
        %5834 = vmatpush1.bf16.xpose.msra.mxu0 %v5831
        %5835 = vmatprep.subr.bf16.mxu0 0
        %5836 = vmatpush1.bf16.xpose.msra.mxu0 0
        %5837 = vmatprep.subr.bf16.mxu0 0
        %5838 = vmatpush1.bf16.xpose.msra.mxu0 0
        %5839 = vmatprep.subr.bf16.mxu0 0
        %5840 = vmatpush1.bf16.xpose.msra.mxu0 0
        %5841 = vmatprep.subr.bf16.mxu0 0
        %5842 = vmatpush1.bf16.xpose.msra.mxu0 0
        %5843 = vmatprep.subr.bf16.mxu0 0
        %5844 = vmatpush1.bf16.xpose.msra.mxu0 0
        %5845 = vmatprep.subr.bf16.mxu0 0
        %5846 = vmatpush1.bf16.xpose.msra.mxu0 0
        %5847 = vmatprep.subr.bf16.mxu0 0
        %5848 = vmatpush1.bf16.xpose.msra.mxu0 0
        %5849 = vmatprep.subr.bf16.mxu0 0
        %5850 = vmatpush1.bf16.xpose.msra.mxu0 0
        %5851 = vmatprep.subr.bf16.mxu0 0
        %5852 = vmatpush1.bf16.xpose.msra.mxu0 0
        %5853 = vmatprep.subr.bf16.mxu0 0
        %5854 = vmatpush1.bf16.xpose.msra.mxu0 0
        %5855 = vmatprep.subr.bf16.mxu0 0
        %5856 = vmatpush1.bf16.xpose.msra.mxu0 0
        %5857 = vmatprep.subr.bf16.mxu0 0
        %5858 = vmatpush1.bf16.xpose.msra.mxu0 0
        %5859 = vmatprep.subr.bf16.mxu0 0
        %5860 = vmatpush1.bf16.xpose.msra.mxu0 0
        %5861 = vmatprep.subr.bf16.mxu0 0
        %5862 = vmatpush1.bf16.xpose.msra.mxu0 0
        %5863 = vmatprep.subr.bf16.mxu0 0
        %5864 = vmatpush1.bf16.xpose.msra.mxu0 0
        %5865 = vmatprep.mubr.bf16.mxu0 0
        %5866 = vmatmul.mubr.bf16.gmra.mrb[0].mxu0 %v5828
        %v5867 = vpop.f32.mrb[0].mxu0
        %v5868 = vadd.f32 0.0, %v5867
        %v5869 = vpop.f32.mrb[0].mxu0
        %v5870 = vpop.f32.mrb[0].mxu0
        %v5871 = vadd.f32 0.0, %v5870
        %v5872 = vpop.f32.mrb[0].mxu0
        %5873 = vdwg.mxu0
        %v5875 = vsel %vm2295, %v4542, 0
        %v5878 = vsel %vm2295, %v5135, 0
        %5880 = vmatprep.subr.bf16.mxu0 0
        %5881 = vmatpush1.bf16.xpose.msra.mxu0 %v5878
        %5882 = vmatprep.subr.bf16.mxu0 0
        %5883 = vmatpush1.bf16.xpose.msra.mxu0 0
        %5884 = vmatprep.subr.bf16.mxu0 0
        %5885 = vmatpush1.bf16.xpose.msra.mxu0 0
        %5886 = vmatprep.subr.bf16.mxu0 0
        %5887 = vmatpush1.bf16.xpose.msra.mxu0 0
        %5888 = vmatprep.subr.bf16.mxu0 0
        %5889 = vmatpush1.bf16.xpose.msra.mxu0 0
        %5890 = vmatprep.subr.bf16.mxu0 0
        %5891 = vmatpush1.bf16.xpose.msra.mxu0 0
        %5892 = vmatprep.subr.bf16.mxu0 0
        %5893 = vmatpush1.bf16.xpose.msra.mxu0 0
        %5894 = vmatprep.subr.bf16.mxu0 0
        %5895 = vmatpush1.bf16.xpose.msra.mxu0 0
        %5896 = vmatprep.subr.bf16.mxu0 0
        %5897 = vmatpush1.bf16.xpose.msra.mxu0 0
        %5898 = vmatprep.subr.bf16.mxu0 0
        %5899 = vmatpush1.bf16.xpose.msra.mxu0 0
        %5900 = vmatprep.subr.bf16.mxu0 0
        %5901 = vmatpush1.bf16.xpose.msra.mxu0 0
        %5902 = vmatprep.subr.bf16.mxu0 0
        %5903 = vmatpush1.bf16.xpose.msra.mxu0 0
        %5904 = vmatprep.subr.bf16.mxu0 0
        %5905 = vmatpush1.bf16.xpose.msra.mxu0 0
        %5906 = vmatprep.subr.bf16.mxu0 0
        %5907 = vmatpush1.bf16.xpose.msra.mxu0 0
        %5908 = vmatprep.subr.bf16.mxu0 0
        %5909 = vmatpush1.bf16.xpose.msra.mxu0 0
        %5910 = vmatprep.subr.bf16.mxu0 0
        %5911 = vmatpush1.bf16.xpose.msra.mxu0 0
        %5912 = vmatprep.mubr.bf16.mxu0 0
        %5913 = vmatmul.mubr.bf16.gmra.mrb[0].mxu0 %v5875
        %v5914 = vpop.f32.mrb[0].mxu0
        %v5915 = vadd.f32 0.0, %v5914
        %v5916 = vpop.f32.mrb[0].mxu0
        %v5917 = vpop.f32.mrb[0].mxu0
        %v5918 = vadd.f32 0.0, %v5917
        %v5919 = vpop.f32.mrb[0].mxu0
        %5920 = vdwg.mxu0
        %v5922 = vsel %vm2295, %v4543, 0
        %v5925 = vsel %vm2295, %v5136, 0
        %5927 = vmatprep.subr.bf16.mxu0 0
        %5928 = vmatpush1.bf16.xpose.msra.mxu0 %v5925
        %5929 = vmatprep.subr.bf16.mxu0 0
        %5930 = vmatpush1.bf16.xpose.msra.mxu0 0
        %5931 = vmatprep.subr.bf16.mxu0 0
        %5932 = vmatpush1.bf16.xpose.msra.mxu0 0
        %5933 = vmatprep.subr.bf16.mxu0 0
        %5934 = vmatpush1.bf16.xpose.msra.mxu0 0
        %5935 = vmatprep.subr.bf16.mxu0 0
        %5936 = vmatpush1.bf16.xpose.msra.mxu0 0
        %5937 = vmatprep.subr.bf16.mxu0 0
        %5938 = vmatpush1.bf16.xpose.msra.mxu0 0
        %5939 = vmatprep.subr.bf16.mxu0 0
        %5940 = vmatpush1.bf16.xpose.msra.mxu0 0
        %5941 = vmatprep.subr.bf16.mxu0 0
        %5942 = vmatpush1.bf16.xpose.msra.mxu0 0
        %5943 = vmatprep.subr.bf16.mxu0 0
        %5944 = vmatpush1.bf16.xpose.msra.mxu0 0
        %5945 = vmatprep.subr.bf16.mxu0 0
        %5946 = vmatpush1.bf16.xpose.msra.mxu0 0
        %5947 = vmatprep.subr.bf16.mxu0 0
        %5948 = vmatpush1.bf16.xpose.msra.mxu0 0
        %5949 = vmatprep.subr.bf16.mxu0 0
        %5950 = vmatpush1.bf16.xpose.msra.mxu0 0
        %5951 = vmatprep.subr.bf16.mxu0 0
        %5952 = vmatpush1.bf16.xpose.msra.mxu0 0
        %5953 = vmatprep.subr.bf16.mxu0 0
        %5954 = vmatpush1.bf16.xpose.msra.mxu0 0
        %5955 = vmatprep.subr.bf16.mxu0 0
        %5956 = vmatpush1.bf16.xpose.msra.mxu0 0
        %5957 = vmatprep.subr.bf16.mxu0 0
        %5958 = vmatpush1.bf16.xpose.msra.mxu0 0
        %5959 = vmatprep.mubr.bf16.mxu0 0
        %5960 = vmatmul.mubr.bf16.gmra.mrb[0].mxu0 %v5922
        %v5961 = vpop.f32.mrb[0].mxu0
        %v5962 = vadd.f32 0.0, %v5961
        %v5963 = vpop.f32.mrb[0].mxu0
        %v5964 = vpop.f32.mrb[0].mxu0
        %v5965 = vadd.f32 0.0, %v5964
        %v5966 = vpop.f32.mrb[0].mxu0
        %5967 = vdwg.mxu0
        %v5969 = vsel %vm2295, %v4544, 0
        %v5972 = vsel %vm2295, %v5137, 0
        %5974 = vmatprep.subr.bf16.mxu0 0
        %5975 = vmatpush1.bf16.xpose.msra.mxu0 %v5972
        %5976 = vmatprep.subr.bf16.mxu0 0
        %5977 = vmatpush1.bf16.xpose.msra.mxu0 0
        %5978 = vmatprep.subr.bf16.mxu0 0
        %5979 = vmatpush1.bf16.xpose.msra.mxu0 0
        %5980 = vmatprep.subr.bf16.mxu0 0
        %5981 = vmatpush1.bf16.xpose.msra.mxu0 0
        %5982 = vmatprep.subr.bf16.mxu0 0
        %5983 = vmatpush1.bf16.xpose.msra.mxu0 0
        %5984 = vmatprep.subr.bf16.mxu0 0
        %5985 = vmatpush1.bf16.xpose.msra.mxu0 0
        %5986 = vmatprep.subr.bf16.mxu0 0
        %5987 = vmatpush1.bf16.xpose.msra.mxu0 0
        %5988 = vmatprep.subr.bf16.mxu0 0
        %5989 = vmatpush1.bf16.xpose.msra.mxu0 0
        %5990 = vmatprep.subr.bf16.mxu0 0
        %5991 = vmatpush1.bf16.xpose.msra.mxu0 0
        %5992 = vmatprep.subr.bf16.mxu0 0
        %5993 = vmatpush1.bf16.xpose.msra.mxu0 0
        %5994 = vmatprep.subr.bf16.mxu0 0
        %5995 = vmatpush1.bf16.xpose.msra.mxu0 0
        %5996 = vmatprep.subr.bf16.mxu0 0
        %5997 = vmatpush1.bf16.xpose.msra.mxu0 0
        %5998 = vmatprep.subr.bf16.mxu0 0
        %5999 = vmatpush1.bf16.xpose.msra.mxu0 0
        %6000 = vmatprep.subr.bf16.mxu0 0
        %6001 = vmatpush1.bf16.xpose.msra.mxu0 0
        %6002 = vmatprep.subr.bf16.mxu0 0
        %6003 = vmatpush1.bf16.xpose.msra.mxu0 0
        %6004 = vmatprep.subr.bf16.mxu0 0
        %6005 = vmatpush1.bf16.xpose.msra.mxu0 0
        %6006 = vmatprep.mubr.bf16.mxu0 0
        %6007 = vmatmul.mubr.bf16.gmra.mrb[0].mxu0 %v5969
        %v6008 = vpop.f32.mrb[0].mxu0
        %v6009 = vadd.f32 0.0, %v6008
        %v6010 = vpop.f32.mrb[0].mxu0
        %v6011 = vpop.f32.mrb[0].mxu0
        %v6012 = vadd.f32 0.0, %v6011
        %v6013 = vpop.f32.mrb[0].mxu0
        %6014 = vdwg.mxu0
        %v6016 = vsel %vm2295, %v4545, 0
        %v6019 = vsel %vm2295, %v5138, 0
        %6021 = vmatprep.subr.bf16.mxu0 0
        %6022 = vmatpush1.bf16.xpose.msra.mxu0 %v6019
        %6023 = vmatprep.subr.bf16.mxu0 0
        %6024 = vmatpush1.bf16.xpose.msra.mxu0 0
        %6025 = vmatprep.subr.bf16.mxu0 0
        %6026 = vmatpush1.bf16.xpose.msra.mxu0 0
        %6027 = vmatprep.subr.bf16.mxu0 0
        %6028 = vmatpush1.bf16.xpose.msra.mxu0 0
        %6029 = vmatprep.subr.bf16.mxu0 0
        %6030 = vmatpush1.bf16.xpose.msra.mxu0 0
        %6031 = vmatprep.subr.bf16.mxu0 0
        %6032 = vmatpush1.bf16.xpose.msra.mxu0 0
        %6033 = vmatprep.subr.bf16.mxu0 0
        %6034 = vmatpush1.bf16.xpose.msra.mxu0 0
        %6035 = vmatprep.subr.bf16.mxu0 0
        %6036 = vmatpush1.bf16.xpose.msra.mxu0 0
        %6037 = vmatprep.subr.bf16.mxu0 0
        %6038 = vmatpush1.bf16.xpose.msra.mxu0 0
        %6039 = vmatprep.subr.bf16.mxu0 0
        %6040 = vmatpush1.bf16.xpose.msra.mxu0 0
        %6041 = vmatprep.subr.bf16.mxu0 0
        %6042 = vmatpush1.bf16.xpose.msra.mxu0 0
        %6043 = vmatprep.subr.bf16.mxu0 0
        %6044 = vmatpush1.bf16.xpose.msra.mxu0 0
        %6045 = vmatprep.subr.bf16.mxu0 0
        %6046 = vmatpush1.bf16.xpose.msra.mxu0 0
        %6047 = vmatprep.subr.bf16.mxu0 0
        %6048 = vmatpush1.bf16.xpose.msra.mxu0 0
        %6049 = vmatprep.subr.bf16.mxu0 0
        %6050 = vmatpush1.bf16.xpose.msra.mxu0 0
        %6051 = vmatprep.subr.bf16.mxu0 0
        %6052 = vmatpush1.bf16.xpose.msra.mxu0 0
        %6053 = vmatprep.mubr.bf16.mxu0 0
        %6054 = vmatmul.mubr.bf16.gmra.mrb[0].mxu0 %v6016
        %v6055 = vpop.f32.mrb[0].mxu0
        %v6056 = vadd.f32 0.0, %v6055
        %v6057 = vpop.f32.mrb[0].mxu0
        %v6058 = vpop.f32.mrb[0].mxu0
        %v6059 = vadd.f32 0.0, %v6058
        %v6060 = vpop.f32.mrb[0].mxu0
        %6061 = vdwg.mxu0
        %v6063 = vsel %vm2295, %v4546, 0
        %v6066 = vsel %vm2295, %v5139, 0
        %6068 = vmatprep.subr.bf16.mxu0 0
        %6069 = vmatpush1.bf16.xpose.msra.mxu0 %v6066
        %6070 = vmatprep.subr.bf16.mxu0 0
        %6071 = vmatpush1.bf16.xpose.msra.mxu0 0
        %6072 = vmatprep.subr.bf16.mxu0 0
        %6073 = vmatpush1.bf16.xpose.msra.mxu0 0
        %6074 = vmatprep.subr.bf16.mxu0 0
        %6075 = vmatpush1.bf16.xpose.msra.mxu0 0
        %6076 = vmatprep.subr.bf16.mxu0 0
        %6077 = vmatpush1.bf16.xpose.msra.mxu0 0
        %6078 = vmatprep.subr.bf16.mxu0 0
        %6079 = vmatpush1.bf16.xpose.msra.mxu0 0
        %6080 = vmatprep.subr.bf16.mxu0 0
        %6081 = vmatpush1.bf16.xpose.msra.mxu0 0
        %6082 = vmatprep.subr.bf16.mxu0 0
        %6083 = vmatpush1.bf16.xpose.msra.mxu0 0
        %6084 = vmatprep.subr.bf16.mxu0 0
        %6085 = vmatpush1.bf16.xpose.msra.mxu0 0
        %6086 = vmatprep.subr.bf16.mxu0 0
        %6087 = vmatpush1.bf16.xpose.msra.mxu0 0
        %6088 = vmatprep.subr.bf16.mxu0 0
        %6089 = vmatpush1.bf16.xpose.msra.mxu0 0
        %6090 = vmatprep.subr.bf16.mxu0 0
        %6091 = vmatpush1.bf16.xpose.msra.mxu0 0
        %6092 = vmatprep.subr.bf16.mxu0 0
        %6093 = vmatpush1.bf16.xpose.msra.mxu0 0
        %6094 = vmatprep.subr.bf16.mxu0 0
        %6095 = vmatpush1.bf16.xpose.msra.mxu0 0
        %6096 = vmatprep.subr.bf16.mxu0 0
        %6097 = vmatpush1.bf16.xpose.msra.mxu0 0
        %6098 = vmatprep.subr.bf16.mxu0 0
        %6099 = vmatpush1.bf16.xpose.msra.mxu0 0
        %6100 = vmatprep.mubr.bf16.mxu0 0
        %6101 = vmatmul.mubr.bf16.gmra.mrb[0].mxu0 %v6063
        %v6102 = vpop.f32.mrb[0].mxu0
        %v6103 = vadd.f32 0.0, %v6102
        %v6104 = vpop.f32.mrb[0].mxu0
        %v6105 = vpop.f32.mrb[0].mxu0
        %v6106 = vadd.f32 0.0, %v6105
        %v6107 = vpop.f32.mrb[0].mxu0
        %6108 = vdwg.mxu0
        %v6109 = vsel %vm2672, %v5774, -inf
        %6110 = vmax.xlane.f32.xlu0 %v6109
        %v6111 = vpop.xlane.xlu0 %6110
        %v6112 = vsel %vm2672, %v5777, -inf
        %6113 = vmax.xlane.f32.xlu0 %v6112
        %v6114 = vpop.xlane.xlu0 %6113
        %v6115 = vsel %vm2672, %v5821, -inf
        %6116 = vmax.xlane.f32.xlu0 %v6115
        %v6117 = vpop.xlane.xlu0 %6116
        %v6118 = vsel %vm2672, %v5824, -inf
        %6119 = vmax.xlane.f32.xlu0 %v6118
        %v6120 = vpop.xlane.xlu0 %6119
        %v6121 = vsel %vm2672, %v5868, -inf
        %6122 = vmax.xlane.f32.xlu0 %v6121
        %v6123 = vpop.xlane.xlu0 %6122
        %v6124 = vsel %vm2672, %v5871, -inf
        %6125 = vmax.xlane.f32.xlu0 %v6124
        %v6126 = vpop.xlane.xlu0 %6125
        %v6127 = vsel %vm2672, %v5915, -inf
        %6128 = vmax.xlane.f32.xlu0 %v6127
        %v6129 = vpop.xlane.xlu0 %6128
        %v6130 = vsel %vm2672, %v5918, -inf
        %6131 = vmax.xlane.f32.xlu0 %v6130
        %v6132 = vpop.xlane.xlu0 %6131
        %v6133 = vsel %vm2672, %v5962, -inf
        %6134 = vmax.xlane.f32.xlu0 %v6133
        %v6135 = vpop.xlane.xlu0 %6134
        %v6136 = vsel %vm2672, %v5965, -inf
        %6137 = vmax.xlane.f32.xlu0 %v6136
        %v6138 = vpop.xlane.xlu0 %6137
        %v6139 = vsel %vm2672, %v6009, -inf
        %6140 = vmax.xlane.f32.xlu0 %v6139
        %v6141 = vpop.xlane.xlu0 %6140
        %v6142 = vsel %vm2672, %v6012, -inf
        %6143 = vmax.xlane.f32.xlu0 %v6142
        %v6144 = vpop.xlane.xlu0 %6143
        %v6145 = vsel %vm2672, %v6056, -inf
        %6146 = vmax.xlane.f32.xlu0 %v6145
        %v6147 = vpop.xlane.xlu0 %6146
        %v6148 = vsel %vm2672, %v6059, -inf
        %6149 = vmax.xlane.f32.xlu0 %v6148
        %v6150 = vpop.xlane.xlu0 %6149
        %v6151 = vsel %vm2672, %v6103, -inf
        %6152 = vmax.xlane.f32.xlu0 %v6151
        %v6153 = vpop.xlane.xlu0 %6152
        %v6154 = vsel %vm2672, %v6106, -inf
        %6155 = vmax.xlane.f32.xlu0 %v6154
        %v6156 = vpop.xlane.xlu0 %6155
        %v6157 = vsub.f32 %v5774, %v6111
        %v6158 = vsub.f32 %v5777, %v6114
        %v6159 = vsub.f32 %v5821, %v6117
        %v6160 = vsub.f32 %v5824, %v6120
        %v6161 = vsub.f32 %v5868, %v6123
        %v6162 = vsub.f32 %v5871, %v6126
        %v6163 = vsub.f32 %v5915, %v6129
        %v6164 = vsub.f32 %v5918, %v6132
        %v6165 = vsub.f32 %v5962, %v6135
        %v6166 = vsub.f32 %v5965, %v6138
        %v6167 = vsub.f32 %v6009, %v6141
        %v6168 = vsub.f32 %v6012, %v6144
        %v6169 = vsub.f32 %v6056, %v6147
        %v6170 = vsub.f32 %v6059, %v6150
        %v6171 = vsub.f32 %v6103, %v6153
        %v6172 = vsub.f32 %v6106, %v6156
        %v6173 = vmul.f32 %v6157, 1.442695
        %v6174 = vpow.pop %v6173
        %v6175 = vmul.f32 %v6158, 1.442695
        %v6176 = vpow.pop %v6175
        %v6177 = vmul.f32 %v6159, 1.442695
        %v6178 = vpow.pop %v6177
        %v6179 = vmul.f32 %v6160, 1.442695
        %v6180 = vpow.pop %v6179
        %v6181 = vmul.f32 %v6161, 1.442695
        %v6182 = vpow.pop %v6181
        %v6183 = vmul.f32 %v6162, 1.442695
        %v6184 = vpow.pop %v6183
        %v6185 = vmul.f32 %v6163, 1.442695
        %v6186 = vpow.pop %v6185
        %v6187 = vmul.f32 %v6164, 1.442695
        %v6188 = vpow.pop %v6187
        %v6189 = vmul.f32 %v6165, 1.442695
        %v6190 = vpow.pop %v6189
        %v6191 = vmul.f32 %v6166, 1.442695
        %v6192 = vpow.pop %v6191
        %v6193 = vmul.f32 %v6167, 1.442695
        %v6194 = vpow.pop %v6193
        %v6195 = vmul.f32 %v6168, 1.442695
        %v6196 = vpow.pop %v6195
        %v6197 = vmul.f32 %v6169, 1.442695
        %v6198 = vpow.pop %v6197
        %v6199 = vmul.f32 %v6170, 1.442695
        %v6200 = vpow.pop %v6199
        %v6201 = vmul.f32 %v6171, 1.442695
        %v6202 = vpow.pop %v6201
        %v6203 = vmul.f32 %v6172, 1.442695
        %v6204 = vpow.pop %v6203
        %v6205 = vsel %vm2672, %v6174, 0.0
        %6206 = vadd.xlane.f32.xlu0 %v6205
        %v6207 = vpop.xlane.xlu0 %6206
        %v6208 = vsel %vm2672, %v6176, 0.0
        %6209 = vadd.xlane.f32.xlu0 %v6208
        %v6210 = vpop.xlane.xlu0 %6209
        %v6211 = vsel %vm2672, %v6178, 0.0
        %6212 = vadd.xlane.f32.xlu0 %v6211
        %v6213 = vpop.xlane.xlu0 %6212
        %v6214 = vsel %vm2672, %v6180, 0.0
        %6215 = vadd.xlane.f32.xlu0 %v6214
        %v6216 = vpop.xlane.xlu0 %6215
        %v6217 = vsel %vm2672, %v6182, 0.0
        %6218 = vadd.xlane.f32.xlu0 %v6217
        %v6219 = vpop.xlane.xlu0 %6218
        %v6220 = vsel %vm2672, %v6184, 0.0
        %6221 = vadd.xlane.f32.xlu0 %v6220
        %v6222 = vpop.xlane.xlu0 %6221
        %v6223 = vsel %vm2672, %v6186, 0.0
        %6224 = vadd.xlane.f32.xlu0 %v6223
        %v6225 = vpop.xlane.xlu0 %6224
        %v6226 = vsel %vm2672, %v6188, 0.0
        %6227 = vadd.xlane.f32.xlu0 %v6226
        %v6228 = vpop.xlane.xlu0 %6227
        %v6229 = vsel %vm2672, %v6190, 0.0
        %6230 = vadd.xlane.f32.xlu0 %v6229
        %v6231 = vpop.xlane.xlu0 %6230
        %v6232 = vsel %vm2672, %v6192, 0.0
        %6233 = vadd.xlane.f32.xlu0 %v6232
        %v6234 = vpop.xlane.xlu0 %6233
        %v6235 = vsel %vm2672, %v6194, 0.0
        %6236 = vadd.xlane.f32.xlu0 %v6235
        %v6237 = vpop.xlane.xlu0 %6236
        %v6238 = vsel %vm2672, %v6196, 0.0
        %6239 = vadd.xlane.f32.xlu0 %v6238
        %v6240 = vpop.xlane.xlu0 %6239
        %v6241 = vsel %vm2672, %v6198, 0.0
        %6242 = vadd.xlane.f32.xlu0 %v6241
        %v6243 = vpop.xlane.xlu0 %6242
        %v6244 = vsel %vm2672, %v6200, 0.0
        %6245 = vadd.xlane.f32.xlu0 %v6244
        %v6246 = vpop.xlane.xlu0 %6245
        %v6247 = vsel %vm2672, %v6202, 0.0
        %6248 = vadd.xlane.f32.xlu0 %v6247
        %v6249 = vpop.xlane.xlu0 %6248
        %v6250 = vsel %vm2672, %v6204, 0.0
        %6251 = vadd.xlane.f32.xlu0 %v6250
        %v6252 = vpop.xlane.xlu0 %6251
        %v6253 = vrcp.pop %v6207
        %v6254 = vmul.f32 %v6174, %v6253
        %v6255 = vrcp.pop %v6210
        %v6256 = vmul.f32 %v6176, %v6255
        %v6257 = vrcp.pop %v6213
        %v6258 = vmul.f32 %v6178, %v6257
        %v6259 = vrcp.pop %v6216
        %v6260 = vmul.f32 %v6180, %v6259
        %v6261 = vrcp.pop %v6219
        %v6262 = vmul.f32 %v6182, %v6261
        %v6263 = vrcp.pop %v6222
        %v6264 = vmul.f32 %v6184, %v6263
        %v6265 = vrcp.pop %v6225
        %v6266 = vmul.f32 %v6186, %v6265
        %v6267 = vrcp.pop %v6228
        %v6268 = vmul.f32 %v6188, %v6267
        %v6269 = vrcp.pop %v6231
        %v6270 = vmul.f32 %v6190, %v6269
        %v6271 = vrcp.pop %v6234
        %v6272 = vmul.f32 %v6192, %v6271
        %v6273 = vrcp.pop %v6237
        %v6274 = vmul.f32 %v6194, %v6273
        %v6275 = vrcp.pop %v6240
        %v6276 = vmul.f32 %v6196, %v6275
        %v6277 = vrcp.pop %v6243
        %v6278 = vmul.f32 %v6198, %v6277
        %v6279 = vrcp.pop %v6246
        %v6280 = vmul.f32 %v6200, %v6279
        %v6281 = vrcp.pop %v6249
        %v6282 = vmul.f32 %v6202, %v6281
        %v6283 = vrcp.pop %v6252
        %v6284 = vmul.f32 %v6204, %v6283
        %v6285 = vpack.c.bf16 %v6256, %v6254
        %v6286 = vpack.c.bf16 %v6260, %v6258
        %v6287 = vpack.c.bf16 %v6264, %v6262
        %v6288 = vpack.c.bf16 %v6268, %v6266
        %v6289 = vpack.c.bf16 %v6272, %v6270
        %v6290 = vpack.c.bf16 %v6276, %v6274
        %v6291 = vpack.c.bf16 %v6280, %v6278
        %v6292 = vpack.c.bf16 %v6284, %v6282
        %v6294 = vsel %vm2672, %v6285, 0
        %6296 = vmatprep.subr.bf16.mxu0 0
        %6297 = vmatpush1.bf16.msra.mxu0 %v5725
        %6298 = vmatprep.subr.bf16.mxu0 0
        %6299 = vmatpush1.bf16.msra.mxu0 0
        %6300 = vmatprep.subr.bf16.mxu0 0
        %6301 = vmatpush1.bf16.msra.mxu0 0
        %6302 = vmatprep.subr.bf16.mxu0 0
        %6303 = vmatpush1.bf16.msra.mxu0 0
        %6304 = vmatprep.subr.bf16.mxu0 0
        %6305 = vmatpush1.bf16.msra.mxu0 0
        %6306 = vmatprep.subr.bf16.mxu0 0
        %6307 = vmatpush1.bf16.msra.mxu0 0
        %6308 = vmatprep.subr.bf16.mxu0 0
        %6309 = vmatpush1.bf16.msra.mxu0 0
        %6310 = vmatprep.subr.bf16.mxu0 0
        %6311 = vmatpush1.bf16.msra.mxu0 0
        %6312 = vmatprep.subr.bf16.mxu0 0
        %6313 = vmatpush1.bf16.msra.mxu0 0
        %6314 = vmatprep.subr.bf16.mxu0 0
        %6315 = vmatpush1.bf16.msra.mxu0 0
        %6316 = vmatprep.subr.bf16.mxu0 0
        %6317 = vmatpush1.bf16.msra.mxu0 0
        %6318 = vmatprep.subr.bf16.mxu0 0
        %6319 = vmatpush1.bf16.msra.mxu0 0
        %6320 = vmatprep.subr.bf16.mxu0 0
        %6321 = vmatpush1.bf16.msra.mxu0 0
        %6322 = vmatprep.subr.bf16.mxu0 0
        %6323 = vmatpush1.bf16.msra.mxu0 0
        %6324 = vmatprep.subr.bf16.mxu0 0
        %6325 = vmatpush1.bf16.msra.mxu0 0
        %6326 = vmatprep.subr.bf16.mxu0 0
        %6327 = vmatpush1.bf16.msra.mxu0 0
        %6328 = vmatprep.mubr.bf16.mxu0 0
        %6329 = vmatmul.mubr.bf16.gmra.mrb[0].mxu0 %v6294
        %v6330 = vpop.f32.mrb[0].mxu0
        %v6331 = vadd.f32 0.0, %v6330
        %v6332 = vpop.f32.mrb[0].mxu0
        %v6333 = vpop.f32.mrb[0].mxu0
        %v6334 = vadd.f32 0.0, %v6333
        %v6335 = vpop.f32.mrb[0].mxu0
        %6336 = vdwg.mxu0
        %v6338 = vsel %vm2672, %v6286, 0
        %6340 = vmatprep.subr.bf16.mxu0 0
        %6341 = vmatpush1.bf16.msra.mxu0 %v5726
        %6342 = vmatprep.subr.bf16.mxu0 0
        %6343 = vmatpush1.bf16.msra.mxu0 0
        %6344 = vmatprep.subr.bf16.mxu0 0
        %6345 = vmatpush1.bf16.msra.mxu0 0
        %6346 = vmatprep.subr.bf16.mxu0 0
        %6347 = vmatpush1.bf16.msra.mxu0 0
        %6348 = vmatprep.subr.bf16.mxu0 0
        %6349 = vmatpush1.bf16.msra.mxu0 0
        %6350 = vmatprep.subr.bf16.mxu0 0
        %6351 = vmatpush1.bf16.msra.mxu0 0
        %6352 = vmatprep.subr.bf16.mxu0 0
        %6353 = vmatpush1.bf16.msra.mxu0 0
        %6354 = vmatprep.subr.bf16.mxu0 0
        %6355 = vmatpush1.bf16.msra.mxu0 0
        %6356 = vmatprep.subr.bf16.mxu0 0
        %6357 = vmatpush1.bf16.msra.mxu0 0
        %6358 = vmatprep.subr.bf16.mxu0 0
        %6359 = vmatpush1.bf16.msra.mxu0 0
        %6360 = vmatprep.subr.bf16.mxu0 0
        %6361 = vmatpush1.bf16.msra.mxu0 0
        %6362 = vmatprep.subr.bf16.mxu0 0
        %6363 = vmatpush1.bf16.msra.mxu0 0
        %6364 = vmatprep.subr.bf16.mxu0 0
        %6365 = vmatpush1.bf16.msra.mxu0 0
        %6366 = vmatprep.subr.bf16.mxu0 0
        %6367 = vmatpush1.bf16.msra.mxu0 0
        %6368 = vmatprep.subr.bf16.mxu0 0
        %6369 = vmatpush1.bf16.msra.mxu0 0
        %6370 = vmatprep.subr.bf16.mxu0 0
        %6371 = vmatpush1.bf16.msra.mxu0 0
        %6372 = vmatprep.mubr.bf16.mxu0 0
        %6373 = vmatmul.mubr.bf16.gmra.mrb[0].mxu0 %v6338
        %v6374 = vpop.f32.mrb[0].mxu0
        %v6375 = vadd.f32 0.0, %v6374
        %v6376 = vpop.f32.mrb[0].mxu0
        %v6377 = vpop.f32.mrb[0].mxu0
        %v6378 = vadd.f32 0.0, %v6377
        %v6379 = vpop.f32.mrb[0].mxu0
        %6380 = vdwg.mxu0
        %v6382 = vsel %vm2672, %v6287, 0
        %6384 = vmatprep.subr.bf16.mxu0 0
        %6385 = vmatpush1.bf16.msra.mxu0 %v5727
        %6386 = vmatprep.subr.bf16.mxu0 0
        %6387 = vmatpush1.bf16.msra.mxu0 0
        %6388 = vmatprep.subr.bf16.mxu0 0
        %6389 = vmatpush1.bf16.msra.mxu0 0
        %6390 = vmatprep.subr.bf16.mxu0 0
        %6391 = vmatpush1.bf16.msra.mxu0 0
        %6392 = vmatprep.subr.bf16.mxu0 0
        %6393 = vmatpush1.bf16.msra.mxu0 0
        %6394 = vmatprep.subr.bf16.mxu0 0
        %6395 = vmatpush1.bf16.msra.mxu0 0
        %6396 = vmatprep.subr.bf16.mxu0 0
        %6397 = vmatpush1.bf16.msra.mxu0 0
        %6398 = vmatprep.subr.bf16.mxu0 0
        %6399 = vmatpush1.bf16.msra.mxu0 0
        %6400 = vmatprep.subr.bf16.mxu0 0
        %6401 = vmatpush1.bf16.msra.mxu0 0
        %6402 = vmatprep.subr.bf16.mxu0 0
        %6403 = vmatpush1.bf16.msra.mxu0 0
        %6404 = vmatprep.subr.bf16.mxu0 0
        %6405 = vmatpush1.bf16.msra.mxu0 0
        %6406 = vmatprep.subr.bf16.mxu0 0
        %6407 = vmatpush1.bf16.msra.mxu0 0
        %6408 = vmatprep.subr.bf16.mxu0 0
        %6409 = vmatpush1.bf16.msra.mxu0 0
        %6410 = vmatprep.subr.bf16.mxu0 0
        %6411 = vmatpush1.bf16.msra.mxu0 0
        %6412 = vmatprep.subr.bf16.mxu0 0
        %6413 = vmatpush1.bf16.msra.mxu0 0
        %6414 = vmatprep.subr.bf16.mxu0 0
        %6415 = vmatpush1.bf16.msra.mxu0 0
        %6416 = vmatprep.mubr.bf16.mxu0 0
        %6417 = vmatmul.mubr.bf16.gmra.mrb[0].mxu0 %v6382
        %v6418 = vpop.f32.mrb[0].mxu0
        %v6419 = vadd.f32 0.0, %v6418
        %v6420 = vpop.f32.mrb[0].mxu0
        %v6421 = vpop.f32.mrb[0].mxu0
        %v6422 = vadd.f32 0.0, %v6421
        %v6423 = vpop.f32.mrb[0].mxu0
        %6424 = vdwg.mxu0
        %v6426 = vsel %vm2672, %v6288, 0
        %6428 = vmatprep.subr.bf16.mxu0 0
        %6429 = vmatpush1.bf16.msra.mxu0 %v5728
        %6430 = vmatprep.subr.bf16.mxu0 0
        %6431 = vmatpush1.bf16.msra.mxu0 0
        %6432 = vmatprep.subr.bf16.mxu0 0
        %6433 = vmatpush1.bf16.msra.mxu0 0
        %6434 = vmatprep.subr.bf16.mxu0 0
        %6435 = vmatpush1.bf16.msra.mxu0 0
        %6436 = vmatprep.subr.bf16.mxu0 0
        %6437 = vmatpush1.bf16.msra.mxu0 0
        %6438 = vmatprep.subr.bf16.mxu0 0
        %6439 = vmatpush1.bf16.msra.mxu0 0
        %6440 = vmatprep.subr.bf16.mxu0 0
        %6441 = vmatpush1.bf16.msra.mxu0 0
        %6442 = vmatprep.subr.bf16.mxu0 0
        %6443 = vmatpush1.bf16.msra.mxu0 0
        %6444 = vmatprep.subr.bf16.mxu0 0
        %6445 = vmatpush1.bf16.msra.mxu0 0
        %6446 = vmatprep.subr.bf16.mxu0 0
        %6447 = vmatpush1.bf16.msra.mxu0 0
        %6448 = vmatprep.subr.bf16.mxu0 0
        %6449 = vmatpush1.bf16.msra.mxu0 0
        %6450 = vmatprep.subr.bf16.mxu0 0
        %6451 = vmatpush1.bf16.msra.mxu0 0
        %6452 = vmatprep.subr.bf16.mxu0 0
        %6453 = vmatpush1.bf16.msra.mxu0 0
        %6454 = vmatprep.subr.bf16.mxu0 0
        %6455 = vmatpush1.bf16.msra.mxu0 0
        %6456 = vmatprep.subr.bf16.mxu0 0
        %6457 = vmatpush1.bf16.msra.mxu0 0
        %6458 = vmatprep.subr.bf16.mxu0 0
        %6459 = vmatpush1.bf16.msra.mxu0 0
        %6460 = vmatprep.mubr.bf16.mxu0 0
        %6461 = vmatmul.mubr.bf16.gmra.mrb[0].mxu0 %v6426
        %v6462 = vpop.f32.mrb[0].mxu0
        %v6463 = vadd.f32 0.0, %v6462
        %v6464 = vpop.f32.mrb[0].mxu0
        %v6465 = vpop.f32.mrb[0].mxu0
        %v6466 = vadd.f32 0.0, %v6465
        %v6467 = vpop.f32.mrb[0].mxu0
        %6468 = vdwg.mxu0
        %v6470 = vsel %vm2672, %v6289, 0
        %6472 = vmatprep.subr.bf16.mxu0 0
        %6473 = vmatpush1.bf16.msra.mxu0 %v5729
        %6474 = vmatprep.subr.bf16.mxu0 0
        %6475 = vmatpush1.bf16.msra.mxu0 0
        %6476 = vmatprep.subr.bf16.mxu0 0
        %6477 = vmatpush1.bf16.msra.mxu0 0
        %6478 = vmatprep.subr.bf16.mxu0 0
        %6479 = vmatpush1.bf16.msra.mxu0 0
        %6480 = vmatprep.subr.bf16.mxu0 0
        %6481 = vmatpush1.bf16.msra.mxu0 0
        %6482 = vmatprep.subr.bf16.mxu0 0
        %6483 = vmatpush1.bf16.msra.mxu0 0
        %6484 = vmatprep.subr.bf16.mxu0 0
        %6485 = vmatpush1.bf16.msra.mxu0 0
        %6486 = vmatprep.subr.bf16.mxu0 0
        %6487 = vmatpush1.bf16.msra.mxu0 0
        %6488 = vmatprep.subr.bf16.mxu0 0
        %6489 = vmatpush1.bf16.msra.mxu0 0
        %6490 = vmatprep.subr.bf16.mxu0 0
        %6491 = vmatpush1.bf16.msra.mxu0 0
        %6492 = vmatprep.subr.bf16.mxu0 0
        %6493 = vmatpush1.bf16.msra.mxu0 0
        %6494 = vmatprep.subr.bf16.mxu0 0
        %6495 = vmatpush1.bf16.msra.mxu0 0
        %6496 = vmatprep.subr.bf16.mxu0 0
        %6497 = vmatpush1.bf16.msra.mxu0 0
        %6498 = vmatprep.subr.bf16.mxu0 0
        %6499 = vmatpush1.bf16.msra.mxu0 0
        %6500 = vmatprep.subr.bf16.mxu0 0
        %6501 = vmatpush1.bf16.msra.mxu0 0
        %6502 = vmatprep.subr.bf16.mxu0 0
        %6503 = vmatpush1.bf16.msra.mxu0 0
        %6504 = vmatprep.mubr.bf16.mxu0 0
        %6505 = vmatmul.mubr.bf16.gmra.mrb[0].mxu0 %v6470
        %v6506 = vpop.f32.mrb[0].mxu0
        %v6507 = vadd.f32 0.0, %v6506
        %v6508 = vpop.f32.mrb[0].mxu0
        %v6509 = vpop.f32.mrb[0].mxu0
        %v6510 = vadd.f32 0.0, %v6509
        %v6511 = vpop.f32.mrb[0].mxu0
        %6512 = vdwg.mxu0
        %v6514 = vsel %vm2672, %v6290, 0
        %6516 = vmatprep.subr.bf16.mxu0 0
        %6517 = vmatpush1.bf16.msra.mxu0 %v5730
        %6518 = vmatprep.subr.bf16.mxu0 0
        %6519 = vmatpush1.bf16.msra.mxu0 0
        %6520 = vmatprep.subr.bf16.mxu0 0
        %6521 = vmatpush1.bf16.msra.mxu0 0
        %6522 = vmatprep.subr.bf16.mxu0 0
        %6523 = vmatpush1.bf16.msra.mxu0 0
        %6524 = vmatprep.subr.bf16.mxu0 0
        %6525 = vmatpush1.bf16.msra.mxu0 0
        %6526 = vmatprep.subr.bf16.mxu0 0
        %6527 = vmatpush1.bf16.msra.mxu0 0
        %6528 = vmatprep.subr.bf16.mxu0 0
        %6529 = vmatpush1.bf16.msra.mxu0 0
        %6530 = vmatprep.subr.bf16.mxu0 0
        %6531 = vmatpush1.bf16.msra.mxu0 0
        %6532 = vmatprep.subr.bf16.mxu0 0
        %6533 = vmatpush1.bf16.msra.mxu0 0
        %6534 = vmatprep.subr.bf16.mxu0 0
        %6535 = vmatpush1.bf16.msra.mxu0 0
        %6536 = vmatprep.subr.bf16.mxu0 0
        %6537 = vmatpush1.bf16.msra.mxu0 0
        %6538 = vmatprep.subr.bf16.mxu0 0
        %6539 = vmatpush1.bf16.msra.mxu0 0
        %6540 = vmatprep.subr.bf16.mxu0 0
        %6541 = vmatpush1.bf16.msra.mxu0 0
        %6542 = vmatprep.subr.bf16.mxu0 0
        %6543 = vmatpush1.bf16.msra.mxu0 0
        %6544 = vmatprep.subr.bf16.mxu0 0
        %6545 = vmatpush1.bf16.msra.mxu0 0
        %6546 = vmatprep.subr.bf16.mxu0 0
        %6547 = vmatpush1.bf16.msra.mxu0 0
        %6548 = vmatprep.mubr.bf16.mxu0 0
        %6549 = vmatmul.mubr.bf16.gmra.mrb[0].mxu0 %v6514
        %v6550 = vpop.f32.mrb[0].mxu0
        %v6551 = vadd.f32 0.0, %v6550
        %v6552 = vpop.f32.mrb[0].mxu0
        %v6553 = vpop.f32.mrb[0].mxu0
        %v6554 = vadd.f32 0.0, %v6553
        %v6555 = vpop.f32.mrb[0].mxu0
        %6556 = vdwg.mxu0
        %v6558 = vsel %vm2672, %v6291, 0
        %6560 = vmatprep.subr.bf16.mxu0 0
        %6561 = vmatpush1.bf16.msra.mxu0 %v5731
        %6562 = vmatprep.subr.bf16.mxu0 0
        %6563 = vmatpush1.bf16.msra.mxu0 0
        %6564 = vmatprep.subr.bf16.mxu0 0
        %6565 = vmatpush1.bf16.msra.mxu0 0
        %6566 = vmatprep.subr.bf16.mxu0 0
        %6567 = vmatpush1.bf16.msra.mxu0 0
        %6568 = vmatprep.subr.bf16.mxu0 0
        %6569 = vmatpush1.bf16.msra.mxu0 0
        %6570 = vmatprep.subr.bf16.mxu0 0
        %6571 = vmatpush1.bf16.msra.mxu0 0
        %6572 = vmatprep.subr.bf16.mxu0 0
        %6573 = vmatpush1.bf16.msra.mxu0 0
        %6574 = vmatprep.subr.bf16.mxu0 0
        %6575 = vmatpush1.bf16.msra.mxu0 0
        %6576 = vmatprep.subr.bf16.mxu0 0
        %6577 = vmatpush1.bf16.msra.mxu0 0
        %6578 = vmatprep.subr.bf16.mxu0 0
        %6579 = vmatpush1.bf16.msra.mxu0 0
        %6580 = vmatprep.subr.bf16.mxu0 0
        %6581 = vmatpush1.bf16.msra.mxu0 0
        %6582 = vmatprep.subr.bf16.mxu0 0
        %6583 = vmatpush1.bf16.msra.mxu0 0
        %6584 = vmatprep.subr.bf16.mxu0 0
        %6585 = vmatpush1.bf16.msra.mxu0 0
        %6586 = vmatprep.subr.bf16.mxu0 0
        %6587 = vmatpush1.bf16.msra.mxu0 0
        %6588 = vmatprep.subr.bf16.mxu0 0
        %6589 = vmatpush1.bf16.msra.mxu0 0
        %6590 = vmatprep.subr.bf16.mxu0 0
        %6591 = vmatpush1.bf16.msra.mxu0 0
        %6592 = vmatprep.mubr.bf16.mxu0 0
        %6593 = vmatmul.mubr.bf16.gmra.mrb[0].mxu0 %v6558
        %v6594 = vpop.f32.mrb[0].mxu0
        %v6595 = vadd.f32 0.0, %v6594
        %v6596 = vpop.f32.mrb[0].mxu0
        %v6597 = vpop.f32.mrb[0].mxu0
        %v6598 = vadd.f32 0.0, %v6597
        %v6599 = vpop.f32.mrb[0].mxu0
        %6600 = vdwg.mxu0
        %v6602 = vsel %vm2672, %v6292, 0
        %6604 = vmatprep.subr.bf16.mxu0 0
        %6605 = vmatpush1.bf16.msra.mxu0 %v5732
        %6606 = vmatprep.subr.bf16.mxu0 0
        %6607 = vmatpush1.bf16.msra.mxu0 0
        %6608 = vmatprep.subr.bf16.mxu0 0
        %6609 = vmatpush1.bf16.msra.mxu0 0
        %6610 = vmatprep.subr.bf16.mxu0 0
        %6611 = vmatpush1.bf16.msra.mxu0 0
        %6612 = vmatprep.subr.bf16.mxu0 0
        %6613 = vmatpush1.bf16.msra.mxu0 0
        %6614 = vmatprep.subr.bf16.mxu0 0
        %6615 = vmatpush1.bf16.msra.mxu0 0
        %6616 = vmatprep.subr.bf16.mxu0 0
        %6617 = vmatpush1.bf16.msra.mxu0 0
        %6618 = vmatprep.subr.bf16.mxu0 0
        %6619 = vmatpush1.bf16.msra.mxu0 0
        %6620 = vmatprep.subr.bf16.mxu0 0
        %6621 = vmatpush1.bf16.msra.mxu0 0
        %6622 = vmatprep.subr.bf16.mxu0 0
        %6623 = vmatpush1.bf16.msra.mxu0 0
        %6624 = vmatprep.subr.bf16.mxu0 0
        %6625 = vmatpush1.bf16.msra.mxu0 0
        %6626 = vmatprep.subr.bf16.mxu0 0
        %6627 = vmatpush1.bf16.msra.mxu0 0
        %6628 = vmatprep.subr.bf16.mxu0 0
        %6629 = vmatpush1.bf16.msra.mxu0 0
        %6630 = vmatprep.subr.bf16.mxu0 0
        %6631 = vmatpush1.bf16.msra.mxu0 0
        %6632 = vmatprep.subr.bf16.mxu0 0
        %6633 = vmatpush1.bf16.msra.mxu0 0
        %6634 = vmatprep.subr.bf16.mxu0 0
        %6635 = vmatpush1.bf16.msra.mxu0 0
        %6636 = vmatprep.mubr.bf16.mxu0 0
        %6637 = vmatmul.mubr.bf16.gmra.mrb[0].mxu0 %v6602
        %v6638 = vpop.f32.mrb[0].mxu0
        %v6639 = vadd.f32 0.0, %v6638
        %v6640 = vpop.f32.mrb[0].mxu0
        %v6641 = vpop.f32.mrb[0].mxu0
        %v6642 = vadd.f32 0.0, %v6641
        %v6643 = vpop.f32.mrb[0].mxu0
        %6644 = vdwg.mxu0
        %v6645 = vpack.c.bf16 %v6334, %v6331
        %v6646 = vpack.c.bf16 %v6378, %v6375
        %v6647 = vpack.c.bf16 %v6422, %v6419
        %v6648 = vpack.c.bf16 %v6466, %v6463
        %v6649 = vpack.c.bf16 %v6510, %v6507
        %v6650 = vpack.c.bf16 %v6554, %v6551
        %v6651 = vpack.c.bf16 %v6598, %v6595
        %v6652 = vpack.c.bf16 %v6642, %v6639
        %s6653 = scalar_lea.vmem %s4, 32
        %v6654 = vld [vmem:[%s6653] sm:$0xf]
        %v6655 = vld [vmem:[%s6653 + $0x4] sm:$0xf]
        %v6656 = vld [vmem:[%s6653 + $0x8] sm:$0xf]
        %v6657 = vld [vmem:[%s6653 + $0xc] sm:$0xf]
        %v6658 = vld [vmem:[%s6653 + $0x10] sm:$0xf]
        %v6659 = vld [vmem:[%s6653 + $0x14] sm:$0xf]
        %v6660 = vld [vmem:[%s6653 + $0x18] sm:$0xf]
        %v6661 = vld [vmem:[%s6653 + $0x1c] sm:$0xf]
        %v6663 = vsel %vm2295, %v6645, 0
        %v6666 = vsel %vm3228, %v6654, 0
        %6668 = vmatprep.subr.bf16.mxu0 0
        %6669 = vmatpush1.bf16.msra.mxu0 %v6666
        %6670 = vmatprep.subr.bf16.mxu0 0
        %6671 = vmatpush1.bf16.msra.mxu0 0
        %6672 = vmatprep.subr.bf16.mxu0 0
        %6673 = vmatpush1.bf16.msra.mxu0 0
        %6674 = vmatprep.subr.bf16.mxu0 0
        %6675 = vmatpush1.bf16.msra.mxu0 0
        %6676 = vmatprep.subr.bf16.mxu0 0
        %6677 = vmatpush1.bf16.msra.mxu0 0
        %6678 = vmatprep.subr.bf16.mxu0 0
        %6679 = vmatpush1.bf16.msra.mxu0 0
        %6680 = vmatprep.subr.bf16.mxu0 0
        %6681 = vmatpush1.bf16.msra.mxu0 0
        %6682 = vmatprep.subr.bf16.mxu0 0
        %6683 = vmatpush1.bf16.msra.mxu0 0
        %6684 = vmatprep.subr.bf16.mxu0 0
        %6685 = vmatpush1.bf16.msra.mxu0 0
        %6686 = vmatprep.subr.bf16.mxu0 0
        %6687 = vmatpush1.bf16.msra.mxu0 0
        %6688 = vmatprep.subr.bf16.mxu0 0
        %6689 = vmatpush1.bf16.msra.mxu0 0
        %6690 = vmatprep.subr.bf16.mxu0 0
        %6691 = vmatpush1.bf16.msra.mxu0 0
        %6692 = vmatprep.subr.bf16.mxu0 0
        %6693 = vmatpush1.bf16.msra.mxu0 0
        %6694 = vmatprep.subr.bf16.mxu0 0
        %6695 = vmatpush1.bf16.msra.mxu0 0
        %6696 = vmatprep.subr.bf16.mxu0 0
        %6697 = vmatpush1.bf16.msra.mxu0 0
        %6698 = vmatprep.subr.bf16.mxu0 0
        %6699 = vmatpush1.bf16.msra.mxu0 0
        %6700 = vmatprep.mubr.bf16.mxu0 0
        %6701 = vmatmul.mubr.bf16.gmra.mrb[0].mxu0 %v6663
        %v6702 = vpop.f32.mrb[0].mxu0
        %v6703 = vadd.f32 0.0, %v6702
        %v6704 = vpop.f32.mrb[0].mxu0
        %v6705 = vpop.f32.mrb[0].mxu0
        %v6706 = vadd.f32 0.0, %v6705
        %v6707 = vpop.f32.mrb[0].mxu0
        %6708 = vdwg.mxu0
        %v6710 = vsel %vm2295, %v6646, 0
        %v6713 = vsel %vm3228, %v6655, 0
        %6715 = vmatprep.subr.bf16.mxu0 0
        %6716 = vmatpush1.bf16.msra.mxu0 %v6713
        %6717 = vmatprep.subr.bf16.mxu0 0
        %6718 = vmatpush1.bf16.msra.mxu0 0
        %6719 = vmatprep.subr.bf16.mxu0 0
        %6720 = vmatpush1.bf16.msra.mxu0 0
        %6721 = vmatprep.subr.bf16.mxu0 0
        %6722 = vmatpush1.bf16.msra.mxu0 0
        %6723 = vmatprep.subr.bf16.mxu0 0
        %6724 = vmatpush1.bf16.msra.mxu0 0
        %6725 = vmatprep.subr.bf16.mxu0 0
        %6726 = vmatpush1.bf16.msra.mxu0 0
        %6727 = vmatprep.subr.bf16.mxu0 0
        %6728 = vmatpush1.bf16.msra.mxu0 0
        %6729 = vmatprep.subr.bf16.mxu0 0
        %6730 = vmatpush1.bf16.msra.mxu0 0
        %6731 = vmatprep.subr.bf16.mxu0 0
        %6732 = vmatpush1.bf16.msra.mxu0 0
        %6733 = vmatprep.subr.bf16.mxu0 0
        %6734 = vmatpush1.bf16.msra.mxu0 0
        %6735 = vmatprep.subr.bf16.mxu0 0
        %6736 = vmatpush1.bf16.msra.mxu0 0
        %6737 = vmatprep.subr.bf16.mxu0 0
        %6738 = vmatpush1.bf16.msra.mxu0 0
        %6739 = vmatprep.subr.bf16.mxu0 0
        %6740 = vmatpush1.bf16.msra.mxu0 0
        %6741 = vmatprep.subr.bf16.mxu0 0
        %6742 = vmatpush1.bf16.msra.mxu0 0
        %6743 = vmatprep.subr.bf16.mxu0 0
        %6744 = vmatpush1.bf16.msra.mxu0 0
        %6745 = vmatprep.subr.bf16.mxu0 0
        %6746 = vmatpush1.bf16.msra.mxu0 0
        %6747 = vmatprep.mubr.bf16.mxu0 0
        %6748 = vmatmul.mubr.bf16.gmra.mrb[0].mxu0 %v6710
        %v6749 = vpop.f32.mrb[0].mxu0
        %v6750 = vadd.f32 0.0, %v6749
        %v6751 = vpop.f32.mrb[0].mxu0
        %v6752 = vpop.f32.mrb[0].mxu0
        %v6753 = vadd.f32 0.0, %v6752
        %v6754 = vpop.f32.mrb[0].mxu0
        %6755 = vdwg.mxu0
        %v6757 = vsel %vm2295, %v6647, 0
        %v6760 = vsel %vm3228, %v6656, 0
        %6762 = vmatprep.subr.bf16.mxu0 0
        %6763 = vmatpush1.bf16.msra.mxu0 %v6760
        %6764 = vmatprep.subr.bf16.mxu0 0
        %6765 = vmatpush1.bf16.msra.mxu0 0
        %6766 = vmatprep.subr.bf16.mxu0 0
        %6767 = vmatpush1.bf16.msra.mxu0 0
        %6768 = vmatprep.subr.bf16.mxu0 0
        %6769 = vmatpush1.bf16.msra.mxu0 0
        %6770 = vmatprep.subr.bf16.mxu0 0
        %6771 = vmatpush1.bf16.msra.mxu0 0
        %6772 = vmatprep.subr.bf16.mxu0 0
        %6773 = vmatpush1.bf16.msra.mxu0 0
        %6774 = vmatprep.subr.bf16.mxu0 0
        %6775 = vmatpush1.bf16.msra.mxu0 0
        %6776 = vmatprep.subr.bf16.mxu0 0
        %6777 = vmatpush1.bf16.msra.mxu0 0
        %6778 = vmatprep.subr.bf16.mxu0 0
        %6779 = vmatpush1.bf16.msra.mxu0 0
        %6780 = vmatprep.subr.bf16.mxu0 0
        %6781 = vmatpush1.bf16.msra.mxu0 0
        %6782 = vmatprep.subr.bf16.mxu0 0
        %6783 = vmatpush1.bf16.msra.mxu0 0
        %6784 = vmatprep.subr.bf16.mxu0 0
        %6785 = vmatpush1.bf16.msra.mxu0 0
        %6786 = vmatprep.subr.bf16.mxu0 0
        %6787 = vmatpush1.bf16.msra.mxu0 0
        %6788 = vmatprep.subr.bf16.mxu0 0
        %6789 = vmatpush1.bf16.msra.mxu0 0
        %6790 = vmatprep.subr.bf16.mxu0 0
        %6791 = vmatpush1.bf16.msra.mxu0 0
        %6792 = vmatprep.subr.bf16.mxu0 0
        %6793 = vmatpush1.bf16.msra.mxu0 0
        %6794 = vmatprep.mubr.bf16.mxu0 0
        %6795 = vmatmul.mubr.bf16.gmra.mrb[0].mxu0 %v6757
        %v6796 = vpop.f32.mrb[0].mxu0
        %v6797 = vadd.f32 0.0, %v6796
        %v6798 = vpop.f32.mrb[0].mxu0
        %v6799 = vpop.f32.mrb[0].mxu0
        %v6800 = vadd.f32 0.0, %v6799
        %v6801 = vpop.f32.mrb[0].mxu0
        %6802 = vdwg.mxu0
        %v6804 = vsel %vm2295, %v6648, 0
        %v6807 = vsel %vm3228, %v6657, 0
        %6809 = vmatprep.subr.bf16.mxu0 0
        %6810 = vmatpush1.bf16.msra.mxu0 %v6807
        %6811 = vmatprep.subr.bf16.mxu0 0
        %6812 = vmatpush1.bf16.msra.mxu0 0
        %6813 = vmatprep.subr.bf16.mxu0 0
        %6814 = vmatpush1.bf16.msra.mxu0 0
        %6815 = vmatprep.subr.bf16.mxu0 0
        %6816 = vmatpush1.bf16.msra.mxu0 0
        %6817 = vmatprep.subr.bf16.mxu0 0
        %6818 = vmatpush1.bf16.msra.mxu0 0
        %6819 = vmatprep.subr.bf16.mxu0 0
        %6820 = vmatpush1.bf16.msra.mxu0 0
        %6821 = vmatprep.subr.bf16.mxu0 0
        %6822 = vmatpush1.bf16.msra.mxu0 0
        %6823 = vmatprep.subr.bf16.mxu0 0
        %6824 = vmatpush1.bf16.msra.mxu0 0
        %6825 = vmatprep.subr.bf16.mxu0 0
        %6826 = vmatpush1.bf16.msra.mxu0 0
        %6827 = vmatprep.subr.bf16.mxu0 0
        %6828 = vmatpush1.bf16.msra.mxu0 0
        %6829 = vmatprep.subr.bf16.mxu0 0
        %6830 = vmatpush1.bf16.msra.mxu0 0
        %6831 = vmatprep.subr.bf16.mxu0 0
        %6832 = vmatpush1.bf16.msra.mxu0 0
        %6833 = vmatprep.subr.bf16.mxu0 0
        %6834 = vmatpush1.bf16.msra.mxu0 0
        %6835 = vmatprep.subr.bf16.mxu0 0
        %6836 = vmatpush1.bf16.msra.mxu0 0
        %6837 = vmatprep.subr.bf16.mxu0 0
        %6838 = vmatpush1.bf16.msra.mxu0 0
        %6839 = vmatprep.subr.bf16.mxu0 0
        %6840 = vmatpush1.bf16.msra.mxu0 0
        %6841 = vmatprep.mubr.bf16.mxu0 0
        %6842 = vmatmul.mubr.bf16.gmra.mrb[0].mxu0 %v6804
        %v6843 = vpop.f32.mrb[0].mxu0
        %v6844 = vadd.f32 0.0, %v6843
        %v6845 = vpop.f32.mrb[0].mxu0
        %v6846 = vpop.f32.mrb[0].mxu0
        %v6847 = vadd.f32 0.0, %v6846
        %v6848 = vpop.f32.mrb[0].mxu0
        %6849 = vdwg.mxu0
        %v6851 = vsel %vm2295, %v6649, 0
        %v6854 = vsel %vm3228, %v6658, 0
        %6856 = vmatprep.subr.bf16.mxu0 0
        %6857 = vmatpush1.bf16.msra.mxu0 %v6854
        %6858 = vmatprep.subr.bf16.mxu0 0
        %6859 = vmatpush1.bf16.msra.mxu0 0
        %6860 = vmatprep.subr.bf16.mxu0 0
        %6861 = vmatpush1.bf16.msra.mxu0 0
        %6862 = vmatprep.subr.bf16.mxu0 0
        %6863 = vmatpush1.bf16.msra.mxu0 0
        %6864 = vmatprep.subr.bf16.mxu0 0
        %6865 = vmatpush1.bf16.msra.mxu0 0
        %6866 = vmatprep.subr.bf16.mxu0 0
        %6867 = vmatpush1.bf16.msra.mxu0 0
        %6868 = vmatprep.subr.bf16.mxu0 0
        %6869 = vmatpush1.bf16.msra.mxu0 0
        %6870 = vmatprep.subr.bf16.mxu0 0
        %6871 = vmatpush1.bf16.msra.mxu0 0
        %6872 = vmatprep.subr.bf16.mxu0 0
        %6873 = vmatpush1.bf16.msra.mxu0 0
        %6874 = vmatprep.subr.bf16.mxu0 0
        %6875 = vmatpush1.bf16.msra.mxu0 0
        %6876 = vmatprep.subr.bf16.mxu0 0
        %6877 = vmatpush1.bf16.msra.mxu0 0
        %6878 = vmatprep.subr.bf16.mxu0 0
        %6879 = vmatpush1.bf16.msra.mxu0 0
        %6880 = vmatprep.subr.bf16.mxu0 0
        %6881 = vmatpush1.bf16.msra.mxu0 0
        %6882 = vmatprep.subr.bf16.mxu0 0
        %6883 = vmatpush1.bf16.msra.mxu0 0
        %6884 = vmatprep.subr.bf16.mxu0 0
        %6885 = vmatpush1.bf16.msra.mxu0 0
        %6886 = vmatprep.subr.bf16.mxu0 0
        %6887 = vmatpush1.bf16.msra.mxu0 0
        %6888 = vmatprep.mubr.bf16.mxu0 0
        %6889 = vmatmul.mubr.bf16.gmra.mrb[0].mxu0 %v6851
        %v6890 = vpop.f32.mrb[0].mxu0
        %v6891 = vadd.f32 0.0, %v6890
        %v6892 = vpop.f32.mrb[0].mxu0
        %v6893 = vpop.f32.mrb[0].mxu0
        %v6894 = vadd.f32 0.0, %v6893
        %v6895 = vpop.f32.mrb[0].mxu0
        %6896 = vdwg.mxu0
        %v6898 = vsel %vm2295, %v6650, 0
        %v6901 = vsel %vm3228, %v6659, 0
        %6903 = vmatprep.subr.bf16.mxu0 0
        %6904 = vmatpush1.bf16.msra.mxu0 %v6901
        %6905 = vmatprep.subr.bf16.mxu0 0
        %6906 = vmatpush1.bf16.msra.mxu0 0
        %6907 = vmatprep.subr.bf16.mxu0 0
        %6908 = vmatpush1.bf16.msra.mxu0 0
        %6909 = vmatprep.subr.bf16.mxu0 0
        %6910 = vmatpush1.bf16.msra.mxu0 0
        %6911 = vmatprep.subr.bf16.mxu0 0
        %6912 = vmatpush1.bf16.msra.mxu0 0
        %6913 = vmatprep.subr.bf16.mxu0 0
        %6914 = vmatpush1.bf16.msra.mxu0 0
        %6915 = vmatprep.subr.bf16.mxu0 0
        %6916 = vmatpush1.bf16.msra.mxu0 0
        %6917 = vmatprep.subr.bf16.mxu0 0
        %6918 = vmatpush1.bf16.msra.mxu0 0
        %6919 = vmatprep.subr.bf16.mxu0 0
        %6920 = vmatpush1.bf16.msra.mxu0 0
        %6921 = vmatprep.subr.bf16.mxu0 0
        %6922 = vmatpush1.bf16.msra.mxu0 0
        %6923 = vmatprep.subr.bf16.mxu0 0
        %6924 = vmatpush1.bf16.msra.mxu0 0
        %6925 = vmatprep.subr.bf16.mxu0 0
        %6926 = vmatpush1.bf16.msra.mxu0 0
        %6927 = vmatprep.subr.bf16.mxu0 0
        %6928 = vmatpush1.bf16.msra.mxu0 0
        %6929 = vmatprep.subr.bf16.mxu0 0
        %6930 = vmatpush1.bf16.msra.mxu0 0
        %6931 = vmatprep.subr.bf16.mxu0 0
        %6932 = vmatpush1.bf16.msra.mxu0 0
        %6933 = vmatprep.subr.bf16.mxu0 0
        %6934 = vmatpush1.bf16.msra.mxu0 0
        %6935 = vmatprep.mubr.bf16.mxu0 0
        %6936 = vmatmul.mubr.bf16.gmra.mrb[0].mxu0 %v6898
        %v6937 = vpop.f32.mrb[0].mxu0
        %v6938 = vadd.f32 0.0, %v6937
        %v6939 = vpop.f32.mrb[0].mxu0
        %v6940 = vpop.f32.mrb[0].mxu0
        %v6941 = vadd.f32 0.0, %v6940
        %v6942 = vpop.f32.mrb[0].mxu0
        %6943 = vdwg.mxu0
        %v6945 = vsel %vm2295, %v6651, 0
        %v6948 = vsel %vm3228, %v6660, 0
        %6950 = vmatprep.subr.bf16.mxu0 0
        %6951 = vmatpush1.bf16.msra.mxu0 %v6948
        %6952 = vmatprep.subr.bf16.mxu0 0
        %6953 = vmatpush1.bf16.msra.mxu0 0
        %6954 = vmatprep.subr.bf16.mxu0 0
        %6955 = vmatpush1.bf16.msra.mxu0 0
        %6956 = vmatprep.subr.bf16.mxu0 0
        %6957 = vmatpush1.bf16.msra.mxu0 0
        %6958 = vmatprep.subr.bf16.mxu0 0
        %6959 = vmatpush1.bf16.msra.mxu0 0
        %6960 = vmatprep.subr.bf16.mxu0 0
        %6961 = vmatpush1.bf16.msra.mxu0 0
        %6962 = vmatprep.subr.bf16.mxu0 0
        %6963 = vmatpush1.bf16.msra.mxu0 0
        %6964 = vmatprep.subr.bf16.mxu0 0
        %6965 = vmatpush1.bf16.msra.mxu0 0
        %6966 = vmatprep.subr.bf16.mxu0 0
        %6967 = vmatpush1.bf16.msra.mxu0 0
        %6968 = vmatprep.subr.bf16.mxu0 0
        %6969 = vmatpush1.bf16.msra.mxu0 0
        %6970 = vmatprep.subr.bf16.mxu0 0
        %6971 = vmatpush1.bf16.msra.mxu0 0
        %6972 = vmatprep.subr.bf16.mxu0 0
        %6973 = vmatpush1.bf16.msra.mxu0 0
        %6974 = vmatprep.subr.bf16.mxu0 0
        %6975 = vmatpush1.bf16.msra.mxu0 0
        %6976 = vmatprep.subr.bf16.mxu0 0
        %6977 = vmatpush1.bf16.msra.mxu0 0
        %6978 = vmatprep.subr.bf16.mxu0 0
        %6979 = vmatpush1.bf16.msra.mxu0 0
        %6980 = vmatprep.subr.bf16.mxu0 0
        %6981 = vmatpush1.bf16.msra.mxu0 0
        %6982 = vmatprep.mubr.bf16.mxu0 0
        %6983 = vmatmul.mubr.bf16.gmra.mrb[0].mxu0 %v6945
        %v6984 = vpop.f32.mrb[0].mxu0
        %v6985 = vadd.f32 0.0, %v6984
        %v6986 = vpop.f32.mrb[0].mxu0
        %v6987 = vpop.f32.mrb[0].mxu0
        %v6988 = vadd.f32 0.0, %v6987
        %v6989 = vpop.f32.mrb[0].mxu0
        %6990 = vdwg.mxu0
        %v6992 = vsel %vm2295, %v6652, 0
        %v6995 = vsel %vm3228, %v6661, 0
        %6997 = vmatprep.subr.bf16.mxu0 0
        %6998 = vmatpush1.bf16.msra.mxu0 %v6995
        %6999 = vmatprep.subr.bf16.mxu0 0
        %7000 = vmatpush1.bf16.msra.mxu0 0
        %7001 = vmatprep.subr.bf16.mxu0 0
        %7002 = vmatpush1.bf16.msra.mxu0 0
        %7003 = vmatprep.subr.bf16.mxu0 0
        %7004 = vmatpush1.bf16.msra.mxu0 0
        %7005 = vmatprep.subr.bf16.mxu0 0
        %7006 = vmatpush1.bf16.msra.mxu0 0
        %7007 = vmatprep.subr.bf16.mxu0 0
        %7008 = vmatpush1.bf16.msra.mxu0 0
        %7009 = vmatprep.subr.bf16.mxu0 0
        %7010 = vmatpush1.bf16.msra.mxu0 0
        %7011 = vmatprep.subr.bf16.mxu0 0
        %7012 = vmatpush1.bf16.msra.mxu0 0
        %7013 = vmatprep.subr.bf16.mxu0 0
        %7014 = vmatpush1.bf16.msra.mxu0 0
        %7015 = vmatprep.subr.bf16.mxu0 0
        %7016 = vmatpush1.bf16.msra.mxu0 0
        %7017 = vmatprep.subr.bf16.mxu0 0
        %7018 = vmatpush1.bf16.msra.mxu0 0
        %7019 = vmatprep.subr.bf16.mxu0 0
        %7020 = vmatpush1.bf16.msra.mxu0 0
        %7021 = vmatprep.subr.bf16.mxu0 0
        %7022 = vmatpush1.bf16.msra.mxu0 0
        %7023 = vmatprep.subr.bf16.mxu0 0
        %7024 = vmatpush1.bf16.msra.mxu0 0
        %7025 = vmatprep.subr.bf16.mxu0 0
        %7026 = vmatpush1.bf16.msra.mxu0 0
        %7027 = vmatprep.subr.bf16.mxu0 0
        %7028 = vmatpush1.bf16.msra.mxu0 0
        %7029 = vmatprep.mubr.bf16.mxu0 0
        %7030 = vmatmul.mubr.bf16.gmra.mrb[0].mxu0 %v6992
        %v7031 = vpop.f32.mrb[0].mxu0
        %v7032 = vadd.f32 0.0, %v7031
        %v7033 = vpop.f32.mrb[0].mxu0
        %v7034 = vpop.f32.mrb[0].mxu0
        %v7035 = vadd.f32 0.0, %v7034
        %v7036 = vpop.f32.mrb[0].mxu0
        %7037 = vdwg.mxu0
        %v7038 = vsel %vm471, %v6703, 0.0
        %v7039 = vsel %vm471, %v6750, 0.0
        %v7040 = vadd.f32 %v7038, %v7039
        %v7041 = vsel %vm471, %v6797, 0.0
        %v7042 = vadd.f32 %v7040, %v7041
        %v7043 = vsel %vm471, %v6844, 0.0
        %v7044 = vadd.f32 %v7042, %v7043
        %v7045 = vsel %vm471, %v6891, 0.0
        %v7046 = vadd.f32 %v7044, %v7045
        %v7047 = vsel %vm471, %v6938, 0.0
        %v7048 = vadd.f32 %v7046, %v7047
        %v7049 = vsel %vm471, %v6985, 0.0
        %v7050 = vadd.f32 %v7048, %v7049
        %v7051 = vsel %vm471, %v7032, 0.0
        %v7052 = vadd.f32 %v7050, %v7051
        %v7053 = vsel %vm471, %v6706, 0.0
        %v7054 = vsel %vm471, %v6753, 0.0
        %v7055 = vadd.f32 %v7053, %v7054
        %v7056 = vsel %vm471, %v6800, 0.0
        %v7057 = vadd.f32 %v7055, %v7056
        %v7058 = vsel %vm471, %v6847, 0.0
        %v7059 = vadd.f32 %v7057, %v7058
        %v7060 = vsel %vm471, %v6894, 0.0
        %v7061 = vadd.f32 %v7059, %v7060
        %v7062 = vsel %vm471, %v6941, 0.0
        %v7063 = vadd.f32 %v7061, %v7062
        %v7064 = vsel %vm471, %v6988, 0.0
        %v7065 = vadd.f32 %v7063, %v7064
        %v7066 = vsel %vm471, %v7035, 0.0
        %v7067 = vadd.f32 %v7065, %v7066
        %v7068 = vadd.f32 %v3902, %v7052
        %v7069 = vadd.f32 %v3903, %v7067
        %s7070 = scalar_lea.vmem %s5, 1
        %v7071 = vld [vmem:[%s7070] sm:$0x1]
        %v7073 = vlaneseq
        %v7074 = vshrl.u32 %v7073, 7
        %v7075 = vsub.s32 0, %v7074
        %v7076 = vrot.slane %v7071, %v7075
        %v7078 = vadd.f32 %v7068, %v7076
        %v7079 = vadd.f32 %v7069, %v7076
        %s7080 = scalar_lea.vmem %s12, 1
        %v7081 = vld [vmem:[%s7080] sm:$0x1]
        %s7082 = scalar_lea.vmem %s13, 1
        %v7083 = vld [vmem:[%s7082] sm:$0x1]
        %v7084 = vsel %vm471, %v7078, 0.0
        %7085 = vadd.xlane.f32.xlu0 %v7084
        %v7086 = vpop.xlane.xlu0 %7085
        %v7087 = vsel %vm471, %v7079, 0.0
        %7088 = vadd.xlane.f32.xlu0 %v7087
        %v7089 = vpop.xlane.xlu0 %7088
        %v7090 = vmul.f32 %v7086, %v478
        %v7091 = vmul.f32 %v7089, %v478
        %v7092 = vsub.f32 %v7078, %v7090
        %v7093 = vsub.f32 %v7079, %v7091
        %v7094 = vmul.f32 %v7092, %v7092
        %v7095 = vmul.f32 %v7093, %v7093
        %v7096 = vsel %vm471, %v7094, 0.0
        %7097 = vadd.xlane.f32.xlu0 %v7096
        %v7098 = vpop.xlane.xlu0 %7097
        %v7099 = vsel %vm471, %v7095, 0.0
        %7100 = vadd.xlane.f32.xlu0 %v7099
        %v7101 = vpop.xlane.xlu0 %7100
        %v7102 = vmul.f32 %v7098, %v478
        %v7103 = vmul.f32 %v7101, %v478
        %v7104 = vadd.f32 %v7102, 1e-05
        %v7105 = vadd.f32 %v7103, 1e-05
        %v7106 = vrsqrt.pop %v7104
        %v7107 = vrsqrt.pop %v7105
        %v7108 = vmul.f32 %v7092, %v7106
        %v7109 = vmul.f32 %v7093, %v7107
        %v7111 = vlaneseq
        %v7112 = vshrl.u32 %v7111, 7
        %v7113 = vsub.s32 0, %v7112
        %v7114 = vrot.slane %v7081, %v7113
        %v7116 = vmul.f32 %v7108, %v7114
        %v7117 = vmul.f32 %v7109, %v7114
        %v7119 = vlaneseq
        %v7120 = vshrl.u32 %v7119, 7
        %v7121 = vsub.s32 0, %v7120
        %v7122 = vrot.slane %v7083, %v7121
        %v7124 = vadd.f32 %v7116, %v7122
        %v7125 = vadd.f32 %v7117, %v7122
        %v7126 = vpack.c.bf16 %v7125, %v7124
        %s7127 = scalar_lea.vmem %s8, 32
        %v7128 = vld [vmem:[%s7127] sm:$0xf]
        %v7129 = vld [vmem:[%s7127 + $0x4] sm:$0xf]
        %v7130 = vld [vmem:[%s7127 + $0x8] sm:$0xf]
        %v7131 = vld [vmem:[%s7127 + $0xc] sm:$0xf]
        %v7132 = vld [vmem:[%s7127 + $0x10] sm:$0xf]
        %v7133 = vld [vmem:[%s7127 + $0x14] sm:$0xf]
        %v7134 = vld [vmem:[%s7127 + $0x18] sm:$0xf]
        %v7135 = vld [vmem:[%s7127 + $0x1c] sm:$0xf]
        %s7136 = scalar_lea.vmem %s9, 1
        %v7137 = vld [vmem:[%s7136] sm:$0x1]
        %v7139 = vlaneseq
        %v7140 = vshrl.u32 %v7139, 7
        %v7141 = vsub.s32 0, %v7140
        %v7142 = vrot.slane %v7137, %v7141
        %v7152 = vunpack.c.l.b16 %v7128
        %v7153 = vunpack.c.l.b16 %v7129
        %v7154 = vunpack.c.l.b16 %v7130
        %v7155 = vunpack.c.l.b16 %v7131
        %v7156 = vunpack.c.l.b16 %v7132
        %v7157 = vunpack.c.l.b16 %v7133
        %v7158 = vunpack.c.l.b16 %v7134
        %v7159 = vunpack.c.l.b16 %v7135
        %v7160 = vpack.c.b16 %v7153, %v7152
        %v7161 = vpack.c.b16 %v7155, %v7154
        %v7162 = vpack.c.b16 %v7157, %v7156
        %v7163 = vpack.c.b16 %v7159, %v7158
        %v7169 = vsel %vm471, %v7126, 0
        %7171 = vmatprep.subr.bf16.mxu0 0
        %7172 = vmatpush1.bf16.msra.mxu0 %v7160
        %7173 = vmatprep.subr.bf16.mxu0 0
        %7174 = vmatpush1.bf16.msra.mxu0 %v7161
        %7175 = vmatprep.subr.bf16.mxu0 0
        %7176 = vmatpush1.bf16.msra.mxu0 %v7162
        %7177 = vmatprep.subr.bf16.mxu0 0
        %7178 = vmatpush1.bf16.msra.mxu0 %v7163
        %7179 = vmatprep.subr.bf16.mxu0 0
        %7180 = vmatpush1.bf16.msra.mxu0 0
        %7181 = vmatprep.subr.bf16.mxu0 0
        %7182 = vmatpush1.bf16.msra.mxu0 0
        %7183 = vmatprep.subr.bf16.mxu0 0
        %7184 = vmatpush1.bf16.msra.mxu0 0
        %7185 = vmatprep.subr.bf16.mxu0 0
        %7186 = vmatpush1.bf16.msra.mxu0 0
        %7187 = vmatprep.subr.bf16.mxu0 0
        %7188 = vmatpush1.bf16.msra.mxu0 0
        %7189 = vmatprep.subr.bf16.mxu0 0
        %7190 = vmatpush1.bf16.msra.mxu0 0
        %7191 = vmatprep.subr.bf16.mxu0 0
        %7192 = vmatpush1.bf16.msra.mxu0 0
        %7193 = vmatprep.subr.bf16.mxu0 0
        %7194 = vmatpush1.bf16.msra.mxu0 0
        %7195 = vmatprep.subr.bf16.mxu0 0
        %7196 = vmatpush1.bf16.msra.mxu0 0
        %7197 = vmatprep.subr.bf16.mxu0 0
        %7198 = vmatpush1.bf16.msra.mxu0 0
        %7199 = vmatprep.subr.bf16.mxu0 0
        %7200 = vmatpush1.bf16.msra.mxu0 0
        %7201 = vmatprep.subr.bf16.mxu0 0
        %7202 = vmatpush1.bf16.msra.mxu0 0
        %7203 = vmatprep.mubr.bf16.mxu0 0
        %7204 = vmatmul.mubr.bf16.gmra.mrb[0].mxu0 %v7169
        %v7205 = vpop.f32.mrb[0].mxu0
        %v7206 = vadd.f32 %v7142, %v7205
        %v7207 = vpop.f32.mrb[0].mxu0
        %v7208 = vpop.f32.mrb[0].mxu0
        %v7209 = vadd.f32 %v7142, %v7208
        %v7210 = vpop.f32.mrb[0].mxu0
        %7211 = vdwg.mxu0
        %v7212 = vmul.f32 %v7206, 0.5
        %v7213 = vmul.f32 %v7209, 0.5
        %v7214 = vmul.f32 %v7206, 0.044715
        %v7215 = vmul.f32 %v7209, 0.044715
        %v7216 = vmul.f32 %v7214, %v7206
        %v7217 = vmul.f32 %v7215, %v7209
        %v7218 = vmul.f32 %v7216, %v7206
        %v7219 = vmul.f32 %v7217, %v7209
        %v7220 = vadd.f32 %v7206, %v7218
        %v7221 = vadd.f32 %v7209, %v7219
        %v7222 = vmul.f32 %v7220, 0.7978846
        %v7223 = vmul.f32 %v7221, 0.7978846
        %v7224 = vtanh.pop %v7222
        %v7225 = vtanh.pop %v7223
        %v7226 = vadd.f32 %v7224, 1.0
        %v7227 = vadd.f32 %v7225, 1.0
        %v7228 = vmul.f32 %v7212, %v7226
        %v7229 = vmul.f32 %v7213, %v7227
        %v7230 = vpack.c.bf16 %v7229, %v7228
        %s7231 = scalar_lea.vmem %s10, 64
        %v7232 = vld [vmem:[%s7231] sm:$0xf]
        %v7233 = vld [vmem:[%s7231 + $0x4] sm:$0xf]
        %v7234 = vld [vmem:[%s7231 + $0x8] sm:$0xf]
        %v7235 = vld [vmem:[%s7231 + $0xc] sm:$0xf]
        %v7236 = vld [vmem:[%s7231 + $0x10] sm:$0xf]
        %v7237 = vld [vmem:[%s7231 + $0x14] sm:$0xf]
        %v7238 = vld [vmem:[%s7231 + $0x18] sm:$0xf]
        %v7239 = vld [vmem:[%s7231 + $0x1c] sm:$0xf]
        %v7240 = vld [vmem:[%s7231 + $0x20] sm:$0xf]
        %v7241 = vld [vmem:[%s7231 + $0x24] sm:$0xf]
        %v7242 = vld [vmem:[%s7231 + $0x28] sm:$0xf]
        %v7243 = vld [vmem:[%s7231 + $0x2c] sm:$0xf]
        %v7244 = vld [vmem:[%s7231 + $0x30] sm:$0xf]
        %v7245 = vld [vmem:[%s7231 + $0x34] sm:$0xf]
        %v7246 = vld [vmem:[%s7231 + $0x38] sm:$0xf]
        %v7247 = vld [vmem:[%s7231 + $0x3c] sm:$0xf]
        %s7248 = scalar_lea.vmem %s11, 1
        %v7249 = vld [vmem:[%s7248] sm:$0x1]
        %v7251 = vlaneseq
        %v7252 = vshrl.u32 %v7251, 7
        %v7253 = vsub.s32 0, %v7252
        %v7254 = vrot.slane %v7249, %v7253
        %v7272 = vunpack.c.l.b16 %v7232
        %v7273 = vunpack.c.l.b16 %v7233
        %v7274 = vunpack.c.l.b16 %v7234
        %v7275 = vunpack.c.l.b16 %v7235
        %v7276 = vunpack.c.l.b16 %v7236
        %v7277 = vunpack.c.l.b16 %v7237
        %v7278 = vunpack.c.l.b16 %v7238
        %v7279 = vunpack.c.l.b16 %v7239
        %v7280 = vunpack.c.l.b16 %v7240
        %v7281 = vunpack.c.l.b16 %v7241
        %v7282 = vunpack.c.l.b16 %v7242
        %v7283 = vunpack.c.l.b16 %v7243
        %v7284 = vunpack.c.l.b16 %v7244
        %v7285 = vunpack.c.l.b16 %v7245
        %v7286 = vunpack.c.l.b16 %v7246
        %v7287 = vunpack.c.l.b16 %v7247
        %v7288 = vpack.c.b16 %v7273, %v7272
        %v7289 = vpack.c.b16 %v7275, %v7274
        %v7290 = vpack.c.b16 %v7277, %v7276
        %v7291 = vpack.c.b16 %v7279, %v7278
        %v7292 = vpack.c.b16 %v7281, %v7280
        %v7293 = vpack.c.b16 %v7283, %v7282
        %v7294 = vpack.c.b16 %v7285, %v7284
        %v7295 = vpack.c.b16 %v7287, %v7286
        %7304 = vmatprep.subr.bf16.mxu0 0
        %7305 = vmatpush1.bf16.msra.mxu0 %v7288
        %7306 = vmatprep.subr.bf16.mxu0 0
        %7307 = vmatpush1.bf16.msra.mxu0 %v7289
        %7308 = vmatprep.subr.bf16.mxu0 0
        %7309 = vmatpush1.bf16.msra.mxu0 %v7290
        %7310 = vmatprep.subr.bf16.mxu0 0
        %7311 = vmatpush1.bf16.msra.mxu0 %v7291
        %7312 = vmatprep.subr.bf16.mxu0 0
        %7313 = vmatpush1.bf16.msra.mxu0 %v7292
        %7314 = vmatprep.subr.bf16.mxu0 0
        %7315 = vmatpush1.bf16.msra.mxu0 %v7293
        %7316 = vmatprep.subr.bf16.mxu0 0
        %7317 = vmatpush1.bf16.msra.mxu0 %v7294
        %7318 = vmatprep.subr.bf16.mxu0 0
        %7319 = vmatpush1.bf16.msra.mxu0 %v7295
        %7320 = vmatprep.subr.bf16.mxu0 0
        %7321 = vmatpush1.bf16.msra.mxu0 0
        %7322 = vmatprep.subr.bf16.mxu0 0
        %7323 = vmatpush1.bf16.msra.mxu0 0
        %7324 = vmatprep.subr.bf16.mxu0 0
        %7325 = vmatpush1.bf16.msra.mxu0 0
        %7326 = vmatprep.subr.bf16.mxu0 0
        %7327 = vmatpush1.bf16.msra.mxu0 0
        %7328 = vmatprep.subr.bf16.mxu0 0
        %7329 = vmatpush1.bf16.msra.mxu0 0
        %7330 = vmatprep.subr.bf16.mxu0 0
        %7331 = vmatpush1.bf16.msra.mxu0 0
        %7332 = vmatprep.subr.bf16.mxu0 0
        %7333 = vmatpush1.bf16.msra.mxu0 0
        %7334 = vmatprep.subr.bf16.mxu0 0
        %7335 = vmatpush1.bf16.msra.mxu0 0
        %7336 = vmatprep.mubr.bf16.mxu0 0
        %7337 = vmatmul.mubr.bf16.gmra.mrb[0].mxu0 %v7230
        %v7338 = vpop.f32.mrb[0].mxu0
        %v7339 = vadd.f32 %v7254, %v7338
        %v7340 = vpop.f32.mrb[0].mxu0
        %v7341 = vpop.f32.mrb[0].mxu0
        %v7342 = vadd.f32 %v7254, %v7341
        %v7343 = vpop.f32.mrb[0].mxu0
        %7344 = vdwg.mxu0
        %v7345 = vadd.f32 %v7078, %v7339
        %v7346 = vadd.f32 %v7079, %v7342
        %7347 = vst.msk [vmem:[%s460] sm:$0xff] %vm471, %v7345
        %7348 = vst.msk [vmem:[%s460 + $0x8] sm:$0xff] %vm471, %v7346
        %s7349 = sand.u32 %s335, 1
        %s7350 = scalar_lea.sflag [#allocation3], %s7349
        %s7351 = sand.u32 %s335, 1
        %s7352 = smul.addr %s7351, 16
        %s7353 = scalar_lea.vmem [#allocation2], %s7352
        // Predicated region
        $region77: #{tpu_custom_call.1} parent=75 // pred_check
          %p7354 = pneg %p345
        $region78: #{tpu_custom_call.1} parent=75 // pred_check_branch
          %7356 = sbr.rel (%p7354) target = $region80
        $region79: #{tpu_custom_call.1} parent=75 // pred_region
          %s7358 = ssub.s32 256, 256
          %7359 = vsyncadd %s7350, %s7358
          %s7360 = smul.addr %s28, 2
          %s7361 = smul.addr %s7360, 128
          %s7362 = scalar_lea.hbm %s14, %s7361
          %s7363 = sshll.u32 %s7353, 4
          %s7364 = int_to_ptr.vmem [resolvable:$true] %s7363
          %7369 = dma.vmem_to_hbm [thread:$0]  %s7364, 256, %s7362, %s7350, 128, 128, 8
        $region80: #{tpu_custom_call.1} parent=75 // pred_fallthru
          _
      $region76: #{tpu_custom_call.1} parent=5 // pred_fallthru
        _
      %p7370 = scmp.le.s32.totalorder 2, %s23
      // Predicated region
      $region81: #{tpu_custom_call.1} parent=5 // pred_check
        %p7371 = pneg %p7370
      $region82: #{tpu_custom_call.1} parent=5 // pred_check_branch
        %7373 = sbr.rel (%p7371) target = $region84
      $region83: #{tpu_custom_call.1} parent=5 // pred_region
        %s7374 = ssub.s32 %s23, 2
        // Predicated region
        $region85: #{tpu_custom_call.1} parent=83 // pred_check
          %p7375 = pneg %p351
        $region86: #{tpu_custom_call.1} parent=83 // pred_check_branch
          %7377 = sbr.rel (%p7375) target = $region88
        $region87: #{tpu_custom_call.1} parent=83 // pred_region
          %s7378 = sand.u32 %s336, 1
          %s7379 = scalar_lea.sflag [#allocation3], %s7378
          %s7380 = sand.u32 %s336, 1
          %s7381 = smul.addr %s7380, 16
          %s7382 = scalar_lea.vmem [#allocation2], %s7381
          %7383 = dma.done %s7379, 256
        $region88: #{tpu_custom_call.1} parent=83 // pred_fallthru
          _
      $region84: #{tpu_custom_call.1} parent=5 // pred_fallthru
        _
    $region6: #{tpu_custom_call.1} parent=1 // loop_footer
      %s27 = sadd.s32 1, %s23
    $region7: #{tpu_custom_call.1} parent=1 // loop_footer_branch
      %22 = sbr.rel target = $region3
    $region8: #{tpu_custom_call.1} parent=1 // loop_exit
      _
    %7384 = vsyncpa [#allocation3], 1
    %s7385 = scalar_lea.sflag [#allocation3], 1
    %7386 = vsyncpa %s7385, 1

</llo_original>
